<compile_context>
chip_gen: v7x
topology: tpu7x:2x2x1
jax: 0.10.0
libtpu: 0.0.40
codegen_flags: <defaults>
</compile_context>

<pallas_src>
import numpy as np
import jax
import jax.numpy as jnp
from jax.experimental import pallas as pl
from jax.experimental.pallas import tpu as pltpu

EPS = 1e-5
LANE = 128


def _round_up(x, m):
    return (x + m - 1) // m * m


def _pad_axis(a, axis, size):
    if a.shape[axis] == size:
        return a
    pad = [(0, 0)] * a.ndim
    pad[axis] = (0, size - a.shape[axis])
    return jnp.pad(a, pad)


def _pick_rows(m, target=2048):
    """Largest multiple-of-8 divisor of m that is <= target (row-tile size)."""
    r = min(m, target)
    r -= r % 8
    while r > 8 and (m % r):
        r -= 8
    return max(r, 8)


# ------------------------------ in-kernel helpers -----------------------------

def _partial_stats(y):
    """Per-channel (sum, sum_sq) of an f32 (rows, C) tile -> (2, C)."""
    return jnp.concatenate(
        [jnp.sum(y, axis=0, keepdims=True),
         jnp.sum(y * y, axis=0, keepdims=True)], axis=0)


def _affine_relu(y_ref, sc_ref, sh_ref):
    """Fused BatchNorm-apply (precomputed scale/shift) + ReLU, in f32."""
    y = y_ref[...].astype(jnp.float32)
    return jnp.maximum(y * sc_ref[...] + sh_ref[...], 0.0)


# ---------------------------------- kernels -----------------------------------

def _conv1_kernel(x_ref, w_ref, y_ref, s_ref):
    # 1x1x1 conv == channel matmul over a large row tile (input already bf16).
    y = jnp.dot(x_ref[...], w_ref[...], preferred_element_type=jnp.float32)
    y_ref[...] = y.astype(y_ref.dtype)
    s_ref[0, :, :] = _partial_stats(y)


def _make_conv2s_kernel(H, W, Cp):
    HW = H * W

    def kernel(y1_ref, sc_ref, sh_ref, w_ref, y2_ref, s_ref, pad_ref):
        # BN1-apply + ReLU fused here (scale/shift precomputed from stats).
        h1 = _affine_relu(y1_ref, sc_ref, sh_ref).astype(jnp.bfloat16)  # (HW,Cp)

        # Zero only the halo strips (cheap, megacore-safe under "parallel");
        # the interior is fully rewritten every step.
        zrow = jnp.zeros((1, W + 2, Cp), jnp.bfloat16)
        zcol = jnp.zeros((H, 1, Cp), jnp.bfloat16)
        pad_ref[0:1, :, :] = zrow
        pad_ref[H + 1:H + 2, :, :] = zrow
        pad_ref[1:H + 1, 0:1, :] = zcol
        pad_ref[1:H + 1, W + 1:W + 2, :] = zcol
        pad_ref[1:H + 1, 1:W + 1, :] = h1.reshape(H, W, Cp)

        # 9 accumulated MXU dots against 1/9 slices of the fused weight
        # (no (HW, 9*Cp) patches materialization, no concat).
        acc = None
        for kh in range(3):
            for kw in range(3):
                tap = kh * 3 + kw
                lhs = pad_ref[kh:kh + H, kw:kw + W, :].reshape(HW, Cp)
                rhs = w_ref[tap * Cp:(tap + 1) * Cp, :]
                d = jnp.dot(lhs, rhs, preferred_element_type=jnp.float32)
                acc = d if acc is None else acc + d

        y2_ref[...] = acc.astype(y2_ref.dtype)
        s_ref[0, :, :] = _partial_stats(acc)

    return kernel


def _make_conv2t_kernel(T, HW, MIDp):
    def kernel(y2_ref, sc_ref, sh_ref, w_ref, y3_ref, s_ref, acc_ref):
        # One batch's full (T*HW, MIDp) slab: y2 is read from HBM exactly once
        # and BN2s-apply + ReLU runs exactly once per element.
        h = _affine_relu(y2_ref, sc_ref, sh_ref).astype(jnp.bfloat16)

        # Temporal 3-tap conv as three shifted slab matmuls.  Zero temporal
        # padding is structural: boundary frames get no prev/next contribution.
        acc_ref[...] = jnp.dot(h, w_ref[MIDp:2 * MIDp, :],
                               preferred_element_type=jnp.float32)
        if T > 1:
            acc_ref[HW:, :] += jnp.dot(h[:-HW, :], w_ref[:MIDp, :],
                                       preferred_element_type=jnp.float32)
            acc_ref[:-HW, :] += jnp.dot(h[HW:, :], w_ref[2 * MIDp:, :],
                                        preferred_element_type=jnp.float32)

        y = acc_ref[...]
        y3_ref[...] = y.astype(y3_ref.dtype)
        s_ref[0, :, :] = _partial_stats(y)

    return kernel


def _conv3_kernel(y3_ref, sc_ref, sh_ref, w_ref, y4_ref, s_ref):
    h = _affine_relu(y3_ref, sc_ref, sh_ref).astype(jnp.bfloat16)
    y = jnp.dot(h, w_ref[...], preferred_element_type=jnp.float32)
    y4_ref[...] = y.astype(y4_ref.dtype)
    s_ref[0, :, :] = _partial_stats(y)


def _final_kernel(y4_ref, res_ref, sc_ref, sh_ref, o_ref):
    y = y4_ref[...].astype(jnp.float32) * sc_ref[...] + sh_ref[...]
    o_ref[...] = jnp.maximum(y + res_ref[...].astype(jnp.float32), 0.0)


# -------------------------- BN finalize (tiny, per-channel) -------------------

def _affine_from_stats(partial, gamma, beta, count):
    tot = jnp.sum(partial, axis=0)                       # (2, C)
    mean = tot[0] / count
    var = jnp.maximum(tot[1] / count - mean * mean, 0.0)
    scale = gamma * jax.lax.rsqrt(var + EPS)
    shift = beta - mean * scale
    return scale.reshape(1, -1), shift.reshape(1, -1)


# ---------------------------------- forward -----------------------------------

def bottleneck_forward(x_ncdhw, kp, *, c_out):
    """Bottleneck.forward with stride=1, downsample=None (residual = x)."""
    N, C0, T, H, W = x_ncdhw.shape
    HW, NT = H * W, N * T
    M = NT * HW
    C0p, Pp = kp["w1"].shape
    MIDp = kp["w2s"].shape[1]
    C4p = kp["w3"].shape[1]
    assert C0p == C4p and c_out == C0, "downsample=None needs in_planes == planes*4"
    assert HW % 8 == 0, "H*W must be a multiple of 8 for row tiling"

    f32, bf16 = jnp.float32, jnp.bfloat16
    par1 = pltpu.CompilerParams(dimension_semantics=("parallel",))
    par1v = pltpu.CompilerParams(dimension_semantics=("parallel",),
                                 vmem_limit_bytes=48 * 1024 * 1024)

    # Large row tiles for the pointwise (1x1x1) stages.
    R = _pick_rows(M, 2048)
    GR = M // R

    def row_spec(rows, c):
        return pl.BlockSpec((rows, c), lambda i: (i, 0))

    # NOTE: constants (weights / scale / shift) could be single-buffered via
    # pipeline_mode=pl.Buffered(1) to save VMEM on v7x; kept default for safety.
    def const_spec(shape):
        return pl.BlockSpec(shape, lambda i: (0,) * len(shape))

    def stats_spec(c):
        return pl.BlockSpec((1, 2, c), lambda i: (i, 0, 0))

    def outs(rows, nblk, c):
        return ([row_spec(rows, c), stats_spec(c)],
                [jax.ShapeDtypeStruct((nblk * rows, c), bf16),
                 jax.ShapeDtypeStruct((nblk, 2, c), f32)])

    # channels-last, flatten to (M, C), zero-pad channels to the lane width,
    # and keep the HBM copy in bf16 (conv1 input + residual read).
    x2d = jnp.transpose(x_ncdhw, (0, 2, 3, 4, 1)).reshape(M, C0)
    x2d = _pad_axis(x2d, 1, C0p).astype(bf16)

    # ---- conv1 (1x1x1) over big row tiles + partial BN1 stats ----------------
    o_specs, o_shapes = outs(R, GR, Pp)
    y1, s1 = pl.pallas_call(
        _conv1_kernel, grid=(GR,),
        in_specs=[row_spec(R, C0p), const_spec((C0p, Pp))],
        out_specs=o_specs, out_shape=o_shapes, compiler_params=par1,
    )(x2d, kp["w1"])
    sc1, sh1 = _affine_from_stats(s1, kp["g1"], kp["b1"], M)

    # ---- BN1-apply + ReLU + conv2_s (1x3x3, bf16 halo scratch) + BN2s stats --
    o_specs, o_shapes = outs(HW, NT, MIDp)
    y2, s2 = pl.pallas_call(
        _make_conv2s_kernel(H, W, Pp), grid=(NT,),
        in_specs=[row_spec(HW, Pp), const_spec((1, Pp)), const_spec((1, Pp)),
                  const_spec((9 * Pp, MIDp))],
        out_specs=o_specs, out_shape=o_shapes,
        scratch_shapes=[pltpu.VMEM((H + 2, W + 2, Pp), bf16)],
        compiler_params=par1v,
    )(y1, sc1, sh1, kp["w2s"])
    sc2s, sh2s = _affine_from_stats(s2, kp["g2s"], kp["b2s"], M)

    # ---- BN2s-apply + ReLU + conv2_t (3x1x1) — y2 read once per batch --------
    y3, s3 = pl.pallas_call(
        _make_conv2t_kernel(T, HW, MIDp), grid=(N,),
        in_specs=[pl.BlockSpec((T * HW, MIDp), lambda n: (n, 0)),
                  const_spec((1, MIDp)), const_spec((1, MIDp)),
                  const_spec((3 * MIDp, Pp))],
        out_specs=[pl.BlockSpec((T * HW, Pp), lambda n: (n, 0)),
                   pl.BlockSpec((1, 2, Pp), lambda n: (n, 0, 0))],
        out_shape=[jax.ShapeDtypeStruct((M, Pp), bf16),
                   jax.ShapeDtypeStruct((N, 2, Pp), f32)],
        scratch_shapes=[pltpu.VMEM((T * HW, Pp), f32)],
        compiler_params=par1v,
    )(y2, sc2s, sh2s, kp["w2t"])
    sc2t, sh2t = _affine_from_stats(s3, kp["g2t"], kp["b2t"], M)

    # ---- BN2t-apply + ReLU + conv3 (1x1x1) over big row tiles + BN3 stats ----
    o_specs, o_shapes = outs(R, GR, C4p)
    y4, s4 = pl.pallas_call(
        _conv3_kernel, grid=(GR,),
        in_specs=[row_spec(R, Pp), const_spec((1, Pp)), const_spec((1, Pp)),
                  const_spec((Pp, C4p))],
        out_specs=o_specs, out_shape=o_shapes, compiler_params=par1,
    )(y3, sc2t, sh2t, kp["w3"])
    sc3, sh3 = _affine_from_stats(s4, kp["g3"], kp["b3"], M)

    # ---- BN3-apply + residual add + ReLU over big row tiles ------------------
    out2d = pl.pallas_call(
        _final_kernel, grid=(GR,),
        in_specs=[row_spec(R, C4p), row_spec(R, C4p),
                  const_spec((1, C4p)), const_spec((1, C4p))],
        out_specs=row_spec(R, C4p),
        out_shape=jax.ShapeDtypeStruct((M, C4p), f32),
        compiler_params=par1,
    )(y4, x2d, sc3, sh3)

    out = out2d[:, :c_out].reshape(N, T, H, W, c_out)
    return jnp.transpose(out, (0, 4, 1, 2, 3))                     # NCDHW


# --------------------------- parameters (synthetic) ----------------------------

def init_params(key, in_planes, planes, expansion=4):
    """Deterministic synthetic parameters with the PyTorch module's shapes."""
    n_3d = planes * planes * 3 * 3 * 3
    n_2p1d = planes * 3 * 3 + 3 * planes
    mid = n_3d // n_2p1d
    out_planes = planes * expansion
    ks = list(jax.random.split(key, 12))

    def conv_w(k, shape):
        fan_in = int(np.prod(shape[1:]))
        return (jax.random.normal(k, shape, jnp.float32)
                / np.sqrt(fan_in)).astype(jnp.float32)

    def bn_g(k, c):
        return 1.0 + 0.1 * jax.random.normal(k, (c,), jnp.float32)

    def bn_b(k, c):
        return 0.1 * jax.random.normal(k, (c,), jnp.float32)

    pt = {
        "conv1":   conv_w(ks[0], (planes, in_planes, 1, 1, 1)),
        "conv2_s": conv_w(ks[1], (mid, planes, 1, 3, 3)),
        "conv2_t": conv_w(ks[2], (planes, mid, 3, 1, 1)),
        "conv3":   conv_w(ks[3], (out_planes, planes, 1, 1, 1)),
        "g1": bn_g(ks[4], planes),      "b1": bn_b(ks[5], planes),
        "g2s": bn_g(ks[6], mid),        "b2s": bn_b(ks[7], mid),
        "g2t": bn_g(ks[8], planes),     "b2t": bn_b(ks[9], planes),
        "g3": bn_g(ks[10], out_planes), "b3": bn_b(ks[11], out_planes),
    }
    return pt, mid


def to_kernel_params(pt):
    """PyTorch-layout weights (Cout, Cin, kt, kh, kw) -> padded kernel layout."""
    P = pt["conv1"].shape[0]
    C0 = pt["conv1"].shape[1]
    MID = pt["conv2_s"].shape[0]
    C4 = pt["conv3"].shape[0]
    C0p, Pp = _round_up(C0, LANE), _round_up(P, LANE)
    MIDp, C4p = _round_up(MID, LANE), _round_up(C4, LANE)

    kp = {}
    w1 = pt["conv1"].reshape(P, C0).T                                # (Cin, P)
    kp["w1"] = _pad_axis(_pad_axis(w1, 0, C0p), 1, Pp).astype(jnp.bfloat16)

    w2s = jnp.transpose(pt["conv2_s"][:, :, 0], (2, 3, 1, 0))        # (kh,kw,Cin,Cout)
    w2s = _pad_axis(_pad_axis(w2s, 2, Pp), 3, MIDp)
    kp["w2s"] = w2s.reshape(9 * Pp, MIDp).astype(jnp.bfloat16)

    w2t = jnp.transpose(pt["conv2_t"][:, :, :, 0, 0], (2, 1, 0))     # (kt,Cin,Cout)
    w2t = _pad_axis(_pad_axis(w2t, 1, MIDp), 2, Pp)
    kp["w2t"] = w2t.reshape(3 * MIDp, Pp).astype(jnp.bfloat16)

    w3 = pt["conv3"].reshape(C4, P).T                                # (P, C4)
    kp["w3"] = _pad_axis(_pad_axis(w3, 0, Pp), 1, C4p).astype(jnp.bfloat16)

    for name, cp in (("1", Pp), ("2s", MIDp), ("2t", Pp), ("3", C4p)):
        kp["g" + name] = _pad_axis(pt["g" + name].astype(jnp.float32), 0, cp)
        kp["b" + name] = _pad_axis(pt["b" + name].astype(jnp.float32), 0, cp)
    return kp


# ----------------------------- pure-JAX reference ------------------------------

def reference_forward(x, pt):
    def conv(v, w, stride, pad):
        return jax.lax.conv_general_dilated(
            v, w, window_strides=stride,
            padding=[(p, p) for p in pad],
            dimension_numbers=("NCDHW", "OIDHW", "NCDHW"),
            precision=jax.lax.Precision.HIGHEST)

    def bn(v, g, b):
        mean = jnp.mean(v, axis=(0, 2, 3, 4), keepdims=True)
        var = jnp.mean((v - mean) ** 2, axis=(0, 2, 3, 4), keepdims=True)
        return ((v - mean) * jax.lax.rsqrt(var + EPS)
                * g.reshape(1, -1, 1, 1, 1) + b.reshape(1, -1, 1, 1, 1))

    relu = lambda v: jnp.maximum(v, 0.0)
    out = relu(bn(conv(x, pt["conv1"], (1, 1, 1), (0, 0, 0)), pt["g1"], pt["b1"]))
    out = relu(bn(conv(out, pt["conv2_s"], (1, 1, 1), (0, 1, 1)), pt["g2s"], pt["b2s"]))
    out = relu(bn(conv(out, pt["conv2_t"], (1, 1, 1), (1, 0, 0)), pt["g2t"], pt["b2t"]))
    out = bn(conv(out, pt["conv3"], (1, 1, 1), (0, 0, 0)), pt["g3"], pt["b3"])
    return relu(out + x)


# ------------------------------------ main --------------------------------------

if __name__ == "__main__":
    key = jax.random.PRNGKey(0)
    planes = 4
    in_planes = planes * 4          # expansion=4, stride=1, downsample=None
    N, T, H, W = 2, 4, 8, 8

    k_x, k_p = jax.random.split(key)
    x = jax.random.normal(k_x, (N, in_planes, T, H, W), jnp.float32)

    pt_params, mid_planes = init_params(k_p, in_planes, planes)
    kparams = to_kernel_params(pt_params)

    fwd = jax.jit(bottleneck_forward, static_argnames=("c_out",))
    out = fwd(x, kparams, c_out=in_planes)
    out = jax.block_until_ready(out)
    assert out.shape == (N, in_planes, T, H, W)

    ref = reference_forward(x, pt_params)
    np.testing.assert_allclose(np.asarray(out), np.asarray(ref),
                               atol=5e-2, rtol=5e-2)
    print("KERNEL_OK")
</pallas_src>

<mosaic_0001>
module attributes {stable_mosaic.version = 11 : i64} {
  func.func @_conv1_kernel(%arg0: i32, %arg1: memref<512x128xbf16, #tpu.memory_space<vmem>>, %arg2: memref<128x128xbf16, #tpu.memory_space<vmem>>, %arg3: memref<512x128xbf16, #tpu.memory_space<vmem>>, %arg4: memref<1x2x128xf32, #tpu.memory_space<vmem>>) attributes {dimension_semantics = [#tpu.dimension_semantics<parallel>], iteration_bounds = array<i64: 1>, scalar_prefetch = 0 : i64, scratch_operands = 0 : i64, tpu.core_type = #tpu.core_type<tc>, window_params = [{transform_indices = @transform_0, window_bounds = array<i64: 512, 128>}, {pipeline_mode = #tpu.pipeline_mode<synchronous>, transform_indices = @transform_1, window_bounds = array<i64: 128, 128>}, {transform_indices = @transform_2, window_bounds = array<i64: 512, 128>}, {transform_indices = @transform_3, window_bounds = array<i64: 1, 2, 128>}]} {
    %c0 = arith.constant 0 : index
    %c0_0 = arith.constant 0 : index
    %0 = vector.load %arg1[%c0, %c0_0] : memref<512x128xbf16, #tpu.memory_space<vmem>>, vector<512x128xbf16>
    %c0_1 = arith.constant 0 : index
    %c0_2 = arith.constant 0 : index
    %1 = vector.load %arg2[%c0_1, %c0_2] : memref<128x128xbf16, #tpu.memory_space<vmem>>, vector<128x128xbf16>
    %cst = arith.constant dense<0.000000e+00> : vector<512x128xf32>
    %2 = tpu.matmul %0, %1, %cst {dimension_numbers = #tpu.dot_dimension_numbers<[1], [0], [0], [1], [0, 0, 1, 1], [], []>} : vector<512x128xbf16>, vector<128x128xbf16>, vector<512x128xf32> -> vector<512x128xf32>
    %3 = arith.truncf %2 : vector<512x128xf32> to vector<512x128xbf16>
    %c0_3 = arith.constant 0 : index
    %c0_4 = arith.constant 0 : index
    %4 = vector.load %arg3[%c0_3, %c0_4] : memref<512x128xbf16, #tpu.memory_space<vmem>>, vector<512x128xbf16>
    tpu.vector_store %arg3[%c0_3, %c0_4], %3 {strides = array<i32>} : memref<512x128xbf16, #tpu.memory_space<vmem>>, vector<512x128xbf16>,
    %cst_5 = arith.constant dense<0.000000e+00> : vector<128xf32>
    %5 = vector.multi_reduction <add>, %2, %cst_5 [0] : vector<512x128xf32> to vector<128xf32>
    %6 = vector.shape_cast %5 : vector<128xf32> to vector<1x128xf32>
    %7 = arith.mulf %2, %2 : vector<512x128xf32>
    %cst_6 = arith.constant dense<0.000000e+00> : vector<128xf32>
    %8 = vector.multi_reduction <add>, %7, %cst_6 [0] : vector<512x128xf32> to vector<128xf32>
    %9 = vector.shape_cast %8 : vector<128xf32> to vector<1x128xf32>
    %10 = tpu.concatenate %6, %9 in 0 : vector<1x128xf32>, vector<1x128xf32> -> vector<2x128xf32>
    %c0_7 = arith.constant 0 : index
    %c0_8 = arith.constant 0 : index
    %c0_9 = arith.constant 0 : index
    %11 = vector.load %arg4[%c0_7, %c0_8, %c0_9] : memref<1x2x128xf32, #tpu.memory_space<vmem>>, vector<1x2x128xf32>
    %12 = vector.shape_cast %11 : vector<1x2x128xf32> to vector<2x128xf32>
    %13 = vector.shape_cast %10 : vector<2x128xf32> to vector<1x2x128xf32>
    tpu.vector_store %arg4[%c0_7, %c0_8, %c0_9], %13 {strides = array<i32>} : memref<1x2x128xf32, #tpu.memory_space<vmem>>, vector<1x2x128xf32>,
    return
  }
  func.func @transform_0(%arg0: i32) -> (i32, i32) {
    %c0_i32 = arith.constant 0 : i32
    %c0_i32_0 = arith.constant 0 : i32
    return %arg0, %c0_i32 : i32, i32
  }
  func.func @transform_1(%arg0: i32) -> (i32, i32) {
    %c0_i32 = arith.constant 0 : i32
    %c0_i32_0 = arith.constant 0 : i32
    %c0_i32_1 = arith.constant 0 : i32
    return %c0_i32, %c0_i32_0 : i32, i32
  }
  func.func @transform_2(%arg0: i32) -> (i32, i32) {
    %c0_i32 = arith.constant 0 : i32
    %c0_i32_0 = arith.constant 0 : i32
    return %arg0, %c0_i32 : i32, i32
  }
  func.func @transform_3(%arg0: i32) -> (i32, i32, i32) {
    %c0_i32 = arith.constant 0 : i32
    %c0_i32_0 = arith.constant 0 : i32
    %c0_i32_1 = arith.constant 0 : i32
    return %arg0, %c0_i32, %c0_i32_0 : i32, i32, i32
  }
}

module attributes {stable_mosaic.version = 11 : i64} {
  func.func @kernel(%arg0: i32, %arg1: memref<64x128xbf16, #tpu.memory_space<vmem>>, %arg2: memref<1x128xf32, #tpu.memory_space<vmem>>, %arg3: memref<1x128xf32, #tpu.memory_space<vmem>>, %arg4: memref<1152x128xbf16, #tpu.memory_space<vmem>>, %arg5: memref<64x128xbf16, #tpu.memory_space<vmem>>, %arg6: memref<1x2x128xf32, #tpu.memory_space<vmem>>, %arg7: memref<10x10x128xbf16, #tpu.memory_space<vmem>>) attributes {dimension_semantics = [#tpu.dimension_semantics<parallel>], iteration_bounds = array<i64: 8>, scalar_prefetch = 0 : i64, scratch_operands = 1 : i64, tpu.core_type = #tpu.core_type<tc>, window_params = [{transform_indices = @transform_0, window_bounds = array<i64: 64, 128>}, {pipeline_mode = #tpu.pipeline_mode<synchronous>, transform_indices = @transform_1, window_bounds = array<i64: 1, 128>}, {pipeline_mode = #tpu.pipeline_mode<synchronous>, transform_indices = @transform_2, window_bounds = array<i64: 1, 128>}, {pipeline_mode = #tpu.pipeline_mode<synchronous>, transform_indices = @transform_3, window_bounds = array<i64: 1152, 128>}, {transform_indices = @transform_4, window_bounds = array<i64: 64, 128>}, {transform_indices = @transform_5, window_bounds = array<i64: 1, 2, 128>}]} {
    %c0 = arith.constant 0 : index
    %c0_0 = arith.constant 0 : index
    %0 = vector.load %arg1[%c0, %c0_0] : memref<64x128xbf16, #tpu.memory_space<vmem>>, vector<64x128xbf16>
    %1 = arith.extf %0 : vector<64x128xbf16> to vector<64x128xf32>
    %c0_1 = arith.constant 0 : index
    %c0_2 = arith.constant 0 : index
    %2 = vector.load %arg2[%c0_1, %c0_2] : memref<1x128xf32, #tpu.memory_space<vmem>>, vector<1x128xf32>
    %3 = vector.broadcast %2 : vector<1x128xf32> to vector<64x128xf32>
    %4 = arith.mulf %1, %3 : vector<64x128xf32>
    %c0_3 = arith.constant 0 : index
    %c0_4 = arith.constant 0 : index
    %5 = vector.load %arg3[%c0_3, %c0_4] : memref<1x128xf32, #tpu.memory_space<vmem>>, vector<1x128xf32>
    %6 = vector.broadcast %5 : vector<1x128xf32> to vector<64x128xf32>
    %7 = arith.addf %4, %6 : vector<64x128xf32>
    %cst = arith.constant 0.000000e+00 : f32
    %8 = vector.broadcast %cst : f32 to vector<64x128xf32>
    %9 = arith.maximumf %7, %8 : vector<64x128xf32>
    %10 = arith.truncf %9 : vector<64x128xf32> to vector<64x128xbf16>
    %cst_5 = arith.constant 0.000000e+00 : bf16
    %11 = vector.broadcast %cst_5 : bf16 to vector<1x10x128xbf16>
    %cst_6 = arith.constant 0.000000e+00 : bf16
    %12 = vector.broadcast %cst_6 : bf16 to vector<8x1x128xbf16>
    %c0_7 = arith.constant 0 : index
    %c0_8 = arith.constant 0 : index
    %c0_9 = arith.constant 0 : index
    %13 = vector.load %arg7[%c0_7, %c0_8, %c0_9] : memref<10x10x128xbf16, #tpu.memory_space<vmem>>, vector<1x10x128xbf16>
    tpu.vector_store %arg7[%c0_7, %c0_8, %c0_9], %11 {strides = array<i32>} : memref<10x10x128xbf16, #tpu.memory_space<vmem>>, vector<1x10x128xbf16>,
    %c9 = arith.constant 9 : index
    %c0_10 = arith.constant 0 : index
    %c0_11 = arith.constant 0 : index
    %14 = vector.load %arg7[%c9, %c0_10, %c0_11] : memref<10x10x128xbf16, #tpu.memory_space<vmem>>, vector<1x10x128xbf16>
    tpu.vector_store %arg7[%c9, %c0_10, %c0_11], %11 {strides = array<i32>} : memref<10x10x128xbf16, #tpu.memory_space<vmem>>, vector<1x10x128xbf16>,
    %c1 = arith.constant 1 : index
    %c0_12 = arith.constant 0 : index
    %c0_13 = arith.constant 0 : index
    %15 = vector.load %arg7[%c1, %c0_12, %c0_13] : memref<10x10x128xbf16, #tpu.memory_space<vmem>>, vector<8x1x128xbf16>
    tpu.vector_store %arg7[%c1, %c0_12, %c0_13], %12 {strides = array<i32>} : memref<10x10x128xbf16, #tpu.memory_space<vmem>>, vector<8x1x128xbf16>,
    %c1_14 = arith.constant 1 : index
    %c9_15 = arith.constant 9 : index
    %c0_16 = arith.constant 0 : index
    %16 = vector.load %arg7[%c1_14, %c9_15, %c0_16] : memref<10x10x128xbf16, #tpu.memory_space<vmem>>, vector<8x1x128xbf16>
    tpu.vector_store %arg7[%c1_14, %c9_15, %c0_16], %12 {strides = array<i32>} : memref<10x10x128xbf16, #tpu.memory_space<vmem>>, vector<8x1x128xbf16>,
    %17 = vector.shape_cast %10 : vector<64x128xbf16> to vector<8x8x128xbf16>
    %c1_17 = arith.constant 1 : index
    %c1_18 = arith.constant 1 : index
    %c0_19 = arith.constant 0 : index
    %18 = vector.load %arg7[%c1_17, %c1_18, %c0_19] : memref<10x10x128xbf16, #tpu.memory_space<vmem>>, vector<8x8x128xbf16>
    tpu.vector_store %arg7[%c1_17, %c1_18, %c0_19], %17 {strides = array<i32>} : memref<10x10x128xbf16, #tpu.memory_space<vmem>>, vector<8x8x128xbf16>,
    %c0_20 = arith.constant 0 : index
    %c0_21 = arith.constant 0 : index
    %c0_22 = arith.constant 0 : index
    %19 = vector.load %arg7[%c0_20, %c0_21, %c0_22] : memref<10x10x128xbf16, #tpu.memory_space<vmem>>, vector<8x8x128xbf16>
    %20 = vector.shape_cast %19 : vector<8x8x128xbf16> to vector<64x128xbf16>
    %c0_23 = arith.constant 0 : index
    %c0_24 = arith.constant 0 : index
    %21 = vector.load %arg4[%c0_23, %c0_24] : memref<1152x128xbf16, #tpu.memory_space<vmem>>, vector<128x128xbf16>
    %cst_25 = arith.constant dense<0.000000e+00> : vector<64x128xf32>
    %22 = tpu.matmul %20, %21, %cst_25 {dimension_numbers = #tpu.dot_dimension_numbers<[1], [0], [0], [1], [0, 0, 1, 1], [], []>} : vector<64x128xbf16>, vector<128x128xbf16>, vector<64x128xf32> -> vector<64x128xf32>
    %c0_26 = arith.constant 0 : index
    %c1_27 = arith.constant 1 : index
    %c0_28 = arith.constant 0 : index
    %23 = vector.load %arg7[%c0_26, %c1_27, %c0_28] : memref<10x10x128xbf16, #tpu.memory_space<vmem>>, vector<8x8x128xbf16>
    %24 = vector.shape_cast %23 : vector<8x8x128xbf16> to vector<64x128xbf16>
    %c128 = arith.constant 128 : index
    %c0_29 = arith.constant 0 : index
    %25 = vector.load %arg4[%c128, %c0_29] : memref<1152x128xbf16, #tpu.memory_space<vmem>>, vector<128x128xbf16>
    %cst_30 = arith.constant dense<0.000000e+00> : vector<64x128xf32>
    %26 = tpu.matmul %24, %25, %cst_30 {dimension_numbers = #tpu.dot_dimension_numbers<[1], [0], [0], [1], [0, 0, 1, 1], [], []>} : vector<64x128xbf16>, vector<128x128xbf16>, vector<64x128xf32> -> vector<64x128xf32>
    %27 = arith.addf %22, %26 : vector<64x128xf32>
    %c0_31 = arith.constant 0 : index
    %c2 = arith.constant 2 : index
    %c0_32 = arith.constant 0 : index
    %28 = vector.load %arg7[%c0_31, %c2, %c0_32] : memref<10x10x128xbf16, #tpu.memory_space<vmem>>, vector<8x8x128xbf16>
    %29 = vector.shape_cast %28 : vector<8x8x128xbf16> to vector<64x128xbf16>
    %c256 = arith.constant 256 : index
    %c0_33 = arith.constant 0 : index
    %30 = vector.load %arg4[%c256, %c0_33] : memref<1152x128xbf16, #tpu.memory_space<vmem>>, vector<128x128xbf16>
    %cst_34 = arith.constant dense<0.000000e+00> : vector<64x128xf32>
    %31 = tpu.matmul %29, %30, %cst_34 {dimension_numbers = #tpu.dot_dimension_numbers<[1], [0], [0], [1], [0, 0, 1, 1], [], []>} : vector<64x128xbf16>, vector<128x128xbf16>, vector<64x128xf32> -> vector<64x128xf32>
    %32 = arith.addf %27, %31 : vector<64x128xf32>
    %c1_35 = arith.constant 1 : index
    %c0_36 = arith.constant 0 : index
    %c0_37 = arith.constant 0 : index
    %33 = vector.load %arg7[%c1_35, %c0_36, %c0_37] : memref<10x10x128xbf16, #tpu.memory_space<vmem>>, vector<8x8x128xbf16>
    %34 = vector.shape_cast %33 : vector<8x8x128xbf16> to vector<64x128xbf16>
    %c384 = arith.constant 384 : index
    %c0_38 = arith.constant 0 : index
    %35 = vector.load %arg4[%c384, %c0_38] : memref<1152x128xbf16, #tpu.memory_space<vmem>>, vector<128x128xbf16>
    %cst_39 = arith.constant dense<0.000000e+00> : vector<64x128xf32>
    %36 = tpu.matmul %34, %35, %cst_39 {dimension_numbers = #tpu.dot_dimension_numbers<[1], [0], [0], [1], [0, 0, 1, 1], [], []>} : vector<64x128xbf16>, vector<128x128xbf16>, vector<64x128xf32> -> vector<64x128xf32>
    %37 = arith.addf %32, %36 : vector<64x128xf32>
    %c1_40 = arith.constant 1 : index
    %c1_41 = arith.constant 1 : index
    %c0_42 = arith.constant 0 : index
    %38 = vector.load %arg7[%c1_40, %c1_41, %c0_42] : memref<10x10x128xbf16, #tpu.memory_space<vmem>>, vector<8x8x128xbf16>
    %39 = vector.shape_cast %38 : vector<8x8x128xbf16> to vector<64x128xbf16>
    %c512 = arith.constant 512 : index
    %c0_43 = arith.constant 0 : index
    %40 = vector.load %arg4[%c512, %c0_43] : memref<1152x128xbf16, #tpu.memory_space<vmem>>, vector<128x128xbf16>
    %cst_44 = arith.constant dense<0.000000e+00> : vector<64x128xf32>
    %41 = tpu.matmul %39, %40, %cst_44 {dimension_numbers = #tpu.dot_dimension_numbers<[1], [0], [0], [1], [0, 0, 1, 1], [], []>} : vector<64x128xbf16>, vector<128x128xbf16>, vector<64x128xf32> -> vector<64x128xf32>
    %42 = arith.addf %37, %41 : vector<64x128xf32>
    %c1_45 = arith.constant 1 : index
    %c2_46 = arith.constant 2 : index
    %c0_47 = arith.constant 0 : index
    %43 = vector.load %arg7[%c1_45, %c2_46, %c0_47] : memref<10x10x128xbf16, #tpu.memory_space<vmem>>, vector<8x8x128xbf16>
    %44 = vector.shape_cast %43 : vector<8x8x128xbf16> to vector<64x128xbf16>
    %c640 = arith.constant 640 : index
    %c0_48 = arith.constant 0 : index
    %45 = vector.load %arg4[%c640, %c0_48] : memref<1152x128xbf16, #tpu.memory_space<vmem>>, vector<128x128xbf16>
    %cst_49 = arith.constant dense<0.000000e+00> : vector<64x128xf32>
    %46 = tpu.matmul %44, %45, %cst_49 {dimension_numbers = #tpu.dot_dimension_numbers<[1], [0], [0], [1], [0, 0, 1, 1], [], []>} : vector<64x128xbf16>, vector<128x128xbf16>, vector<64x128xf32> -> vector<64x128xf32>
    %47 = arith.addf %42, %46 : vector<64x128xf32>
    %c2_50 = arith.constant 2 : index
    %c0_51 = arith.constant 0 : index
    %c0_52 = arith.constant 0 : index
    %48 = vector.load %arg7[%c2_50, %c0_51, %c0_52] : memref<10x10x128xbf16, #tpu.memory_space<vmem>>, vector<8x8x128xbf16>
    %49 = vector.shape_cast %48 : vector<8x8x128xbf16> to vector<64x128xbf16>
    %c768 = arith.constant 768 : index
    %c0_53 = arith.constant 0 : index
    %50 = vector.load %arg4[%c768, %c0_53] : memref<1152x128xbf16, #tpu.memory_space<vmem>>, vector<128x128xbf16>
    %cst_54 = arith.constant dense<0.000000e+00> : vector<64x128xf32>
    %51 = tpu.matmul %49, %50, %cst_54 {dimension_numbers = #tpu.dot_dimension_numbers<[1], [0], [0], [1], [0, 0, 1, 1], [], []>} : vector<64x128xbf16>, vector<128x128xbf16>, vector<64x128xf32> -> vector<64x128xf32>
    %52 = arith.addf %47, %51 : vector<64x128xf32>
    %c2_55 = arith.constant 2 : index
    %c1_56 = arith.constant 1 : index
    %c0_57 = arith.constant 0 : index
    %53 = vector.load %arg7[%c2_55, %c1_56, %c0_57] : memref<10x10x128xbf16, #tpu.memory_space<vmem>>, vector<8x8x128xbf16>
    %54 = vector.shape_cast %53 : vector<8x8x128xbf16> to vector<64x128xbf16>
    %c896 = arith.constant 896 : index
    %c0_58 = arith.constant 0 : index
    %55 = vector.load %arg4[%c896, %c0_58] : memref<1152x128xbf16, #tpu.memory_space<vmem>>, vector<128x128xbf16>
    %cst_59 = arith.constant dense<0.000000e+00> : vector<64x128xf32>
    %56 = tpu.matmul %54, %55, %cst_59 {dimension_numbers = #tpu.dot_dimension_numbers<[1], [0], [0], [1], [0, 0, 1, 1], [], []>} : vector<64x128xbf16>, vector<128x128xbf16>, vector<64x128xf32> -> vector<64x128xf32>
    %57 = arith.addf %52, %56 : vector<64x128xf32>
    %c2_60 = arith.constant 2 : index
    %c2_61 = arith.constant 2 : index
    %c0_62 = arith.constant 0 : index
    %58 = vector.load %arg7[%c2_60, %c2_61, %c0_62] : memref<10x10x128xbf16, #tpu.memory_space<vmem>>, vector<8x8x128xbf16>
    %59 = vector.shape_cast %58 : vector<8x8x128xbf16> to vector<64x128xbf16>
    %c1024 = arith.constant 1024 : index
    %c0_63 = arith.constant 0 : index
    %60 = vector.load %arg4[%c1024, %c0_63] : memref<1152x128xbf16, #tpu.memory_space<vmem>>, vector<128x128xbf16>
    %cst_64 = arith.constant dense<0.000000e+00> : vector<64x128xf32>
    %61 = tpu.matmul %59, %60, %cst_64 {dimension_numbers = #tpu.dot_dimension_numbers<[1], [0], [0], [1], [0, 0, 1, 1], [], []>} : vector<64x128xbf16>, vector<128x128xbf16>, vector<64x128xf32> -> vector<64x128xf32>
    %62 = arith.addf %57, %61 : vector<64x128xf32>
    %63 = arith.truncf %62 : vector<64x128xf32> to vector<64x128xbf16>
    %c0_65 = arith.constant 0 : index
    %c0_66 = arith.constant 0 : index
    %64 = vector.load %arg5[%c0_65, %c0_66] : memref<64x128xbf16, #tpu.memory_space<vmem>>, vector<64x128xbf16>
    tpu.vector_store %arg5[%c0_65, %c0_66], %63 {strides = array<i32>} : memref<64x128xbf16, #tpu.memory_space<vmem>>, vector<64x128xbf16>,
    %cst_67 = arith.constant dense<0.000000e+00> : vector<128xf32>
    %65 = vector.multi_reduction <add>, %62, %cst_67 [0] : vector<64x128xf32> to vector<128xf32>
    %66 = vector.shape_cast %65 : vector<128xf32> to vector<1x128xf32>
    %67 = arith.mulf %62, %62 : vector<64x128xf32>
    %cst_68 = arith.constant dense<0.000000e+00> : vector<128xf32>
    %68 = vector.multi_reduction <add>, %67, %cst_68 [0] : vector<64x128xf32> to vector<128xf32>
    %69 = vector.shape_cast %68 : vector<128xf32> to vector<1x128xf32>
    %70 = tpu.concatenate %66, %69 in 0 : vector<1x128xf32>, vector<1x128xf32> -> vector<2x128xf32>
    %c0_69 = arith.constant 0 : index
    %c0_70 = arith.constant 0 : index
    %c0_71 = arith.constant 0 : index
    %71 = vector.load %arg6[%c0_69, %c0_70, %c0_71] : memref<1x2x128xf32, #tpu.memory_space<vmem>>, vector<1x2x128xf32>
    %72 = vector.shape_cast %71 : vector<1x2x128xf32> to vector<2x128xf32>
    %73 = vector.shape_cast %70 : vector<2x128xf32> to vector<1x2x128xf32>
    tpu.vector_store %arg6[%c0_69, %c0_70, %c0_71], %73 {strides = array<i32>} : memref<1x2x128xf32, #tpu.memory_space<vmem>>, vector<1x2x128xf32>,
    return
  }
  func.func @transform_0(%arg0: i32) -> (i32, i32) {
    %c0_i32 = arith.constant 0 : i32
    %c0_i32_0 = arith.constant 0 : i32
    return %arg0, %c0_i32 : i32, i32
  }
  func.func @transform_1(%arg0: i32) -> (i32, i32) {
    %c0_i32 = arith.constant 0 : i32
    %c0_i32_0 = arith.constant 0 : i32
    %c0_i32_1 = arith.constant 0 : i32
    return %c0_i32, %c0_i32_0 : i32, i32
  }
  func.func @transform_2(%arg0: i32) -> (i32, i32) {
    %c0_i32 = arith.constant 0 : i32
    %c0_i32_0 = arith.constant 0 : i32
    %c0_i32_1 = arith.constant 0 : i32
    return %c0_i32, %c0_i32_0 : i32, i32
  }
  func.func @transform_3(%arg0: i32) -> (i32, i32) {
    %c0_i32 = arith.constant 0 : i32
    %c0_i32_0 = arith.constant 0 : i32
    %c0_i32_1 = arith.constant 0 : i32
    return %c0_i32, %c0_i32_0 : i32, i32
  }
  func.func @transform_4(%arg0: i32) -> (i32, i32) {
    %c0_i32 = arith.constant 0 : i32
    %c0_i32_0 = arith.constant 0 : i32
    return %arg0, %c0_i32 : i32, i32
  }
  func.func @transform_5(%arg0: i32) -> (i32, i32, i32) {
    %c0_i32 = arith.constant 0 : i32
    %c0_i32_0 = arith.constant 0 : i32
    %c0_i32_1 = arith.constant 0 : i32
    return %arg0, %c0_i32, %c0_i32_0 : i32, i32, i32
  }
}

module attributes {stable_mosaic.version = 11 : i64} {
  func.func @kernel(%arg0: i32, %arg1: memref<256x128xbf16, #tpu.memory_space<vmem>>, %arg2: memref<1x128xf32, #tpu.memory_space<vmem>>, %arg3: memref<1x128xf32, #tpu.memory_space<vmem>>, %arg4: memref<384x128xbf16, #tpu.memory_space<vmem>>, %arg5: memref<256x128xbf16, #tpu.memory_space<vmem>>, %arg6: memref<1x2x128xf32, #tpu.memory_space<vmem>>, %arg7: memref<256x128xf32, #tpu.memory_space<vmem>>) attributes {dimension_semantics = [#tpu.dimension_semantics<parallel>], iteration_bounds = array<i64: 2>, scalar_prefetch = 0 : i64, scratch_operands = 1 : i64, tpu.core_type = #tpu.core_type<tc>, window_params = [{transform_indices = @transform_0, window_bounds = array<i64: 256, 128>}, {pipeline_mode = #tpu.pipeline_mode<synchronous>, transform_indices = @transform_1, window_bounds = array<i64: 1, 128>}, {pipeline_mode = #tpu.pipeline_mode<synchronous>, transform_indices = @transform_2, window_bounds = array<i64: 1, 128>}, {pipeline_mode = #tpu.pipeline_mode<synchronous>, transform_indices = @transform_3, window_bounds = array<i64: 384, 128>}, {transform_indices = @transform_4, window_bounds = array<i64: 256, 128>}, {transform_indices = @transform_5, window_bounds = array<i64: 1, 2, 128>}]} {
    %c0 = arith.constant 0 : index
    %c0_0 = arith.constant 0 : index
    %0 = vector.load %arg1[%c0, %c0_0] : memref<256x128xbf16, #tpu.memory_space<vmem>>, vector<256x128xbf16>
    %1 = arith.extf %0 : vector<256x128xbf16> to vector<256x128xf32>
    %c0_1 = arith.constant 0 : index
    %c0_2 = arith.constant 0 : index
    %2 = vector.load %arg2[%c0_1, %c0_2] : memref<1x128xf32, #tpu.memory_space<vmem>>, vector<1x128xf32>
    %3 = vector.broadcast %2 : vector<1x128xf32> to vector<256x128xf32>
    %4 = arith.mulf %1, %3 : vector<256x128xf32>
    %c0_3 = arith.constant 0 : index
    %c0_4 = arith.constant 0 : index
    %5 = vector.load %arg3[%c0_3, %c0_4] : memref<1x128xf32, #tpu.memory_space<vmem>>, vector<1x128xf32>
    %6 = vector.broadcast %5 : vector<1x128xf32> to vector<256x128xf32>
    %7 = arith.addf %4, %6 : vector<256x128xf32>
    %cst = arith.constant 0.000000e+00 : f32
    %8 = vector.broadcast %cst : f32 to vector<256x128xf32>
    %9 = arith.maximumf %7, %8 : vector<256x128xf32>
    %10 = arith.truncf %9 : vector<256x128xf32> to vector<256x128xbf16>
    %c128 = arith.constant 128 : index
    %c0_5 = arith.constant 0 : index
    %11 = vector.load %arg4[%c128, %c0_5] : memref<384x128xbf16, #tpu.memory_space<vmem>>, vector<128x128xbf16>
    %cst_6 = arith.constant dense<0.000000e+00> : vector<256x128xf32>
    %12 = tpu.matmul %10, %11, %cst_6 {dimension_numbers = #tpu.dot_dimension_numbers<[1], [0], [0], [1], [0, 0, 1, 1], [], []>} : vector<256x128xbf16>, vector<128x128xbf16>, vector<256x128xf32> -> vector<256x128xf32>
    %c0_7 = arith.constant 0 : index
    %c0_8 = arith.constant 0 : index
    %13 = vector.load %arg7[%c0_7, %c0_8] : memref<256x128xf32, #tpu.memory_space<vmem>>, vector<256x128xf32>
    tpu.vector_store %arg7[%c0_7, %c0_8], %12 {strides = array<i32>} : memref<256x128xf32, #tpu.memory_space<vmem>>, vector<256x128xf32>,
    %c64 = arith.constant 64 : index
    %c0_9 = arith.constant 0 : index
    %14 = vector.load %arg7[%c64, %c0_9] : memref<256x128xf32, #tpu.memory_space<vmem>>, vector<192x128xf32>
    %15 = vector.extract_strided_slice %10 {offsets = [0, 0], sizes = [192, 128], strides = [1, 1]} : vector<256x128xbf16> to vector<192x128xbf16>
    %c0_10 = arith.constant 0 : index
    %c0_11 = arith.constant 0 : index
    %16 = vector.load %arg4[%c0_10, %c0_11] : memref<384x128xbf16, #tpu.memory_space<vmem>>, vector<128x128xbf16>
    %cst_12 = arith.constant dense<0.000000e+00> : vector<192x128xf32>
    %17 = tpu.matmul %15, %16, %cst_12 {dimension_numbers = #tpu.dot_dimension_numbers<[1], [0], [0], [1], [0, 0, 1, 1], [], []>} : vector<192x128xbf16>, vector<128x128xbf16>, vector<192x128xf32> -> vector<192x128xf32>
    %18 = arith.addf %14, %17 : vector<192x128xf32>
    %c64_13 = arith.constant 64 : index
    %c0_14 = arith.constant 0 : index
    %19 = vector.load %arg7[%c64_13, %c0_14] : memref<256x128xf32, #tpu.memory_space<vmem>>, vector<192x128xf32>
    tpu.vector_store %arg7[%c64_13, %c0_14], %18 {strides = array<i32>} : memref<256x128xf32, #tpu.memory_space<vmem>>, vector<192x128xf32>,
    %c0_15 = arith.constant 0 : index
    %c0_16 = arith.constant 0 : index
    %20 = vector.load %arg7[%c0_15, %c0_16] : memref<256x128xf32, #tpu.memory_space<vmem>>, vector<192x128xf32>
    %21 = vector.extract_strided_slice %10 {offsets = [64, 0], sizes = [192, 128], strides = [1, 1]} : vector<256x128xbf16> to vector<192x128xbf16>
    %c256 = arith.constant 256 : index
    %c0_17 = arith.constant 0 : index
    %22 = vector.load %arg4[%c256, %c0_17] : memref<384x128xbf16, #tpu.memory_space<vmem>>, vector<128x128xbf16>
    %cst_18 = arith.constant dense<0.000000e+00> : vector<192x128xf32>
    %23 = tpu.matmul %21, %22, %cst_18 {dimension_numbers = #tpu.dot_dimension_numbers<[1], [0], [0], [1], [0, 0, 1, 1], [], []>} : vector<192x128xbf16>, vector<128x128xbf16>, vector<192x128xf32> -> vector<192x128xf32>
    %24 = arith.addf %20, %23 : vector<192x128xf32>
    %c0_19 = arith.constant 0 : index
    %c0_20 = arith.constant 0 : index
    %25 = vector.load %arg7[%c0_19, %c0_20] : memref<256x128xf32, #tpu.memory_space<vmem>>, vector<192x128xf32>
    tpu.vector_store %arg7[%c0_19, %c0_20], %24 {strides = array<i32>} : memref<256x128xf32, #tpu.memory_space<vmem>>, vector<192x128xf32>,
    %c0_21 = arith.constant 0 : index
    %c0_22 = arith.constant 0 : index
    %26 = vector.load %arg7[%c0_21, %c0_22] : memref<256x128xf32, #tpu.memory_space<vmem>>, vector<256x128xf32>
    %27 = arith.truncf %26 : vector<256x128xf32> to vector<256x128xbf16>
    %c0_23 = arith.constant 0 : index
    %c0_24 = arith.constant 0 : index
    %28 = vector.load %arg5[%c0_23, %c0_24] : memref<256x128xbf16, #tpu.memory_space<vmem>>, vector<256x128xbf16>
    tpu.vector_store %arg5[%c0_23, %c0_24], %27 {strides = array<i32>} : memref<256x128xbf16, #tpu.memory_space<vmem>>, vector<256x128xbf16>,
    %cst_25 = arith.constant dense<0.000000e+00> : vector<128xf32>
    %29 = vector.multi_reduction <add>, %26, %cst_25 [0] : vector<256x128xf32> to vector<128xf32>
    %30 = vector.shape_cast %29 : vector<128xf32> to vector<1x128xf32>
    %31 = arith.mulf %26, %26 : vector<256x128xf32>
    %cst_26 = arith.constant dense<0.000000e+00> : vector<128xf32>
    %32 = vector.multi_reduction <add>, %31, %cst_26 [0] : vector<256x128xf32> to vector<128xf32>
    %33 = vector.shape_cast %32 : vector<128xf32> to vector<1x128xf32>
    %34 = tpu.concatenate %30, %33 in 0 : vector<1x128xf32>, vector<1x128xf32> -> vector<2x128xf32>
    %c0_27 = arith.constant 0 : index
    %c0_28 = arith.constant 0 : index
    %c0_29 = arith.constant 0 : index
    %35 = vector.load %arg6[%c0_27, %c0_28, %c0_29] : memref<1x2x128xf32, #tpu.memory_space<vmem>>, vector<1x2x128xf32>
    %36 = vector.shape_cast %35 : vector<1x2x128xf32> to vector<2x128xf32>
    %37 = vector.shape_cast %34 : vector<2x128xf32> to vector<1x2x128xf32>
    tpu.vector_store %arg6[%c0_27, %c0_28, %c0_29], %37 {strides = array<i32>} : memref<1x2x128xf32, #tpu.memory_space<vmem>>, vector<1x2x128xf32>,
    return
  }
  func.func @transform_0(%arg0: i32) -> (i32, i32) {
    %c0_i32 = arith.constant 0 : i32
    %c0_i32_0 = arith.constant 0 : i32
    return %arg0, %c0_i32 : i32, i32
  }
  func.func @transform_1(%arg0: i32) -> (i32, i32) {
    %c0_i32 = arith.constant 0 : i32
    %c0_i32_0 = arith.constant 0 : i32
    %c0_i32_1 = arith.constant 0 : i32
    return %c0_i32, %c0_i32_0 : i32, i32
  }
  func.func @transform_2(%arg0: i32) -> (i32, i32) {
    %c0_i32 = arith.constant 0 : i32
    %c0_i32_0 = arith.constant 0 : i32
    %c0_i32_1 = arith.constant 0 : i32
    return %c0_i32, %c0_i32_0 : i32, i32
  }
  func.func @transform_3(%arg0: i32) -> (i32, i32) {
    %c0_i32 = arith.constant 0 : i32
    %c0_i32_0 = arith.constant 0 : i32
    %c0_i32_1 = arith.constant 0 : i32
    return %c0_i32, %c0_i32_0 : i32, i32
  }
  func.func @transform_4(%arg0: i32) -> (i32, i32) {
    %c0_i32 = arith.constant 0 : i32
    %c0_i32_0 = arith.constant 0 : i32
    return %arg0, %c0_i32 : i32, i32
  }
  func.func @transform_5(%arg0: i32) -> (i32, i32, i32) {
    %c0_i32 = arith.constant 0 : i32
    %c0_i32_0 = arith.constant 0 : i32
    %c0_i32_1 = arith.constant 0 : i32
    return %arg0, %c0_i32, %c0_i32_0 : i32, i32, i32
  }
}

module attributes {stable_mosaic.version = 11 : i64} {
  func.func @_conv3_kernel(%arg0: i32, %arg1: memref<512x128xbf16, #tpu.memory_space<vmem>>, %arg2: memref<1x128xf32, #tpu.memory_space<vmem>>, %arg3: memref<1x128xf32, #tpu.memory_space<vmem>>, %arg4: memref<128x128xbf16, #tpu.memory_space<vmem>>, %arg5: memref<512x128xbf16, #tpu.memory_space<vmem>>, %arg6: memref<1x2x128xf32, #tpu.memory_space<vmem>>) attributes {dimension_semantics = [#tpu.dimension_semantics<parallel>], iteration_bounds = array<i64: 1>, scalar_prefetch = 0 : i64, scratch_operands = 0 : i64, tpu.core_type = #tpu.core_type<tc>, window_params = [{transform_indices = @transform_0, window_bounds = array<i64: 512, 128>}, {pipeline_mode = #tpu.pipeline_mode<synchronous>, transform_indices = @transform_1, window_bounds = array<i64: 1, 128>}, {pipeline_mode = #tpu.pipeline_mode<synchronous>, transform_indices = @transform_2, window_bounds = array<i64: 1, 128>}, {pipeline_mode = #tpu.pipeline_mode<synchronous>, transform_indices = @transform_3, window_bounds = array<i64: 128, 128>}, {transform_indices = @transform_4, window_bounds = array<i64: 512, 128>}, {transform_indices = @transform_5, window_bounds = array<i64: 1, 2, 128>}]} {
    %c0 = arith.constant 0 : index
    %c0_0 = arith.constant 0 : index
    %0 = vector.load %arg1[%c0, %c0_0] : memref<512x128xbf16, #tpu.memory_space<vmem>>, vector<512x128xbf16>
    %1 = arith.extf %0 : vector<512x128xbf16> to vector<512x128xf32>
    %c0_1 = arith.constant 0 : index
    %c0_2 = arith.constant 0 : index
    %2 = vector.load %arg2[%c0_1, %c0_2] : memref<1x128xf32, #tpu.memory_space<vmem>>, vector<1x128xf32>
    %3 = vector.broadcast %2 : vector<1x128xf32> to vector<512x128xf32>
    %4 = arith.mulf %1, %3 : vector<512x128xf32>
    %c0_3 = arith.constant 0 : index
    %c0_4 = arith.constant 0 : index
    %5 = vector.load %arg3[%c0_3, %c0_4] : memref<1x128xf32, #tpu.memory_space<vmem>>, vector<1x128xf32>
    %6 = vector.broadcast %5 : vector<1x128xf32> to vector<512x128xf32>
    %7 = arith.addf %4, %6 : vector<512x128xf32>
    %cst = arith.constant 0.000000e+00 : f32
    %8 = vector.broadcast %cst : f32 to vector<512x128xf32>
    %9 = arith.maximumf %7, %8 : vector<512x128xf32>
    %10 = arith.truncf %9 : vector<512x128xf32> to vector<512x128xbf16>
    %c0_5 = arith.constant 0 : index
    %c0_6 = arith.constant 0 : index
    %11 = vector.load %arg4[%c0_5, %c0_6] : memref<128x128xbf16, #tpu.memory_space<vmem>>, vector<128x128xbf16>
    %cst_7 = arith.constant dense<0.000000e+00> : vector<512x128xf32>
    %12 = tpu.matmul %10, %11, %cst_7 {dimension_numbers = #tpu.dot_dimension_numbers<[1], [0], [0], [1], [0, 0, 1, 1], [], []>} : vector<512x128xbf16>, vector<128x128xbf16>, vector<512x128xf32> -> vector<512x128xf32>
    %13 = arith.truncf %12 : vector<512x128xf32> to vector<512x128xbf16>
    %c0_8 = arith.constant 0 : index
    %c0_9 = arith.constant 0 : index
    %14 = vector.load %arg5[%c0_8, %c0_9] : memref<512x128xbf16, #tpu.memory_space<vmem>>, vector<512x128xbf16>
    tpu.vector_store %arg5[%c0_8, %c0_9], %13 {strides = array<i32>} : memref<512x128xbf16, #tpu.memory_space<vmem>>, vector<512x128xbf16>,
    %cst_10 = arith.constant dense<0.000000e+00> : vector<128xf32>
    %15 = vector.multi_reduction <add>, %12, %cst_10 [0] : vector<512x128xf32> to vector<128xf32>
    %16 = vector.shape_cast %15 : vector<128xf32> to vector<1x128xf32>
    %17 = arith.mulf %12, %12 : vector<512x128xf32>
    %cst_11 = arith.constant dense<0.000000e+00> : vector<128xf32>
    %18 = vector.multi_reduction <add>, %17, %cst_11 [0] : vector<512x128xf32> to vector<128xf32>
    %19 = vector.shape_cast %18 : vector<128xf32> to vector<1x128xf32>
    %20 = tpu.concatenate %16, %19 in 0 : vector<1x128xf32>, vector<1x128xf32> -> vector<2x128xf32>
    %c0_12 = arith.constant 0 : index
    %c0_13 = arith.constant 0 : index
    %c0_14 = arith.constant 0 : index
    %21 = vector.load %arg6[%c0_12, %c0_13, %c0_14] : memref<1x2x128xf32, #tpu.memory_space<vmem>>, vector<1x2x128xf32>
    %22 = vector.shape_cast %21 : vector<1x2x128xf32> to vector<2x128xf32>
    %23 = vector.shape_cast %20 : vector<2x128xf32> to vector<1x2x128xf32>
    tpu.vector_store %arg6[%c0_12, %c0_13, %c0_14], %23 {strides = array<i32>} : memref<1x2x128xf32, #tpu.memory_space<vmem>>, vector<1x2x128xf32>,
    return
  }
  func.func @transform_0(%arg0: i32) -> (i32, i32) {
    %c0_i32 = arith.constant 0 : i32
    %c0_i32_0 = arith.constant 0 : i32
    return %arg0, %c0_i32 : i32, i32
  }
  func.func @transform_1(%arg0: i32) -> (i32, i32) {
    %c0_i32 = arith.constant 0 : i32
    %c0_i32_0 = arith.constant 0 : i32
    %c0_i32_1 = arith.constant 0 : i32
    return %c0_i32, %c0_i32_0 : i32, i32
  }
  func.func @transform_2(%arg0: i32) -> (i32, i32) {
    %c0_i32 = arith.constant 0 : i32
    %c0_i32_0 = arith.constant 0 : i32
    %c0_i32_1 = arith.constant 0 : i32
    return %c0_i32, %c0_i32_0 : i32, i32
  }
  func.func @transform_3(%arg0: i32) -> (i32, i32) {
    %c0_i32 = arith.constant 0 : i32
    %c0_i32_0 = arith.constant 0 : i32
    %c0_i32_1 = arith.constant 0 : i32
    return %c0_i32, %c0_i32_0 : i32, i32
  }
  func.func @transform_4(%arg0: i32) -> (i32, i32) {
    %c0_i32 = arith.constant 0 : i32
    %c0_i32_0 = arith.constant 0 : i32
    return %arg0, %c0_i32 : i32, i32
  }
  func.func @transform_5(%arg0: i32) -> (i32, i32, i32) {
    %c0_i32 = arith.constant 0 : i32
    %c0_i32_0 = arith.constant 0 : i32
    %c0_i32_1 = arith.constant 0 : i32
    return %arg0, %c0_i32, %c0_i32_0 : i32, i32, i32
  }
}

module attributes {stable_mosaic.version = 11 : i64} {
  func.func @_final_kernel(%arg0: i32, %arg1: memref<512x128xbf16, #tpu.memory_space<vmem>>, %arg2: memref<512x128xbf16, #tpu.memory_space<vmem>>, %arg3: memref<1x128xf32, #tpu.memory_space<vmem>>, %arg4: memref<1x128xf32, #tpu.memory_space<vmem>>, %arg5: memref<512x128xf32, #tpu.memory_space<vmem>>) attributes {dimension_semantics = [#tpu.dimension_semantics<parallel>], iteration_bounds = array<i64: 1>, scalar_prefetch = 0 : i64, scratch_operands = 0 : i64, tpu.core_type = #tpu.core_type<tc>, window_params = [{transform_indices = @transform_0, window_bounds = array<i64: 512, 128>}, {transform_indices = @transform_1, window_bounds = array<i64: 512, 128>}, {pipeline_mode = #tpu.pipeline_mode<synchronous>, transform_indices = @transform_2, window_bounds = array<i64: 1, 128>}, {pipeline_mode = #tpu.pipeline_mode<synchronous>, transform_indices = @transform_3, window_bounds = array<i64: 1, 128>}, {transform_indices = @transform_4, window_bounds = array<i64: 512, 128>}]} {
    %c0 = arith.constant 0 : index
    %c0_0 = arith.constant 0 : index
    %0 = vector.load %arg1[%c0, %c0_0] : memref<512x128xbf16, #tpu.memory_space<vmem>>, vector<512x128xbf16>
    %1 = arith.extf %0 : vector<512x128xbf16> to vector<512x128xf32>
    %c0_1 = arith.constant 0 : index
    %c0_2 = arith.constant 0 : index
    %2 = vector.load %arg3[%c0_1, %c0_2] : memref<1x128xf32, #tpu.memory_space<vmem>>, vector<1x128xf32>
    %3 = vector.broadcast %2 : vector<1x128xf32> to vector<512x128xf32>
    %4 = arith.mulf %1, %3 : vector<512x128xf32>
    %c0_3 = arith.constant 0 : index
    %c0_4 = arith.constant 0 : index
    %5 = vector.load %arg4[%c0_3, %c0_4] : memref<1x128xf32, #tpu.memory_space<vmem>>, vector<1x128xf32>
    %6 = vector.broadcast %5 : vector<1x128xf32> to vector<512x128xf32>
    %7 = arith.addf %4, %6 : vector<512x128xf32>
    %c0_5 = arith.constant 0 : index
    %c0_6 = arith.constant 0 : index
    %8 = vector.load %arg2[%c0_5, %c0_6] : memref<512x128xbf16, #tpu.memory_space<vmem>>, vector<512x128xbf16>
    %9 = arith.extf %8 : vector<512x128xbf16> to vector<512x128xf32>
    %10 = arith.addf %7, %9 : vector<512x128xf32>
    %cst = arith.constant 0.000000e+00 : f32
    %11 = vector.broadcast %cst : f32 to vector<512x128xf32>
    %12 = arith.maximumf %10, %11 : vector<512x128xf32>
    %c0_7 = arith.constant 0 : index
    %c0_8 = arith.constant 0 : index
    %13 = vector.load %arg5[%c0_7, %c0_8] : memref<512x128xf32, #tpu.memory_space<vmem>>, vector<512x128xf32>
    tpu.vector_store %arg5[%c0_7, %c0_8], %12 {strides = array<i32>} : memref<512x128xf32, #tpu.memory_space<vmem>>, vector<512x128xf32>,
    return
  }
  func.func @transform_0(%arg0: i32) -> (i32, i32) {
    %c0_i32 = arith.constant 0 : i32
    %c0_i32_0 = arith.constant 0 : i32
    return %arg0, %c0_i32 : i32, i32
  }
  func.func @transform_1(%arg0: i32) -> (i32, i32) {
    %c0_i32 = arith.constant 0 : i32
    %c0_i32_0 = arith.constant 0 : i32
    return %arg0, %c0_i32 : i32, i32
  }
  func.func @transform_2(%arg0: i32) -> (i32, i32) {
    %c0_i32 = arith.constant 0 : i32
    %c0_i32_0 = arith.constant 0 : i32
    %c0_i32_1 = arith.constant 0 : i32
    return %c0_i32, %c0_i32_0 : i32, i32
  }
  func.func @transform_3(%arg0: i32) -> (i32, i32) {
    %c0_i32 = arith.constant 0 : i32
    %c0_i32_0 = arith.constant 0 : i32
    %c0_i32_1 = arith.constant 0 : i32
    return %c0_i32, %c0_i32_0 : i32, i32
  }
  func.func @transform_4(%arg0: i32) -> (i32, i32) {
    %c0_i32 = arith.constant 0 : i32
    %c0_i32_0 = arith.constant 0 : i32
    return %arg0, %c0_i32 : i32, i32
  }
}

</mosaic_0001>

<llo_original>
// kernel: bottleneck_forward.5
$region0: #{bottleneck_forward.5}
  #allocation0 [shape = 'u32[]', space=smem, size = 0x4, offset = 0x4, fixed_abs, tag = 'smem constant byte address 0x4 - core index']
  #allocation1 [shape = 'u32[144,128]{1,0:T(1,128)}', space=vmem, size = 0x12000, scoped, tag = 'internal scratch']
  %s0 = inlined_call_operand.vmem [shape: bf16[512,128], index: 0, kind: input, shape index: {}]
  %s1 = inlined_call_operand.vmem [shape: bf16[128,128], index: 1, kind: input, shape index: {}]
  %s2 = inlined_call_operand.vmem [shape: bf16[512,128], index: 2, kind: output, shape index: {0}]
  %s3 = inlined_call_operand.vmem [shape: f32[1,2,128], index: 3, kind: output, shape index: {1}]
  %4 = xla_tuple %s2, %s3
  %s5 = sld [smem:[#allocation0]]
  $region26: #{bottleneck_forward.5} parent=0
    _
  %s7 = ssub.s32 1, %s5
  %s8 = scalar_select 0, %s7, %s5
  // Predicated region
  $region2: #{bottleneck_forward.5} parent=0 // pred_check
    _
  $region3: #{bottleneck_forward.5} parent=0 // pred_check_branch
    %10 = sbr.rel (0) target = $region5
  $region4: #{bottleneck_forward.5} parent=0 // pred_region
    _
  $region5: #{bottleneck_forward.5} parent=0 // pred_fallthru
    _
  // Predicated region
  $region6: #{bottleneck_forward.5} parent=0 // pred_check
    _
  $region7: #{bottleneck_forward.5} parent=0 // pred_check_branch
    %12 = sbr.rel (0) target = $region9
  $region8: #{bottleneck_forward.5} parent=0 // pred_region
    _
  $region9: #{bottleneck_forward.5} parent=0 // pred_fallthru
    _
  %v14 = vld [vmem:[%s0] sm:$0xf]
  %v15 = vld [vmem:[%s0 + $0x4] sm:$0xf]
  %v16 = vld [vmem:[%s0 + $0x8] sm:$0xf]
  %v17 = vld [vmem:[%s0 + $0xc] sm:$0xf]
  %v18 = vld [vmem:[%s0 + $0x10] sm:$0xf]
  %v19 = vld [vmem:[%s0 + $0x14] sm:$0xf]
  %v20 = vld [vmem:[%s0 + $0x18] sm:$0xf]
  %v21 = vld [vmem:[%s0 + $0x1c] sm:$0xf]
  %v22 = vld [vmem:[%s0 + $0x20] sm:$0xf]
  %v23 = vld [vmem:[%s0 + $0x24] sm:$0xf]
  %v24 = vld [vmem:[%s0 + $0x28] sm:$0xf]
  %v25 = vld [vmem:[%s0 + $0x2c] sm:$0xf]
  %v26 = vld [vmem:[%s0 + $0x30] sm:$0xf]
  %v27 = vld [vmem:[%s0 + $0x34] sm:$0xf]
  %v28 = vld [vmem:[%s0 + $0x38] sm:$0xf]
  %v29 = vld [vmem:[%s0 + $0x3c] sm:$0xf]
  %v30 = vld [vmem:[%s0 + $0x40] sm:$0xf]
  %v31 = vld [vmem:[%s0 + $0x44] sm:$0xf]
  %v32 = vld [vmem:[%s0 + $0x48] sm:$0xf]
  %v33 = vld [vmem:[%s0 + $0x4c] sm:$0xf]
  %v34 = vld [vmem:[%s0 + $0x50] sm:$0xf]
  %v35 = vld [vmem:[%s0 + $0x54] sm:$0xf]
  %v36 = vld [vmem:[%s0 + $0x58] sm:$0xf]
  %v37 = vld [vmem:[%s0 + $0x5c] sm:$0xf]
  %v38 = vld [vmem:[%s0 + $0x60] sm:$0xf]
  %v39 = vld [vmem:[%s0 + $0x64] sm:$0xf]
  %v40 = vld [vmem:[%s0 + $0x68] sm:$0xf]
  %v41 = vld [vmem:[%s0 + $0x6c] sm:$0xf]
  %v42 = vld [vmem:[%s0 + $0x70] sm:$0xf]
  %v43 = vld [vmem:[%s0 + $0x74] sm:$0xf]
  %v44 = vld [vmem:[%s0 + $0x78] sm:$0xf]
  %v45 = vld [vmem:[%s0 + $0x7c] sm:$0xf]
  %v46 = vld [vmem:[%s0 + $0x80] sm:$0xf]
  %v47 = vld [vmem:[%s0 + $0x84] sm:$0xf]
  %v48 = vld [vmem:[%s0 + $0x88] sm:$0xf]
  %v49 = vld [vmem:[%s0 + $0x8c] sm:$0xf]
  %v50 = vld [vmem:[%s0 + $0x90] sm:$0xf]
  %v51 = vld [vmem:[%s0 + $0x94] sm:$0xf]
  %v52 = vld [vmem:[%s0 + $0x98] sm:$0xf]
  %v53 = vld [vmem:[%s0 + $0x9c] sm:$0xf]
  %v54 = vld [vmem:[%s0 + $0xa0] sm:$0xf]
  %v55 = vld [vmem:[%s0 + $0xa4] sm:$0xf]
  %v56 = vld [vmem:[%s0 + $0xa8] sm:$0xf]
  %v57 = vld [vmem:[%s0 + $0xac] sm:$0xf]
  %v58 = vld [vmem:[%s0 + $0xb0] sm:$0xf]
  %v59 = vld [vmem:[%s0 + $0xb4] sm:$0xf]
  %v60 = vld [vmem:[%s0 + $0xb8] sm:$0xf]
  %v61 = vld [vmem:[%s0 + $0xbc] sm:$0xf]
  %v62 = vld [vmem:[%s0 + $0xc0] sm:$0xf]
  %v63 = vld [vmem:[%s0 + $0xc4] sm:$0xf]
  %v64 = vld [vmem:[%s0 + $0xc8] sm:$0xf]
  %v65 = vld [vmem:[%s0 + $0xcc] sm:$0xf]
  %v66 = vld [vmem:[%s0 + $0xd0] sm:$0xf]
  %v67 = vld [vmem:[%s0 + $0xd4] sm:$0xf]
  %v68 = vld [vmem:[%s0 + $0xd8] sm:$0xf]
  %v69 = vld [vmem:[%s0 + $0xdc] sm:$0xf]
  %v70 = vld [vmem:[%s0 + $0xe0] sm:$0xf]
  %v71 = vld [vmem:[%s0 + $0xe4] sm:$0xf]
  %v72 = vld [vmem:[%s0 + $0xe8] sm:$0xf]
  %v73 = vld [vmem:[%s0 + $0xec] sm:$0xf]
  %v74 = vld [vmem:[%s0 + $0xf0] sm:$0xf]
  %v75 = vld [vmem:[%s0 + $0xf4] sm:$0xf]
  %v76 = vld [vmem:[%s0 + $0xf8] sm:$0xf]
  %v77 = vld [vmem:[%s0 + $0xfc] sm:$0xf]
  %v78 = vld [vmem:[%s1] sm:$0xf]
  %v79 = vld [vmem:[%s1 + $0x4] sm:$0xf]
  %v80 = vld [vmem:[%s1 + $0x8] sm:$0xf]
  %v81 = vld [vmem:[%s1 + $0xc] sm:$0xf]
  %v82 = vld [vmem:[%s1 + $0x10] sm:$0xf]
  %v83 = vld [vmem:[%s1 + $0x14] sm:$0xf]
  %v84 = vld [vmem:[%s1 + $0x18] sm:$0xf]
  %v85 = vld [vmem:[%s1 + $0x1c] sm:$0xf]
  %v86 = vld [vmem:[%s1 + $0x20] sm:$0xf]
  %v87 = vld [vmem:[%s1 + $0x24] sm:$0xf]
  %v88 = vld [vmem:[%s1 + $0x28] sm:$0xf]
  %v89 = vld [vmem:[%s1 + $0x2c] sm:$0xf]
  %v90 = vld [vmem:[%s1 + $0x30] sm:$0xf]
  %v91 = vld [vmem:[%s1 + $0x34] sm:$0xf]
  %v92 = vld [vmem:[%s1 + $0x38] sm:$0xf]
  %v93 = vld [vmem:[%s1 + $0x3c] sm:$0xf]
  %v158 = vunpack.c.l.b16 %v14
  %v159 = vunpack.c.l.b16 %v15
  %v160 = vunpack.c.l.b16 %v16
  %v161 = vunpack.c.l.b16 %v17
  %v162 = vunpack.c.l.b16 %v18
  %v163 = vunpack.c.l.b16 %v19
  %v164 = vunpack.c.l.b16 %v20
  %v165 = vunpack.c.l.b16 %v21
  %v166 = vunpack.c.l.b16 %v22
  %v167 = vunpack.c.l.b16 %v23
  %v168 = vunpack.c.l.b16 %v24
  %v169 = vunpack.c.l.b16 %v25
  %v170 = vunpack.c.l.b16 %v26
  %v171 = vunpack.c.l.b16 %v27
  %v172 = vunpack.c.l.b16 %v28
  %v173 = vunpack.c.l.b16 %v29
  %v174 = vunpack.c.l.b16 %v30
  %v175 = vunpack.c.l.b16 %v31
  %v176 = vunpack.c.l.b16 %v32
  %v177 = vunpack.c.l.b16 %v33
  %v178 = vunpack.c.l.b16 %v34
  %v179 = vunpack.c.l.b16 %v35
  %v180 = vunpack.c.l.b16 %v36
  %v181 = vunpack.c.l.b16 %v37
  %v182 = vunpack.c.l.b16 %v38
  %v183 = vunpack.c.l.b16 %v39
  %v184 = vunpack.c.l.b16 %v40
  %v185 = vunpack.c.l.b16 %v41
  %v186 = vunpack.c.l.b16 %v42
  %v187 = vunpack.c.l.b16 %v43
  %v188 = vunpack.c.l.b16 %v44
  %v189 = vunpack.c.l.b16 %v45
  %v190 = vunpack.c.l.b16 %v46
  %v191 = vunpack.c.l.b16 %v47
  %v192 = vunpack.c.l.b16 %v48
  %v193 = vunpack.c.l.b16 %v49
  %v194 = vunpack.c.l.b16 %v50
  %v195 = vunpack.c.l.b16 %v51
  %v196 = vunpack.c.l.b16 %v52
  %v197 = vunpack.c.l.b16 %v53
  %v198 = vunpack.c.l.b16 %v54
  %v199 = vunpack.c.l.b16 %v55
  %v200 = vunpack.c.l.b16 %v56
  %v201 = vunpack.c.l.b16 %v57
  %v202 = vunpack.c.l.b16 %v58
  %v203 = vunpack.c.l.b16 %v59
  %v204 = vunpack.c.l.b16 %v60
  %v205 = vunpack.c.l.b16 %v61
  %v206 = vunpack.c.l.b16 %v62
  %v207 = vunpack.c.l.b16 %v63
  %v208 = vunpack.c.l.b16 %v64
  %v209 = vunpack.c.l.b16 %v65
  %v210 = vunpack.c.l.b16 %v66
  %v211 = vunpack.c.l.b16 %v67
  %v212 = vunpack.c.l.b16 %v68
  %v213 = vunpack.c.l.b16 %v69
  %v214 = vunpack.c.l.b16 %v70
  %v215 = vunpack.c.l.b16 %v71
  %v216 = vunpack.c.l.b16 %v72
  %v217 = vunpack.c.l.b16 %v73
  %v218 = vunpack.c.l.b16 %v74
  %v219 = vunpack.c.l.b16 %v75
  %v220 = vunpack.c.l.b16 %v76
  %v221 = vunpack.c.l.b16 %v77
  %v222 = vpack.c.b16 %v159, %v158
  %v223 = vpack.c.b16 %v161, %v160
  %v224 = vpack.c.b16 %v163, %v162
  %v225 = vpack.c.b16 %v165, %v164
  %v226 = vpack.c.b16 %v167, %v166
  %v227 = vpack.c.b16 %v169, %v168
  %v228 = vpack.c.b16 %v171, %v170
  %v229 = vpack.c.b16 %v173, %v172
  %v230 = vpack.c.b16 %v175, %v174
  %v231 = vpack.c.b16 %v177, %v176
  %v232 = vpack.c.b16 %v179, %v178
  %v233 = vpack.c.b16 %v181, %v180
  %v234 = vpack.c.b16 %v183, %v182
  %v235 = vpack.c.b16 %v185, %v184
  %v236 = vpack.c.b16 %v187, %v186
  %v237 = vpack.c.b16 %v189, %v188
  %v238 = vpack.c.b16 %v191, %v190
  %v239 = vpack.c.b16 %v193, %v192
  %v240 = vpack.c.b16 %v195, %v194
  %v241 = vpack.c.b16 %v197, %v196
  %v242 = vpack.c.b16 %v199, %v198
  %v243 = vpack.c.b16 %v201, %v200
  %v244 = vpack.c.b16 %v203, %v202
  %v245 = vpack.c.b16 %v205, %v204
  %v246 = vpack.c.b16 %v207, %v206
  %v247 = vpack.c.b16 %v209, %v208
  %v248 = vpack.c.b16 %v211, %v210
  %v249 = vpack.c.b16 %v213, %v212
  %v250 = vpack.c.b16 %v215, %v214
  %v251 = vpack.c.b16 %v217, %v216
  %v252 = vpack.c.b16 %v219, %v218
  %v253 = vpack.c.b16 %v221, %v220
  %v302 = vunpack.c.l.b16 %v78
  %v303 = vunpack.c.l.b16 %v79
  %v304 = vunpack.c.l.b16 %v80
  %v305 = vunpack.c.l.b16 %v81
  %v306 = vunpack.c.l.b16 %v82
  %v307 = vunpack.c.l.b16 %v83
  %v308 = vunpack.c.l.b16 %v84
  %v309 = vunpack.c.l.b16 %v85
  %v310 = vunpack.c.l.b16 %v86
  %v311 = vunpack.c.l.b16 %v87
  %v312 = vunpack.c.l.b16 %v88
  %v313 = vunpack.c.l.b16 %v89
  %v314 = vunpack.c.l.b16 %v90
  %v315 = vunpack.c.l.b16 %v91
  %v316 = vunpack.c.l.b16 %v92
  %v317 = vunpack.c.l.b16 %v93
  %v318 = vpack.c.b16 %v303, %v302
  %v319 = vpack.c.b16 %v305, %v304
  %v320 = vpack.c.b16 %v307, %v306
  %v321 = vpack.c.b16 %v309, %v308
  %v322 = vpack.c.b16 %v311, %v310
  %v323 = vpack.c.b16 %v313, %v312
  %v324 = vpack.c.b16 %v315, %v314
  %v325 = vpack.c.b16 %v317, %v316
  %334 = vmatprep.subr.bf16.mxu0 0
  %335 = vmatpush1.bf16.msra.mxu0 %v318
  %336 = vmatprep.subr.bf16.mxu0 0
  %337 = vmatpush1.bf16.msra.mxu0 %v319
  %338 = vmatprep.subr.bf16.mxu0 0
  %339 = vmatpush1.bf16.msra.mxu0 %v320
  %340 = vmatprep.subr.bf16.mxu0 0
  %341 = vmatpush1.bf16.msra.mxu0 %v321
  %342 = vmatprep.subr.bf16.mxu0 0
  %343 = vmatpush1.bf16.msra.mxu0 %v322
  %344 = vmatprep.subr.bf16.mxu0 0
  %345 = vmatpush1.bf16.msra.mxu0 %v323
  %346 = vmatprep.subr.bf16.mxu0 0
  %347 = vmatpush1.bf16.msra.mxu0 %v324
  %348 = vmatprep.subr.bf16.mxu0 0
  %349 = vmatpush1.bf16.msra.mxu0 %v325
  %350 = vmatprep.subr.bf16.mxu0 0
  %351 = vmatpush1.bf16.msra.mxu0 0
  %352 = vmatprep.subr.bf16.mxu0 0
  %353 = vmatpush1.bf16.msra.mxu0 0
  %354 = vmatprep.subr.bf16.mxu0 0
  %355 = vmatpush1.bf16.msra.mxu0 0
  %356 = vmatprep.subr.bf16.mxu0 0
  %357 = vmatpush1.bf16.msra.mxu0 0
  %358 = vmatprep.subr.bf16.mxu0 0
  %359 = vmatpush1.bf16.msra.mxu0 0
  %360 = vmatprep.subr.bf16.mxu0 0
  %361 = vmatpush1.bf16.msra.mxu0 0
  %362 = vmatprep.subr.bf16.mxu0 0
  %363 = vmatpush1.bf16.msra.mxu0 0
  %364 = vmatprep.subr.bf16.mxu0 0
  %365 = vmatpush1.bf16.msra.mxu0 0
  %366 = vmatprep.mubr.bf16.mxu0 0
  %367 = vmatmul.mubr.bf16.gmra.mrb[0].mxu0 %v222
  %v368 = vpop.f32.mrb[0].mxu0
  %v369 = vadd.f32 0.0, %v368
  %v370 = vpop.f32.mrb[0].mxu0
  %v371 = vpop.f32.mrb[0].mxu0
  %v372 = vadd.f32 0.0, %v371
  %v373 = vpop.f32.mrb[0].mxu0
  %374 = vmatprep.mubr.bf16.mxu0 0
  %375 = vmatmul.mubr.bf16.gmra.mrb[0].mxu0 %v223
  %v376 = vpop.f32.mrb[0].mxu0
  %v377 = vadd.f32 0.0, %v376
  %v378 = vpop.f32.mrb[0].mxu0
  %v379 = vpop.f32.mrb[0].mxu0
  %v380 = vadd.f32 0.0, %v379
  %v381 = vpop.f32.mrb[0].mxu0
  %382 = vmatprep.mubr.bf16.mxu0 0
  %383 = vmatmul.mubr.bf16.gmra.mrb[0].mxu0 %v224
  %v384 = vpop.f32.mrb[0].mxu0
  %v385 = vadd.f32 0.0, %v384
  %v386 = vpop.f32.mrb[0].mxu0
  %v387 = vpop.f32.mrb[0].mxu0
  %v388 = vadd.f32 0.0, %v387
  %v389 = vpop.f32.mrb[0].mxu0
  %390 = vmatprep.mubr.bf16.mxu0 0
  %391 = vmatmul.mubr.bf16.gmra.mrb[0].mxu0 %v225
  %v392 = vpop.f32.mrb[0].mxu0
  %v393 = vadd.f32 0.0, %v392
  %v394 = vpop.f32.mrb[0].mxu0
  %v395 = vpop.f32.mrb[0].mxu0
  %v396 = vadd.f32 0.0, %v395
  %v397 = vpop.f32.mrb[0].mxu0
  %398 = vmatprep.mubr.bf16.mxu0 0
  %399 = vmatmul.mubr.bf16.gmra.mrb[0].mxu0 %v226
  %v400 = vpop.f32.mrb[0].mxu0
  %v401 = vadd.f32 0.0, %v400
  %v402 = vpop.f32.mrb[0].mxu0
  %v403 = vpop.f32.mrb[0].mxu0
  %v404 = vadd.f32 0.0, %v403
  %v405 = vpop.f32.mrb[0].mxu0
  %406 = vmatprep.mubr.bf16.mxu0 0
  %407 = vmatmul.mubr.bf16.gmra.mrb[0].mxu0 %v227
  %v408 = vpop.f32.mrb[0].mxu0
  %v409 = vadd.f32 0.0, %v408
  %v410 = vpop.f32.mrb[0].mxu0
  %v411 = vpop.f32.mrb[0].mxu0
  %v412 = vadd.f32 0.0, %v411
  %v413 = vpop.f32.mrb[0].mxu0
  %414 = vmatprep.mubr.bf16.mxu0 0
  %415 = vmatmul.mubr.bf16.gmra.mrb[0].mxu0 %v228
  %v416 = vpop.f32.mrb[0].mxu0
  %v417 = vadd.f32 0.0, %v416
  %v418 = vpop.f32.mrb[0].mxu0
  %v419 = vpop.f32.mrb[0].mxu0
  %v420 = vadd.f32 0.0, %v419
  %v421 = vpop.f32.mrb[0].mxu0
  %422 = vmatprep.mubr.bf16.mxu0 0
  %423 = vmatmul.mubr.bf16.gmra.mrb[0].mxu0 %v229
  %v424 = vpop.f32.mrb[0].mxu0
  %v425 = vadd.f32 0.0, %v424
  %v426 = vpop.f32.mrb[0].mxu0
  %v427 = vpop.f32.mrb[0].mxu0
  %v428 = vadd.f32 0.0, %v427
  %v429 = vpop.f32.mrb[0].mxu0
  %430 = vmatprep.mubr.bf16.mxu0 0
  %431 = vmatmul.mubr.bf16.gmra.mrb[0].mxu0 %v230
  %v432 = vpop.f32.mrb[0].mxu0
  %v433 = vadd.f32 0.0, %v432
  %v434 = vpop.f32.mrb[0].mxu0
  %v435 = vpop.f32.mrb[0].mxu0
  %v436 = vadd.f32 0.0, %v435
  %v437 = vpop.f32.mrb[0].mxu0
  %438 = vmatprep.mubr.bf16.mxu0 0
  %439 = vmatmul.mubr.bf16.gmra.mrb[0].mxu0 %v231
  %v440 = vpop.f32.mrb[0].mxu0
  %v441 = vadd.f32 0.0, %v440
  %v442 = vpop.f32.mrb[0].mxu0
  %v443 = vpop.f32.mrb[0].mxu0
  %v444 = vadd.f32 0.0, %v443
  %v445 = vpop.f32.mrb[0].mxu0
  %446 = vmatprep.mubr.bf16.mxu0 0
  %447 = vmatmul.mubr.bf16.gmra.mrb[0].mxu0 %v232
  %v448 = vpop.f32.mrb[0].mxu0
  %v449 = vadd.f32 0.0, %v448
  %v450 = vpop.f32.mrb[0].mxu0
  %v451 = vpop.f32.mrb[0].mxu0
  %v452 = vadd.f32 0.0, %v451
  %v453 = vpop.f32.mrb[0].mxu0
  %454 = vmatprep.mubr.bf16.mxu0 0
  %455 = vmatmul.mubr.bf16.gmra.mrb[0].mxu0 %v233
  %v456 = vpop.f32.mrb[0].mxu0
  %v457 = vadd.f32 0.0, %v456
  %v458 = vpop.f32.mrb[0].mxu0
  %v459 = vpop.f32.mrb[0].mxu0
  %v460 = vadd.f32 0.0, %v459
  %v461 = vpop.f32.mrb[0].mxu0
  %462 = vmatprep.mubr.bf16.mxu0 0
  %463 = vmatmul.mubr.bf16.gmra.mrb[0].mxu0 %v234
  %v464 = vpop.f32.mrb[0].mxu0
  %v465 = vadd.f32 0.0, %v464
  %v466 = vpop.f32.mrb[0].mxu0
  %v467 = vpop.f32.mrb[0].mxu0
  %v468 = vadd.f32 0.0, %v467
  %v469 = vpop.f32.mrb[0].mxu0
  %470 = vmatprep.mubr.bf16.mxu0 0
  %471 = vmatmul.mubr.bf16.gmra.mrb[0].mxu0 %v235
  %v472 = vpop.f32.mrb[0].mxu0
  %v473 = vadd.f32 0.0, %v472
  %v474 = vpop.f32.mrb[0].mxu0
  %v475 = vpop.f32.mrb[0].mxu0
  %v476 = vadd.f32 0.0, %v475
  %v477 = vpop.f32.mrb[0].mxu0
  %478 = vmatprep.mubr.bf16.mxu0 0
  %479 = vmatmul.mubr.bf16.gmra.mrb[0].mxu0 %v236
  %v480 = vpop.f32.mrb[0].mxu0
  %v481 = vadd.f32 0.0, %v480
  %v482 = vpop.f32.mrb[0].mxu0
  %v483 = vpop.f32.mrb[0].mxu0
  %v484 = vadd.f32 0.0, %v483
  %v485 = vpop.f32.mrb[0].mxu0
  %486 = vmatprep.mubr.bf16.mxu0 0
  %487 = vmatmul.mubr.bf16.gmra.mrb[0].mxu0 %v237
  %v488 = vpop.f32.mrb[0].mxu0
  %v489 = vadd.f32 0.0, %v488
  %v490 = vpop.f32.mrb[0].mxu0
  %v491 = vpop.f32.mrb[0].mxu0
  %v492 = vadd.f32 0.0, %v491
  %v493 = vpop.f32.mrb[0].mxu0
  %494 = vmatprep.mubr.bf16.mxu0 0
  %495 = vmatmul.mubr.bf16.gmra.mrb[0].mxu0 %v238
  %v496 = vpop.f32.mrb[0].mxu0
  %v497 = vadd.f32 0.0, %v496
  %v498 = vpop.f32.mrb[0].mxu0
  %v499 = vpop.f32.mrb[0].mxu0
  %v500 = vadd.f32 0.0, %v499
  %v501 = vpop.f32.mrb[0].mxu0
  %502 = vmatprep.mubr.bf16.mxu0 0
  %503 = vmatmul.mubr.bf16.gmra.mrb[0].mxu0 %v239
  %v504 = vpop.f32.mrb[0].mxu0
  %v505 = vadd.f32 0.0, %v504
  %v506 = vpop.f32.mrb[0].mxu0
  %v507 = vpop.f32.mrb[0].mxu0
  %v508 = vadd.f32 0.0, %v507
  %v509 = vpop.f32.mrb[0].mxu0
  %510 = vmatprep.mubr.bf16.mxu0 0
  %511 = vmatmul.mubr.bf16.gmra.mrb[0].mxu0 %v240
  %v512 = vpop.f32.mrb[0].mxu0
  %v513 = vadd.f32 0.0, %v512
  %v514 = vpop.f32.mrb[0].mxu0
  %v515 = vpop.f32.mrb[0].mxu0
  %v516 = vadd.f32 0.0, %v515
  %v517 = vpop.f32.mrb[0].mxu0
  %518 = vmatprep.mubr.bf16.mxu0 0
  %519 = vmatmul.mubr.bf16.gmra.mrb[0].mxu0 %v241
  %v520 = vpop.f32.mrb[0].mxu0
  %v521 = vadd.f32 0.0, %v520
  %v522 = vpop.f32.mrb[0].mxu0
  %v523 = vpop.f32.mrb[0].mxu0
  %v524 = vadd.f32 0.0, %v523
  %v525 = vpop.f32.mrb[0].mxu0
  %526 = vmatprep.mubr.bf16.mxu0 0
  %527 = vmatmul.mubr.bf16.gmra.mrb[0].mxu0 %v242
  %v528 = vpop.f32.mrb[0].mxu0
  %v529 = vadd.f32 0.0, %v528
  %v530 = vpop.f32.mrb[0].mxu0
  %v531 = vpop.f32.mrb[0].mxu0
  %v532 = vadd.f32 0.0, %v531
  %v533 = vpop.f32.mrb[0].mxu0
  %534 = vmatprep.mubr.bf16.mxu0 0
  %535 = vmatmul.mubr.bf16.gmra.mrb[0].mxu0 %v243
  %v536 = vpop.f32.mrb[0].mxu0
  %v537 = vadd.f32 0.0, %v536
  %v538 = vpop.f32.mrb[0].mxu0
  %v539 = vpop.f32.mrb[0].mxu0
  %v540 = vadd.f32 0.0, %v539
  %v541 = vpop.f32.mrb[0].mxu0
  %542 = vmatprep.mubr.bf16.mxu0 0
  %543 = vmatmul.mubr.bf16.gmra.mrb[0].mxu0 %v244
  %v544 = vpop.f32.mrb[0].mxu0
  %v545 = vadd.f32 0.0, %v544
  %v546 = vpop.f32.mrb[0].mxu0
  %v547 = vpop.f32.mrb[0].mxu0
  %v548 = vadd.f32 0.0, %v547
  %v549 = vpop.f32.mrb[0].mxu0
  %550 = vmatprep.mubr.bf16.mxu0 0
  %551 = vmatmul.mubr.bf16.gmra.mrb[0].mxu0 %v245
  %v552 = vpop.f32.mrb[0].mxu0
  %v553 = vadd.f32 0.0, %v552
  %v554 = vpop.f32.mrb[0].mxu0
  %v555 = vpop.f32.mrb[0].mxu0
  %v556 = vadd.f32 0.0, %v555
  %v557 = vpop.f32.mrb[0].mxu0
  %558 = vmatprep.mubr.bf16.mxu0 0
  %559 = vmatmul.mubr.bf16.gmra.mrb[0].mxu0 %v246
  %v560 = vpop.f32.mrb[0].mxu0
  %v561 = vadd.f32 0.0, %v560
  %v562 = vpop.f32.mrb[0].mxu0
  %v563 = vpop.f32.mrb[0].mxu0
  %v564 = vadd.f32 0.0, %v563
  %v565 = vpop.f32.mrb[0].mxu0
  %566 = vmatprep.mubr.bf16.mxu0 0
  %567 = vmatmul.mubr.bf16.gmra.mrb[0].mxu0 %v247
  %v568 = vpop.f32.mrb[0].mxu0
  %v569 = vadd.f32 0.0, %v568
  %v570 = vpop.f32.mrb[0].mxu0
  %v571 = vpop.f32.mrb[0].mxu0
  %v572 = vadd.f32 0.0, %v571
  %v573 = vpop.f32.mrb[0].mxu0
  %574 = vmatprep.mubr.bf16.mxu0 0
  %575 = vmatmul.mubr.bf16.gmra.mrb[0].mxu0 %v248
  %v576 = vpop.f32.mrb[0].mxu0
  %v577 = vadd.f32 0.0, %v576
  %v578 = vpop.f32.mrb[0].mxu0
  %v579 = vpop.f32.mrb[0].mxu0
  %v580 = vadd.f32 0.0, %v579
  %v581 = vpop.f32.mrb[0].mxu0
  %582 = vmatprep.mubr.bf16.mxu0 0
  %583 = vmatmul.mubr.bf16.gmra.mrb[0].mxu0 %v249
  %v584 = vpop.f32.mrb[0].mxu0
  %v585 = vadd.f32 0.0, %v584
  %v586 = vpop.f32.mrb[0].mxu0
  %v587 = vpop.f32.mrb[0].mxu0
  %v588 = vadd.f32 0.0, %v587
  %v589 = vpop.f32.mrb[0].mxu0
  %590 = vmatprep.mubr.bf16.mxu0 0
  %591 = vmatmul.mubr.bf16.gmra.mrb[0].mxu0 %v250
  %v592 = vpop.f32.mrb[0].mxu0
  %v593 = vadd.f32 0.0, %v592
  %v594 = vpop.f32.mrb[0].mxu0
  %v595 = vpop.f32.mrb[0].mxu0
  %v596 = vadd.f32 0.0, %v595
  %v597 = vpop.f32.mrb[0].mxu0
  %598 = vmatprep.mubr.bf16.mxu0 0
  %599 = vmatmul.mubr.bf16.gmra.mrb[0].mxu0 %v251
  %v600 = vpop.f32.mrb[0].mxu0
  %v601 = vadd.f32 0.0, %v600
  %v602 = vpop.f32.mrb[0].mxu0
  %v603 = vpop.f32.mrb[0].mxu0
  %v604 = vadd.f32 0.0, %v603
  %v605 = vpop.f32.mrb[0].mxu0
  %606 = vmatprep.mubr.bf16.mxu0 0
  %607 = vmatmul.mubr.bf16.gmra.mrb[0].mxu0 %v252
  %v608 = vpop.f32.mrb[0].mxu0
  %v609 = vadd.f32 0.0, %v608
  %v610 = vpop.f32.mrb[0].mxu0
  %v611 = vpop.f32.mrb[0].mxu0
  %v612 = vadd.f32 0.0, %v611
  %v613 = vpop.f32.mrb[0].mxu0
  %614 = vmatprep.mubr.bf16.mxu0 0
  %615 = vmatmul.mubr.bf16.gmra.mrb[0].mxu0 %v253
  %v616 = vpop.f32.mrb[0].mxu0
  %v617 = vadd.f32 0.0, %v616
  %v618 = vpop.f32.mrb[0].mxu0
  %v619 = vpop.f32.mrb[0].mxu0
  %v620 = vadd.f32 0.0, %v619
  %v621 = vpop.f32.mrb[0].mxu0
  %622 = vdwg.mxu0
  %v623 = vpack.c.bf16 %v372, %v369
  %v624 = vpack.c.bf16 %v380, %v377
  %v625 = vpack.c.bf16 %v388, %v385
  %v626 = vpack.c.bf16 %v396, %v393
  %v627 = vpack.c.bf16 %v404, %v401
  %v628 = vpack.c.bf16 %v412, %v409
  %v629 = vpack.c.bf16 %v420, %v417
  %v630 = vpack.c.bf16 %v428, %v425
  %v631 = vpack.c.bf16 %v436, %v433
  %v632 = vpack.c.bf16 %v444, %v441
  %v633 = vpack.c.bf16 %v452, %v449
  %v634 = vpack.c.bf16 %v460, %v457
  %v635 = vpack.c.bf16 %v468, %v465
  %v636 = vpack.c.bf16 %v476, %v473
  %v637 = vpack.c.bf16 %v484, %v481
  %v638 = vpack.c.bf16 %v492, %v489
  %v639 = vpack.c.bf16 %v500, %v497
  %v640 = vpack.c.bf16 %v508, %v505
  %v641 = vpack.c.bf16 %v516, %v513
  %v642 = vpack.c.bf16 %v524, %v521
  %v643 = vpack.c.bf16 %v532, %v529
  %v644 = vpack.c.bf16 %v540, %v537
  %v645 = vpack.c.bf16 %v548, %v545
  %v646 = vpack.c.bf16 %v556, %v553
  %v647 = vpack.c.bf16 %v564, %v561
  %v648 = vpack.c.bf16 %v572, %v569
  %v649 = vpack.c.bf16 %v580, %v577
  %v650 = vpack.c.bf16 %v588, %v585
  %v651 = vpack.c.bf16 %v596, %v593
  %v652 = vpack.c.bf16 %v604, %v601
  %v653 = vpack.c.bf16 %v612, %v609
  %v654 = vpack.c.bf16 %v620, %v617
  %v687 = vunpack.c.l.b16 %v623
  %v688 = vunpack.c.h.b16 %v623
  %v689 = vunpack.c.l.b16 %v624
  %v690 = vunpack.c.h.b16 %v624
  %v691 = vunpack.c.l.b16 %v625
  %v692 = vunpack.c.h.b16 %v625
  %v693 = vunpack.c.l.b16 %v626
  %v694 = vunpack.c.h.b16 %v626
  %v695 = vunpack.c.l.b16 %v627
  %v696 = vunpack.c.h.b16 %v627
  %v697 = vunpack.c.l.b16 %v628
  %v698 = vunpack.c.h.b16 %v628
  %v699 = vunpack.c.l.b16 %v629
  %v700 = vunpack.c.h.b16 %v629
  %v701 = vunpack.c.l.b16 %v630
  %v702 = vunpack.c.h.b16 %v630
  %v703 = vunpack.c.l.b16 %v631
  %v704 = vunpack.c.h.b16 %v631
  %v705 = vunpack.c.l.b16 %v632
  %v706 = vunpack.c.h.b16 %v632
  %v707 = vunpack.c.l.b16 %v633
  %v708 = vunpack.c.h.b16 %v633
  %v709 = vunpack.c.l.b16 %v634
  %v710 = vunpack.c.h.b16 %v634
  %v711 = vunpack.c.l.b16 %v635
  %v712 = vunpack.c.h.b16 %v635
  %v713 = vunpack.c.l.b16 %v636
  %v714 = vunpack.c.h.b16 %v636
  %v715 = vunpack.c.l.b16 %v637
  %v716 = vunpack.c.h.b16 %v637
  %v717 = vunpack.c.l.b16 %v638
  %v718 = vunpack.c.h.b16 %v638
  %v719 = vunpack.c.l.b16 %v639
  %v720 = vunpack.c.h.b16 %v639
  %v721 = vunpack.c.l.b16 %v640
  %v722 = vunpack.c.h.b16 %v640
  %v723 = vunpack.c.l.b16 %v641
  %v724 = vunpack.c.h.b16 %v641
  %v725 = vunpack.c.l.b16 %v642
  %v726 = vunpack.c.h.b16 %v642
  %v727 = vunpack.c.l.b16 %v643
  %v728 = vunpack.c.h.b16 %v643
  %v729 = vunpack.c.l.b16 %v644
  %v730 = vunpack.c.h.b16 %v644
  %v731 = vunpack.c.l.b16 %v645
  %v732 = vunpack.c.h.b16 %v645
  %v733 = vunpack.c.l.b16 %v646
  %v734 = vunpack.c.h.b16 %v646
  %v735 = vunpack.c.l.b16 %v647
  %v736 = vunpack.c.h.b16 %v647
  %v737 = vunpack.c.l.b16 %v648
  %v738 = vunpack.c.h.b16 %v648
  %v739 = vunpack.c.l.b16 %v649
  %v740 = vunpack.c.h.b16 %v649
  %v741 = vunpack.c.l.b16 %v650
  %v742 = vunpack.c.h.b16 %v650
  %v743 = vunpack.c.l.b16 %v651
  %v744 = vunpack.c.h.b16 %v651
  %v745 = vunpack.c.l.b16 %v652
  %v746 = vunpack.c.h.b16 %v652
  %v747 = vunpack.c.l.b16 %v653
  %v748 = vunpack.c.h.b16 %v653
  %v749 = vunpack.c.l.b16 %v654
  %v750 = vunpack.c.h.b16 %v654
  %v751 = vpack.c.b16 %v687, %v687
  %v752 = vpack.c.b16 %v688, %v688
  %v753 = vpack.c.b16 %v689, %v689
  %v754 = vpack.c.b16 %v690, %v690
  %v755 = vpack.c.b16 %v691, %v691
  %v756 = vpack.c.b16 %v692, %v692
  %v757 = vpack.c.b16 %v693, %v693
  %v758 = vpack.c.b16 %v694, %v694
  %v759 = vpack.c.b16 %v695, %v695
  %v760 = vpack.c.b16 %v696, %v696
  %v761 = vpack.c.b16 %v697, %v697
  %v762 = vpack.c.b16 %v698, %v698
  %v763 = vpack.c.b16 %v699, %v699
  %v764 = vpack.c.b16 %v700, %v700
  %v765 = vpack.c.b16 %v701, %v701
  %v766 = vpack.c.b16 %v702, %v702
  %v767 = vpack.c.b16 %v703, %v703
  %v768 = vpack.c.b16 %v704, %v704
  %v769 = vpack.c.b16 %v705, %v705
  %v770 = vpack.c.b16 %v706, %v706
  %v771 = vpack.c.b16 %v707, %v707
  %v772 = vpack.c.b16 %v708, %v708
  %v773 = vpack.c.b16 %v709, %v709
  %v774 = vpack.c.b16 %v710, %v710
  %v775 = vpack.c.b16 %v711, %v711
  %v776 = vpack.c.b16 %v712, %v712
  %v777 = vpack.c.b16 %v713, %v713
  %v778 = vpack.c.b16 %v714, %v714
  %v779 = vpack.c.b16 %v715, %v715
  %v780 = vpack.c.b16 %v716, %v716
  %v781 = vpack.c.b16 %v717, %v717
  %v782 = vpack.c.b16 %v718, %v718
  %v783 = vpack.c.b16 %v719, %v719
  %v784 = vpack.c.b16 %v720, %v720
  %v785 = vpack.c.b16 %v721, %v721
  %v786 = vpack.c.b16 %v722, %v722
  %v787 = vpack.c.b16 %v723, %v723
  %v788 = vpack.c.b16 %v724, %v724
  %v789 = vpack.c.b16 %v725, %v725
  %v790 = vpack.c.b16 %v726, %v726
  %v791 = vpack.c.b16 %v727, %v727
  %v792 = vpack.c.b16 %v728, %v728
  %v793 = vpack.c.b16 %v729, %v729
  %v794 = vpack.c.b16 %v730, %v730
  %v795 = vpack.c.b16 %v731, %v731
  %v796 = vpack.c.b16 %v732, %v732
  %v797 = vpack.c.b16 %v733, %v733
  %v798 = vpack.c.b16 %v734, %v734
  %v799 = vpack.c.b16 %v735, %v735
  %v800 = vpack.c.b16 %v736, %v736
  %v801 = vpack.c.b16 %v737, %v737
  %v802 = vpack.c.b16 %v738, %v738
  %v803 = vpack.c.b16 %v739, %v739
  %v804 = vpack.c.b16 %v740, %v740
  %v805 = vpack.c.b16 %v741, %v741
  %v806 = vpack.c.b16 %v742, %v742
  %v807 = vpack.c.b16 %v743, %v743
  %v808 = vpack.c.b16 %v744, %v744
  %v809 = vpack.c.b16 %v745, %v745
  %v810 = vpack.c.b16 %v746, %v746
  %v811 = vpack.c.b16 %v747, %v747
  %v812 = vpack.c.b16 %v748, %v748
  %v813 = vpack.c.b16 %v749, %v749
  %v814 = vpack.c.b16 %v750, %v750
  %879 = vst [vmem:[%s2] sm:$0xf] %v751
  %880 = vst [vmem:[%s2 + $0x4] sm:$0xf] %v752
  %881 = vst [vmem:[%s2 + $0x8] sm:$0xf] %v753
  %882 = vst [vmem:[%s2 + $0xc] sm:$0xf] %v754
  %883 = vst [vmem:[%s2 + $0x10] sm:$0xf] %v755
  %884 = vst [vmem:[%s2 + $0x14] sm:$0xf] %v756
  %885 = vst [vmem:[%s2 + $0x18] sm:$0xf] %v757
  %886 = vst [vmem:[%s2 + $0x1c] sm:$0xf] %v758
  %887 = vst [vmem:[%s2 + $0x20] sm:$0xf] %v759
  %888 = vst [vmem:[%s2 + $0x24] sm:$0xf] %v760
  %889 = vst [vmem:[%s2 + $0x28] sm:$0xf] %v761
  %890 = vst [vmem:[%s2 + $0x2c] sm:$0xf] %v762
  %891 = vst [vmem:[%s2 + $0x30] sm:$0xf] %v763
  %892 = vst [vmem:[%s2 + $0x34] sm:$0xf] %v764
  %893 = vst [vmem:[%s2 + $0x38] sm:$0xf] %v765
  %894 = vst [vmem:[%s2 + $0x3c] sm:$0xf] %v766
  %895 = vst [vmem:[%s2 + $0x40] sm:$0xf] %v767
  %896 = vst [vmem:[%s2 + $0x44] sm:$0xf] %v768
  %897 = vst [vmem:[%s2 + $0x48] sm:$0xf] %v769
  %898 = vst [vmem:[%s2 + $0x4c] sm:$0xf] %v770
  %899 = vst [vmem:[%s2 + $0x50] sm:$0xf] %v771
  %900 = vst [vmem:[%s2 + $0x54] sm:$0xf] %v772
  %901 = vst [vmem:[%s2 + $0x58] sm:$0xf] %v773
  %902 = vst [vmem:[%s2 + $0x5c] sm:$0xf] %v774
  %903 = vst [vmem:[%s2 + $0x60] sm:$0xf] %v775
  %904 = vst [vmem:[%s2 + $0x64] sm:$0xf] %v776
  %905 = vst [vmem:[%s2 + $0x68] sm:$0xf] %v777
  %906 = vst [vmem:[%s2 + $0x6c] sm:$0xf] %v778
  %907 = vst [vmem:[%s2 + $0x70] sm:$0xf] %v779
  %908 = vst [vmem:[%s2 + $0x74] sm:$0xf] %v780
  %909 = vst [vmem:[%s2 + $0x78] sm:$0xf] %v781
  %910 = vst [vmem:[%s2 + $0x7c] sm:$0xf] %v782
  %911 = vst [vmem:[%s2 + $0x80] sm:$0xf] %v783
  %912 = vst [vmem:[%s2 + $0x84] sm:$0xf] %v784
  %913 = vst [vmem:[%s2 + $0x88] sm:$0xf] %v785
  %914 = vst [vmem:[%s2 + $0x8c] sm:$0xf] %v786
  %915 = vst [vmem:[%s2 + $0x90] sm:$0xf] %v787
  %916 = vst [vmem:[%s2 + $0x94] sm:$0xf] %v788
  %917 = vst [vmem:[%s2 + $0x98] sm:$0xf] %v789
  %918 = vst [vmem:[%s2 + $0x9c] sm:$0xf] %v790
  %919 = vst [vmem:[%s2 + $0xa0] sm:$0xf] %v791
  %920 = vst [vmem:[%s2 + $0xa4] sm:$0xf] %v792
  %921 = vst [vmem:[%s2 + $0xa8] sm:$0xf] %v793
  %922 = vst [vmem:[%s2 + $0xac] sm:$0xf] %v794
  %923 = vst [vmem:[%s2 + $0xb0] sm:$0xf] %v795
  %924 = vst [vmem:[%s2 + $0xb4] sm:$0xf] %v796
  %925 = vst [vmem:[%s2 + $0xb8] sm:$0xf] %v797
  %926 = vst [vmem:[%s2 + $0xbc] sm:$0xf] %v798
  %927 = vst [vmem:[%s2 + $0xc0] sm:$0xf] %v799
  %928 = vst [vmem:[%s2 + $0xc4] sm:$0xf] %v800
  %929 = vst [vmem:[%s2 + $0xc8] sm:$0xf] %v801
  %930 = vst [vmem:[%s2 + $0xcc] sm:$0xf] %v802
  %931 = vst [vmem:[%s2 + $0xd0] sm:$0xf] %v803
  %932 = vst [vmem:[%s2 + $0xd4] sm:$0xf] %v804
  %933 = vst [vmem:[%s2 + $0xd8] sm:$0xf] %v805
  %934 = vst [vmem:[%s2 + $0xdc] sm:$0xf] %v806
  %935 = vst [vmem:[%s2 + $0xe0] sm:$0xf] %v807
  %936 = vst [vmem:[%s2 + $0xe4] sm:$0xf] %v808
  %937 = vst [vmem:[%s2 + $0xe8] sm:$0xf] %v809
  %938 = vst [vmem:[%s2 + $0xec] sm:$0xf] %v810
  %939 = vst [vmem:[%s2 + $0xf0] sm:$0xf] %v811
  %940 = vst [vmem:[%s2 + $0xf4] sm:$0xf] %v812
  %941 = vst [vmem:[%s2 + $0xf8] sm:$0xf] %v813
  %942 = vst [vmem:[%s2 + $0xfc] sm:$0xf] %v814
  %v943 = vadd.f32 %v369, %v372
  %v944 = vadd.f32 %v943, %v377
  %v945 = vadd.f32 %v944, %v380
  %v946 = vadd.f32 %v945, %v385
  %v947 = vadd.f32 %v946, %v388
  %v948 = vadd.f32 %v947, %v393
  %v949 = vadd.f32 %v948, %v396
  %v950 = vadd.f32 %v949, %v401
  %v951 = vadd.f32 %v950, %v404
  %v952 = vadd.f32 %v951, %v409
  %v953 = vadd.f32 %v952, %v412
  %v954 = vadd.f32 %v953, %v417
  %v955 = vadd.f32 %v954, %v420
  %v956 = vadd.f32 %v955, %v425
  %v957 = vadd.f32 %v956, %v428
  %v958 = vadd.f32 %v957, %v433
  %v959 = vadd.f32 %v958, %v436
  %v960 = vadd.f32 %v959, %v441
  %v961 = vadd.f32 %v960, %v444
  %v962 = vadd.f32 %v961, %v449
  %v963 = vadd.f32 %v962, %v452
  %v964 = vadd.f32 %v963, %v457
  %v965 = vadd.f32 %v964, %v460
  %v966 = vadd.f32 %v965, %v465
  %v967 = vadd.f32 %v966, %v468
  %v968 = vadd.f32 %v967, %v473
  %v969 = vadd.f32 %v968, %v476
  %v970 = vadd.f32 %v969, %v481
  %v971 = vadd.f32 %v970, %v484
  %v972 = vadd.f32 %v971, %v489
  %v973 = vadd.f32 %v972, %v492
  %v974 = vadd.f32 %v973, %v497
  %v975 = vadd.f32 %v974, %v500
  %v976 = vadd.f32 %v975, %v505
  %v977 = vadd.f32 %v976, %v508
  %v978 = vadd.f32 %v977, %v513
  %v979 = vadd.f32 %v978, %v516
  %v980 = vadd.f32 %v979, %v521
  %v981 = vadd.f32 %v980, %v524
  %v982 = vadd.f32 %v981, %v529
  %v983 = vadd.f32 %v982, %v532
  %v984 = vadd.f32 %v983, %v537
  %v985 = vadd.f32 %v984, %v540
  %v986 = vadd.f32 %v985, %v545
  %v987 = vadd.f32 %v986, %v548
  %v988 = vadd.f32 %v987, %v553
  %v989 = vadd.f32 %v988, %v556
  %v990 = vadd.f32 %v989, %v561
  %v991 = vadd.f32 %v990, %v564
  %v992 = vadd.f32 %v991, %v569
  %v993 = vadd.f32 %v992, %v572
  %v994 = vadd.f32 %v993, %v577
  %v995 = vadd.f32 %v994, %v580
  %v996 = vadd.f32 %v995, %v585
  %v997 = vadd.f32 %v996, %v588
  %v998 = vadd.f32 %v997, %v593
  %v999 = vadd.f32 %v998, %v596
  %v1000 = vadd.f32 %v999, %v601
  %v1001 = vadd.f32 %v1000, %v604
  %v1002 = vadd.f32 %v1001, %v609
  %v1003 = vadd.f32 %v1002, %v612
  %v1004 = vadd.f32 %v1003, %v617
  %v1005 = vadd.f32 %v1004, %v620
  %v1006 = vrot.slane %v1005, 4
  %v1007 = vadd.f32 %v1005, %v1006
  %v1008 = vrot.slane %v1007, 2
  %v1009 = vadd.f32 %v1007, %v1008
  %v1010 = vrot.slane %v1009, 1
  %v1011 = vadd.f32 %v1009, %v1010
  %v1012 = vmul.f32 %v369, %v369
  %v1013 = vmul.f32 %v372, %v372
  %v1014 = vmul.f32 %v377, %v377
  %v1015 = vmul.f32 %v380, %v380
  %v1016 = vmul.f32 %v385, %v385
  %v1017 = vmul.f32 %v388, %v388
  %v1018 = vmul.f32 %v393, %v393
  %v1019 = vmul.f32 %v396, %v396
  %v1020 = vmul.f32 %v401, %v401
  %v1021 = vmul.f32 %v404, %v404
  %v1022 = vmul.f32 %v409, %v409
  %v1023 = vmul.f32 %v412, %v412
  %v1024 = vmul.f32 %v417, %v417
  %v1025 = vmul.f32 %v420, %v420
  %v1026 = vmul.f32 %v425, %v425
  %v1027 = vmul.f32 %v428, %v428
  %v1028 = vmul.f32 %v433, %v433
  %v1029 = vmul.f32 %v436, %v436
  %v1030 = vmul.f32 %v441, %v441
  %v1031 = vmul.f32 %v444, %v444
  %v1032 = vmul.f32 %v449, %v449
  %v1033 = vmul.f32 %v452, %v452
  %v1034 = vmul.f32 %v457, %v457
  %v1035 = vmul.f32 %v460, %v460
  %v1036 = vmul.f32 %v465, %v465
  %v1037 = vmul.f32 %v468, %v468
  %v1038 = vmul.f32 %v473, %v473
  %v1039 = vmul.f32 %v476, %v476
  %v1040 = vmul.f32 %v481, %v481
  %v1041 = vmul.f32 %v484, %v484
  %v1042 = vmul.f32 %v489, %v489
  %v1043 = vmul.f32 %v492, %v492
  %v1044 = vmul.f32 %v497, %v497
  %v1045 = vmul.f32 %v500, %v500
  %v1046 = vmul.f32 %v505, %v505
  %v1047 = vmul.f32 %v508, %v508
  %v1048 = vmul.f32 %v513, %v513
  %v1049 = vmul.f32 %v516, %v516
  %v1050 = vmul.f32 %v521, %v521
  %v1051 = vmul.f32 %v524, %v524
  %v1052 = vmul.f32 %v529, %v529
  %v1053 = vmul.f32 %v532, %v532
  %v1054 = vmul.f32 %v537, %v537
  %v1055 = vmul.f32 %v540, %v540
  %v1056 = vmul.f32 %v545, %v545
  %v1057 = vmul.f32 %v548, %v548
  %v1058 = vmul.f32 %v553, %v553
  %v1059 = vmul.f32 %v556, %v556
  %v1060 = vmul.f32 %v561, %v561
  %v1061 = vmul.f32 %v564, %v564
  %v1062 = vmul.f32 %v569, %v569
  %v1063 = vmul.f32 %v572, %v572
  %v1064 = vmul.f32 %v577, %v577
  %v1065 = vmul.f32 %v580, %v580
  %v1066 = vmul.f32 %v585, %v585
  %v1067 = vmul.f32 %v588, %v588
  %v1068 = vmul.f32 %v593, %v593
  %v1069 = vmul.f32 %v596, %v596
  %v1070 = vmul.f32 %v601, %v601
  %v1071 = vmul.f32 %v604, %v604
  %v1072 = vmul.f32 %v609, %v609
  %v1073 = vmul.f32 %v612, %v612
  %v1074 = vmul.f32 %v617, %v617
  %v1075 = vmul.f32 %v620, %v620
  %v1076 = vadd.f32 %v1012, %v1013
  %v1077 = vadd.f32 %v1076, %v1014
  %v1078 = vadd.f32 %v1077, %v1015
  %v1079 = vadd.f32 %v1078, %v1016
  %v1080 = vadd.f32 %v1079, %v1017
  %v1081 = vadd.f32 %v1080, %v1018
  %v1082 = vadd.f32 %v1081, %v1019
  %v1083 = vadd.f32 %v1082, %v1020
  %v1084 = vadd.f32 %v1083, %v1021
  %v1085 = vadd.f32 %v1084, %v1022
  %v1086 = vadd.f32 %v1085, %v1023
  %v1087 = vadd.f32 %v1086, %v1024
  %v1088 = vadd.f32 %v1087, %v1025
  %v1089 = vadd.f32 %v1088, %v1026
  %v1090 = vadd.f32 %v1089, %v1027
  %v1091 = vadd.f32 %v1090, %v1028
  %v1092 = vadd.f32 %v1091, %v1029
  %v1093 = vadd.f32 %v1092, %v1030
  %v1094 = vadd.f32 %v1093, %v1031
  %v1095 = vadd.f32 %v1094, %v1032
  %v1096 = vadd.f32 %v1095, %v1033
  %v1097 = vadd.f32 %v1096, %v1034
  %v1098 = vadd.f32 %v1097, %v1035
  %v1099 = vadd.f32 %v1098, %v1036
  %v1100 = vadd.f32 %v1099, %v1037
  %v1101 = vadd.f32 %v1100, %v1038
  %v1102 = vadd.f32 %v1101, %v1039
  %v1103 = vadd.f32 %v1102, %v1040
  %v1104 = vadd.f32 %v1103, %v1041
  %v1105 = vadd.f32 %v1104, %v1042
  %v1106 = vadd.f32 %v1105, %v1043
  %v1107 = vadd.f32 %v1106, %v1044
  %v1108 = vadd.f32 %v1107, %v1045
  %v1109 = vadd.f32 %v1108, %v1046
  %v1110 = vadd.f32 %v1109, %v1047
  %v1111 = vadd.f32 %v1110, %v1048
  %v1112 = vadd.f32 %v1111, %v1049
  %v1113 = vadd.f32 %v1112, %v1050
  %v1114 = vadd.f32 %v1113, %v1051
  %v1115 = vadd.f32 %v1114, %v1052
  %v1116 = vadd.f32 %v1115, %v1053
  %v1117 = vadd.f32 %v1116, %v1054
  %v1118 = vadd.f32 %v1117, %v1055
  %v1119 = vadd.f32 %v1118, %v1056
  %v1120 = vadd.f32 %v1119, %v1057
  %v1121 = vadd.f32 %v1120, %v1058
  %v1122 = vadd.f32 %v1121, %v1059
  %v1123 = vadd.f32 %v1122, %v1060
  %v1124 = vadd.f32 %v1123, %v1061
  %v1125 = vadd.f32 %v1124, %v1062
  %v1126 = vadd.f32 %v1125, %v1063
  %v1127 = vadd.f32 %v1126, %v1064
  %v1128 = vadd.f32 %v1127, %v1065
  %v1129 = vadd.f32 %v1128, %v1066
  %v1130 = vadd.f32 %v1129, %v1067
  %v1131 = vadd.f32 %v1130, %v1068
  %v1132 = vadd.f32 %v1131, %v1069
  %v1133 = vadd.f32 %v1132, %v1070
  %v1134 = vadd.f32 %v1133, %v1071
  %v1135 = vadd.f32 %v1134, %v1072
  %v1136 = vadd.f32 %v1135, %v1073
  %v1137 = vadd.f32 %v1136, %v1074
  %v1138 = vadd.f32 %v1137, %v1075
  %v1139 = vrot.slane %v1138, 4
  %v1140 = vadd.f32 %v1138, %v1139
  %v1141 = vrot.slane %v1140, 2
  %v1142 = vadd.f32 %v1140, %v1141
  %v1143 = vrot.slane %v1142, 1
  %v1144 = vadd.f32 %v1142, %v1143
  %vm1145 = vcmask 1040384
  %v1146 = vsel %vm1145, %v1011, %v1144
  %1147 = vst [vmem:[%s3] sm:$0x3] %v1146
  // Predicated region
  $region10: #{bottleneck_forward.5} parent=0 // pred_check
    _
  $region11: #{bottleneck_forward.5} parent=0 // pred_check_branch
    %1149 = sbr.rel (0) target = $region13
  $region12: #{bottleneck_forward.5} parent=0 // pred_region
    _
  $region13: #{bottleneck_forward.5} parent=0 // pred_fallthru
    _
  // Predicated region
  $region14: #{bottleneck_forward.5} parent=0 // pred_check
    _
  $region15: #{bottleneck_forward.5} parent=0 // pred_check_branch
    %1151 = sbr.rel (0) target = $region17
  $region16: #{bottleneck_forward.5} parent=0 // pred_region
    _
  $region17: #{bottleneck_forward.5} parent=0 // pred_fallthru
    _
  // Predicated region
  $region18: #{bottleneck_forward.5} parent=0 // pred_check
    _
  $region19: #{bottleneck_forward.5} parent=0 // pred_check_branch
    %1153 = sbr.rel (0) target = $region21
  $region20: #{bottleneck_forward.5} parent=0 // pred_region
    _
  $region21: #{bottleneck_forward.5} parent=0 // pred_fallthru
    _
  // Predicated region
  $region22: #{bottleneck_forward.5} parent=0 // pred_check
    _
  $region23: #{bottleneck_forward.5} parent=0 // pred_check_branch
    %1155 = sbr.rel (0) target = $region25
  $region24: #{bottleneck_forward.5} parent=0 // pred_region
    _
  $region25: #{bottleneck_forward.5} parent=0 // pred_fallthru
    _

// kernel: bottleneck_forward.8
$region0: #{bottleneck_forward.8}
  #allocation0 [shape = 'u32[]', space=smem, size = 0x4, offset = 0x4, fixed_abs, tag = 'smem constant byte address 0x4 - core index']
  #allocation1 [shape = 'u32[144,128]{1,0:T(1,128)}', space=vmem, size = 0x12000, scoped, tag = 'internal scratch']
  %s0 = inlined_call_operand.vmem [shape: bf16[512,128], index: 0, kind: input, shape index: {}]
  %s1 = inlined_call_operand.vmem [shape: f32[1,128], index: 1, kind: input, shape index: {}]
  %s2 = inlined_call_operand.vmem [shape: f32[1,128], index: 2, kind: input, shape index: {}]
  %s3 = inlined_call_operand.vmem [shape: bf16[128,128], index: 3, kind: input, shape index: {}]
  %s4 = inlined_call_operand.vmem [shape: bf16[512,128], index: 4, kind: output, shape index: {0}]
  %s5 = inlined_call_operand.vmem [shape: f32[1,2,128], index: 5, kind: output, shape index: {1}]
  %6 = xla_tuple %s4, %s5
  %s7 = sld [smem:[#allocation0]]
  $region34: #{bottleneck_forward.8} parent=0
    _
  %s9 = ssub.s32 1, %s7
  %s10 = scalar_select 0, %s9, %s7
  // Predicated region
  $region2: #{bottleneck_forward.8} parent=0 // pred_check
    _
  $region3: #{bottleneck_forward.8} parent=0 // pred_check_branch
    %12 = sbr.rel (0) target = $region5
  $region4: #{bottleneck_forward.8} parent=0 // pred_region
    _
  $region5: #{bottleneck_forward.8} parent=0 // pred_fallthru
    _
  // Predicated region
  $region6: #{bottleneck_forward.8} parent=0 // pred_check
    _
  $region7: #{bottleneck_forward.8} parent=0 // pred_check_branch
    %14 = sbr.rel (0) target = $region9
  $region8: #{bottleneck_forward.8} parent=0 // pred_region
    _
  $region9: #{bottleneck_forward.8} parent=0 // pred_fallthru
    _
  // Predicated region
  $region10: #{bottleneck_forward.8} parent=0 // pred_check
    _
  $region11: #{bottleneck_forward.8} parent=0 // pred_check_branch
    %16 = sbr.rel (0) target = $region13
  $region12: #{bottleneck_forward.8} parent=0 // pred_region
    _
  $region13: #{bottleneck_forward.8} parent=0 // pred_fallthru
    _
  // Predicated region
  $region14: #{bottleneck_forward.8} parent=0 // pred_check
    _
  $region15: #{bottleneck_forward.8} parent=0 // pred_check_branch
    %18 = sbr.rel (0) target = $region17
  $region16: #{bottleneck_forward.8} parent=0 // pred_region
    _
  $region17: #{bottleneck_forward.8} parent=0 // pred_fallthru
    _
  %v20 = vld [vmem:[%s0] sm:$0xf]
  %v21 = vld [vmem:[%s0 + $0x4] sm:$0xf]
  %v22 = vld [vmem:[%s0 + $0x8] sm:$0xf]
  %v23 = vld [vmem:[%s0 + $0xc] sm:$0xf]
  %v24 = vld [vmem:[%s0 + $0x10] sm:$0xf]
  %v25 = vld [vmem:[%s0 + $0x14] sm:$0xf]
  %v26 = vld [vmem:[%s0 + $0x18] sm:$0xf]
  %v27 = vld [vmem:[%s0 + $0x1c] sm:$0xf]
  %v28 = vld [vmem:[%s0 + $0x20] sm:$0xf]
  %v29 = vld [vmem:[%s0 + $0x24] sm:$0xf]
  %v30 = vld [vmem:[%s0 + $0x28] sm:$0xf]
  %v31 = vld [vmem:[%s0 + $0x2c] sm:$0xf]
  %v32 = vld [vmem:[%s0 + $0x30] sm:$0xf]
  %v33 = vld [vmem:[%s0 + $0x34] sm:$0xf]
  %v34 = vld [vmem:[%s0 + $0x38] sm:$0xf]
  %v35 = vld [vmem:[%s0 + $0x3c] sm:$0xf]
  %v36 = vld [vmem:[%s0 + $0x40] sm:$0xf]
  %v37 = vld [vmem:[%s0 + $0x44] sm:$0xf]
  %v38 = vld [vmem:[%s0 + $0x48] sm:$0xf]
  %v39 = vld [vmem:[%s0 + $0x4c] sm:$0xf]
  %v40 = vld [vmem:[%s0 + $0x50] sm:$0xf]
  %v41 = vld [vmem:[%s0 + $0x54] sm:$0xf]
  %v42 = vld [vmem:[%s0 + $0x58] sm:$0xf]
  %v43 = vld [vmem:[%s0 + $0x5c] sm:$0xf]
  %v44 = vld [vmem:[%s0 + $0x60] sm:$0xf]
  %v45 = vld [vmem:[%s0 + $0x64] sm:$0xf]
  %v46 = vld [vmem:[%s0 + $0x68] sm:$0xf]
  %v47 = vld [vmem:[%s0 + $0x6c] sm:$0xf]
  %v48 = vld [vmem:[%s0 + $0x70] sm:$0xf]
  %v49 = vld [vmem:[%s0 + $0x74] sm:$0xf]
  %v50 = vld [vmem:[%s0 + $0x78] sm:$0xf]
  %v51 = vld [vmem:[%s0 + $0x7c] sm:$0xf]
  %v52 = vld [vmem:[%s0 + $0x80] sm:$0xf]
  %v53 = vld [vmem:[%s0 + $0x84] sm:$0xf]
  %v54 = vld [vmem:[%s0 + $0x88] sm:$0xf]
  %v55 = vld [vmem:[%s0 + $0x8c] sm:$0xf]
  %v56 = vld [vmem:[%s0 + $0x90] sm:$0xf]
  %v57 = vld [vmem:[%s0 + $0x94] sm:$0xf]
  %v58 = vld [vmem:[%s0 + $0x98] sm:$0xf]
  %v59 = vld [vmem:[%s0 + $0x9c] sm:$0xf]
  %v60 = vld [vmem:[%s0 + $0xa0] sm:$0xf]
  %v61 = vld [vmem:[%s0 + $0xa4] sm:$0xf]
  %v62 = vld [vmem:[%s0 + $0xa8] sm:$0xf]
  %v63 = vld [vmem:[%s0 + $0xac] sm:$0xf]
  %v64 = vld [vmem:[%s0 + $0xb0] sm:$0xf]
  %v65 = vld [vmem:[%s0 + $0xb4] sm:$0xf]
  %v66 = vld [vmem:[%s0 + $0xb8] sm:$0xf]
  %v67 = vld [vmem:[%s0 + $0xbc] sm:$0xf]
  %v68 = vld [vmem:[%s0 + $0xc0] sm:$0xf]
  %v69 = vld [vmem:[%s0 + $0xc4] sm:$0xf]
  %v70 = vld [vmem:[%s0 + $0xc8] sm:$0xf]
  %v71 = vld [vmem:[%s0 + $0xcc] sm:$0xf]
  %v72 = vld [vmem:[%s0 + $0xd0] sm:$0xf]
  %v73 = vld [vmem:[%s0 + $0xd4] sm:$0xf]
  %v74 = vld [vmem:[%s0 + $0xd8] sm:$0xf]
  %v75 = vld [vmem:[%s0 + $0xdc] sm:$0xf]
  %v76 = vld [vmem:[%s0 + $0xe0] sm:$0xf]
  %v77 = vld [vmem:[%s0 + $0xe4] sm:$0xf]
  %v78 = vld [vmem:[%s0 + $0xe8] sm:$0xf]
  %v79 = vld [vmem:[%s0 + $0xec] sm:$0xf]
  %v80 = vld [vmem:[%s0 + $0xf0] sm:$0xf]
  %v81 = vld [vmem:[%s0 + $0xf4] sm:$0xf]
  %v82 = vld [vmem:[%s0 + $0xf8] sm:$0xf]
  %v83 = vld [vmem:[%s0 + $0xfc] sm:$0xf]
  %v84 = vunpack.c.l.bf16 %v20
  %v85 = vunpack.c.l.bf16 %v21
  %v86 = vunpack.c.l.bf16 %v22
  %v87 = vunpack.c.l.bf16 %v23
  %v88 = vunpack.c.l.bf16 %v24
  %v89 = vunpack.c.l.bf16 %v25
  %v90 = vunpack.c.l.bf16 %v26
  %v91 = vunpack.c.l.bf16 %v27
  %v92 = vunpack.c.l.bf16 %v28
  %v93 = vunpack.c.l.bf16 %v29
  %v94 = vunpack.c.l.bf16 %v30
  %v95 = vunpack.c.l.bf16 %v31
  %v96 = vunpack.c.l.bf16 %v32
  %v97 = vunpack.c.l.bf16 %v33
  %v98 = vunpack.c.l.bf16 %v34
  %v99 = vunpack.c.l.bf16 %v35
  %v100 = vunpack.c.l.bf16 %v36
  %v101 = vunpack.c.l.bf16 %v37
  %v102 = vunpack.c.l.bf16 %v38
  %v103 = vunpack.c.l.bf16 %v39
  %v104 = vunpack.c.l.bf16 %v40
  %v105 = vunpack.c.l.bf16 %v41
  %v106 = vunpack.c.l.bf16 %v42
  %v107 = vunpack.c.l.bf16 %v43
  %v108 = vunpack.c.l.bf16 %v44
  %v109 = vunpack.c.l.bf16 %v45
  %v110 = vunpack.c.l.bf16 %v46
  %v111 = vunpack.c.l.bf16 %v47
  %v112 = vunpack.c.l.bf16 %v48
  %v113 = vunpack.c.l.bf16 %v49
  %v114 = vunpack.c.l.bf16 %v50
  %v115 = vunpack.c.l.bf16 %v51
  %v116 = vunpack.c.l.bf16 %v52
  %v117 = vunpack.c.l.bf16 %v53
  %v118 = vunpack.c.l.bf16 %v54
  %v119 = vunpack.c.l.bf16 %v55
  %v120 = vunpack.c.l.bf16 %v56
  %v121 = vunpack.c.l.bf16 %v57
  %v122 = vunpack.c.l.bf16 %v58
  %v123 = vunpack.c.l.bf16 %v59
  %v124 = vunpack.c.l.bf16 %v60
  %v125 = vunpack.c.l.bf16 %v61
  %v126 = vunpack.c.l.bf16 %v62
  %v127 = vunpack.c.l.bf16 %v63
  %v128 = vunpack.c.l.bf16 %v64
  %v129 = vunpack.c.l.bf16 %v65
  %v130 = vunpack.c.l.bf16 %v66
  %v131 = vunpack.c.l.bf16 %v67
  %v132 = vunpack.c.l.bf16 %v68
  %v133 = vunpack.c.l.bf16 %v69
  %v134 = vunpack.c.l.bf16 %v70
  %v135 = vunpack.c.l.bf16 %v71
  %v136 = vunpack.c.l.bf16 %v72
  %v137 = vunpack.c.l.bf16 %v73
  %v138 = vunpack.c.l.bf16 %v74
  %v139 = vunpack.c.l.bf16 %v75
  %v140 = vunpack.c.l.bf16 %v76
  %v141 = vunpack.c.l.bf16 %v77
  %v142 = vunpack.c.l.bf16 %v78
  %v143 = vunpack.c.l.bf16 %v79
  %v144 = vunpack.c.l.bf16 %v80
  %v145 = vunpack.c.l.bf16 %v81
  %v146 = vunpack.c.l.bf16 %v82
  %v147 = vunpack.c.l.bf16 %v83
  %v148 = vld [vmem:[%s1] sm:$0x1]
  %v150 = vlaneseq
  %v151 = vshrl.u32 %v150, 7
  %v152 = vsub.s32 0, %v151
  %v153 = vrot.slane %v148, %v152
  %v155 = vmul.f32 %v84, %v153
  %v156 = vmul.f32 %v85, %v153
  %v157 = vmul.f32 %v86, %v153
  %v158 = vmul.f32 %v87, %v153
  %v159 = vmul.f32 %v88, %v153
  %v160 = vmul.f32 %v89, %v153
  %v161 = vmul.f32 %v90, %v153
  %v162 = vmul.f32 %v91, %v153
  %v163 = vmul.f32 %v92, %v153
  %v164 = vmul.f32 %v93, %v153
  %v165 = vmul.f32 %v94, %v153
  %v166 = vmul.f32 %v95, %v153
  %v167 = vmul.f32 %v96, %v153
  %v168 = vmul.f32 %v97, %v153
  %v169 = vmul.f32 %v98, %v153
  %v170 = vmul.f32 %v99, %v153
  %v171 = vmul.f32 %v100, %v153
  %v172 = vmul.f32 %v101, %v153
  %v173 = vmul.f32 %v102, %v153
  %v174 = vmul.f32 %v103, %v153
  %v175 = vmul.f32 %v104, %v153
  %v176 = vmul.f32 %v105, %v153
  %v177 = vmul.f32 %v106, %v153
  %v178 = vmul.f32 %v107, %v153
  %v179 = vmul.f32 %v108, %v153
  %v180 = vmul.f32 %v109, %v153
  %v181 = vmul.f32 %v110, %v153
  %v182 = vmul.f32 %v111, %v153
  %v183 = vmul.f32 %v112, %v153
  %v184 = vmul.f32 %v113, %v153
  %v185 = vmul.f32 %v114, %v153
  %v186 = vmul.f32 %v115, %v153
  %v187 = vmul.f32 %v116, %v153
  %v188 = vmul.f32 %v117, %v153
  %v189 = vmul.f32 %v118, %v153
  %v190 = vmul.f32 %v119, %v153
  %v191 = vmul.f32 %v120, %v153
  %v192 = vmul.f32 %v121, %v153
  %v193 = vmul.f32 %v122, %v153
  %v194 = vmul.f32 %v123, %v153
  %v195 = vmul.f32 %v124, %v153
  %v196 = vmul.f32 %v125, %v153
  %v197 = vmul.f32 %v126, %v153
  %v198 = vmul.f32 %v127, %v153
  %v199 = vmul.f32 %v128, %v153
  %v200 = vmul.f32 %v129, %v153
  %v201 = vmul.f32 %v130, %v153
  %v202 = vmul.f32 %v131, %v153
  %v203 = vmul.f32 %v132, %v153
  %v204 = vmul.f32 %v133, %v153
  %v205 = vmul.f32 %v134, %v153
  %v206 = vmul.f32 %v135, %v153
  %v207 = vmul.f32 %v136, %v153
  %v208 = vmul.f32 %v137, %v153
  %v209 = vmul.f32 %v138, %v153
  %v210 = vmul.f32 %v139, %v153
  %v211 = vmul.f32 %v140, %v153
  %v212 = vmul.f32 %v141, %v153
  %v213 = vmul.f32 %v142, %v153
  %v214 = vmul.f32 %v143, %v153
  %v215 = vmul.f32 %v144, %v153
  %v216 = vmul.f32 %v145, %v153
  %v217 = vmul.f32 %v146, %v153
  %v218 = vmul.f32 %v147, %v153
  %v219 = vld [vmem:[%s2] sm:$0x1]
  %v221 = vlaneseq
  %v222 = vshrl.u32 %v221, 7
  %v223 = vsub.s32 0, %v222
  %v224 = vrot.slane %v219, %v223
  %v226 = vadd.f32 %v155, %v224
  %v227 = vadd.f32 %v156, %v224
  %v228 = vadd.f32 %v157, %v224
  %v229 = vadd.f32 %v158, %v224
  %v230 = vadd.f32 %v159, %v224
  %v231 = vadd.f32 %v160, %v224
  %v232 = vadd.f32 %v161, %v224
  %v233 = vadd.f32 %v162, %v224
  %v234 = vadd.f32 %v163, %v224
  %v235 = vadd.f32 %v164, %v224
  %v236 = vadd.f32 %v165, %v224
  %v237 = vadd.f32 %v166, %v224
  %v238 = vadd.f32 %v167, %v224
  %v239 = vadd.f32 %v168, %v224
  %v240 = vadd.f32 %v169, %v224
  %v241 = vadd.f32 %v170, %v224
  %v242 = vadd.f32 %v171, %v224
  %v243 = vadd.f32 %v172, %v224
  %v244 = vadd.f32 %v173, %v224
  %v245 = vadd.f32 %v174, %v224
  %v246 = vadd.f32 %v175, %v224
  %v247 = vadd.f32 %v176, %v224
  %v248 = vadd.f32 %v177, %v224
  %v249 = vadd.f32 %v178, %v224
  %v250 = vadd.f32 %v179, %v224
  %v251 = vadd.f32 %v180, %v224
  %v252 = vadd.f32 %v181, %v224
  %v253 = vadd.f32 %v182, %v224
  %v254 = vadd.f32 %v183, %v224
  %v255 = vadd.f32 %v184, %v224
  %v256 = vadd.f32 %v185, %v224
  %v257 = vadd.f32 %v186, %v224
  %v258 = vadd.f32 %v187, %v224
  %v259 = vadd.f32 %v188, %v224
  %v260 = vadd.f32 %v189, %v224
  %v261 = vadd.f32 %v190, %v224
  %v262 = vadd.f32 %v191, %v224
  %v263 = vadd.f32 %v192, %v224
  %v264 = vadd.f32 %v193, %v224
  %v265 = vadd.f32 %v194, %v224
  %v266 = vadd.f32 %v195, %v224
  %v267 = vadd.f32 %v196, %v224
  %v268 = vadd.f32 %v197, %v224
  %v269 = vadd.f32 %v198, %v224
  %v270 = vadd.f32 %v199, %v224
  %v271 = vadd.f32 %v200, %v224
  %v272 = vadd.f32 %v201, %v224
  %v273 = vadd.f32 %v202, %v224
  %v274 = vadd.f32 %v203, %v224
  %v275 = vadd.f32 %v204, %v224
  %v276 = vadd.f32 %v205, %v224
  %v277 = vadd.f32 %v206, %v224
  %v278 = vadd.f32 %v207, %v224
  %v279 = vadd.f32 %v208, %v224
  %v280 = vadd.f32 %v209, %v224
  %v281 = vadd.f32 %v210, %v224
  %v282 = vadd.f32 %v211, %v224
  %v283 = vadd.f32 %v212, %v224
  %v284 = vadd.f32 %v213, %v224
  %v285 = vadd.f32 %v214, %v224
  %v286 = vadd.f32 %v215, %v224
  %v287 = vadd.f32 %v216, %v224
  %v288 = vadd.f32 %v217, %v224
  %v289 = vadd.f32 %v218, %v224
  %v290 = vmax.f32 %v226, 0.0
  %v291 = vmax.f32 %v227, 0.0
  %v292 = vmax.f32 %v228, 0.0
  %v293 = vmax.f32 %v229, 0.0
  %v294 = vmax.f32 %v230, 0.0
  %v295 = vmax.f32 %v231, 0.0
  %v296 = vmax.f32 %v232, 0.0
  %v297 = vmax.f32 %v233, 0.0
  %v298 = vmax.f32 %v234, 0.0
  %v299 = vmax.f32 %v235, 0.0
  %v300 = vmax.f32 %v236, 0.0
  %v301 = vmax.f32 %v237, 0.0
  %v302 = vmax.f32 %v238, 0.0
  %v303 = vmax.f32 %v239, 0.0
  %v304 = vmax.f32 %v240, 0.0
  %v305 = vmax.f32 %v241, 0.0
  %v306 = vmax.f32 %v242, 0.0
  %v307 = vmax.f32 %v243, 0.0
  %v308 = vmax.f32 %v244, 0.0
  %v309 = vmax.f32 %v245, 0.0
  %v310 = vmax.f32 %v246, 0.0
  %v311 = vmax.f32 %v247, 0.0
  %v312 = vmax.f32 %v248, 0.0
  %v313 = vmax.f32 %v249, 0.0
  %v314 = vmax.f32 %v250, 0.0
  %v315 = vmax.f32 %v251, 0.0
  %v316 = vmax.f32 %v252, 0.0
  %v317 = vmax.f32 %v253, 0.0
  %v318 = vmax.f32 %v254, 0.0
  %v319 = vmax.f32 %v255, 0.0
  %v320 = vmax.f32 %v256, 0.0
  %v321 = vmax.f32 %v257, 0.0
  %v322 = vmax.f32 %v258, 0.0
  %v323 = vmax.f32 %v259, 0.0
  %v324 = vmax.f32 %v260, 0.0
  %v325 = vmax.f32 %v261, 0.0
  %v326 = vmax.f32 %v262, 0.0
  %v327 = vmax.f32 %v263, 0.0
  %v328 = vmax.f32 %v264, 0.0
  %v329 = vmax.f32 %v265, 0.0
  %v330 = vmax.f32 %v266, 0.0
  %v331 = vmax.f32 %v267, 0.0
  %v332 = vmax.f32 %v268, 0.0
  %v333 = vmax.f32 %v269, 0.0
  %v334 = vmax.f32 %v270, 0.0
  %v335 = vmax.f32 %v271, 0.0
  %v336 = vmax.f32 %v272, 0.0
  %v337 = vmax.f32 %v273, 0.0
  %v338 = vmax.f32 %v274, 0.0
  %v339 = vmax.f32 %v275, 0.0
  %v340 = vmax.f32 %v276, 0.0
  %v341 = vmax.f32 %v277, 0.0
  %v342 = vmax.f32 %v278, 0.0
  %v343 = vmax.f32 %v279, 0.0
  %v344 = vmax.f32 %v280, 0.0
  %v345 = vmax.f32 %v281, 0.0
  %v346 = vmax.f32 %v282, 0.0
  %v347 = vmax.f32 %v283, 0.0
  %v348 = vmax.f32 %v284, 0.0
  %v349 = vmax.f32 %v285, 0.0
  %v350 = vmax.f32 %v286, 0.0
  %v351 = vmax.f32 %v287, 0.0
  %v352 = vmax.f32 %v288, 0.0
  %v353 = vmax.f32 %v289, 0.0
  %v354 = vpack.c.bf16 %v291, %v290
  %v355 = vpack.c.bf16 %v293, %v292
  %v356 = vpack.c.bf16 %v295, %v294
  %v357 = vpack.c.bf16 %v297, %v296
  %v358 = vpack.c.bf16 %v299, %v298
  %v359 = vpack.c.bf16 %v301, %v300
  %v360 = vpack.c.bf16 %v303, %v302
  %v361 = vpack.c.bf16 %v305, %v304
  %v362 = vpack.c.bf16 %v307, %v306
  %v363 = vpack.c.bf16 %v309, %v308
  %v364 = vpack.c.bf16 %v311, %v310
  %v365 = vpack.c.bf16 %v313, %v312
  %v366 = vpack.c.bf16 %v315, %v314
  %v367 = vpack.c.bf16 %v317, %v316
  %v368 = vpack.c.bf16 %v319, %v318
  %v369 = vpack.c.bf16 %v321, %v320
  %v370 = vpack.c.bf16 %v323, %v322
  %v371 = vpack.c.bf16 %v325, %v324
  %v372 = vpack.c.bf16 %v327, %v326
  %v373 = vpack.c.bf16 %v329, %v328
  %v374 = vpack.c.bf16 %v331, %v330
  %v375 = vpack.c.bf16 %v333, %v332
  %v376 = vpack.c.bf16 %v335, %v334
  %v377 = vpack.c.bf16 %v337, %v336
  %v378 = vpack.c.bf16 %v339, %v338
  %v379 = vpack.c.bf16 %v341, %v340
  %v380 = vpack.c.bf16 %v343, %v342
  %v381 = vpack.c.bf16 %v345, %v344
  %v382 = vpack.c.bf16 %v347, %v346
  %v383 = vpack.c.bf16 %v349, %v348
  %v384 = vpack.c.bf16 %v351, %v350
  %v385 = vpack.c.bf16 %v353, %v352
  %v386 = vld [vmem:[%s3] sm:$0xf]
  %v387 = vld [vmem:[%s3 + $0x4] sm:$0xf]
  %v388 = vld [vmem:[%s3 + $0x8] sm:$0xf]
  %v389 = vld [vmem:[%s3 + $0xc] sm:$0xf]
  %v390 = vld [vmem:[%s3 + $0x10] sm:$0xf]
  %v391 = vld [vmem:[%s3 + $0x14] sm:$0xf]
  %v392 = vld [vmem:[%s3 + $0x18] sm:$0xf]
  %v393 = vld [vmem:[%s3 + $0x1c] sm:$0xf]
  %v394 = vld [vmem:[%s3 + $0x20] sm:$0xf]
  %v395 = vld [vmem:[%s3 + $0x24] sm:$0xf]
  %v396 = vld [vmem:[%s3 + $0x28] sm:$0xf]
  %v397 = vld [vmem:[%s3 + $0x2c] sm:$0xf]
  %v398 = vld [vmem:[%s3 + $0x30] sm:$0xf]
  %v399 = vld [vmem:[%s3 + $0x34] sm:$0xf]
  %v400 = vld [vmem:[%s3 + $0x38] sm:$0xf]
  %v401 = vld [vmem:[%s3 + $0x3c] sm:$0xf]
  %v418 = vunpack.c.l.b16 %v386
  %v419 = vunpack.c.l.b16 %v387
  %v420 = vunpack.c.l.b16 %v388
  %v421 = vunpack.c.l.b16 %v389
  %v422 = vunpack.c.l.b16 %v390
  %v423 = vunpack.c.l.b16 %v391
  %v424 = vunpack.c.l.b16 %v392
  %v425 = vunpack.c.l.b16 %v393
  %v426 = vunpack.c.l.b16 %v394
  %v427 = vunpack.c.l.b16 %v395
  %v428 = vunpack.c.l.b16 %v396
  %v429 = vunpack.c.l.b16 %v397
  %v430 = vunpack.c.l.b16 %v398
  %v431 = vunpack.c.l.b16 %v399
  %v432 = vunpack.c.l.b16 %v400
  %v433 = vunpack.c.l.b16 %v401
  %v434 = vpack.c.b16 %v419, %v418
  %v435 = vpack.c.b16 %v421, %v420
  %v436 = vpack.c.b16 %v423, %v422
  %v437 = vpack.c.b16 %v425, %v424
  %v438 = vpack.c.b16 %v427, %v426
  %v439 = vpack.c.b16 %v429, %v428
  %v440 = vpack.c.b16 %v431, %v430
  %v441 = vpack.c.b16 %v433, %v432
  %450 = vmatprep.subr.bf16.mxu0 0
  %451 = vmatpush1.bf16.msra.mxu0 %v434
  %452 = vmatprep.subr.bf16.mxu0 0
  %453 = vmatpush1.bf16.msra.mxu0 %v435
  %454 = vmatprep.subr.bf16.mxu0 0
  %455 = vmatpush1.bf16.msra.mxu0 %v436
  %456 = vmatprep.subr.bf16.mxu0 0
  %457 = vmatpush1.bf16.msra.mxu0 %v437
  %458 = vmatprep.subr.bf16.mxu0 0
  %459 = vmatpush1.bf16.msra.mxu0 %v438
  %460 = vmatprep.subr.bf16.mxu0 0
  %461 = vmatpush1.bf16.msra.mxu0 %v439
  %462 = vmatprep.subr.bf16.mxu0 0
  %463 = vmatpush1.bf16.msra.mxu0 %v440
  %464 = vmatprep.subr.bf16.mxu0 0
  %465 = vmatpush1.bf16.msra.mxu0 %v441
  %466 = vmatprep.subr.bf16.mxu0 0
  %467 = vmatpush1.bf16.msra.mxu0 0
  %468 = vmatprep.subr.bf16.mxu0 0
  %469 = vmatpush1.bf16.msra.mxu0 0
  %470 = vmatprep.subr.bf16.mxu0 0
  %471 = vmatpush1.bf16.msra.mxu0 0
  %472 = vmatprep.subr.bf16.mxu0 0
  %473 = vmatpush1.bf16.msra.mxu0 0
  %474 = vmatprep.subr.bf16.mxu0 0
  %475 = vmatpush1.bf16.msra.mxu0 0
  %476 = vmatprep.subr.bf16.mxu0 0
  %477 = vmatpush1.bf16.msra.mxu0 0
  %478 = vmatprep.subr.bf16.mxu0 0
  %479 = vmatpush1.bf16.msra.mxu0 0
  %480 = vmatprep.subr.bf16.mxu0 0
  %481 = vmatpush1.bf16.msra.mxu0 0
  %482 = vmatprep.mubr.bf16.mxu0 0
  %483 = vmatmul.mubr.bf16.gmra.mrb[0].mxu0 %v354
  %v484 = vpop.f32.mrb[0].mxu0
  %v485 = vadd.f32 0.0, %v484
  %v486 = vpop.f32.mrb[0].mxu0
  %v487 = vpop.f32.mrb[0].mxu0
  %v488 = vadd.f32 0.0, %v487
  %v489 = vpop.f32.mrb[0].mxu0
  %490 = vmatprep.mubr.bf16.mxu0 0
  %491 = vmatmul.mubr.bf16.gmra.mrb[0].mxu0 %v355
  %v492 = vpop.f32.mrb[0].mxu0
  %v493 = vadd.f32 0.0, %v492
  %v494 = vpop.f32.mrb[0].mxu0
  %v495 = vpop.f32.mrb[0].mxu0
  %v496 = vadd.f32 0.0, %v495
  %v497 = vpop.f32.mrb[0].mxu0
  %498 = vmatprep.mubr.bf16.mxu0 0
  %499 = vmatmul.mubr.bf16.gmra.mrb[0].mxu0 %v356
  %v500 = vpop.f32.mrb[0].mxu0
  %v501 = vadd.f32 0.0, %v500
  %v502 = vpop.f32.mrb[0].mxu0
  %v503 = vpop.f32.mrb[0].mxu0
  %v504 = vadd.f32 0.0, %v503
  %v505 = vpop.f32.mrb[0].mxu0
  %506 = vmatprep.mubr.bf16.mxu0 0
  %507 = vmatmul.mubr.bf16.gmra.mrb[0].mxu0 %v357
  %v508 = vpop.f32.mrb[0].mxu0
  %v509 = vadd.f32 0.0, %v508
  %v510 = vpop.f32.mrb[0].mxu0
  %v511 = vpop.f32.mrb[0].mxu0
  %v512 = vadd.f32 0.0, %v511
  %v513 = vpop.f32.mrb[0].mxu0
  %514 = vmatprep.mubr.bf16.mxu0 0
  %515 = vmatmul.mubr.bf16.gmra.mrb[0].mxu0 %v358
  %v516 = vpop.f32.mrb[0].mxu0
  %v517 = vadd.f32 0.0, %v516
  %v518 = vpop.f32.mrb[0].mxu0
  %v519 = vpop.f32.mrb[0].mxu0
  %v520 = vadd.f32 0.0, %v519
  %v521 = vpop.f32.mrb[0].mxu0
  %522 = vmatprep.mubr.bf16.mxu0 0
  %523 = vmatmul.mubr.bf16.gmra.mrb[0].mxu0 %v359
  %v524 = vpop.f32.mrb[0].mxu0
  %v525 = vadd.f32 0.0, %v524
  %v526 = vpop.f32.mrb[0].mxu0
  %v527 = vpop.f32.mrb[0].mxu0
  %v528 = vadd.f32 0.0, %v527
  %v529 = vpop.f32.mrb[0].mxu0
  %530 = vmatprep.mubr.bf16.mxu0 0
  %531 = vmatmul.mubr.bf16.gmra.mrb[0].mxu0 %v360
  %v532 = vpop.f32.mrb[0].mxu0
  %v533 = vadd.f32 0.0, %v532
  %v534 = vpop.f32.mrb[0].mxu0
  %v535 = vpop.f32.mrb[0].mxu0
  %v536 = vadd.f32 0.0, %v535
  %v537 = vpop.f32.mrb[0].mxu0
  %538 = vmatprep.mubr.bf16.mxu0 0
  %539 = vmatmul.mubr.bf16.gmra.mrb[0].mxu0 %v361
  %v540 = vpop.f32.mrb[0].mxu0
  %v541 = vadd.f32 0.0, %v540
  %v542 = vpop.f32.mrb[0].mxu0
  %v543 = vpop.f32.mrb[0].mxu0
  %v544 = vadd.f32 0.0, %v543
  %v545 = vpop.f32.mrb[0].mxu0
  %546 = vmatprep.mubr.bf16.mxu0 0
  %547 = vmatmul.mubr.bf16.gmra.mrb[0].mxu0 %v362
  %v548 = vpop.f32.mrb[0].mxu0
  %v549 = vadd.f32 0.0, %v548
  %v550 = vpop.f32.mrb[0].mxu0
  %v551 = vpop.f32.mrb[0].mxu0
  %v552 = vadd.f32 0.0, %v551
  %v553 = vpop.f32.mrb[0].mxu0
  %554 = vmatprep.mubr.bf16.mxu0 0
  %555 = vmatmul.mubr.bf16.gmra.mrb[0].mxu0 %v363
  %v556 = vpop.f32.mrb[0].mxu0
  %v557 = vadd.f32 0.0, %v556
  %v558 = vpop.f32.mrb[0].mxu0
  %v559 = vpop.f32.mrb[0].mxu0
  %v560 = vadd.f32 0.0, %v559
  %v561 = vpop.f32.mrb[0].mxu0
  %562 = vmatprep.mubr.bf16.mxu0 0
  %563 = vmatmul.mubr.bf16.gmra.mrb[0].mxu0 %v364
  %v564 = vpop.f32.mrb[0].mxu0
  %v565 = vadd.f32 0.0, %v564
  %v566 = vpop.f32.mrb[0].mxu0
  %v567 = vpop.f32.mrb[0].mxu0
  %v568 = vadd.f32 0.0, %v567
  %v569 = vpop.f32.mrb[0].mxu0
  %570 = vmatprep.mubr.bf16.mxu0 0
  %571 = vmatmul.mubr.bf16.gmra.mrb[0].mxu0 %v365
  %v572 = vpop.f32.mrb[0].mxu0
  %v573 = vadd.f32 0.0, %v572
  %v574 = vpop.f32.mrb[0].mxu0
  %v575 = vpop.f32.mrb[0].mxu0
  %v576 = vadd.f32 0.0, %v575
  %v577 = vpop.f32.mrb[0].mxu0
  %578 = vmatprep.mubr.bf16.mxu0 0
  %579 = vmatmul.mubr.bf16.gmra.mrb[0].mxu0 %v366
  %v580 = vpop.f32.mrb[0].mxu0
  %v581 = vadd.f32 0.0, %v580
  %v582 = vpop.f32.mrb[0].mxu0
  %v583 = vpop.f32.mrb[0].mxu0
  %v584 = vadd.f32 0.0, %v583
  %v585 = vpop.f32.mrb[0].mxu0
  %586 = vmatprep.mubr.bf16.mxu0 0
  %587 = vmatmul.mubr.bf16.gmra.mrb[0].mxu0 %v367
  %v588 = vpop.f32.mrb[0].mxu0
  %v589 = vadd.f32 0.0, %v588
  %v590 = vpop.f32.mrb[0].mxu0
  %v591 = vpop.f32.mrb[0].mxu0
  %v592 = vadd.f32 0.0, %v591
  %v593 = vpop.f32.mrb[0].mxu0
  %594 = vmatprep.mubr.bf16.mxu0 0
  %595 = vmatmul.mubr.bf16.gmra.mrb[0].mxu0 %v368
  %v596 = vpop.f32.mrb[0].mxu0
  %v597 = vadd.f32 0.0, %v596
  %v598 = vpop.f32.mrb[0].mxu0
  %v599 = vpop.f32.mrb[0].mxu0
  %v600 = vadd.f32 0.0, %v599
  %v601 = vpop.f32.mrb[0].mxu0
  %602 = vmatprep.mubr.bf16.mxu0 0
  %603 = vmatmul.mubr.bf16.gmra.mrb[0].mxu0 %v369
  %v604 = vpop.f32.mrb[0].mxu0
  %v605 = vadd.f32 0.0, %v604
  %v606 = vpop.f32.mrb[0].mxu0
  %v607 = vpop.f32.mrb[0].mxu0
  %v608 = vadd.f32 0.0, %v607
  %v609 = vpop.f32.mrb[0].mxu0
  %610 = vmatprep.mubr.bf16.mxu0 0
  %611 = vmatmul.mubr.bf16.gmra.mrb[0].mxu0 %v370
  %v612 = vpop.f32.mrb[0].mxu0
  %v613 = vadd.f32 0.0, %v612
  %v614 = vpop.f32.mrb[0].mxu0
  %v615 = vpop.f32.mrb[0].mxu0
  %v616 = vadd.f32 0.0, %v615
  %v617 = vpop.f32.mrb[0].mxu0
  %618 = vmatprep.mubr.bf16.mxu0 0
  %619 = vmatmul.mubr.bf16.gmra.mrb[0].mxu0 %v371
  %v620 = vpop.f32.mrb[0].mxu0
  %v621 = vadd.f32 0.0, %v620
  %v622 = vpop.f32.mrb[0].mxu0
  %v623 = vpop.f32.mrb[0].mxu0
  %v624 = vadd.f32 0.0, %v623
  %v625 = vpop.f32.mrb[0].mxu0
  %626 = vmatprep.mubr.bf16.mxu0 0
  %627 = vmatmul.mubr.bf16.gmra.mrb[0].mxu0 %v372
  %v628 = vpop.f32.mrb[0].mxu0
  %v629 = vadd.f32 0.0, %v628
  %v630 = vpop.f32.mrb[0].mxu0
  %v631 = vpop.f32.mrb[0].mxu0
  %v632 = vadd.f32 0.0, %v631
  %v633 = vpop.f32.mrb[0].mxu0
  %634 = vmatprep.mubr.bf16.mxu0 0
  %635 = vmatmul.mubr.bf16.gmra.mrb[0].mxu0 %v373
  %v636 = vpop.f32.mrb[0].mxu0
  %v637 = vadd.f32 0.0, %v636
  %v638 = vpop.f32.mrb[0].mxu0
  %v639 = vpop.f32.mrb[0].mxu0
  %v640 = vadd.f32 0.0, %v639
  %v641 = vpop.f32.mrb[0].mxu0
  %642 = vmatprep.mubr.bf16.mxu0 0
  %643 = vmatmul.mubr.bf16.gmra.mrb[0].mxu0 %v374
  %v644 = vpop.f32.mrb[0].mxu0
  %v645 = vadd.f32 0.0, %v644
  %v646 = vpop.f32.mrb[0].mxu0
  %v647 = vpop.f32.mrb[0].mxu0
  %v648 = vadd.f32 0.0, %v647
  %v649 = vpop.f32.mrb[0].mxu0
  %650 = vmatprep.mubr.bf16.mxu0 0
  %651 = vmatmul.mubr.bf16.gmra.mrb[0].mxu0 %v375
  %v652 = vpop.f32.mrb[0].mxu0
  %v653 = vadd.f32 0.0, %v652
  %v654 = vpop.f32.mrb[0].mxu0
  %v655 = vpop.f32.mrb[0].mxu0
  %v656 = vadd.f32 0.0, %v655
  %v657 = vpop.f32.mrb[0].mxu0
  %658 = vmatprep.mubr.bf16.mxu0 0
  %659 = vmatmul.mubr.bf16.gmra.mrb[0].mxu0 %v376
  %v660 = vpop.f32.mrb[0].mxu0
  %v661 = vadd.f32 0.0, %v660
  %v662 = vpop.f32.mrb[0].mxu0
  %v663 = vpop.f32.mrb[0].mxu0
  %v664 = vadd.f32 0.0, %v663
  %v665 = vpop.f32.mrb[0].mxu0
  %666 = vmatprep.mubr.bf16.mxu0 0
  %667 = vmatmul.mubr.bf16.gmra.mrb[0].mxu0 %v377
  %v668 = vpop.f32.mrb[0].mxu0
  %v669 = vadd.f32 0.0, %v668
  %v670 = vpop.f32.mrb[0].mxu0
  %v671 = vpop.f32.mrb[0].mxu0
  %v672 = vadd.f32 0.0, %v671
  %v673 = vpop.f32.mrb[0].mxu0
  %674 = vmatprep.mubr.bf16.mxu0 0
  %675 = vmatmul.mubr.bf16.gmra.mrb[0].mxu0 %v378
  %v676 = vpop.f32.mrb[0].mxu0
  %v677 = vadd.f32 0.0, %v676
  %v678 = vpop.f32.mrb[0].mxu0
  %v679 = vpop.f32.mrb[0].mxu0
  %v680 = vadd.f32 0.0, %v679
  %v681 = vpop.f32.mrb[0].mxu0
  %682 = vmatprep.mubr.bf16.mxu0 0
  %683 = vmatmul.mubr.bf16.gmra.mrb[0].mxu0 %v379
  %v684 = vpop.f32.mrb[0].mxu0
  %v685 = vadd.f32 0.0, %v684
  %v686 = vpop.f32.mrb[0].mxu0
  %v687 = vpop.f32.mrb[0].mxu0
  %v688 = vadd.f32 0.0, %v687
  %v689 = vpop.f32.mrb[0].mxu0
  %690 = vmatprep.mubr.bf16.mxu0 0
  %691 = vmatmul.mubr.bf16.gmra.mrb[0].mxu0 %v380
  %v692 = vpop.f32.mrb[0].mxu0
  %v693 = vadd.f32 0.0, %v692
  %v694 = vpop.f32.mrb[0].mxu0
  %v695 = vpop.f32.mrb[0].mxu0
  %v696 = vadd.f32 0.0, %v695
  %v697 = vpop.f32.mrb[0].mxu0
  %698 = vmatprep.mubr.bf16.mxu0 0
  %699 = vmatmul.mubr.bf16.gmra.mrb[0].mxu0 %v381
  %v700 = vpop.f32.mrb[0].mxu0
  %v701 = vadd.f32 0.0, %v700
  %v702 = vpop.f32.mrb[0].mxu0
  %v703 = vpop.f32.mrb[0].mxu0
  %v704 = vadd.f32 0.0, %v703
  %v705 = vpop.f32.mrb[0].mxu0
  %706 = vmatprep.mubr.bf16.mxu0 0
  %707 = vmatmul.mubr.bf16.gmra.mrb[0].mxu0 %v382
  %v708 = vpop.f32.mrb[0].mxu0
  %v709 = vadd.f32 0.0, %v708
  %v710 = vpop.f32.mrb[0].mxu0
  %v711 = vpop.f32.mrb[0].mxu0
  %v712 = vadd.f32 0.0, %v711
  %v713 = vpop.f32.mrb[0].mxu0
  %714 = vmatprep.mubr.bf16.mxu0 0
  %715 = vmatmul.mubr.bf16.gmra.mrb[0].mxu0 %v383
  %v716 = vpop.f32.mrb[0].mxu0
  %v717 = vadd.f32 0.0, %v716
  %v718 = vpop.f32.mrb[0].mxu0
  %v719 = vpop.f32.mrb[0].mxu0
  %v720 = vadd.f32 0.0, %v719
  %v721 = vpop.f32.mrb[0].mxu0
  %722 = vmatprep.mubr.bf16.mxu0 0
  %723 = vmatmul.mubr.bf16.gmra.mrb[0].mxu0 %v384
  %v724 = vpop.f32.mrb[0].mxu0
  %v725 = vadd.f32 0.0, %v724
  %v726 = vpop.f32.mrb[0].mxu0
  %v727 = vpop.f32.mrb[0].mxu0
  %v728 = vadd.f32 0.0, %v727
  %v729 = vpop.f32.mrb[0].mxu0
  %730 = vmatprep.mubr.bf16.mxu0 0
  %731 = vmatmul.mubr.bf16.gmra.mrb[0].mxu0 %v385
  %v732 = vpop.f32.mrb[0].mxu0
  %v733 = vadd.f32 0.0, %v732
  %v734 = vpop.f32.mrb[0].mxu0
  %v735 = vpop.f32.mrb[0].mxu0
  %v736 = vadd.f32 0.0, %v735
  %v737 = vpop.f32.mrb[0].mxu0
  %738 = vdwg.mxu0
  %v739 = vpack.c.bf16 %v488, %v485
  %v740 = vpack.c.bf16 %v496, %v493
  %v741 = vpack.c.bf16 %v504, %v501
  %v742 = vpack.c.bf16 %v512, %v509
  %v743 = vpack.c.bf16 %v520, %v517
  %v744 = vpack.c.bf16 %v528, %v525
  %v745 = vpack.c.bf16 %v536, %v533
  %v746 = vpack.c.bf16 %v544, %v541
  %v747 = vpack.c.bf16 %v552, %v549
  %v748 = vpack.c.bf16 %v560, %v557
  %v749 = vpack.c.bf16 %v568, %v565
  %v750 = vpack.c.bf16 %v576, %v573
  %v751 = vpack.c.bf16 %v584, %v581
  %v752 = vpack.c.bf16 %v592, %v589
  %v753 = vpack.c.bf16 %v600, %v597
  %v754 = vpack.c.bf16 %v608, %v605
  %v755 = vpack.c.bf16 %v616, %v613
  %v756 = vpack.c.bf16 %v624, %v621
  %v757 = vpack.c.bf16 %v632, %v629
  %v758 = vpack.c.bf16 %v640, %v637
  %v759 = vpack.c.bf16 %v648, %v645
  %v760 = vpack.c.bf16 %v656, %v653
  %v761 = vpack.c.bf16 %v664, %v661
  %v762 = vpack.c.bf16 %v672, %v669
  %v763 = vpack.c.bf16 %v680, %v677
  %v764 = vpack.c.bf16 %v688, %v685
  %v765 = vpack.c.bf16 %v696, %v693
  %v766 = vpack.c.bf16 %v704, %v701
  %v767 = vpack.c.bf16 %v712, %v709
  %v768 = vpack.c.bf16 %v720, %v717
  %v769 = vpack.c.bf16 %v728, %v725
  %v770 = vpack.c.bf16 %v736, %v733
  %v803 = vunpack.c.l.b16 %v739
  %v804 = vunpack.c.h.b16 %v739
  %v805 = vunpack.c.l.b16 %v740
  %v806 = vunpack.c.h.b16 %v740
  %v807 = vunpack.c.l.b16 %v741
  %v808 = vunpack.c.h.b16 %v741
  %v809 = vunpack.c.l.b16 %v742
  %v810 = vunpack.c.h.b16 %v742
  %v811 = vunpack.c.l.b16 %v743
  %v812 = vunpack.c.h.b16 %v743
  %v813 = vunpack.c.l.b16 %v744
  %v814 = vunpack.c.h.b16 %v744
  %v815 = vunpack.c.l.b16 %v745
  %v816 = vunpack.c.h.b16 %v745
  %v817 = vunpack.c.l.b16 %v746
  %v818 = vunpack.c.h.b16 %v746
  %v819 = vunpack.c.l.b16 %v747
  %v820 = vunpack.c.h.b16 %v747
  %v821 = vunpack.c.l.b16 %v748
  %v822 = vunpack.c.h.b16 %v748
  %v823 = vunpack.c.l.b16 %v749
  %v824 = vunpack.c.h.b16 %v749
  %v825 = vunpack.c.l.b16 %v750
  %v826 = vunpack.c.h.b16 %v750
  %v827 = vunpack.c.l.b16 %v751
  %v828 = vunpack.c.h.b16 %v751
  %v829 = vunpack.c.l.b16 %v752
  %v830 = vunpack.c.h.b16 %v752
  %v831 = vunpack.c.l.b16 %v753
  %v832 = vunpack.c.h.b16 %v753
  %v833 = vunpack.c.l.b16 %v754
  %v834 = vunpack.c.h.b16 %v754
  %v835 = vunpack.c.l.b16 %v755
  %v836 = vunpack.c.h.b16 %v755
  %v837 = vunpack.c.l.b16 %v756
  %v838 = vunpack.c.h.b16 %v756
  %v839 = vunpack.c.l.b16 %v757
  %v840 = vunpack.c.h.b16 %v757
  %v841 = vunpack.c.l.b16 %v758
  %v842 = vunpack.c.h.b16 %v758
  %v843 = vunpack.c.l.b16 %v759
  %v844 = vunpack.c.h.b16 %v759
  %v845 = vunpack.c.l.b16 %v760
  %v846 = vunpack.c.h.b16 %v760
  %v847 = vunpack.c.l.b16 %v761
  %v848 = vunpack.c.h.b16 %v761
  %v849 = vunpack.c.l.b16 %v762
  %v850 = vunpack.c.h.b16 %v762
  %v851 = vunpack.c.l.b16 %v763
  %v852 = vunpack.c.h.b16 %v763
  %v853 = vunpack.c.l.b16 %v764
  %v854 = vunpack.c.h.b16 %v764
  %v855 = vunpack.c.l.b16 %v765
  %v856 = vunpack.c.h.b16 %v765
  %v857 = vunpack.c.l.b16 %v766
  %v858 = vunpack.c.h.b16 %v766
  %v859 = vunpack.c.l.b16 %v767
  %v860 = vunpack.c.h.b16 %v767
  %v861 = vunpack.c.l.b16 %v768
  %v862 = vunpack.c.h.b16 %v768
  %v863 = vunpack.c.l.b16 %v769
  %v864 = vunpack.c.h.b16 %v769
  %v865 = vunpack.c.l.b16 %v770
  %v866 = vunpack.c.h.b16 %v770
  %v867 = vpack.c.b16 %v803, %v803
  %v868 = vpack.c.b16 %v804, %v804
  %v869 = vpack.c.b16 %v805, %v805
  %v870 = vpack.c.b16 %v806, %v806
  %v871 = vpack.c.b16 %v807, %v807
  %v872 = vpack.c.b16 %v808, %v808
  %v873 = vpack.c.b16 %v809, %v809
  %v874 = vpack.c.b16 %v810, %v810
  %v875 = vpack.c.b16 %v811, %v811
  %v876 = vpack.c.b16 %v812, %v812
  %v877 = vpack.c.b16 %v813, %v813
  %v878 = vpack.c.b16 %v814, %v814
  %v879 = vpack.c.b16 %v815, %v815
  %v880 = vpack.c.b16 %v816, %v816
  %v881 = vpack.c.b16 %v817, %v817
  %v882 = vpack.c.b16 %v818, %v818
  %v883 = vpack.c.b16 %v819, %v819
  %v884 = vpack.c.b16 %v820, %v820
  %v885 = vpack.c.b16 %v821, %v821
  %v886 = vpack.c.b16 %v822, %v822
  %v887 = vpack.c.b16 %v823, %v823
  %v888 = vpack.c.b16 %v824, %v824
  %v889 = vpack.c.b16 %v825, %v825
  %v890 = vpack.c.b16 %v826, %v826
  %v891 = vpack.c.b16 %v827, %v827
  %v892 = vpack.c.b16 %v828, %v828
  %v893 = vpack.c.b16 %v829, %v829
  %v894 = vpack.c.b16 %v830, %v830
  %v895 = vpack.c.b16 %v831, %v831
  %v896 = vpack.c.b16 %v832, %v832
  %v897 = vpack.c.b16 %v833, %v833
  %v898 = vpack.c.b16 %v834, %v834
  %v899 = vpack.c.b16 %v835, %v835
  %v900 = vpack.c.b16 %v836, %v836
  %v901 = vpack.c.b16 %v837, %v837
  %v902 = vpack.c.b16 %v838, %v838
  %v903 = vpack.c.b16 %v839, %v839
  %v904 = vpack.c.b16 %v840, %v840
  %v905 = vpack.c.b16 %v841, %v841
  %v906 = vpack.c.b16 %v842, %v842
  %v907 = vpack.c.b16 %v843, %v843
  %v908 = vpack.c.b16 %v844, %v844
  %v909 = vpack.c.b16 %v845, %v845
  %v910 = vpack.c.b16 %v846, %v846
  %v911 = vpack.c.b16 %v847, %v847
  %v912 = vpack.c.b16 %v848, %v848
  %v913 = vpack.c.b16 %v849, %v849
  %v914 = vpack.c.b16 %v850, %v850
  %v915 = vpack.c.b16 %v851, %v851
  %v916 = vpack.c.b16 %v852, %v852
  %v917 = vpack.c.b16 %v853, %v853
  %v918 = vpack.c.b16 %v854, %v854
  %v919 = vpack.c.b16 %v855, %v855
  %v920 = vpack.c.b16 %v856, %v856
  %v921 = vpack.c.b16 %v857, %v857
  %v922 = vpack.c.b16 %v858, %v858
  %v923 = vpack.c.b16 %v859, %v859
  %v924 = vpack.c.b16 %v860, %v860
  %v925 = vpack.c.b16 %v861, %v861
  %v926 = vpack.c.b16 %v862, %v862
  %v927 = vpack.c.b16 %v863, %v863
  %v928 = vpack.c.b16 %v864, %v864
  %v929 = vpack.c.b16 %v865, %v865
  %v930 = vpack.c.b16 %v866, %v866
  %995 = vst [vmem:[%s4] sm:$0xf] %v867
  %996 = vst [vmem:[%s4 + $0x4] sm:$0xf] %v868
  %997 = vst [vmem:[%s4 + $0x8] sm:$0xf] %v869
  %998 = vst [vmem:[%s4 + $0xc] sm:$0xf] %v870
  %999 = vst [vmem:[%s4 + $0x10] sm:$0xf] %v871
  %1000 = vst [vmem:[%s4 + $0x14] sm:$0xf] %v872
  %1001 = vst [vmem:[%s4 + $0x18] sm:$0xf] %v873
  %1002 = vst [vmem:[%s4 + $0x1c] sm:$0xf] %v874
  %1003 = vst [vmem:[%s4 + $0x20] sm:$0xf] %v875
  %1004 = vst [vmem:[%s4 + $0x24] sm:$0xf] %v876
  %1005 = vst [vmem:[%s4 + $0x28] sm:$0xf] %v877
  %1006 = vst [vmem:[%s4 + $0x2c] sm:$0xf] %v878
  %1007 = vst [vmem:[%s4 + $0x30] sm:$0xf] %v879
  %1008 = vst [vmem:[%s4 + $0x34] sm:$0xf] %v880
  %1009 = vst [vmem:[%s4 + $0x38] sm:$0xf] %v881
  %1010 = vst [vmem:[%s4 + $0x3c] sm:$0xf] %v882
  %1011 = vst [vmem:[%s4 + $0x40] sm:$0xf] %v883
  %1012 = vst [vmem:[%s4 + $0x44] sm:$0xf] %v884
  %1013 = vst [vmem:[%s4 + $0x48] sm:$0xf] %v885
  %1014 = vst [vmem:[%s4 + $0x4c] sm:$0xf] %v886
  %1015 = vst [vmem:[%s4 + $0x50] sm:$0xf] %v887
  %1016 = vst [vmem:[%s4 + $0x54] sm:$0xf] %v888
  %1017 = vst [vmem:[%s4 + $0x58] sm:$0xf] %v889
  %1018 = vst [vmem:[%s4 + $0x5c] sm:$0xf] %v890
  %1019 = vst [vmem:[%s4 + $0x60] sm:$0xf] %v891
  %1020 = vst [vmem:[%s4 + $0x64] sm:$0xf] %v892
  %1021 = vst [vmem:[%s4 + $0x68] sm:$0xf] %v893
  %1022 = vst [vmem:[%s4 + $0x6c] sm:$0xf] %v894
  %1023 = vst [vmem:[%s4 + $0x70] sm:$0xf] %v895
  %1024 = vst [vmem:[%s4 + $0x74] sm:$0xf] %v896
  %1025 = vst [vmem:[%s4 + $0x78] sm:$0xf] %v897
  %1026 = vst [vmem:[%s4 + $0x7c] sm:$0xf] %v898
  %1027 = vst [vmem:[%s4 + $0x80] sm:$0xf] %v899
  %1028 = vst [vmem:[%s4 + $0x84] sm:$0xf] %v900
  %1029 = vst [vmem:[%s4 + $0x88] sm:$0xf] %v901
  %1030 = vst [vmem:[%s4 + $0x8c] sm:$0xf] %v902
  %1031 = vst [vmem:[%s4 + $0x90] sm:$0xf] %v903
  %1032 = vst [vmem:[%s4 + $0x94] sm:$0xf] %v904
  %1033 = vst [vmem:[%s4 + $0x98] sm:$0xf] %v905
  %1034 = vst [vmem:[%s4 + $0x9c] sm:$0xf] %v906
  %1035 = vst [vmem:[%s4 + $0xa0] sm:$0xf] %v907
  %1036 = vst [vmem:[%s4 + $0xa4] sm:$0xf] %v908
  %1037 = vst [vmem:[%s4 + $0xa8] sm:$0xf] %v909
  %1038 = vst [vmem:[%s4 + $0xac] sm:$0xf] %v910
  %1039 = vst [vmem:[%s4 + $0xb0] sm:$0xf] %v911
  %1040 = vst [vmem:[%s4 + $0xb4] sm:$0xf] %v912
  %1041 = vst [vmem:[%s4 + $0xb8] sm:$0xf] %v913
  %1042 = vst [vmem:[%s4 + $0xbc] sm:$0xf] %v914
  %1043 = vst [vmem:[%s4 + $0xc0] sm:$0xf] %v915
  %1044 = vst [vmem:[%s4 + $0xc4] sm:$0xf] %v916
  %1045 = vst [vmem:[%s4 + $0xc8] sm:$0xf] %v917
  %1046 = vst [vmem:[%s4 + $0xcc] sm:$0xf] %v918
  %1047 = vst [vmem:[%s4 + $0xd0] sm:$0xf] %v919
  %1048 = vst [vmem:[%s4 + $0xd4] sm:$0xf] %v920
  %1049 = vst [vmem:[%s4 + $0xd8] sm:$0xf] %v921
  %1050 = vst [vmem:[%s4 + $0xdc] sm:$0xf] %v922
  %1051 = vst [vmem:[%s4 + $0xe0] sm:$0xf] %v923
  %1052 = vst [vmem:[%s4 + $0xe4] sm:$0xf] %v924
  %1053 = vst [vmem:[%s4 + $0xe8] sm:$0xf] %v925
  %1054 = vst [vmem:[%s4 + $0xec] sm:$0xf] %v926
  %1055 = vst [vmem:[%s4 + $0xf0] sm:$0xf] %v927
  %1056 = vst [vmem:[%s4 + $0xf4] sm:$0xf] %v928
  %1057 = vst [vmem:[%s4 + $0xf8] sm:$0xf] %v929
  %1058 = vst [vmem:[%s4 + $0xfc] sm:$0xf] %v930
  %v1059 = vadd.f32 %v485, %v488
  %v1060 = vadd.f32 %v1059, %v493
  %v1061 = vadd.f32 %v1060, %v496
  %v1062 = vadd.f32 %v1061, %v501
  %v1063 = vadd.f32 %v1062, %v504
  %v1064 = vadd.f32 %v1063, %v509
  %v1065 = vadd.f32 %v1064, %v512
  %v1066 = vadd.f32 %v1065, %v517
  %v1067 = vadd.f32 %v1066, %v520
  %v1068 = vadd.f32 %v1067, %v525
  %v1069 = vadd.f32 %v1068, %v528
  %v1070 = vadd.f32 %v1069, %v533
  %v1071 = vadd.f32 %v1070, %v536
  %v1072 = vadd.f32 %v1071, %v541
  %v1073 = vadd.f32 %v1072, %v544
  %v1074 = vadd.f32 %v1073, %v549
  %v1075 = vadd.f32 %v1074, %v552
  %v1076 = vadd.f32 %v1075, %v557
  %v1077 = vadd.f32 %v1076, %v560
  %v1078 = vadd.f32 %v1077, %v565
  %v1079 = vadd.f32 %v1078, %v568
  %v1080 = vadd.f32 %v1079, %v573
  %v1081 = vadd.f32 %v1080, %v576
  %v1082 = vadd.f32 %v1081, %v581
  %v1083 = vadd.f32 %v1082, %v584
  %v1084 = vadd.f32 %v1083, %v589
  %v1085 = vadd.f32 %v1084, %v592
  %v1086 = vadd.f32 %v1085, %v597
  %v1087 = vadd.f32 %v1086, %v600
  %v1088 = vadd.f32 %v1087, %v605
  %v1089 = vadd.f32 %v1088, %v608
  %v1090 = vadd.f32 %v1089, %v613
  %v1091 = vadd.f32 %v1090, %v616
  %v1092 = vadd.f32 %v1091, %v621
  %v1093 = vadd.f32 %v1092, %v624
  %v1094 = vadd.f32 %v1093, %v629
  %v1095 = vadd.f32 %v1094, %v632
  %v1096 = vadd.f32 %v1095, %v637
  %v1097 = vadd.f32 %v1096, %v640
  %v1098 = vadd.f32 %v1097, %v645
  %v1099 = vadd.f32 %v1098, %v648
  %v1100 = vadd.f32 %v1099, %v653
  %v1101 = vadd.f32 %v1100, %v656
  %v1102 = vadd.f32 %v1101, %v661
  %v1103 = vadd.f32 %v1102, %v664
  %v1104 = vadd.f32 %v1103, %v669
  %v1105 = vadd.f32 %v1104, %v672
  %v1106 = vadd.f32 %v1105, %v677
  %v1107 = vadd.f32 %v1106, %v680
  %v1108 = vadd.f32 %v1107, %v685
  %v1109 = vadd.f32 %v1108, %v688
  %v1110 = vadd.f32 %v1109, %v693
  %v1111 = vadd.f32 %v1110, %v696
  %v1112 = vadd.f32 %v1111, %v701
  %v1113 = vadd.f32 %v1112, %v704
  %v1114 = vadd.f32 %v1113, %v709
  %v1115 = vadd.f32 %v1114, %v712
  %v1116 = vadd.f32 %v1115, %v717
  %v1117 = vadd.f32 %v1116, %v720
  %v1118 = vadd.f32 %v1117, %v725
  %v1119 = vadd.f32 %v1118, %v728
  %v1120 = vadd.f32 %v1119, %v733
  %v1121 = vadd.f32 %v1120, %v736
  %v1122 = vrot.slane %v1121, 4
  %v1123 = vadd.f32 %v1121, %v1122
  %v1124 = vrot.slane %v1123, 2
  %v1125 = vadd.f32 %v1123, %v1124
  %v1126 = vrot.slane %v1125, 1
  %v1127 = vadd.f32 %v1125, %v1126
  %v1128 = vmul.f32 %v485, %v485
  %v1129 = vmul.f32 %v488, %v488
  %v1130 = vmul.f32 %v493, %v493
  %v1131 = vmul.f32 %v496, %v496
  %v1132 = vmul.f32 %v501, %v501
  %v1133 = vmul.f32 %v504, %v504
  %v1134 = vmul.f32 %v509, %v509
  %v1135 = vmul.f32 %v512, %v512
  %v1136 = vmul.f32 %v517, %v517
  %v1137 = vmul.f32 %v520, %v520
  %v1138 = vmul.f32 %v525, %v525
  %v1139 = vmul.f32 %v528, %v528
  %v1140 = vmul.f32 %v533, %v533
  %v1141 = vmul.f32 %v536, %v536
  %v1142 = vmul.f32 %v541, %v541
  %v1143 = vmul.f32 %v544, %v544
  %v1144 = vmul.f32 %v549, %v549
  %v1145 = vmul.f32 %v552, %v552
  %v1146 = vmul.f32 %v557, %v557
  %v1147 = vmul.f32 %v560, %v560
  %v1148 = vmul.f32 %v565, %v565
  %v1149 = vmul.f32 %v568, %v568
  %v1150 = vmul.f32 %v573, %v573
  %v1151 = vmul.f32 %v576, %v576
  %v1152 = vmul.f32 %v581, %v581
  %v1153 = vmul.f32 %v584, %v584
  %v1154 = vmul.f32 %v589, %v589
  %v1155 = vmul.f32 %v592, %v592
  %v1156 = vmul.f32 %v597, %v597
  %v1157 = vmul.f32 %v600, %v600
  %v1158 = vmul.f32 %v605, %v605
  %v1159 = vmul.f32 %v608, %v608
  %v1160 = vmul.f32 %v613, %v613
  %v1161 = vmul.f32 %v616, %v616
  %v1162 = vmul.f32 %v621, %v621
  %v1163 = vmul.f32 %v624, %v624
  %v1164 = vmul.f32 %v629, %v629
  %v1165 = vmul.f32 %v632, %v632
  %v1166 = vmul.f32 %v637, %v637
  %v1167 = vmul.f32 %v640, %v640
  %v1168 = vmul.f32 %v645, %v645
  %v1169 = vmul.f32 %v648, %v648
  %v1170 = vmul.f32 %v653, %v653
  %v1171 = vmul.f32 %v656, %v656
  %v1172 = vmul.f32 %v661, %v661
  %v1173 = vmul.f32 %v664, %v664
  %v1174 = vmul.f32 %v669, %v669
  %v1175 = vmul.f32 %v672, %v672
  %v1176 = vmul.f32 %v677, %v677
  %v1177 = vmul.f32 %v680, %v680
  %v1178 = vmul.f32 %v685, %v685
  %v1179 = vmul.f32 %v688, %v688
  %v1180 = vmul.f32 %v693, %v693
  %v1181 = vmul.f32 %v696, %v696
  %v1182 = vmul.f32 %v701, %v701
  %v1183 = vmul.f32 %v704, %v704
  %v1184 = vmul.f32 %v709, %v709
  %v1185 = vmul.f32 %v712, %v712
  %v1186 = vmul.f32 %v717, %v717
  %v1187 = vmul.f32 %v720, %v720
  %v1188 = vmul.f32 %v725, %v725
  %v1189 = vmul.f32 %v728, %v728
  %v1190 = vmul.f32 %v733, %v733
  %v1191 = vmul.f32 %v736, %v736
  %v1192 = vadd.f32 %v1128, %v1129
  %v1193 = vadd.f32 %v1192, %v1130
  %v1194 = vadd.f32 %v1193, %v1131
  %v1195 = vadd.f32 %v1194, %v1132
  %v1196 = vadd.f32 %v1195, %v1133
  %v1197 = vadd.f32 %v1196, %v1134
  %v1198 = vadd.f32 %v1197, %v1135
  %v1199 = vadd.f32 %v1198, %v1136
  %v1200 = vadd.f32 %v1199, %v1137
  %v1201 = vadd.f32 %v1200, %v1138
  %v1202 = vadd.f32 %v1201, %v1139
  %v1203 = vadd.f32 %v1202, %v1140
  %v1204 = vadd.f32 %v1203, %v1141
  %v1205 = vadd.f32 %v1204, %v1142
  %v1206 = vadd.f32 %v1205, %v1143
  %v1207 = vadd.f32 %v1206, %v1144
  %v1208 = vadd.f32 %v1207, %v1145
  %v1209 = vadd.f32 %v1208, %v1146
  %v1210 = vadd.f32 %v1209, %v1147
  %v1211 = vadd.f32 %v1210, %v1148
  %v1212 = vadd.f32 %v1211, %v1149
  %v1213 = vadd.f32 %v1212, %v1150
  %v1214 = vadd.f32 %v1213, %v1151
  %v1215 = vadd.f32 %v1214, %v1152
  %v1216 = vadd.f32 %v1215, %v1153
  %v1217 = vadd.f32 %v1216, %v1154
  %v1218 = vadd.f32 %v1217, %v1155
  %v1219 = vadd.f32 %v1218, %v1156
  %v1220 = vadd.f32 %v1219, %v1157
  %v1221 = vadd.f32 %v1220, %v1158
  %v1222 = vadd.f32 %v1221, %v1159
  %v1223 = vadd.f32 %v1222, %v1160
  %v1224 = vadd.f32 %v1223, %v1161
  %v1225 = vadd.f32 %v1224, %v1162
  %v1226 = vadd.f32 %v1225, %v1163
  %v1227 = vadd.f32 %v1226, %v1164
  %v1228 = vadd.f32 %v1227, %v1165
  %v1229 = vadd.f32 %v1228, %v1166
  %v1230 = vadd.f32 %v1229, %v1167
  %v1231 = vadd.f32 %v1230, %v1168
  %v1232 = vadd.f32 %v1231, %v1169
  %v1233 = vadd.f32 %v1232, %v1170
  %v1234 = vadd.f32 %v1233, %v1171
  %v1235 = vadd.f32 %v1234, %v1172
  %v1236 = vadd.f32 %v1235, %v1173
  %v1237 = vadd.f32 %v1236, %v1174
  %v1238 = vadd.f32 %v1237, %v1175
  %v1239 = vadd.f32 %v1238, %v1176
  %v1240 = vadd.f32 %v1239, %v1177
  %v1241 = vadd.f32 %v1240, %v1178
  %v1242 = vadd.f32 %v1241, %v1179
  %v1243 = vadd.f32 %v1242, %v1180
  %v1244 = vadd.f32 %v1243, %v1181
  %v1245 = vadd.f32 %v1244, %v1182
  %v1246 = vadd.f32 %v1245, %v1183
  %v1247 = vadd.f32 %v1246, %v1184
  %v1248 = vadd.f32 %v1247, %v1185
  %v1249 = vadd.f32 %v1248, %v1186
  %v1250 = vadd.f32 %v1249, %v1187
  %v1251 = vadd.f32 %v1250, %v1188
  %v1252 = vadd.f32 %v1251, %v1189
  %v1253 = vadd.f32 %v1252, %v1190
  %v1254 = vadd.f32 %v1253, %v1191
  %v1255 = vrot.slane %v1254, 4
  %v1256 = vadd.f32 %v1254, %v1255
  %v1257 = vrot.slane %v1256, 2
  %v1258 = vadd.f32 %v1256, %v1257
  %v1259 = vrot.slane %v1258, 1
  %v1260 = vadd.f32 %v1258, %v1259
  %vm1261 = vcmask 1040384
  %v1262 = vsel %vm1261, %v1127, %v1260
  %1263 = vst [vmem:[%s5] sm:$0x3] %v1262
  // Predicated region
  $region18: #{bottleneck_forward.8} parent=0 // pred_check
    _
  $region19: #{bottleneck_forward.8} parent=0 // pred_check_branch
    %1265 = sbr.rel (0) target = $region21
  $region20: #{bottleneck_forward.8} parent=0 // pred_region
    _
  $region21: #{bottleneck_forward.8} parent=0 // pred_fallthru
    _
  // Predicated region
  $region22: #{bottleneck_forward.8} parent=0 // pred_check
    _
  $region23: #{bottleneck_forward.8} parent=0 // pred_check_branch
    %1267 = sbr.rel (0) target = $region25
  $region24: #{bottleneck_forward.8} parent=0 // pred_region
    _
  $region25: #{bottleneck_forward.8} parent=0 // pred_fallthru
    _
  // Predicated region
  $region26: #{bottleneck_forward.8} parent=0 // pred_check
    _
  $region27: #{bottleneck_forward.8} parent=0 // pred_check_branch
    %1269 = sbr.rel (0) target = $region29
  $region28: #{bottleneck_forward.8} parent=0 // pred_region
    _
  $region29: #{bottleneck_forward.8} parent=0 // pred_fallthru
    _
  // Predicated region
  $region30: #{bottleneck_forward.8} parent=0 // pred_check
    _
  $region31: #{bottleneck_forward.8} parent=0 // pred_check_branch
    %1271 = sbr.rel (0) target = $region33
  $region32: #{bottleneck_forward.8} parent=0 // pred_region
    _
  $region33: #{bottleneck_forward.8} parent=0 // pred_fallthru
    _

// kernel: bottleneck_forward.7
$region0: #{bottleneck_forward.7}
  #allocation0 [shape = 'u32[]', space=smem, size = 0x4, offset = 0x4, fixed_abs, tag = 'smem constant byte address 0x4 - core index']
  #allocation1 [shape = 'u32[144,128]{1,0:T(1,128)}', space=vmem, size = 0x12000, scoped, tag = 'internal scratch']
  #allocation2 [shape = 'f32[256,128]{1,0:T(8,128)}', space=vmem, size = 0x20000, scoped, tag = 'scratch operand']
  %s0 = inlined_call_operand.vmem [shape: bf16[512,128], index: 0, kind: input, shape index: {}]
  %s1 = inlined_call_operand.vmem [shape: f32[1,128], index: 1, kind: input, shape index: {}]
  %s2 = inlined_call_operand.vmem [shape: f32[1,128], index: 2, kind: input, shape index: {}]
  %s3 = inlined_call_operand.vmem [shape: bf16[384,128], index: 3, kind: input, shape index: {}]
  %s4 = inlined_call_operand.vmem [shape: bf16[512,128], index: 4, kind: output, shape index: {0}]
  %s5 = inlined_call_operand.vmem [shape: f32[2,2,128], index: 5, kind: output, shape index: {1}]
  %6 = xla_tuple %s4, %s5
  %s7 = sld [smem:[#allocation0]]
  $region57: #{bottleneck_forward.7} parent=0
    _
  %s9 = ssub.s32 1, %s7
  %s10 = scalar_select 0, %s9, %s7
  loop: start=0, step=1, limit=4
  $region2: #{bottleneck_forward.7} parent=0 // loop_pre_header
    _
  $region3: #{bottleneck_forward.7} parent=0 // loop_header
    %s12 = sphi 0, %s16
    %p13 = scmp.ge.s32.totalorder %s12, 4
    %s22 = sphi 0, %s24
    %s25 = sphi 0, %s22
    %s26 = sphi 0, %s25
    %s42 = sphi 0, %s26
    %s46 = sphi 0, %s46
    %s48 = sphi 0, %s46
    %s49 = sphi 0, %s48
    %s63 = sphi 0, %s49
    %s67 = sphi 0, %s67
    %s69 = sphi 0, %s67
    %s70 = sphi 0, %s69
    %s84 = sphi 0, %s70
    %s88 = sphi 0, %s88
    %s90 = sphi 0, %s88
    %s91 = sphi 0, %s90
    %s105 = sphi 0, %s91
    %s111 = sphi 0, %s113
    %s114 = sphi 0, %s111
    %s115 = sphi 0, %s114
    %s131 = sphi 0, %s115
    %s137 = sphi 0, %s139
    %s140 = sphi 0, %s137
    %s141 = sphi 0, %s140
    %s157 = sphi 0, %s141
  $region4: #{bottleneck_forward.7} parent=0 // loop_header_branch
    %15 = sbr.rel (%p13) target = $region8
  $region5: #{bottleneck_forward.7} parent=0 // loop_body
    %s17 = ssub.s32 %s12, 1
    %s18 = ssub.s32 %s12, 2
    %s19 = sadd.s32 %s12, 1
    %s20 = ssub.s32 %s12, %s19
    %p21 = scmp.eq.s32.totalorder %s20, 0
    %s23 = sadd.s32 %s22, 1
    %s24 = scalar_select %p21, %s22, %s23
    %p27 = pneg %p21
    %p28 = scmp.eq.s32.totalorder %s12, 1
    %p29 = por %p27, %p28
    %p30 = scmp.ne.s32.totalorder %s22, %s25
    %p31 = scmp.eq.s32.totalorder %s12, 0
    %p32 = por %p30, %p31
    %p33 = scmp.ne.s32.totalorder %s22, %s25
    %p34 = scmp.eq.s32.totalorder %s17, 1
    %p35 = por %p33, %p34
    %p36 = scmp.ne.s32.totalorder %s25, %s26
    %p37 = scmp.eq.s32.totalorder %s17, 0
    %p38 = por %p36, %p37
    %p39 = scmp.ne.s32.totalorder %s25, %s26
    %p40 = scmp.eq.s32.totalorder %s18, 1
    %p41 = por %p39, %p40
    %p43 = scmp.ne.s32.totalorder %s26, %s42
    %p44 = scmp.eq.s32.totalorder %s18, 0
    %p45 = por %p43, %p44
    %s47 = sadd.s32 %s46, 1
    %p50 = scmp.eq.s32.totalorder %s12, 1
    %p51 = scmp.ne.s32.totalorder %s46, %s48
    %p52 = scmp.eq.s32.totalorder %s12, 0
    %p53 = por %p51, %p52
    %p54 = scmp.ne.s32.totalorder %s46, %s48
    %p55 = scmp.eq.s32.totalorder %s17, 1
    %p56 = por %p54, %p55
    %p57 = scmp.ne.s32.totalorder %s48, %s49
    %p58 = scmp.eq.s32.totalorder %s17, 0
    %p59 = por %p57, %p58
    %p60 = scmp.ne.s32.totalorder %s48, %s49
    %p61 = scmp.eq.s32.totalorder %s18, 1
    %p62 = por %p60, %p61
    %p64 = scmp.ne.s32.totalorder %s49, %s63
    %p65 = scmp.eq.s32.totalorder %s18, 0
    %p66 = por %p64, %p65
    %s68 = sadd.s32 %s67, 1
    %p71 = scmp.eq.s32.totalorder %s12, 1
    %p72 = scmp.ne.s32.totalorder %s67, %s69
    %p73 = scmp.eq.s32.totalorder %s12, 0
    %p74 = por %p72, %p73
    %p75 = scmp.ne.s32.totalorder %s67, %s69
    %p76 = scmp.eq.s32.totalorder %s17, 1
    %p77 = por %p75, %p76
    %p78 = scmp.ne.s32.totalorder %s69, %s70
    %p79 = scmp.eq.s32.totalorder %s17, 0
    %p80 = por %p78, %p79
    %p81 = scmp.ne.s32.totalorder %s69, %s70
    %p82 = scmp.eq.s32.totalorder %s18, 1
    %p83 = por %p81, %p82
    %p85 = scmp.ne.s32.totalorder %s70, %s84
    %p86 = scmp.eq.s32.totalorder %s18, 0
    %p87 = por %p85, %p86
    %s89 = sadd.s32 %s88, 1
    %p92 = scmp.eq.s32.totalorder %s12, 1
    %p93 = scmp.ne.s32.totalorder %s88, %s90
    %p94 = scmp.eq.s32.totalorder %s12, 0
    %p95 = por %p93, %p94
    %p96 = scmp.ne.s32.totalorder %s88, %s90
    %p97 = scmp.eq.s32.totalorder %s17, 1
    %p98 = por %p96, %p97
    %p99 = scmp.ne.s32.totalorder %s90, %s91
    %p100 = scmp.eq.s32.totalorder %s17, 0
    %p101 = por %p99, %p100
    %p102 = scmp.ne.s32.totalorder %s90, %s91
    %p103 = scmp.eq.s32.totalorder %s18, 1
    %p104 = por %p102, %p103
    %p106 = scmp.ne.s32.totalorder %s91, %s105
    %p107 = scmp.eq.s32.totalorder %s18, 0
    %p108 = por %p106, %p107
    %s109 = ssub.s32 %s12, %s19
    %p110 = scmp.eq.s32.totalorder %s109, 0
    %s112 = sadd.s32 %s111, 1
    %s113 = scalar_select %p110, %s111, %s112
    %p116 = pneg %p110
    %p117 = scmp.eq.s32.totalorder %s12, 1
    %p118 = por %p116, %p117
    %p119 = scmp.ne.s32.totalorder %s111, %s114
    %p120 = scmp.eq.s32.totalorder %s12, 0
    %p121 = por %p119, %p120
    %p122 = scmp.ne.s32.totalorder %s111, %s114
    %p123 = scmp.eq.s32.totalorder %s17, 1
    %p124 = por %p122, %p123
    %p125 = scmp.ne.s32.totalorder %s114, %s115
    %p126 = scmp.eq.s32.totalorder %s17, 0
    %p127 = por %p125, %p126
    %p128 = scmp.ne.s32.totalorder %s114, %s115
    %p129 = scmp.eq.s32.totalorder %s18, 1
    %p130 = por %p128, %p129
    %p132 = scmp.ne.s32.totalorder %s115, %s131
    %p133 = scmp.eq.s32.totalorder %s18, 0
    %p134 = por %p132, %p133
    %s135 = ssub.s32 %s12, %s19
    %p136 = scmp.eq.s32.totalorder %s135, 0
    %s138 = sadd.s32 %s137, 1
    %s139 = scalar_select %p136, %s137, %s138
    %p142 = pneg %p136
    %p143 = scmp.eq.s32.totalorder %s12, 1
    %p144 = por %p142, %p143
    %p145 = scmp.ne.s32.totalorder %s137, %s140
    %p146 = scmp.eq.s32.totalorder %s12, 0
    %p147 = por %p145, %p146
    %p148 = scmp.ne.s32.totalorder %s137, %s140
    %p149 = scmp.eq.s32.totalorder %s17, 1
    %p150 = por %p148, %p149
    %p151 = scmp.ne.s32.totalorder %s140, %s141
    %p152 = scmp.eq.s32.totalorder %s17, 0
    %p153 = por %p151, %p152
    %p154 = scmp.ne.s32.totalorder %s140, %s141
    %p155 = scmp.eq.s32.totalorder %s18, 1
    %p156 = por %p154, %p155
    %p158 = scmp.ne.s32.totalorder %s141, %s157
    %p159 = scmp.eq.s32.totalorder %s18, 0
    %p160 = por %p158, %p159
    %p161 = scmp.le.s32.totalorder 1, %s12
    %p162 = scmp.lt.s32.totalorder %s12, 3
    %p163 = pnand %p161, %p162
    %p164 = pneg %p163
    // Predicated region
    $region9: #{bottleneck_forward.7} parent=5 // pred_check
      _
    $region10: #{bottleneck_forward.7} parent=5 // pred_check_branch
      %166 = sbr.rel (%p163) target = $region12
    $region11: #{bottleneck_forward.7} parent=5 // pred_region
      %s167 = ssub.s32 %s12, 1
      // Predicated region
      $region13: #{bottleneck_forward.7} parent=11 // pred_check
        %p168 = pneg %p59
      $region14: #{bottleneck_forward.7} parent=11 // pred_check_branch
        %170 = sbr.rel (%p168) target = $region16
      $region15: #{bottleneck_forward.7} parent=11 // pred_region
        _
      $region16: #{bottleneck_forward.7} parent=11 // pred_fallthru
        _
      // Predicated region
      $region17: #{bottleneck_forward.7} parent=11 // pred_check
        %p171 = pneg %p80
      $region18: #{bottleneck_forward.7} parent=11 // pred_check_branch
        %173 = sbr.rel (%p171) target = $region20
      $region19: #{bottleneck_forward.7} parent=11 // pred_region
        _
      $region20: #{bottleneck_forward.7} parent=11 // pred_fallthru
        _
      // Predicated region
      $region21: #{bottleneck_forward.7} parent=11 // pred_check
        %p174 = pneg %p101
      $region22: #{bottleneck_forward.7} parent=11 // pred_check_branch
        %176 = sbr.rel (%p174) target = $region24
      $region23: #{bottleneck_forward.7} parent=11 // pred_region
        _
      $region24: #{bottleneck_forward.7} parent=11 // pred_fallthru
        _
    $region12: #{bottleneck_forward.7} parent=5 // pred_fallthru
      _
    %p177 = scmp.lt.s32.totalorder %s12, 2
    // Predicated region
    $region25: #{bottleneck_forward.7} parent=5 // pred_check
      %p178 = pneg %p177
    $region26: #{bottleneck_forward.7} parent=5 // pred_check_branch
      %180 = sbr.rel (%p178) target = $region28
    $region27: #{bottleneck_forward.7} parent=5 // pred_region
      // Predicated region
      $region29: #{bottleneck_forward.7} parent=27 // pred_check
        %p181 = pneg %p32
      $region30: #{bottleneck_forward.7} parent=27 // pred_check_branch
        %183 = sbr.rel (%p181) target = $region32
      $region31: #{bottleneck_forward.7} parent=27 // pred_region
        %s184 = smul.u32 32, %s12
        %p185 = scmp.lt.s32.totalorder %s184, 63
        %s186 = scalar_select %p185, %s184, 63
        %s187 = smul.addr %s186, 4
        %s188 = scalar_lea.vmem %s0, %s187
        %s189 = smul.u32 32, %s12
      $region32: #{bottleneck_forward.7} parent=27 // pred_fallthru
        _
    $region28: #{bottleneck_forward.7} parent=5 // pred_fallthru
      _
    %p190 = scmp.le.s32.totalorder 1, %s12
    %p191 = scmp.lt.s32.totalorder %s12, 3
    %p192 = pnand %p190, %p191
    %p193 = pneg %p192
    // Predicated region
    $region33: #{bottleneck_forward.7} parent=5 // pred_check
      _
    $region34: #{bottleneck_forward.7} parent=5 // pred_check_branch
      %195 = sbr.rel (%p192) target = $region36
    $region35: #{bottleneck_forward.7} parent=5 // pred_region
      %s196 = ssub.s32 %s12, 1
      %s197 = smul.u32 32, %s17
      %p198 = scmp.lt.s32.totalorder %s197, 63
      %s199 = scalar_select %p198, %s197, 63
      %s200 = smul.addr %s199, 4
      %s201 = scalar_lea.vmem %s0, %s200
      %p202 = pneg %p38
      %p203 = pneg %p35
      %p204 = pneg %p59
      %p205 = pneg %p56
      %p206 = pneg %p80
      %p207 = pneg %p77
      %p208 = pneg %p101
      %p209 = pneg %p98
      %p210 = pneg %p127
      %p211 = pneg %p124
      %s212 = smul.u32 32, %s17
      %p213 = scmp.lt.s32.totalorder %s212, 63
      %s214 = scalar_select %p213, %s212, 63
      %s215 = smul.addr %s214, 4
      %s216 = scalar_lea.vmem %s4, %s215
      %p217 = pneg %p153
      %p218 = pneg %p150
      %p219 = scmp.lt.s32.totalorder %s17, 1
      %s220 = scalar_select %p219, %s17, 1
      %s221 = smul.addr %s220, 2
      %s222 = scalar_lea.vmem %s5, %s221
      %s223 = smul.u32 32, %s17
      %p224 = scmp.lt.s32.totalorder %s223, 63
      %s225 = scalar_select %p224, %s223, 63
      %s226 = smul.addr %s225, 4
      %s227 = scalar_lea.vmem %s0, %s226
      %s228 = smul.u32 32, %s17
      %s229 = smul.u32 32, %s17
      %p230 = scmp.lt.s32.totalorder %s229, 63
      %s231 = scalar_select %p230, %s229, 63
      %s232 = smul.addr %s231, 4
      %s233 = scalar_lea.vmem %s4, %s232
      %s234 = smul.u32 32, %s17
      %p235 = scmp.lt.s32.totalorder %s17, 1
      %s236 = scalar_select %p235, %s17, 1
      %s237 = smul.addr %s236, 2
      %s238 = scalar_lea.vmem %s5, %s237
      %v240 = vld [vmem:[%s227] sm:$0xf]
      %v241 = vld [vmem:[%s227 + $0x4] sm:$0xf]
      %v242 = vld [vmem:[%s227 + $0x8] sm:$0xf]
      %v243 = vld [vmem:[%s227 + $0xc] sm:$0xf]
      %v244 = vld [vmem:[%s227 + $0x10] sm:$0xf]
      %v245 = vld [vmem:[%s227 + $0x14] sm:$0xf]
      %v246 = vld [vmem:[%s227 + $0x18] sm:$0xf]
      %v247 = vld [vmem:[%s227 + $0x1c] sm:$0xf]
      %v248 = vld [vmem:[%s227 + $0x20] sm:$0xf]
      %v249 = vld [vmem:[%s227 + $0x24] sm:$0xf]
      %v250 = vld [vmem:[%s227 + $0x28] sm:$0xf]
      %v251 = vld [vmem:[%s227 + $0x2c] sm:$0xf]
      %v252 = vld [vmem:[%s227 + $0x30] sm:$0xf]
      %v253 = vld [vmem:[%s227 + $0x34] sm:$0xf]
      %v254 = vld [vmem:[%s227 + $0x38] sm:$0xf]
      %v255 = vld [vmem:[%s227 + $0x3c] sm:$0xf]
      %v256 = vld [vmem:[%s227 + $0x40] sm:$0xf]
      %v257 = vld [vmem:[%s227 + $0x44] sm:$0xf]
      %v258 = vld [vmem:[%s227 + $0x48] sm:$0xf]
      %v259 = vld [vmem:[%s227 + $0x4c] sm:$0xf]
      %v260 = vld [vmem:[%s227 + $0x50] sm:$0xf]
      %v261 = vld [vmem:[%s227 + $0x54] sm:$0xf]
      %v262 = vld [vmem:[%s227 + $0x58] sm:$0xf]
      %v263 = vld [vmem:[%s227 + $0x5c] sm:$0xf]
      %v264 = vld [vmem:[%s227 + $0x60] sm:$0xf]
      %v265 = vld [vmem:[%s227 + $0x64] sm:$0xf]
      %v266 = vld [vmem:[%s227 + $0x68] sm:$0xf]
      %v267 = vld [vmem:[%s227 + $0x6c] sm:$0xf]
      %v268 = vld [vmem:[%s227 + $0x70] sm:$0xf]
      %v269 = vld [vmem:[%s227 + $0x74] sm:$0xf]
      %v270 = vld [vmem:[%s227 + $0x78] sm:$0xf]
      %v271 = vld [vmem:[%s227 + $0x7c] sm:$0xf]
      %v272 = vunpack.c.l.bf16 %v240
      %v273 = vunpack.c.l.bf16 %v241
      %v274 = vunpack.c.l.bf16 %v242
      %v275 = vunpack.c.l.bf16 %v243
      %v276 = vunpack.c.l.bf16 %v244
      %v277 = vunpack.c.l.bf16 %v245
      %v278 = vunpack.c.l.bf16 %v246
      %v279 = vunpack.c.l.bf16 %v247
      %v280 = vunpack.c.l.bf16 %v248
      %v281 = vunpack.c.l.bf16 %v249
      %v282 = vunpack.c.l.bf16 %v250
      %v283 = vunpack.c.l.bf16 %v251
      %v284 = vunpack.c.l.bf16 %v252
      %v285 = vunpack.c.l.bf16 %v253
      %v286 = vunpack.c.l.bf16 %v254
      %v287 = vunpack.c.l.bf16 %v255
      %v288 = vunpack.c.l.bf16 %v256
      %v289 = vunpack.c.l.bf16 %v257
      %v290 = vunpack.c.l.bf16 %v258
      %v291 = vunpack.c.l.bf16 %v259
      %v292 = vunpack.c.l.bf16 %v260
      %v293 = vunpack.c.l.bf16 %v261
      %v294 = vunpack.c.l.bf16 %v262
      %v295 = vunpack.c.l.bf16 %v263
      %v296 = vunpack.c.l.bf16 %v264
      %v297 = vunpack.c.l.bf16 %v265
      %v298 = vunpack.c.l.bf16 %v266
      %v299 = vunpack.c.l.bf16 %v267
      %v300 = vunpack.c.l.bf16 %v268
      %v301 = vunpack.c.l.bf16 %v269
      %v302 = vunpack.c.l.bf16 %v270
      %v303 = vunpack.c.l.bf16 %v271
      %v304 = vld [vmem:[%s1] sm:$0x1]
      %v306 = vlaneseq
      %v307 = vshrl.u32 %v306, 7
      %v308 = vsub.s32 0, %v307
      %v309 = vrot.slane %v304, %v308
      %v311 = vmul.f32 %v272, %v309
      %v312 = vmul.f32 %v273, %v309
      %v313 = vmul.f32 %v274, %v309
      %v314 = vmul.f32 %v275, %v309
      %v315 = vmul.f32 %v276, %v309
      %v316 = vmul.f32 %v277, %v309
      %v317 = vmul.f32 %v278, %v309
      %v318 = vmul.f32 %v279, %v309
      %v319 = vmul.f32 %v280, %v309
      %v320 = vmul.f32 %v281, %v309
      %v321 = vmul.f32 %v282, %v309
      %v322 = vmul.f32 %v283, %v309
      %v323 = vmul.f32 %v284, %v309
      %v324 = vmul.f32 %v285, %v309
      %v325 = vmul.f32 %v286, %v309
      %v326 = vmul.f32 %v287, %v309
      %v327 = vmul.f32 %v288, %v309
      %v328 = vmul.f32 %v289, %v309
      %v329 = vmul.f32 %v290, %v309
      %v330 = vmul.f32 %v291, %v309
      %v331 = vmul.f32 %v292, %v309
      %v332 = vmul.f32 %v293, %v309
      %v333 = vmul.f32 %v294, %v309
      %v334 = vmul.f32 %v295, %v309
      %v335 = vmul.f32 %v296, %v309
      %v336 = vmul.f32 %v297, %v309
      %v337 = vmul.f32 %v298, %v309
      %v338 = vmul.f32 %v299, %v309
      %v339 = vmul.f32 %v300, %v309
      %v340 = vmul.f32 %v301, %v309
      %v341 = vmul.f32 %v302, %v309
      %v342 = vmul.f32 %v303, %v309
      %v343 = vld [vmem:[%s2] sm:$0x1]
      %v345 = vlaneseq
      %v346 = vshrl.u32 %v345, 7
      %v347 = vsub.s32 0, %v346
      %v348 = vrot.slane %v343, %v347
      %v350 = vadd.f32 %v311, %v348
      %v351 = vadd.f32 %v312, %v348
      %v352 = vadd.f32 %v313, %v348
      %v353 = vadd.f32 %v314, %v348
      %v354 = vadd.f32 %v315, %v348
      %v355 = vadd.f32 %v316, %v348
      %v356 = vadd.f32 %v317, %v348
      %v357 = vadd.f32 %v318, %v348
      %v358 = vadd.f32 %v319, %v348
      %v359 = vadd.f32 %v320, %v348
      %v360 = vadd.f32 %v321, %v348
      %v361 = vadd.f32 %v322, %v348
      %v362 = vadd.f32 %v323, %v348
      %v363 = vadd.f32 %v324, %v348
      %v364 = vadd.f32 %v325, %v348
      %v365 = vadd.f32 %v326, %v348
      %v366 = vadd.f32 %v327, %v348
      %v367 = vadd.f32 %v328, %v348
      %v368 = vadd.f32 %v329, %v348
      %v369 = vadd.f32 %v330, %v348
      %v370 = vadd.f32 %v331, %v348
      %v371 = vadd.f32 %v332, %v348
      %v372 = vadd.f32 %v333, %v348
      %v373 = vadd.f32 %v334, %v348
      %v374 = vadd.f32 %v335, %v348
      %v375 = vadd.f32 %v336, %v348
      %v376 = vadd.f32 %v337, %v348
      %v377 = vadd.f32 %v338, %v348
      %v378 = vadd.f32 %v339, %v348
      %v379 = vadd.f32 %v340, %v348
      %v380 = vadd.f32 %v341, %v348
      %v381 = vadd.f32 %v342, %v348
      %v382 = vmax.f32 %v350, 0.0
      %v383 = vmax.f32 %v351, 0.0
      %v384 = vmax.f32 %v352, 0.0
      %v385 = vmax.f32 %v353, 0.0
      %v386 = vmax.f32 %v354, 0.0
      %v387 = vmax.f32 %v355, 0.0
      %v388 = vmax.f32 %v356, 0.0
      %v389 = vmax.f32 %v357, 0.0
      %v390 = vmax.f32 %v358, 0.0
      %v391 = vmax.f32 %v359, 0.0
      %v392 = vmax.f32 %v360, 0.0
      %v393 = vmax.f32 %v361, 0.0
      %v394 = vmax.f32 %v362, 0.0
      %v395 = vmax.f32 %v363, 0.0
      %v396 = vmax.f32 %v364, 0.0
      %v397 = vmax.f32 %v365, 0.0
      %v398 = vmax.f32 %v366, 0.0
      %v399 = vmax.f32 %v367, 0.0
      %v400 = vmax.f32 %v368, 0.0
      %v401 = vmax.f32 %v369, 0.0
      %v402 = vmax.f32 %v370, 0.0
      %v403 = vmax.f32 %v371, 0.0
      %v404 = vmax.f32 %v372, 0.0
      %v405 = vmax.f32 %v373, 0.0
      %v406 = vmax.f32 %v374, 0.0
      %v407 = vmax.f32 %v375, 0.0
      %v408 = vmax.f32 %v376, 0.0
      %v409 = vmax.f32 %v377, 0.0
      %v410 = vmax.f32 %v378, 0.0
      %v411 = vmax.f32 %v379, 0.0
      %v412 = vmax.f32 %v380, 0.0
      %v413 = vmax.f32 %v381, 0.0
      %v414 = vpack.c.bf16 %v383, %v382
      %v415 = vpack.c.bf16 %v385, %v384
      %v416 = vpack.c.bf16 %v387, %v386
      %v417 = vpack.c.bf16 %v389, %v388
      %v418 = vpack.c.bf16 %v391, %v390
      %v419 = vpack.c.bf16 %v393, %v392
      %v420 = vpack.c.bf16 %v395, %v394
      %v421 = vpack.c.bf16 %v397, %v396
      %v422 = vpack.c.bf16 %v399, %v398
      %v423 = vpack.c.bf16 %v401, %v400
      %v424 = vpack.c.bf16 %v403, %v402
      %v425 = vpack.c.bf16 %v405, %v404
      %v426 = vpack.c.bf16 %v407, %v406
      %v427 = vpack.c.bf16 %v409, %v408
      %v428 = vpack.c.bf16 %v411, %v410
      %v429 = vpack.c.bf16 %v413, %v412
      %v430 = vld [vmem:[%s3 + $0x40] sm:$0xf]
      %v431 = vld [vmem:[%s3 + $0x44] sm:$0xf]
      %v432 = vld [vmem:[%s3 + $0x48] sm:$0xf]
      %v433 = vld [vmem:[%s3 + $0x4c] sm:$0xf]
      %v434 = vld [vmem:[%s3 + $0x50] sm:$0xf]
      %v435 = vld [vmem:[%s3 + $0x54] sm:$0xf]
      %v436 = vld [vmem:[%s3 + $0x58] sm:$0xf]
      %v437 = vld [vmem:[%s3 + $0x5c] sm:$0xf]
      %v438 = vld [vmem:[%s3 + $0x60] sm:$0xf]
      %v439 = vld [vmem:[%s3 + $0x64] sm:$0xf]
      %v440 = vld [vmem:[%s3 + $0x68] sm:$0xf]
      %v441 = vld [vmem:[%s3 + $0x6c] sm:$0xf]
      %v442 = vld [vmem:[%s3 + $0x70] sm:$0xf]
      %v443 = vld [vmem:[%s3 + $0x74] sm:$0xf]
      %v444 = vld [vmem:[%s3 + $0x78] sm:$0xf]
      %v445 = vld [vmem:[%s3 + $0x7c] sm:$0xf]
      %v462 = vunpack.c.l.b16 %v430
      %v463 = vunpack.c.l.b16 %v431
      %v464 = vunpack.c.l.b16 %v432
      %v465 = vunpack.c.l.b16 %v433
      %v466 = vunpack.c.l.b16 %v434
      %v467 = vunpack.c.l.b16 %v435
      %v468 = vunpack.c.l.b16 %v436
      %v469 = vunpack.c.l.b16 %v437
      %v470 = vunpack.c.l.b16 %v438
      %v471 = vunpack.c.l.b16 %v439
      %v472 = vunpack.c.l.b16 %v440
      %v473 = vunpack.c.l.b16 %v441
      %v474 = vunpack.c.l.b16 %v442
      %v475 = vunpack.c.l.b16 %v443
      %v476 = vunpack.c.l.b16 %v444
      %v477 = vunpack.c.l.b16 %v445
      %v478 = vpack.c.b16 %v463, %v462
      %v479 = vpack.c.b16 %v465, %v464
      %v480 = vpack.c.b16 %v467, %v466
      %v481 = vpack.c.b16 %v469, %v468
      %v482 = vpack.c.b16 %v471, %v470
      %v483 = vpack.c.b16 %v473, %v472
      %v484 = vpack.c.b16 %v475, %v474
      %v485 = vpack.c.b16 %v477, %v476
      %494 = vmatprep.subr.bf16.mxu0 0
      %495 = vmatpush1.bf16.msra.mxu0 %v478
      %496 = vmatprep.subr.bf16.mxu0 0
      %497 = vmatpush1.bf16.msra.mxu0 %v479
      %498 = vmatprep.subr.bf16.mxu0 0
      %499 = vmatpush1.bf16.msra.mxu0 %v480
      %500 = vmatprep.subr.bf16.mxu0 0
      %501 = vmatpush1.bf16.msra.mxu0 %v481
      %502 = vmatprep.subr.bf16.mxu0 0
      %503 = vmatpush1.bf16.msra.mxu0 %v482
      %504 = vmatprep.subr.bf16.mxu0 0
      %505 = vmatpush1.bf16.msra.mxu0 %v483
      %506 = vmatprep.subr.bf16.mxu0 0
      %507 = vmatpush1.bf16.msra.mxu0 %v484
      %508 = vmatprep.subr.bf16.mxu0 0
      %509 = vmatpush1.bf16.msra.mxu0 %v485
      %510 = vmatprep.subr.bf16.mxu0 0
      %511 = vmatpush1.bf16.msra.mxu0 0
      %512 = vmatprep.subr.bf16.mxu0 0
      %513 = vmatpush1.bf16.msra.mxu0 0
      %514 = vmatprep.subr.bf16.mxu0 0
      %515 = vmatpush1.bf16.msra.mxu0 0
      %516 = vmatprep.subr.bf16.mxu0 0
      %517 = vmatpush1.bf16.msra.mxu0 0
      %518 = vmatprep.subr.bf16.mxu0 0
      %519 = vmatpush1.bf16.msra.mxu0 0
      %520 = vmatprep.subr.bf16.mxu0 0
      %521 = vmatpush1.bf16.msra.mxu0 0
      %522 = vmatprep.subr.bf16.mxu0 0
      %523 = vmatpush1.bf16.msra.mxu0 0
      %524 = vmatprep.subr.bf16.mxu0 0
      %525 = vmatpush1.bf16.msra.mxu0 0
      %526 = vmatprep.mubr.bf16.mxu0 0
      %527 = vmatmul.mubr.bf16.gmra.mrb[0].mxu0 %v414
      %v528 = vpop.f32.mrb[0].mxu0
      %v529 = vadd.f32 0.0, %v528
      %v530 = vpop.f32.mrb[0].mxu0
      %v531 = vpop.f32.mrb[0].mxu0
      %v532 = vadd.f32 0.0, %v531
      %v533 = vpop.f32.mrb[0].mxu0
      %534 = vmatprep.mubr.bf16.mxu0 0
      %535 = vmatmul.mubr.bf16.gmra.mrb[0].mxu0 %v415
      %v536 = vpop.f32.mrb[0].mxu0
      %v537 = vadd.f32 0.0, %v536
      %v538 = vpop.f32.mrb[0].mxu0
      %v539 = vpop.f32.mrb[0].mxu0
      %v540 = vadd.f32 0.0, %v539
      %v541 = vpop.f32.mrb[0].mxu0
      %542 = vmatprep.mubr.bf16.mxu0 0
      %543 = vmatmul.mubr.bf16.gmra.mrb[0].mxu0 %v416
      %v544 = vpop.f32.mrb[0].mxu0
      %v545 = vadd.f32 0.0, %v544
      %v546 = vpop.f32.mrb[0].mxu0
      %v547 = vpop.f32.mrb[0].mxu0
      %v548 = vadd.f32 0.0, %v547
      %v549 = vpop.f32.mrb[0].mxu0
      %550 = vmatprep.mubr.bf16.mxu0 0
      %551 = vmatmul.mubr.bf16.gmra.mrb[0].mxu0 %v417
      %v552 = vpop.f32.mrb[0].mxu0
      %v553 = vadd.f32 0.0, %v552
      %v554 = vpop.f32.mrb[0].mxu0
      %v555 = vpop.f32.mrb[0].mxu0
      %v556 = vadd.f32 0.0, %v555
      %v557 = vpop.f32.mrb[0].mxu0
      %558 = vmatprep.mubr.bf16.mxu0 0
      %559 = vmatmul.mubr.bf16.gmra.mrb[0].mxu0 %v418
      %v560 = vpop.f32.mrb[0].mxu0
      %v561 = vadd.f32 0.0, %v560
      %v562 = vpop.f32.mrb[0].mxu0
      %v563 = vpop.f32.mrb[0].mxu0
      %v564 = vadd.f32 0.0, %v563
      %v565 = vpop.f32.mrb[0].mxu0
      %566 = vmatprep.mubr.bf16.mxu0 0
      %567 = vmatmul.mubr.bf16.gmra.mrb[0].mxu0 %v419
      %v568 = vpop.f32.mrb[0].mxu0
      %v569 = vadd.f32 0.0, %v568
      %v570 = vpop.f32.mrb[0].mxu0
      %v571 = vpop.f32.mrb[0].mxu0
      %v572 = vadd.f32 0.0, %v571
      %v573 = vpop.f32.mrb[0].mxu0
      %574 = vmatprep.mubr.bf16.mxu0 0
      %575 = vmatmul.mubr.bf16.gmra.mrb[0].mxu0 %v420
      %v576 = vpop.f32.mrb[0].mxu0
      %v577 = vadd.f32 0.0, %v576
      %v578 = vpop.f32.mrb[0].mxu0
      %v579 = vpop.f32.mrb[0].mxu0
      %v580 = vadd.f32 0.0, %v579
      %v581 = vpop.f32.mrb[0].mxu0
      %582 = vmatprep.mubr.bf16.mxu0 0
      %583 = vmatmul.mubr.bf16.gmra.mrb[0].mxu0 %v421
      %v584 = vpop.f32.mrb[0].mxu0
      %v585 = vadd.f32 0.0, %v584
      %v586 = vpop.f32.mrb[0].mxu0
      %v587 = vpop.f32.mrb[0].mxu0
      %v588 = vadd.f32 0.0, %v587
      %v589 = vpop.f32.mrb[0].mxu0
      %590 = vmatprep.mubr.bf16.mxu0 0
      %591 = vmatmul.mubr.bf16.gmra.mrb[0].mxu0 %v422
      %v592 = vpop.f32.mrb[0].mxu0
      %v593 = vadd.f32 0.0, %v592
      %v594 = vpop.f32.mrb[0].mxu0
      %v595 = vpop.f32.mrb[0].mxu0
      %v596 = vadd.f32 0.0, %v595
      %v597 = vpop.f32.mrb[0].mxu0
      %598 = vmatprep.mubr.bf16.mxu0 0
      %599 = vmatmul.mubr.bf16.gmra.mrb[0].mxu0 %v423
      %v600 = vpop.f32.mrb[0].mxu0
      %v601 = vadd.f32 0.0, %v600
      %v602 = vpop.f32.mrb[0].mxu0
      %v603 = vpop.f32.mrb[0].mxu0
      %v604 = vadd.f32 0.0, %v603
      %v605 = vpop.f32.mrb[0].mxu0
      %606 = vmatprep.mubr.bf16.mxu0 0
      %607 = vmatmul.mubr.bf16.gmra.mrb[0].mxu0 %v424
      %v608 = vpop.f32.mrb[0].mxu0
      %v609 = vadd.f32 0.0, %v608
      %v610 = vpop.f32.mrb[0].mxu0
      %v611 = vpop.f32.mrb[0].mxu0
      %v612 = vadd.f32 0.0, %v611
      %v613 = vpop.f32.mrb[0].mxu0
      %614 = vmatprep.mubr.bf16.mxu0 0
      %615 = vmatmul.mubr.bf16.gmra.mrb[0].mxu0 %v425
      %v616 = vpop.f32.mrb[0].mxu0
      %v617 = vadd.f32 0.0, %v616
      %v618 = vpop.f32.mrb[0].mxu0
      %v619 = vpop.f32.mrb[0].mxu0
      %v620 = vadd.f32 0.0, %v619
      %v621 = vpop.f32.mrb[0].mxu0
      %622 = vmatprep.mubr.bf16.mxu0 0
      %623 = vmatmul.mubr.bf16.gmra.mrb[0].mxu0 %v426
      %v624 = vpop.f32.mrb[0].mxu0
      %v625 = vadd.f32 0.0, %v624
      %v626 = vpop.f32.mrb[0].mxu0
      %v627 = vpop.f32.mrb[0].mxu0
      %v628 = vadd.f32 0.0, %v627
      %v629 = vpop.f32.mrb[0].mxu0
      %630 = vmatprep.mubr.bf16.mxu0 0
      %631 = vmatmul.mubr.bf16.gmra.mrb[0].mxu0 %v427
      %v632 = vpop.f32.mrb[0].mxu0
      %v633 = vadd.f32 0.0, %v632
      %v634 = vpop.f32.mrb[0].mxu0
      %v635 = vpop.f32.mrb[0].mxu0
      %v636 = vadd.f32 0.0, %v635
      %v637 = vpop.f32.mrb[0].mxu0
      %638 = vmatprep.mubr.bf16.mxu0 0
      %639 = vmatmul.mubr.bf16.gmra.mrb[0].mxu0 %v428
      %v640 = vpop.f32.mrb[0].mxu0
      %v641 = vadd.f32 0.0, %v640
      %v642 = vpop.f32.mrb[0].mxu0
      %v643 = vpop.f32.mrb[0].mxu0
      %v644 = vadd.f32 0.0, %v643
      %v645 = vpop.f32.mrb[0].mxu0
      %646 = vmatprep.mubr.bf16.mxu0 0
      %647 = vmatmul.mubr.bf16.gmra.mrb[0].mxu0 %v429
      %v648 = vpop.f32.mrb[0].mxu0
      %v649 = vadd.f32 0.0, %v648
      %v650 = vpop.f32.mrb[0].mxu0
      %v651 = vpop.f32.mrb[0].mxu0
      %v652 = vadd.f32 0.0, %v651
      %v653 = vpop.f32.mrb[0].mxu0
      %654 = vdwg.mxu0
      %655 = vst [vmem:[#allocation2] sm:$0xff] %v529
      %656 = vst [vmem:[#allocation2 + $0x8] sm:$0xff] %v532
      %657 = vst [vmem:[#allocation2 + $0x10] sm:$0xff] %v537
      %658 = vst [vmem:[#allocation2 + $0x18] sm:$0xff] %v540
      %659 = vst [vmem:[#allocation2 + $0x20] sm:$0xff] %v545
      %660 = vst [vmem:[#allocation2 + $0x28] sm:$0xff] %v548
      %661 = vst [vmem:[#allocation2 + $0x30] sm:$0xff] %v553
      %662 = vst [vmem:[#allocation2 + $0x38] sm:$0xff] %v556
      %663 = vst [vmem:[#allocation2 + $0x40] sm:$0xff] %v561
      %664 = vst [vmem:[#allocation2 + $0x48] sm:$0xff] %v564
      %665 = vst [vmem:[#allocation2 + $0x50] sm:$0xff] %v569
      %666 = vst [vmem:[#allocation2 + $0x58] sm:$0xff] %v572
      %667 = vst [vmem:[#allocation2 + $0x60] sm:$0xff] %v577
      %668 = vst [vmem:[#allocation2 + $0x68] sm:$0xff] %v580
      %669 = vst [vmem:[#allocation2 + $0x70] sm:$0xff] %v585
      %670 = vst [vmem:[#allocation2 + $0x78] sm:$0xff] %v588
      %671 = vst [vmem:[#allocation2 + $0x80] sm:$0xff] %v593
      %672 = vst [vmem:[#allocation2 + $0x88] sm:$0xff] %v596
      %673 = vst [vmem:[#allocation2 + $0x90] sm:$0xff] %v601
      %674 = vst [vmem:[#allocation2 + $0x98] sm:$0xff] %v604
      %675 = vst [vmem:[#allocation2 + $0xa0] sm:$0xff] %v609
      %676 = vst [vmem:[#allocation2 + $0xa8] sm:$0xff] %v612
      %677 = vst [vmem:[#allocation2 + $0xb0] sm:$0xff] %v617
      %678 = vst [vmem:[#allocation2 + $0xb8] sm:$0xff] %v620
      %679 = vst [vmem:[#allocation2 + $0xc0] sm:$0xff] %v625
      %680 = vst [vmem:[#allocation2 + $0xc8] sm:$0xff] %v628
      %681 = vst [vmem:[#allocation2 + $0xd0] sm:$0xff] %v633
      %682 = vst [vmem:[#allocation2 + $0xd8] sm:$0xff] %v636
      %683 = vst [vmem:[#allocation2 + $0xe0] sm:$0xff] %v641
      %684 = vst [vmem:[#allocation2 + $0xe8] sm:$0xff] %v644
      %685 = vst [vmem:[#allocation2 + $0xf0] sm:$0xff] %v649
      %686 = vst [vmem:[#allocation2 + $0xf8] sm:$0xff] %v652
      %v687 = vld [vmem:[#allocation2 + $0x40] sm:$0xff]
      %v688 = vld [vmem:[#allocation2 + $0x48] sm:$0xff]
      %v689 = vld [vmem:[#allocation2 + $0x50] sm:$0xff]
      %v690 = vld [vmem:[#allocation2 + $0x58] sm:$0xff]
      %v691 = vld [vmem:[#allocation2 + $0x60] sm:$0xff]
      %v692 = vld [vmem:[#allocation2 + $0x68] sm:$0xff]
      %v693 = vld [vmem:[#allocation2 + $0x70] sm:$0xff]
      %v694 = vld [vmem:[#allocation2 + $0x78] sm:$0xff]
      %v695 = vld [vmem:[#allocation2 + $0x80] sm:$0xff]
      %v696 = vld [vmem:[#allocation2 + $0x88] sm:$0xff]
      %v697 = vld [vmem:[#allocation2 + $0x90] sm:$0xff]
      %v698 = vld [vmem:[#allocation2 + $0x98] sm:$0xff]
      %v699 = vld [vmem:[#allocation2 + $0xa0] sm:$0xff]
      %v700 = vld [vmem:[#allocation2 + $0xa8] sm:$0xff]
      %v701 = vld [vmem:[#allocation2 + $0xb0] sm:$0xff]
      %v702 = vld [vmem:[#allocation2 + $0xb8] sm:$0xff]
      %v703 = vld [vmem:[#allocation2 + $0xc0] sm:$0xff]
      %v704 = vld [vmem:[#allocation2 + $0xc8] sm:$0xff]
      %v705 = vld [vmem:[#allocation2 + $0xd0] sm:$0xff]
      %v706 = vld [vmem:[#allocation2 + $0xd8] sm:$0xff]
      %v707 = vld [vmem:[#allocation2 + $0xe0] sm:$0xff]
      %v708 = vld [vmem:[#allocation2 + $0xe8] sm:$0xff]
      %v709 = vld [vmem:[#allocation2 + $0xf0] sm:$0xff]
      %v710 = vld [vmem:[#allocation2 + $0xf8] sm:$0xff]
      %v711 = vld [vmem:[%s3] sm:$0xf]
      %v712 = vld [vmem:[%s3 + $0x4] sm:$0xf]
      %v713 = vld [vmem:[%s3 + $0x8] sm:$0xf]
      %v714 = vld [vmem:[%s3 + $0xc] sm:$0xf]
      %v715 = vld [vmem:[%s3 + $0x10] sm:$0xf]
      %v716 = vld [vmem:[%s3 + $0x14] sm:$0xf]
      %v717 = vld [vmem:[%s3 + $0x18] sm:$0xf]
      %v718 = vld [vmem:[%s3 + $0x1c] sm:$0xf]
      %v719 = vld [vmem:[%s3 + $0x20] sm:$0xf]
      %v720 = vld [vmem:[%s3 + $0x24] sm:$0xf]
      %v721 = vld [vmem:[%s3 + $0x28] sm:$0xf]
      %v722 = vld [vmem:[%s3 + $0x2c] sm:$0xf]
      %v723 = vld [vmem:[%s3 + $0x30] sm:$0xf]
      %v724 = vld [vmem:[%s3 + $0x34] sm:$0xf]
      %v725 = vld [vmem:[%s3 + $0x38] sm:$0xf]
      %v726 = vld [vmem:[%s3 + $0x3c] sm:$0xf]
      %v743 = vunpack.c.l.b16 %v711
      %v744 = vunpack.c.l.b16 %v712
      %v745 = vunpack.c.l.b16 %v713
      %v746 = vunpack.c.l.b16 %v714
      %v747 = vunpack.c.l.b16 %v715
      %v748 = vunpack.c.l.b16 %v716
      %v749 = vunpack.c.l.b16 %v717
      %v750 = vunpack.c.l.b16 %v718
      %v751 = vunpack.c.l.b16 %v719
      %v752 = vunpack.c.l.b16 %v720
      %v753 = vunpack.c.l.b16 %v721
      %v754 = vunpack.c.l.b16 %v722
      %v755 = vunpack.c.l.b16 %v723
      %v756 = vunpack.c.l.b16 %v724
      %v757 = vunpack.c.l.b16 %v725
      %v758 = vunpack.c.l.b16 %v726
      %v759 = vpack.c.b16 %v744, %v743
      %v760 = vpack.c.b16 %v746, %v745
      %v761 = vpack.c.b16 %v748, %v747
      %v762 = vpack.c.b16 %v750, %v749
      %v763 = vpack.c.b16 %v752, %v751
      %v764 = vpack.c.b16 %v754, %v753
      %v765 = vpack.c.b16 %v756, %v755
      %v766 = vpack.c.b16 %v758, %v757
      %775 = vmatprep.subr.bf16.mxu0 0
      %776 = vmatpush1.bf16.msra.mxu0 %v759
      %777 = vmatprep.subr.bf16.mxu0 0
      %778 = vmatpush1.bf16.msra.mxu0 %v760
      %779 = vmatprep.subr.bf16.mxu0 0
      %780 = vmatpush1.bf16.msra.mxu0 %v761
      %781 = vmatprep.subr.bf16.mxu0 0
      %782 = vmatpush1.bf16.msra.mxu0 %v762
      %783 = vmatprep.subr.bf16.mxu0 0
      %784 = vmatpush1.bf16.msra.mxu0 %v763
      %785 = vmatprep.subr.bf16.mxu0 0
      %786 = vmatpush1.bf16.msra.mxu0 %v764
      %787 = vmatprep.subr.bf16.mxu0 0
      %788 = vmatpush1.bf16.msra.mxu0 %v765
      %789 = vmatprep.subr.bf16.mxu0 0
      %790 = vmatpush1.bf16.msra.mxu0 %v766
      %791 = vmatprep.subr.bf16.mxu0 0
      %792 = vmatpush1.bf16.msra.mxu0 0
      %793 = vmatprep.subr.bf16.mxu0 0
      %794 = vmatpush1.bf16.msra.mxu0 0
      %795 = vmatprep.subr.bf16.mxu0 0
      %796 = vmatpush1.bf16.msra.mxu0 0
      %797 = vmatprep.subr.bf16.mxu0 0
      %798 = vmatpush1.bf16.msra.mxu0 0
      %799 = vmatprep.subr.bf16.mxu0 0
      %800 = vmatpush1.bf16.msra.mxu0 0
      %801 = vmatprep.subr.bf16.mxu0 0
      %802 = vmatpush1.bf16.msra.mxu0 0
      %803 = vmatprep.subr.bf16.mxu0 0
      %804 = vmatpush1.bf16.msra.mxu0 0
      %805 = vmatprep.subr.bf16.mxu0 0
      %806 = vmatpush1.bf16.msra.mxu0 0
      %807 = vmatprep.mubr.bf16.mxu0 0
      %808 = vmatmul.mubr.bf16.gmra.mrb[0].mxu0 %v414
      %v809 = vpop.f32.mrb[0].mxu0
      %v810 = vadd.f32 0.0, %v809
      %v811 = vpop.f32.mrb[0].mxu0
      %v812 = vpop.f32.mrb[0].mxu0
      %v813 = vadd.f32 0.0, %v812
      %v814 = vpop.f32.mrb[0].mxu0
      %815 = vmatprep.mubr.bf16.mxu0 0
      %816 = vmatmul.mubr.bf16.gmra.mrb[0].mxu0 %v415
      %v817 = vpop.f32.mrb[0].mxu0
      %v818 = vadd.f32 0.0, %v817
      %v819 = vpop.f32.mrb[0].mxu0
      %v820 = vpop.f32.mrb[0].mxu0
      %v821 = vadd.f32 0.0, %v820
      %v822 = vpop.f32.mrb[0].mxu0
      %823 = vmatprep.mubr.bf16.mxu0 0
      %824 = vmatmul.mubr.bf16.gmra.mrb[0].mxu0 %v416
      %v825 = vpop.f32.mrb[0].mxu0
      %v826 = vadd.f32 0.0, %v825
      %v827 = vpop.f32.mrb[0].mxu0
      %v828 = vpop.f32.mrb[0].mxu0
      %v829 = vadd.f32 0.0, %v828
      %v830 = vpop.f32.mrb[0].mxu0
      %831 = vmatprep.mubr.bf16.mxu0 0
      %832 = vmatmul.mubr.bf16.gmra.mrb[0].mxu0 %v417
      %v833 = vpop.f32.mrb[0].mxu0
      %v834 = vadd.f32 0.0, %v833
      %v835 = vpop.f32.mrb[0].mxu0
      %v836 = vpop.f32.mrb[0].mxu0
      %v837 = vadd.f32 0.0, %v836
      %v838 = vpop.f32.mrb[0].mxu0
      %839 = vmatprep.mubr.bf16.mxu0 0
      %840 = vmatmul.mubr.bf16.gmra.mrb[0].mxu0 %v418
      %v841 = vpop.f32.mrb[0].mxu0
      %v842 = vadd.f32 0.0, %v841
      %v843 = vpop.f32.mrb[0].mxu0
      %v844 = vpop.f32.mrb[0].mxu0
      %v845 = vadd.f32 0.0, %v844
      %v846 = vpop.f32.mrb[0].mxu0
      %847 = vmatprep.mubr.bf16.mxu0 0
      %848 = vmatmul.mubr.bf16.gmra.mrb[0].mxu0 %v419
      %v849 = vpop.f32.mrb[0].mxu0
      %v850 = vadd.f32 0.0, %v849
      %v851 = vpop.f32.mrb[0].mxu0
      %v852 = vpop.f32.mrb[0].mxu0
      %v853 = vadd.f32 0.0, %v852
      %v854 = vpop.f32.mrb[0].mxu0
      %855 = vmatprep.mubr.bf16.mxu0 0
      %856 = vmatmul.mubr.bf16.gmra.mrb[0].mxu0 %v420
      %v857 = vpop.f32.mrb[0].mxu0
      %v858 = vadd.f32 0.0, %v857
      %v859 = vpop.f32.mrb[0].mxu0
      %v860 = vpop.f32.mrb[0].mxu0
      %v861 = vadd.f32 0.0, %v860
      %v862 = vpop.f32.mrb[0].mxu0
      %863 = vmatprep.mubr.bf16.mxu0 0
      %864 = vmatmul.mubr.bf16.gmra.mrb[0].mxu0 %v421
      %v865 = vpop.f32.mrb[0].mxu0
      %v866 = vadd.f32 0.0, %v865
      %v867 = vpop.f32.mrb[0].mxu0
      %v868 = vpop.f32.mrb[0].mxu0
      %v869 = vadd.f32 0.0, %v868
      %v870 = vpop.f32.mrb[0].mxu0
      %871 = vmatprep.mubr.bf16.mxu0 0
      %872 = vmatmul.mubr.bf16.gmra.mrb[0].mxu0 %v422
      %v873 = vpop.f32.mrb[0].mxu0
      %v874 = vadd.f32 0.0, %v873
      %v875 = vpop.f32.mrb[0].mxu0
      %v876 = vpop.f32.mrb[0].mxu0
      %v877 = vadd.f32 0.0, %v876
      %v878 = vpop.f32.mrb[0].mxu0
      %879 = vmatprep.mubr.bf16.mxu0 0
      %880 = vmatmul.mubr.bf16.gmra.mrb[0].mxu0 %v423
      %v881 = vpop.f32.mrb[0].mxu0
      %v882 = vadd.f32 0.0, %v881
      %v883 = vpop.f32.mrb[0].mxu0
      %v884 = vpop.f32.mrb[0].mxu0
      %v885 = vadd.f32 0.0, %v884
      %v886 = vpop.f32.mrb[0].mxu0
      %887 = vmatprep.mubr.bf16.mxu0 0
      %888 = vmatmul.mubr.bf16.gmra.mrb[0].mxu0 %v424
      %v889 = vpop.f32.mrb[0].mxu0
      %v890 = vadd.f32 0.0, %v889
      %v891 = vpop.f32.mrb[0].mxu0
      %v892 = vpop.f32.mrb[0].mxu0
      %v893 = vadd.f32 0.0, %v892
      %v894 = vpop.f32.mrb[0].mxu0
      %895 = vmatprep.mubr.bf16.mxu0 0
      %896 = vmatmul.mubr.bf16.gmra.mrb[0].mxu0 %v425
      %v897 = vpop.f32.mrb[0].mxu0
      %v898 = vadd.f32 0.0, %v897
      %v899 = vpop.f32.mrb[0].mxu0
      %v900 = vpop.f32.mrb[0].mxu0
      %v901 = vadd.f32 0.0, %v900
      %v902 = vpop.f32.mrb[0].mxu0
      %903 = vdwg.mxu0
      %v904 = vadd.f32 %v687, %v810
      %v905 = vadd.f32 %v688, %v813
      %v906 = vadd.f32 %v689, %v818
      %v907 = vadd.f32 %v690, %v821
      %v908 = vadd.f32 %v691, %v826
      %v909 = vadd.f32 %v692, %v829
      %v910 = vadd.f32 %v693, %v834
      %v911 = vadd.f32 %v694, %v837
      %v912 = vadd.f32 %v695, %v842
      %v913 = vadd.f32 %v696, %v845
      %v914 = vadd.f32 %v697, %v850
      %v915 = vadd.f32 %v698, %v853
      %v916 = vadd.f32 %v699, %v858
      %v917 = vadd.f32 %v700, %v861
      %v918 = vadd.f32 %v701, %v866
      %v919 = vadd.f32 %v702, %v869
      %v920 = vadd.f32 %v703, %v874
      %v921 = vadd.f32 %v704, %v877
      %v922 = vadd.f32 %v705, %v882
      %v923 = vadd.f32 %v706, %v885
      %v924 = vadd.f32 %v707, %v890
      %v925 = vadd.f32 %v708, %v893
      %v926 = vadd.f32 %v709, %v898
      %v927 = vadd.f32 %v710, %v901
      %928 = vst [vmem:[#allocation2 + $0x40] sm:$0xff] %v904
      %929 = vst [vmem:[#allocation2 + $0x48] sm:$0xff] %v905
      %930 = vst [vmem:[#allocation2 + $0x50] sm:$0xff] %v906
      %931 = vst [vmem:[#allocation2 + $0x58] sm:$0xff] %v907
      %932 = vst [vmem:[#allocation2 + $0x60] sm:$0xff] %v908
      %933 = vst [vmem:[#allocation2 + $0x68] sm:$0xff] %v909
      %934 = vst [vmem:[#allocation2 + $0x70] sm:$0xff] %v910
      %935 = vst [vmem:[#allocation2 + $0x78] sm:$0xff] %v911
      %936 = vst [vmem:[#allocation2 + $0x80] sm:$0xff] %v912
      %937 = vst [vmem:[#allocation2 + $0x88] sm:$0xff] %v913
      %938 = vst [vmem:[#allocation2 + $0x90] sm:$0xff] %v914
      %939 = vst [vmem:[#allocation2 + $0x98] sm:$0xff] %v915
      %940 = vst [vmem:[#allocation2 + $0xa0] sm:$0xff] %v916
      %941 = vst [vmem:[#allocation2 + $0xa8] sm:$0xff] %v917
      %942 = vst [vmem:[#allocation2 + $0xb0] sm:$0xff] %v918
      %943 = vst [vmem:[#allocation2 + $0xb8] sm:$0xff] %v919
      %944 = vst [vmem:[#allocation2 + $0xc0] sm:$0xff] %v920
      %945 = vst [vmem:[#allocation2 + $0xc8] sm:$0xff] %v921
      %946 = vst [vmem:[#allocation2 + $0xd0] sm:$0xff] %v922
      %947 = vst [vmem:[#allocation2 + $0xd8] sm:$0xff] %v923
      %948 = vst [vmem:[#allocation2 + $0xe0] sm:$0xff] %v924
      %949 = vst [vmem:[#allocation2 + $0xe8] sm:$0xff] %v925
      %950 = vst [vmem:[#allocation2 + $0xf0] sm:$0xff] %v926
      %951 = vst [vmem:[#allocation2 + $0xf8] sm:$0xff] %v927
      %v952 = vld [vmem:[#allocation2] sm:$0xff]
      %v953 = vld [vmem:[#allocation2 + $0x8] sm:$0xff]
      %v954 = vld [vmem:[#allocation2 + $0x10] sm:$0xff]
      %v955 = vld [vmem:[#allocation2 + $0x18] sm:$0xff]
      %v956 = vld [vmem:[#allocation2 + $0x20] sm:$0xff]
      %v957 = vld [vmem:[#allocation2 + $0x28] sm:$0xff]
      %v958 = vld [vmem:[#allocation2 + $0x30] sm:$0xff]
      %v959 = vld [vmem:[#allocation2 + $0x38] sm:$0xff]
      %v960 = vld [vmem:[#allocation2 + $0x40] sm:$0xff]
      %v961 = vld [vmem:[#allocation2 + $0x48] sm:$0xff]
      %v962 = vld [vmem:[#allocation2 + $0x50] sm:$0xff]
      %v963 = vld [vmem:[#allocation2 + $0x58] sm:$0xff]
      %v964 = vld [vmem:[#allocation2 + $0x60] sm:$0xff]
      %v965 = vld [vmem:[#allocation2 + $0x68] sm:$0xff]
      %v966 = vld [vmem:[#allocation2 + $0x70] sm:$0xff]
      %v967 = vld [vmem:[#allocation2 + $0x78] sm:$0xff]
      %v968 = vld [vmem:[#allocation2 + $0x80] sm:$0xff]
      %v969 = vld [vmem:[#allocation2 + $0x88] sm:$0xff]
      %v970 = vld [vmem:[#allocation2 + $0x90] sm:$0xff]
      %v971 = vld [vmem:[#allocation2 + $0x98] sm:$0xff]
      %v972 = vld [vmem:[#allocation2 + $0xa0] sm:$0xff]
      %v973 = vld [vmem:[#allocation2 + $0xa8] sm:$0xff]
      %v974 = vld [vmem:[#allocation2 + $0xb0] sm:$0xff]
      %v975 = vld [vmem:[#allocation2 + $0xb8] sm:$0xff]
      %v976 = vld [vmem:[%s3 + $0x80] sm:$0xf]
      %v977 = vld [vmem:[%s3 + $0x84] sm:$0xf]
      %v978 = vld [vmem:[%s3 + $0x88] sm:$0xf]
      %v979 = vld [vmem:[%s3 + $0x8c] sm:$0xf]
      %v980 = vld [vmem:[%s3 + $0x90] sm:$0xf]
      %v981 = vld [vmem:[%s3 + $0x94] sm:$0xf]
      %v982 = vld [vmem:[%s3 + $0x98] sm:$0xf]
      %v983 = vld [vmem:[%s3 + $0x9c] sm:$0xf]
      %v984 = vld [vmem:[%s3 + $0xa0] sm:$0xf]
      %v985 = vld [vmem:[%s3 + $0xa4] sm:$0xf]
      %v986 = vld [vmem:[%s3 + $0xa8] sm:$0xf]
      %v987 = vld [vmem:[%s3 + $0xac] sm:$0xf]
      %v988 = vld [vmem:[%s3 + $0xb0] sm:$0xf]
      %v989 = vld [vmem:[%s3 + $0xb4] sm:$0xf]
      %v990 = vld [vmem:[%s3 + $0xb8] sm:$0xf]
      %v991 = vld [vmem:[%s3 + $0xbc] sm:$0xf]
      %v1008 = vunpack.c.l.b16 %v976
      %v1009 = vunpack.c.l.b16 %v977
      %v1010 = vunpack.c.l.b16 %v978
      %v1011 = vunpack.c.l.b16 %v979
      %v1012 = vunpack.c.l.b16 %v980
      %v1013 = vunpack.c.l.b16 %v981
      %v1014 = vunpack.c.l.b16 %v982
      %v1015 = vunpack.c.l.b16 %v983
      %v1016 = vunpack.c.l.b16 %v984
      %v1017 = vunpack.c.l.b16 %v985
      %v1018 = vunpack.c.l.b16 %v986
      %v1019 = vunpack.c.l.b16 %v987
      %v1020 = vunpack.c.l.b16 %v988
      %v1021 = vunpack.c.l.b16 %v989
      %v1022 = vunpack.c.l.b16 %v990
      %v1023 = vunpack.c.l.b16 %v991
      %v1024 = vpack.c.b16 %v1009, %v1008
      %v1025 = vpack.c.b16 %v1011, %v1010
      %v1026 = vpack.c.b16 %v1013, %v1012
      %v1027 = vpack.c.b16 %v1015, %v1014
      %v1028 = vpack.c.b16 %v1017, %v1016
      %v1029 = vpack.c.b16 %v1019, %v1018
      %v1030 = vpack.c.b16 %v1021, %v1020
      %v1031 = vpack.c.b16 %v1023, %v1022
      %1040 = vmatprep.subr.bf16.mxu0 0
      %1041 = vmatpush1.bf16.msra.mxu0 %v1024
      %1042 = vmatprep.subr.bf16.mxu0 0
      %1043 = vmatpush1.bf16.msra.mxu0 %v1025
      %1044 = vmatprep.subr.bf16.mxu0 0
      %1045 = vmatpush1.bf16.msra.mxu0 %v1026
      %1046 = vmatprep.subr.bf16.mxu0 0
      %1047 = vmatpush1.bf16.msra.mxu0 %v1027
      %1048 = vmatprep.subr.bf16.mxu0 0
      %1049 = vmatpush1.bf16.msra.mxu0 %v1028
      %1050 = vmatprep.subr.bf16.mxu0 0
      %1051 = vmatpush1.bf16.msra.mxu0 %v1029
      %1052 = vmatprep.subr.bf16.mxu0 0
      %1053 = vmatpush1.bf16.msra.mxu0 %v1030
      %1054 = vmatprep.subr.bf16.mxu0 0
      %1055 = vmatpush1.bf16.msra.mxu0 %v1031
      %1056 = vmatprep.subr.bf16.mxu0 0
      %1057 = vmatpush1.bf16.msra.mxu0 0
      %1058 = vmatprep.subr.bf16.mxu0 0
      %1059 = vmatpush1.bf16.msra.mxu0 0
      %1060 = vmatprep.subr.bf16.mxu0 0
      %1061 = vmatpush1.bf16.msra.mxu0 0
      %1062 = vmatprep.subr.bf16.mxu0 0
      %1063 = vmatpush1.bf16.msra.mxu0 0
      %1064 = vmatprep.subr.bf16.mxu0 0
      %1065 = vmatpush1.bf16.msra.mxu0 0
      %1066 = vmatprep.subr.bf16.mxu0 0
      %1067 = vmatpush1.bf16.msra.mxu0 0
      %1068 = vmatprep.subr.bf16.mxu0 0
      %1069 = vmatpush1.bf16.msra.mxu0 0
      %1070 = vmatprep.subr.bf16.mxu0 0
      %1071 = vmatpush1.bf16.msra.mxu0 0
      %1072 = vmatprep.mubr.bf16.mxu0 0
      %1073 = vmatmul.mubr.bf16.gmra.mrb[0].mxu0 %v418
      %v1074 = vpop.f32.mrb[0].mxu0
      %v1075 = vadd.f32 0.0, %v1074
      %v1076 = vpop.f32.mrb[0].mxu0
      %v1077 = vpop.f32.mrb[0].mxu0
      %v1078 = vadd.f32 0.0, %v1077
      %v1079 = vpop.f32.mrb[0].mxu0
      %1080 = vmatprep.mubr.bf16.mxu0 0
      %1081 = vmatmul.mubr.bf16.gmra.mrb[0].mxu0 %v419
      %v1082 = vpop.f32.mrb[0].mxu0
      %v1083 = vadd.f32 0.0, %v1082
      %v1084 = vpop.f32.mrb[0].mxu0
      %v1085 = vpop.f32.mrb[0].mxu0
      %v1086 = vadd.f32 0.0, %v1085
      %v1087 = vpop.f32.mrb[0].mxu0
      %1088 = vmatprep.mubr.bf16.mxu0 0
      %1089 = vmatmul.mubr.bf16.gmra.mrb[0].mxu0 %v420
      %v1090 = vpop.f32.mrb[0].mxu0
      %v1091 = vadd.f32 0.0, %v1090
      %v1092 = vpop.f32.mrb[0].mxu0
      %v1093 = vpop.f32.mrb[0].mxu0
      %v1094 = vadd.f32 0.0, %v1093
      %v1095 = vpop.f32.mrb[0].mxu0
      %1096 = vmatprep.mubr.bf16.mxu0 0
      %1097 = vmatmul.mubr.bf16.gmra.mrb[0].mxu0 %v421
      %v1098 = vpop.f32.mrb[0].mxu0
      %v1099 = vadd.f32 0.0, %v1098
      %v1100 = vpop.f32.mrb[0].mxu0
      %v1101 = vpop.f32.mrb[0].mxu0
      %v1102 = vadd.f32 0.0, %v1101
      %v1103 = vpop.f32.mrb[0].mxu0
      %1104 = vmatprep.mubr.bf16.mxu0 0
      %1105 = vmatmul.mubr.bf16.gmra.mrb[0].mxu0 %v422
      %v1106 = vpop.f32.mrb[0].mxu0
      %v1107 = vadd.f32 0.0, %v1106
      %v1108 = vpop.f32.mrb[0].mxu0
      %v1109 = vpop.f32.mrb[0].mxu0
      %v1110 = vadd.f32 0.0, %v1109
      %v1111 = vpop.f32.mrb[0].mxu0
      %1112 = vmatprep.mubr.bf16.mxu0 0
      %1113 = vmatmul.mubr.bf16.gmra.mrb[0].mxu0 %v423
      %v1114 = vpop.f32.mrb[0].mxu0
      %v1115 = vadd.f32 0.0, %v1114
      %v1116 = vpop.f32.mrb[0].mxu0
      %v1117 = vpop.f32.mrb[0].mxu0
      %v1118 = vadd.f32 0.0, %v1117
      %v1119 = vpop.f32.mrb[0].mxu0
      %1120 = vmatprep.mubr.bf16.mxu0 0
      %1121 = vmatmul.mubr.bf16.gmra.mrb[0].mxu0 %v424
      %v1122 = vpop.f32.mrb[0].mxu0
      %v1123 = vadd.f32 0.0, %v1122
      %v1124 = vpop.f32.mrb[0].mxu0
      %v1125 = vpop.f32.mrb[0].mxu0
      %v1126 = vadd.f32 0.0, %v1125
      %v1127 = vpop.f32.mrb[0].mxu0
      %1128 = vmatprep.mubr.bf16.mxu0 0
      %1129 = vmatmul.mubr.bf16.gmra.mrb[0].mxu0 %v425
      %v1130 = vpop.f32.mrb[0].mxu0
      %v1131 = vadd.f32 0.0, %v1130
      %v1132 = vpop.f32.mrb[0].mxu0
      %v1133 = vpop.f32.mrb[0].mxu0
      %v1134 = vadd.f32 0.0, %v1133
      %v1135 = vpop.f32.mrb[0].mxu0
      %1136 = vmatprep.mubr.bf16.mxu0 0
      %1137 = vmatmul.mubr.bf16.gmra.mrb[0].mxu0 %v426
      %v1138 = vpop.f32.mrb[0].mxu0
      %v1139 = vadd.f32 0.0, %v1138
      %v1140 = vpop.f32.mrb[0].mxu0
      %v1141 = vpop.f32.mrb[0].mxu0
      %v1142 = vadd.f32 0.0, %v1141
      %v1143 = vpop.f32.mrb[0].mxu0
      %1144 = vmatprep.mubr.bf16.mxu0 0
      %1145 = vmatmul.mubr.bf16.gmra.mrb[0].mxu0 %v427
      %v1146 = vpop.f32.mrb[0].mxu0
      %v1147 = vadd.f32 0.0, %v1146
      %v1148 = vpop.f32.mrb[0].mxu0
      %v1149 = vpop.f32.mrb[0].mxu0
      %v1150 = vadd.f32 0.0, %v1149
      %v1151 = vpop.f32.mrb[0].mxu0
      %1152 = vmatprep.mubr.bf16.mxu0 0
      %1153 = vmatmul.mubr.bf16.gmra.mrb[0].mxu0 %v428
      %v1154 = vpop.f32.mrb[0].mxu0
      %v1155 = vadd.f32 0.0, %v1154
      %v1156 = vpop.f32.mrb[0].mxu0
      %v1157 = vpop.f32.mrb[0].mxu0
      %v1158 = vadd.f32 0.0, %v1157
      %v1159 = vpop.f32.mrb[0].mxu0
      %1160 = vmatprep.mubr.bf16.mxu0 0
      %1161 = vmatmul.mubr.bf16.gmra.mrb[0].mxu0 %v429
      %v1162 = vpop.f32.mrb[0].mxu0
      %v1163 = vadd.f32 0.0, %v1162
      %v1164 = vpop.f32.mrb[0].mxu0
      %v1165 = vpop.f32.mrb[0].mxu0
      %v1166 = vadd.f32 0.0, %v1165
      %v1167 = vpop.f32.mrb[0].mxu0
      %1168 = vdwg.mxu0
      %v1169 = vadd.f32 %v952, %v1075
      %v1170 = vadd.f32 %v953, %v1078
      %v1171 = vadd.f32 %v954, %v1083
      %v1172 = vadd.f32 %v955, %v1086
      %v1173 = vadd.f32 %v956, %v1091
      %v1174 = vadd.f32 %v957, %v1094
      %v1175 = vadd.f32 %v958, %v1099
      %v1176 = vadd.f32 %v959, %v1102
      %v1177 = vadd.f32 %v960, %v1107
      %v1178 = vadd.f32 %v961, %v1110
      %v1179 = vadd.f32 %v962, %v1115
      %v1180 = vadd.f32 %v963, %v1118
      %v1181 = vadd.f32 %v964, %v1123
      %v1182 = vadd.f32 %v965, %v1126
      %v1183 = vadd.f32 %v966, %v1131
      %v1184 = vadd.f32 %v967, %v1134
      %v1185 = vadd.f32 %v968, %v1139
      %v1186 = vadd.f32 %v969, %v1142
      %v1187 = vadd.f32 %v970, %v1147
      %v1188 = vadd.f32 %v971, %v1150
      %v1189 = vadd.f32 %v972, %v1155
      %v1190 = vadd.f32 %v973, %v1158
      %v1191 = vadd.f32 %v974, %v1163
      %v1192 = vadd.f32 %v975, %v1166
      %1193 = vst [vmem:[#allocation2] sm:$0xff] %v1169
      %1194 = vst [vmem:[#allocation2 + $0x8] sm:$0xff] %v1170
      %1195 = vst [vmem:[#allocation2 + $0x10] sm:$0xff] %v1171
      %1196 = vst [vmem:[#allocation2 + $0x18] sm:$0xff] %v1172
      %1197 = vst [vmem:[#allocation2 + $0x20] sm:$0xff] %v1173
      %1198 = vst [vmem:[#allocation2 + $0x28] sm:$0xff] %v1174
      %1199 = vst [vmem:[#allocation2 + $0x30] sm:$0xff] %v1175
      %1200 = vst [vmem:[#allocation2 + $0x38] sm:$0xff] %v1176
      %1201 = vst [vmem:[#allocation2 + $0x40] sm:$0xff] %v1177
      %1202 = vst [vmem:[#allocation2 + $0x48] sm:$0xff] %v1178
      %1203 = vst [vmem:[#allocation2 + $0x50] sm:$0xff] %v1179
      %1204 = vst [vmem:[#allocation2 + $0x58] sm:$0xff] %v1180
      %1205 = vst [vmem:[#allocation2 + $0x60] sm:$0xff] %v1181
      %1206 = vst [vmem:[#allocation2 + $0x68] sm:$0xff] %v1182
      %1207 = vst [vmem:[#allocation2 + $0x70] sm:$0xff] %v1183
      %1208 = vst [vmem:[#allocation2 + $0x78] sm:$0xff] %v1184
      %1209 = vst [vmem:[#allocation2 + $0x80] sm:$0xff] %v1185
      %1210 = vst [vmem:[#allocation2 + $0x88] sm:$0xff] %v1186
      %1211 = vst [vmem:[#allocation2 + $0x90] sm:$0xff] %v1187
      %1212 = vst [vmem:[#allocation2 + $0x98] sm:$0xff] %v1188
      %1213 = vst [vmem:[#allocation2 + $0xa0] sm:$0xff] %v1189
      %1214 = vst [vmem:[#allocation2 + $0xa8] sm:$0xff] %v1190
      %1215 = vst [vmem:[#allocation2 + $0xb0] sm:$0xff] %v1191
      %1216 = vst [vmem:[#allocation2 + $0xb8] sm:$0xff] %v1192
      %v1217 = vld [vmem:[#allocation2] sm:$0xff]
      %v1218 = vld [vmem:[#allocation2 + $0x8] sm:$0xff]
      %v1219 = vld [vmem:[#allocation2 + $0x10] sm:$0xff]
      %v1220 = vld [vmem:[#allocation2 + $0x18] sm:$0xff]
      %v1221 = vld [vmem:[#allocation2 + $0x20] sm:$0xff]
      %v1222 = vld [vmem:[#allocation2 + $0x28] sm:$0xff]
      %v1223 = vld [vmem:[#allocation2 + $0x30] sm:$0xff]
      %v1224 = vld [vmem:[#allocation2 + $0x38] sm:$0xff]
      %v1225 = vld [vmem:[#allocation2 + $0x40] sm:$0xff]
      %v1226 = vld [vmem:[#allocation2 + $0x48] sm:$0xff]
      %v1227 = vld [vmem:[#allocation2 + $0x50] sm:$0xff]
      %v1228 = vld [vmem:[#allocation2 + $0x58] sm:$0xff]
      %v1229 = vld [vmem:[#allocation2 + $0x60] sm:$0xff]
      %v1230 = vld [vmem:[#allocation2 + $0x68] sm:$0xff]
      %v1231 = vld [vmem:[#allocation2 + $0x70] sm:$0xff]
      %v1232 = vld [vmem:[#allocation2 + $0x78] sm:$0xff]
      %v1233 = vld [vmem:[#allocation2 + $0x80] sm:$0xff]
      %v1234 = vld [vmem:[#allocation2 + $0x88] sm:$0xff]
      %v1235 = vld [vmem:[#allocation2 + $0x90] sm:$0xff]
      %v1236 = vld [vmem:[#allocation2 + $0x98] sm:$0xff]
      %v1237 = vld [vmem:[#allocation2 + $0xa0] sm:$0xff]
      %v1238 = vld [vmem:[#allocation2 + $0xa8] sm:$0xff]
      %v1239 = vld [vmem:[#allocation2 + $0xb0] sm:$0xff]
      %v1240 = vld [vmem:[#allocation2 + $0xb8] sm:$0xff]
      %v1241 = vld [vmem:[#allocation2 + $0xc0] sm:$0xff]
      %v1242 = vld [vmem:[#allocation2 + $0xc8] sm:$0xff]
      %v1243 = vld [vmem:[#allocation2 + $0xd0] sm:$0xff]
      %v1244 = vld [vmem:[#allocation2 + $0xd8] sm:$0xff]
      %v1245 = vld [vmem:[#allocation2 + $0xe0] sm:$0xff]
      %v1246 = vld [vmem:[#allocation2 + $0xe8] sm:$0xff]
      %v1247 = vld [vmem:[#allocation2 + $0xf0] sm:$0xff]
      %v1248 = vld [vmem:[#allocation2 + $0xf8] sm:$0xff]
      %v1249 = vpack.c.bf16 %v1218, %v1217
      %v1250 = vpack.c.bf16 %v1220, %v1219
      %v1251 = vpack.c.bf16 %v1222, %v1221
      %v1252 = vpack.c.bf16 %v1224, %v1223
      %v1253 = vpack.c.bf16 %v1226, %v1225
      %v1254 = vpack.c.bf16 %v1228, %v1227
      %v1255 = vpack.c.bf16 %v1230, %v1229
      %v1256 = vpack.c.bf16 %v1232, %v1231
      %v1257 = vpack.c.bf16 %v1234, %v1233
      %v1258 = vpack.c.bf16 %v1236, %v1235
      %v1259 = vpack.c.bf16 %v1238, %v1237
      %v1260 = vpack.c.bf16 %v1240, %v1239
      %v1261 = vpack.c.bf16 %v1242, %v1241
      %v1262 = vpack.c.bf16 %v1244, %v1243
      %v1263 = vpack.c.bf16 %v1246, %v1245
      %v1264 = vpack.c.bf16 %v1248, %v1247
      %v1281 = vunpack.c.l.b16 %v1249
      %v1282 = vunpack.c.h.b16 %v1249
      %v1283 = vunpack.c.l.b16 %v1250
      %v1284 = vunpack.c.h.b16 %v1250
      %v1285 = vunpack.c.l.b16 %v1251
      %v1286 = vunpack.c.h.b16 %v1251
      %v1287 = vunpack.c.l.b16 %v1252
      %v1288 = vunpack.c.h.b16 %v1252
      %v1289 = vunpack.c.l.b16 %v1253
      %v1290 = vunpack.c.h.b16 %v1253
      %v1291 = vunpack.c.l.b16 %v1254
      %v1292 = vunpack.c.h.b16 %v1254
      %v1293 = vunpack.c.l.b16 %v1255
      %v1294 = vunpack.c.h.b16 %v1255
      %v1295 = vunpack.c.l.b16 %v1256
      %v1296 = vunpack.c.h.b16 %v1256
      %v1297 = vunpack.c.l.b16 %v1257
      %v1298 = vunpack.c.h.b16 %v1257
      %v1299 = vunpack.c.l.b16 %v1258
      %v1300 = vunpack.c.h.b16 %v1258
      %v1301 = vunpack.c.l.b16 %v1259
      %v1302 = vunpack.c.h.b16 %v1259
      %v1303 = vunpack.c.l.b16 %v1260
      %v1304 = vunpack.c.h.b16 %v1260
      %v1305 = vunpack.c.l.b16 %v1261
      %v1306 = vunpack.c.h.b16 %v1261
      %v1307 = vunpack.c.l.b16 %v1262
      %v1308 = vunpack.c.h.b16 %v1262
      %v1309 = vunpack.c.l.b16 %v1263
      %v1310 = vunpack.c.h.b16 %v1263
      %v1311 = vunpack.c.l.b16 %v1264
      %v1312 = vunpack.c.h.b16 %v1264
      %v1313 = vpack.c.b16 %v1281, %v1281
      %v1314 = vpack.c.b16 %v1282, %v1282
      %v1315 = vpack.c.b16 %v1283, %v1283
      %v1316 = vpack.c.b16 %v1284, %v1284
      %v1317 = vpack.c.b16 %v1285, %v1285
      %v1318 = vpack.c.b16 %v1286, %v1286
      %v1319 = vpack.c.b16 %v1287, %v1287
      %v1320 = vpack.c.b16 %v1288, %v1288
      %v1321 = vpack.c.b16 %v1289, %v1289
      %v1322 = vpack.c.b16 %v1290, %v1290
      %v1323 = vpack.c.b16 %v1291, %v1291
      %v1324 = vpack.c.b16 %v1292, %v1292
      %v1325 = vpack.c.b16 %v1293, %v1293
      %v1326 = vpack.c.b16 %v1294, %v1294
      %v1327 = vpack.c.b16 %v1295, %v1295
      %v1328 = vpack.c.b16 %v1296, %v1296
      %v1329 = vpack.c.b16 %v1297, %v1297
      %v1330 = vpack.c.b16 %v1298, %v1298
      %v1331 = vpack.c.b16 %v1299, %v1299
      %v1332 = vpack.c.b16 %v1300, %v1300
      %v1333 = vpack.c.b16 %v1301, %v1301
      %v1334 = vpack.c.b16 %v1302, %v1302
      %v1335 = vpack.c.b16 %v1303, %v1303
      %v1336 = vpack.c.b16 %v1304, %v1304
      %v1337 = vpack.c.b16 %v1305, %v1305
      %v1338 = vpack.c.b16 %v1306, %v1306
      %v1339 = vpack.c.b16 %v1307, %v1307
      %v1340 = vpack.c.b16 %v1308, %v1308
      %v1341 = vpack.c.b16 %v1309, %v1309
      %v1342 = vpack.c.b16 %v1310, %v1310
      %v1343 = vpack.c.b16 %v1311, %v1311
      %v1344 = vpack.c.b16 %v1312, %v1312
      %1377 = vst [vmem:[%s233] sm:$0xf] %v1313
      %1378 = vst [vmem:[%s233 + $0x4] sm:$0xf] %v1314
      %1379 = vst [vmem:[%s233 + $0x8] sm:$0xf] %v1315
      %1380 = vst [vmem:[%s233 + $0xc] sm:$0xf] %v1316
      %1381 = vst [vmem:[%s233 + $0x10] sm:$0xf] %v1317
      %1382 = vst [vmem:[%s233 + $0x14] sm:$0xf] %v1318
      %1383 = vst [vmem:[%s233 + $0x18] sm:$0xf] %v1319
      %1384 = vst [vmem:[%s233 + $0x1c] sm:$0xf] %v1320
      %1385 = vst [vmem:[%s233 + $0x20] sm:$0xf] %v1321
      %1386 = vst [vmem:[%s233 + $0x24] sm:$0xf] %v1322
      %1387 = vst [vmem:[%s233 + $0x28] sm:$0xf] %v1323
      %1388 = vst [vmem:[%s233 + $0x2c] sm:$0xf] %v1324
      %1389 = vst [vmem:[%s233 + $0x30] sm:$0xf] %v1325
      %1390 = vst [vmem:[%s233 + $0x34] sm:$0xf] %v1326
      %1391 = vst [vmem:[%s233 + $0x38] sm:$0xf] %v1327
      %1392 = vst [vmem:[%s233 + $0x3c] sm:$0xf] %v1328
      %1393 = vst [vmem:[%s233 + $0x40] sm:$0xf] %v1329
      %1394 = vst [vmem:[%s233 + $0x44] sm:$0xf] %v1330
      %1395 = vst [vmem:[%s233 + $0x48] sm:$0xf] %v1331
      %1396 = vst [vmem:[%s233 + $0x4c] sm:$0xf] %v1332
      %1397 = vst [vmem:[%s233 + $0x50] sm:$0xf] %v1333
      %1398 = vst [vmem:[%s233 + $0x54] sm:$0xf] %v1334
      %1399 = vst [vmem:[%s233 + $0x58] sm:$0xf] %v1335
      %1400 = vst [vmem:[%s233 + $0x5c] sm:$0xf] %v1336
      %1401 = vst [vmem:[%s233 + $0x60] sm:$0xf] %v1337
      %1402 = vst [vmem:[%s233 + $0x64] sm:$0xf] %v1338
      %1403 = vst [vmem:[%s233 + $0x68] sm:$0xf] %v1339
      %1404 = vst [vmem:[%s233 + $0x6c] sm:$0xf] %v1340
      %1405 = vst [vmem:[%s233 + $0x70] sm:$0xf] %v1341
      %1406 = vst [vmem:[%s233 + $0x74] sm:$0xf] %v1342
      %1407 = vst [vmem:[%s233 + $0x78] sm:$0xf] %v1343
      %1408 = vst [vmem:[%s233 + $0x7c] sm:$0xf] %v1344
      %v1409 = vadd.f32 %v1217, %v1218
      %v1410 = vadd.f32 %v1409, %v1219
      %v1411 = vadd.f32 %v1410, %v1220
      %v1412 = vadd.f32 %v1411, %v1221
      %v1413 = vadd.f32 %v1412, %v1222
      %v1414 = vadd.f32 %v1413, %v1223
      %v1415 = vadd.f32 %v1414, %v1224
      %v1416 = vadd.f32 %v1415, %v1225
      %v1417 = vadd.f32 %v1416, %v1226
      %v1418 = vadd.f32 %v1417, %v1227
      %v1419 = vadd.f32 %v1418, %v1228
      %v1420 = vadd.f32 %v1419, %v1229
      %v1421 = vadd.f32 %v1420, %v1230
      %v1422 = vadd.f32 %v1421, %v1231
      %v1423 = vadd.f32 %v1422, %v1232
      %v1424 = vadd.f32 %v1423, %v1233
      %v1425 = vadd.f32 %v1424, %v1234
      %v1426 = vadd.f32 %v1425, %v1235
      %v1427 = vadd.f32 %v1426, %v1236
      %v1428 = vadd.f32 %v1427, %v1237
      %v1429 = vadd.f32 %v1428, %v1238
      %v1430 = vadd.f32 %v1429, %v1239
      %v1431 = vadd.f32 %v1430, %v1240
      %v1432 = vadd.f32 %v1431, %v1241
      %v1433 = vadd.f32 %v1432, %v1242
      %v1434 = vadd.f32 %v1433, %v1243
      %v1435 = vadd.f32 %v1434, %v1244
      %v1436 = vadd.f32 %v1435, %v1245
      %v1437 = vadd.f32 %v1436, %v1246
      %v1438 = vadd.f32 %v1437, %v1247
      %v1439 = vadd.f32 %v1438, %v1248
      %v1440 = vrot.slane %v1439, 4
      %v1441 = vadd.f32 %v1439, %v1440
      %v1442 = vrot.slane %v1441, 2
      %v1443 = vadd.f32 %v1441, %v1442
      %v1444 = vrot.slane %v1443, 1
      %v1445 = vadd.f32 %v1443, %v1444
      %v1446 = vmul.f32 %v1217, %v1217
      %v1447 = vmul.f32 %v1218, %v1218
      %v1448 = vmul.f32 %v1219, %v1219
      %v1449 = vmul.f32 %v1220, %v1220
      %v1450 = vmul.f32 %v1221, %v1221
      %v1451 = vmul.f32 %v1222, %v1222
      %v1452 = vmul.f32 %v1223, %v1223
      %v1453 = vmul.f32 %v1224, %v1224
      %v1454 = vmul.f32 %v1225, %v1225
      %v1455 = vmul.f32 %v1226, %v1226
      %v1456 = vmul.f32 %v1227, %v1227
      %v1457 = vmul.f32 %v1228, %v1228
      %v1458 = vmul.f32 %v1229, %v1229
      %v1459 = vmul.f32 %v1230, %v1230
      %v1460 = vmul.f32 %v1231, %v1231
      %v1461 = vmul.f32 %v1232, %v1232
      %v1462 = vmul.f32 %v1233, %v1233
      %v1463 = vmul.f32 %v1234, %v1234
      %v1464 = vmul.f32 %v1235, %v1235
      %v1465 = vmul.f32 %v1236, %v1236
      %v1466 = vmul.f32 %v1237, %v1237
      %v1467 = vmul.f32 %v1238, %v1238
      %v1468 = vmul.f32 %v1239, %v1239
      %v1469 = vmul.f32 %v1240, %v1240
      %v1470 = vmul.f32 %v1241, %v1241
      %v1471 = vmul.f32 %v1242, %v1242
      %v1472 = vmul.f32 %v1243, %v1243
      %v1473 = vmul.f32 %v1244, %v1244
      %v1474 = vmul.f32 %v1245, %v1245
      %v1475 = vmul.f32 %v1246, %v1246
      %v1476 = vmul.f32 %v1247, %v1247
      %v1477 = vmul.f32 %v1248, %v1248
      %v1478 = vadd.f32 %v1446, %v1447
      %v1479 = vadd.f32 %v1478, %v1448
      %v1480 = vadd.f32 %v1479, %v1449
      %v1481 = vadd.f32 %v1480, %v1450
      %v1482 = vadd.f32 %v1481, %v1451
      %v1483 = vadd.f32 %v1482, %v1452
      %v1484 = vadd.f32 %v1483, %v1453
      %v1485 = vadd.f32 %v1484, %v1454
      %v1486 = vadd.f32 %v1485, %v1455
      %v1487 = vadd.f32 %v1486, %v1456
      %v1488 = vadd.f32 %v1487, %v1457
      %v1489 = vadd.f32 %v1488, %v1458
      %v1490 = vadd.f32 %v1489, %v1459
      %v1491 = vadd.f32 %v1490, %v1460
      %v1492 = vadd.f32 %v1491, %v1461
      %v1493 = vadd.f32 %v1492, %v1462
      %v1494 = vadd.f32 %v1493, %v1463
      %v1495 = vadd.f32 %v1494, %v1464
      %v1496 = vadd.f32 %v1495, %v1465
      %v1497 = vadd.f32 %v1496, %v1466
      %v1498 = vadd.f32 %v1497, %v1467
      %v1499 = vadd.f32 %v1498, %v1468
      %v1500 = vadd.f32 %v1499, %v1469
      %v1501 = vadd.f32 %v1500, %v1470
      %v1502 = vadd.f32 %v1501, %v1471
      %v1503 = vadd.f32 %v1502, %v1472
      %v1504 = vadd.f32 %v1503, %v1473
      %v1505 = vadd.f32 %v1504, %v1474
      %v1506 = vadd.f32 %v1505, %v1475
      %v1507 = vadd.f32 %v1506, %v1476
      %v1508 = vadd.f32 %v1507, %v1477
      %v1509 = vrot.slane %v1508, 4
      %v1510 = vadd.f32 %v1508, %v1509
      %v1511 = vrot.slane %v1510, 2
      %v1512 = vadd.f32 %v1510, %v1511
      %v1513 = vrot.slane %v1512, 1
      %v1514 = vadd.f32 %v1512, %v1513
      %vm1515 = vcmask 1040384
      %v1516 = vsel %vm1515, %v1445, %v1514
      %1517 = vst [vmem:[%s238] sm:$0x3] %v1516
      %s1518 = smul.u32 32, %s17
      %p1519 = scmp.lt.s32.totalorder %s1518, 63
      %s1520 = scalar_select %p1519, %s1518, 63
      %s1521 = smul.addr %s1520, 4
      %s1522 = scalar_lea.vmem %s4, %s1521
      %p1523 = scmp.lt.s32.totalorder %s17, 1
      %s1524 = scalar_select %p1523, %s17, 1
      %s1525 = smul.addr %s1524, 2
      %s1526 = scalar_lea.vmem %s5, %s1525
      // Predicated region
      $region37: #{bottleneck_forward.7} parent=35 // pred_check
        %p1527 = pneg %p124
      $region38: #{bottleneck_forward.7} parent=35 // pred_check_branch
        %1529 = sbr.rel (%p1527) target = $region40
      $region39: #{bottleneck_forward.7} parent=35 // pred_region
        %s1530 = smul.u32 32, %s17
      $region40: #{bottleneck_forward.7} parent=35 // pred_fallthru
        _
      // Predicated region
      $region41: #{bottleneck_forward.7} parent=35 // pred_check
        %p1531 = pneg %p150
      $region42: #{bottleneck_forward.7} parent=35 // pred_check_branch
        %1533 = sbr.rel (%p1531) target = $region44
      $region43: #{bottleneck_forward.7} parent=35 // pred_region
        _
      $region44: #{bottleneck_forward.7} parent=35 // pred_fallthru
        _
    $region36: #{bottleneck_forward.7} parent=5 // pred_fallthru
      _
    %p1534 = scmp.le.s32.totalorder 2, %s12
    // Predicated region
    $region45: #{bottleneck_forward.7} parent=5 // pred_check
      %p1535 = pneg %p1534
    $region46: #{bottleneck_forward.7} parent=5 // pred_check_branch
      %1537 = sbr.rel (%p1535) target = $region48
    $region47: #{bottleneck_forward.7} parent=5 // pred_region
      %s1538 = ssub.s32 %s12, 2
      // Predicated region
      $region49: #{bottleneck_forward.7} parent=47 // pred_check
        %p1539 = pneg %p130
      $region50: #{bottleneck_forward.7} parent=47 // pred_check_branch
        %1541 = sbr.rel (%p1539) target = $region52
      $region51: #{bottleneck_forward.7} parent=47 // pred_region
        %s1542 = smul.u32 32, %s18
        %p1543 = scmp.lt.s32.totalorder %s1542, 63
        %s1544 = scalar_select %p1543, %s1542, 63
        %s1545 = smul.addr %s1544, 4
        %s1546 = scalar_lea.vmem %s4, %s1545
      $region52: #{bottleneck_forward.7} parent=47 // pred_fallthru
        _
      // Predicated region
      $region53: #{bottleneck_forward.7} parent=47 // pred_check
        %p1547 = pneg %p156
      $region54: #{bottleneck_forward.7} parent=47 // pred_check_branch
        %1549 = sbr.rel (%p1547) target = $region56
      $region55: #{bottleneck_forward.7} parent=47 // pred_region
        %p1550 = scmp.lt.s32.totalorder %s18, 1
        %s1551 = scalar_select %p1550, %s18, 1
        %s1552 = smul.addr %s1551, 2
        %s1553 = scalar_lea.vmem %s5, %s1552
      $region56: #{bottleneck_forward.7} parent=47 // pred_fallthru
        _
    $region48: #{bottleneck_forward.7} parent=5 // pred_fallthru
      _
  $region6: #{bottleneck_forward.7} parent=0 // loop_footer
    %s16 = sadd.s32 1, %s12
  $region7: #{bottleneck_forward.7} parent=0 // loop_footer_branch
    %11 = sbr.rel target = $region3
  $region8: #{bottleneck_forward.7} parent=0 // loop_exit
    _

// kernel: bottleneck_forward.6
$region0: #{bottleneck_forward.6}
  #allocation0 [shape = 'u32[]', space=smem, size = 0x4, offset = 0x4, fixed_abs, tag = 'smem constant byte address 0x4 - core index']
  #allocation1 [shape = 'u32[144,128]{1,0:T(1,128)}', space=vmem, size = 0x12000, scoped, tag = 'internal scratch']
  #allocation2 [shape = 'bf16[10,10,128]{2,1,0:T(8,128)(2,1)}', space=vmem, size = 0xa000, scoped, tag = 'scratch operand']
  %s0 = inlined_call_operand.vmem [shape: bf16[512,128], index: 0, kind: input, shape index: {}]
  %s1 = inlined_call_operand.vmem [shape: f32[1,128], index: 1, kind: input, shape index: {}]
  %s2 = inlined_call_operand.vmem [shape: f32[1,128], index: 2, kind: input, shape index: {}]
  %s3 = inlined_call_operand.vmem [shape: bf16[1152,128], index: 3, kind: input, shape index: {}]
  %s4 = inlined_call_operand.vmem [shape: bf16[512,128], index: 4, kind: output, shape index: {0}]
  %s5 = inlined_call_operand.vmem [shape: f32[8,2,128], index: 5, kind: output, shape index: {1}]
  %6 = xla_tuple %s4, %s5
  %s7 = sld [smem:[#allocation0]]
  $region57: #{bottleneck_forward.6} parent=0
    _
  %s9 = ssub.s32 1, %s7
  %s10 = scalar_select 0, %s9, %s7
  loop: start=0, step=1, limit=10
  $region2: #{bottleneck_forward.6} parent=0 // loop_pre_header
    _
  $region3: #{bottleneck_forward.6} parent=0 // loop_header
    %s12 = sphi 0, %s16
    %p13 = scmp.ge.s32.totalorder %s12, 10
    %s22 = sphi 0, %s24
    %s25 = sphi 0, %s22
    %s26 = sphi 0, %s25
    %s42 = sphi 0, %s26
    %s46 = sphi 0, %s46
    %s48 = sphi 0, %s46
    %s49 = sphi 0, %s48
    %s63 = sphi 0, %s49
    %s67 = sphi 0, %s67
    %s69 = sphi 0, %s67
    %s70 = sphi 0, %s69
    %s84 = sphi 0, %s70
    %s88 = sphi 0, %s88
    %s90 = sphi 0, %s88
    %s91 = sphi 0, %s90
    %s105 = sphi 0, %s91
    %s111 = sphi 0, %s113
    %s114 = sphi 0, %s111
    %s115 = sphi 0, %s114
    %s131 = sphi 0, %s115
    %s137 = sphi 0, %s139
    %s140 = sphi 0, %s137
    %s141 = sphi 0, %s140
    %s157 = sphi 0, %s141
  $region4: #{bottleneck_forward.6} parent=0 // loop_header_branch
    %15 = sbr.rel (%p13) target = $region8
  $region5: #{bottleneck_forward.6} parent=0 // loop_body
    %s17 = ssub.s32 %s12, 1
    %s18 = ssub.s32 %s12, 2
    %s19 = sadd.s32 %s12, 1
    %s20 = ssub.s32 %s12, %s19
    %p21 = scmp.eq.s32.totalorder %s20, 0
    %s23 = sadd.s32 %s22, 1
    %s24 = scalar_select %p21, %s22, %s23
    %p27 = pneg %p21
    %p28 = scmp.eq.s32.totalorder %s12, 7
    %p29 = por %p27, %p28
    %p30 = scmp.ne.s32.totalorder %s22, %s25
    %p31 = scmp.eq.s32.totalorder %s12, 0
    %p32 = por %p30, %p31
    %p33 = scmp.ne.s32.totalorder %s22, %s25
    %p34 = scmp.eq.s32.totalorder %s17, 7
    %p35 = por %p33, %p34
    %p36 = scmp.ne.s32.totalorder %s25, %s26
    %p37 = scmp.eq.s32.totalorder %s17, 0
    %p38 = por %p36, %p37
    %p39 = scmp.ne.s32.totalorder %s25, %s26
    %p40 = scmp.eq.s32.totalorder %s18, 7
    %p41 = por %p39, %p40
    %p43 = scmp.ne.s32.totalorder %s26, %s42
    %p44 = scmp.eq.s32.totalorder %s18, 0
    %p45 = por %p43, %p44
    %s47 = sadd.s32 %s46, 1
    %p50 = scmp.eq.s32.totalorder %s12, 7
    %p51 = scmp.ne.s32.totalorder %s46, %s48
    %p52 = scmp.eq.s32.totalorder %s12, 0
    %p53 = por %p51, %p52
    %p54 = scmp.ne.s32.totalorder %s46, %s48
    %p55 = scmp.eq.s32.totalorder %s17, 7
    %p56 = por %p54, %p55
    %p57 = scmp.ne.s32.totalorder %s48, %s49
    %p58 = scmp.eq.s32.totalorder %s17, 0
    %p59 = por %p57, %p58
    %p60 = scmp.ne.s32.totalorder %s48, %s49
    %p61 = scmp.eq.s32.totalorder %s18, 7
    %p62 = por %p60, %p61
    %p64 = scmp.ne.s32.totalorder %s49, %s63
    %p65 = scmp.eq.s32.totalorder %s18, 0
    %p66 = por %p64, %p65
    %s68 = sadd.s32 %s67, 1
    %p71 = scmp.eq.s32.totalorder %s12, 7
    %p72 = scmp.ne.s32.totalorder %s67, %s69
    %p73 = scmp.eq.s32.totalorder %s12, 0
    %p74 = por %p72, %p73
    %p75 = scmp.ne.s32.totalorder %s67, %s69
    %p76 = scmp.eq.s32.totalorder %s17, 7
    %p77 = por %p75, %p76
    %p78 = scmp.ne.s32.totalorder %s69, %s70
    %p79 = scmp.eq.s32.totalorder %s17, 0
    %p80 = por %p78, %p79
    %p81 = scmp.ne.s32.totalorder %s69, %s70
    %p82 = scmp.eq.s32.totalorder %s18, 7
    %p83 = por %p81, %p82
    %p85 = scmp.ne.s32.totalorder %s70, %s84
    %p86 = scmp.eq.s32.totalorder %s18, 0
    %p87 = por %p85, %p86
    %s89 = sadd.s32 %s88, 1
    %p92 = scmp.eq.s32.totalorder %s12, 7
    %p93 = scmp.ne.s32.totalorder %s88, %s90
    %p94 = scmp.eq.s32.totalorder %s12, 0
    %p95 = por %p93, %p94
    %p96 = scmp.ne.s32.totalorder %s88, %s90
    %p97 = scmp.eq.s32.totalorder %s17, 7
    %p98 = por %p96, %p97
    %p99 = scmp.ne.s32.totalorder %s90, %s91
    %p100 = scmp.eq.s32.totalorder %s17, 0
    %p101 = por %p99, %p100
    %p102 = scmp.ne.s32.totalorder %s90, %s91
    %p103 = scmp.eq.s32.totalorder %s18, 7
    %p104 = por %p102, %p103
    %p106 = scmp.ne.s32.totalorder %s91, %s105
    %p107 = scmp.eq.s32.totalorder %s18, 0
    %p108 = por %p106, %p107
    %s109 = ssub.s32 %s12, %s19
    %p110 = scmp.eq.s32.totalorder %s109, 0
    %s112 = sadd.s32 %s111, 1
    %s113 = scalar_select %p110, %s111, %s112
    %p116 = pneg %p110
    %p117 = scmp.eq.s32.totalorder %s12, 7
    %p118 = por %p116, %p117
    %p119 = scmp.ne.s32.totalorder %s111, %s114
    %p120 = scmp.eq.s32.totalorder %s12, 0
    %p121 = por %p119, %p120
    %p122 = scmp.ne.s32.totalorder %s111, %s114
    %p123 = scmp.eq.s32.totalorder %s17, 7
    %p124 = por %p122, %p123
    %p125 = scmp.ne.s32.totalorder %s114, %s115
    %p126 = scmp.eq.s32.totalorder %s17, 0
    %p127 = por %p125, %p126
    %p128 = scmp.ne.s32.totalorder %s114, %s115
    %p129 = scmp.eq.s32.totalorder %s18, 7
    %p130 = por %p128, %p129
    %p132 = scmp.ne.s32.totalorder %s115, %s131
    %p133 = scmp.eq.s32.totalorder %s18, 0
    %p134 = por %p132, %p133
    %s135 = ssub.s32 %s12, %s19
    %p136 = scmp.eq.s32.totalorder %s135, 0
    %s138 = sadd.s32 %s137, 1
    %s139 = scalar_select %p136, %s137, %s138
    %p142 = pneg %p136
    %p143 = scmp.eq.s32.totalorder %s12, 7
    %p144 = por %p142, %p143
    %p145 = scmp.ne.s32.totalorder %s137, %s140
    %p146 = scmp.eq.s32.totalorder %s12, 0
    %p147 = por %p145, %p146
    %p148 = scmp.ne.s32.totalorder %s137, %s140
    %p149 = scmp.eq.s32.totalorder %s17, 7
    %p150 = por %p148, %p149
    %p151 = scmp.ne.s32.totalorder %s140, %s141
    %p152 = scmp.eq.s32.totalorder %s17, 0
    %p153 = por %p151, %p152
    %p154 = scmp.ne.s32.totalorder %s140, %s141
    %p155 = scmp.eq.s32.totalorder %s18, 7
    %p156 = por %p154, %p155
    %p158 = scmp.ne.s32.totalorder %s141, %s157
    %p159 = scmp.eq.s32.totalorder %s18, 0
    %p160 = por %p158, %p159
    %p161 = scmp.le.s32.totalorder 1, %s12
    %p162 = scmp.lt.s32.totalorder %s12, 9
    %p163 = pnand %p161, %p162
    %p164 = pneg %p163
    // Predicated region
    $region9: #{bottleneck_forward.6} parent=5 // pred_check
      _
    $region10: #{bottleneck_forward.6} parent=5 // pred_check_branch
      %166 = sbr.rel (%p163) target = $region12
    $region11: #{bottleneck_forward.6} parent=5 // pred_region
      %s167 = ssub.s32 %s12, 1
      // Predicated region
      $region13: #{bottleneck_forward.6} parent=11 // pred_check
        %p168 = pneg %p59
      $region14: #{bottleneck_forward.6} parent=11 // pred_check_branch
        %170 = sbr.rel (%p168) target = $region16
      $region15: #{bottleneck_forward.6} parent=11 // pred_region
        _
      $region16: #{bottleneck_forward.6} parent=11 // pred_fallthru
        _
      // Predicated region
      $region17: #{bottleneck_forward.6} parent=11 // pred_check
        %p171 = pneg %p80
      $region18: #{bottleneck_forward.6} parent=11 // pred_check_branch
        %173 = sbr.rel (%p171) target = $region20
      $region19: #{bottleneck_forward.6} parent=11 // pred_region
        _
      $region20: #{bottleneck_forward.6} parent=11 // pred_fallthru
        _
      // Predicated region
      $region21: #{bottleneck_forward.6} parent=11 // pred_check
        %p174 = pneg %p101
      $region22: #{bottleneck_forward.6} parent=11 // pred_check_branch
        %176 = sbr.rel (%p174) target = $region24
      $region23: #{bottleneck_forward.6} parent=11 // pred_region
        _
      $region24: #{bottleneck_forward.6} parent=11 // pred_fallthru
        _
    $region12: #{bottleneck_forward.6} parent=5 // pred_fallthru
      _
    %p177 = scmp.lt.s32.totalorder %s12, 8
    // Predicated region
    $region25: #{bottleneck_forward.6} parent=5 // pred_check
      %p178 = pneg %p177
    $region26: #{bottleneck_forward.6} parent=5 // pred_check_branch
      %180 = sbr.rel (%p178) target = $region28
    $region27: #{bottleneck_forward.6} parent=5 // pred_region
      // Predicated region
      $region29: #{bottleneck_forward.6} parent=27 // pred_check
        %p181 = pneg %p32
      $region30: #{bottleneck_forward.6} parent=27 // pred_check_branch
        %183 = sbr.rel (%p181) target = $region32
      $region31: #{bottleneck_forward.6} parent=27 // pred_region
        %s184 = smul.u32 8, %s12
        %p185 = scmp.lt.s32.totalorder %s184, 63
        %s186 = scalar_select %p185, %s184, 63
        %s187 = smul.addr %s186, 4
        %s188 = scalar_lea.vmem %s0, %s187
        %s189 = smul.u32 8, %s12
      $region32: #{bottleneck_forward.6} parent=27 // pred_fallthru
        _
    $region28: #{bottleneck_forward.6} parent=5 // pred_fallthru
      _
    %p190 = scmp.le.s32.totalorder 1, %s12
    %p191 = scmp.lt.s32.totalorder %s12, 9
    %p192 = pnand %p190, %p191
    %p193 = pneg %p192
    // Predicated region
    $region33: #{bottleneck_forward.6} parent=5 // pred_check
      _
    $region34: #{bottleneck_forward.6} parent=5 // pred_check_branch
      %195 = sbr.rel (%p192) target = $region36
    $region35: #{bottleneck_forward.6} parent=5 // pred_region
      %s196 = ssub.s32 %s12, 1
      %s197 = smul.u32 8, %s17
      %p198 = scmp.lt.s32.totalorder %s197, 63
      %s199 = scalar_select %p198, %s197, 63
      %s200 = smul.addr %s199, 4
      %s201 = scalar_lea.vmem %s0, %s200
      %p202 = pneg %p38
      %p203 = pneg %p35
      %p204 = pneg %p59
      %p205 = pneg %p56
      %p206 = pneg %p80
      %p207 = pneg %p77
      %p208 = pneg %p101
      %p209 = pneg %p98
      %p210 = pneg %p127
      %p211 = pneg %p124
      %s212 = smul.u32 8, %s17
      %p213 = scmp.lt.s32.totalorder %s212, 63
      %s214 = scalar_select %p213, %s212, 63
      %s215 = smul.addr %s214, 4
      %s216 = scalar_lea.vmem %s4, %s215
      %p217 = pneg %p153
      %p218 = pneg %p150
      %p219 = scmp.lt.s32.totalorder %s17, 7
      %s220 = scalar_select %p219, %s17, 7
      %s221 = smul.addr %s220, 2
      %s222 = scalar_lea.vmem %s5, %s221
      %s223 = smul.u32 8, %s17
      %p224 = scmp.lt.s32.totalorder %s223, 63
      %s225 = scalar_select %p224, %s223, 63
      %s226 = smul.addr %s225, 4
      %s227 = scalar_lea.vmem %s0, %s226
      %s228 = smul.u32 8, %s17
      %s229 = smul.u32 8, %s17
      %p230 = scmp.lt.s32.totalorder %s229, 63
      %s231 = scalar_select %p230, %s229, 63
      %s232 = smul.addr %s231, 4
      %s233 = scalar_lea.vmem %s4, %s232
      %s234 = smul.u32 8, %s17
      %p235 = scmp.lt.s32.totalorder %s17, 7
      %s236 = scalar_select %p235, %s17, 7
      %s237 = smul.addr %s236, 2
      %s238 = scalar_lea.vmem %s5, %s237
      %v240 = vld [vmem:[%s227] sm:$0xf]
      %v241 = vld [vmem:[%s227 + $0x4] sm:$0xf]
      %v242 = vld [vmem:[%s227 + $0x8] sm:$0xf]
      %v243 = vld [vmem:[%s227 + $0xc] sm:$0xf]
      %v244 = vld [vmem:[%s227 + $0x10] sm:$0xf]
      %v245 = vld [vmem:[%s227 + $0x14] sm:$0xf]
      %v246 = vld [vmem:[%s227 + $0x18] sm:$0xf]
      %v247 = vld [vmem:[%s227 + $0x1c] sm:$0xf]
      %v248 = vunpack.c.l.bf16 %v240
      %v249 = vunpack.c.l.bf16 %v241
      %v250 = vunpack.c.l.bf16 %v242
      %v251 = vunpack.c.l.bf16 %v243
      %v252 = vunpack.c.l.bf16 %v244
      %v253 = vunpack.c.l.bf16 %v245
      %v254 = vunpack.c.l.bf16 %v246
      %v255 = vunpack.c.l.bf16 %v247
      %v256 = vld [vmem:[%s1] sm:$0x1]
      %v258 = vlaneseq
      %v259 = vshrl.u32 %v258, 7
      %v260 = vsub.s32 0, %v259
      %v261 = vrot.slane %v256, %v260
      %v263 = vmul.f32 %v248, %v261
      %v264 = vmul.f32 %v249, %v261
      %v265 = vmul.f32 %v250, %v261
      %v266 = vmul.f32 %v251, %v261
      %v267 = vmul.f32 %v252, %v261
      %v268 = vmul.f32 %v253, %v261
      %v269 = vmul.f32 %v254, %v261
      %v270 = vmul.f32 %v255, %v261
      %v271 = vld [vmem:[%s2] sm:$0x1]
      %v273 = vlaneseq
      %v274 = vshrl.u32 %v273, 7
      %v275 = vsub.s32 0, %v274
      %v276 = vrot.slane %v271, %v275
      %v278 = vadd.f32 %v263, %v276
      %v279 = vadd.f32 %v264, %v276
      %v280 = vadd.f32 %v265, %v276
      %v281 = vadd.f32 %v266, %v276
      %v282 = vadd.f32 %v267, %v276
      %v283 = vadd.f32 %v268, %v276
      %v284 = vadd.f32 %v269, %v276
      %v285 = vadd.f32 %v270, %v276
      %v286 = vmax.f32 %v278, 0.0
      %v287 = vmax.f32 %v279, 0.0
      %v288 = vmax.f32 %v280, 0.0
      %v289 = vmax.f32 %v281, 0.0
      %v290 = vmax.f32 %v282, 0.0
      %v291 = vmax.f32 %v283, 0.0
      %v292 = vmax.f32 %v284, 0.0
      %v293 = vmax.f32 %v285, 0.0
      %v294 = vpack.c.bf16 %v287, %v286
      %v295 = vpack.c.bf16 %v289, %v288
      %v296 = vpack.c.bf16 %v291, %v290
      %v297 = vpack.c.bf16 %v293, %v292
      %298 = vst [vmem:[#allocation2] sm:$0xf] 0
      %299 = vst [vmem:[#allocation2 + $0x4] sm:$0x1] 0
      %s300 = scalar_lea.vmem [#allocation2], 72
      %301 = vst [vmem:[%s300] sm:$0xf] 0
      %302 = vst [vmem:[%s300 + $0x4] sm:$0x1] 0
      %s303 = scalar_lea.vmem [#allocation2], 8
      %vm304 = vcmask 1040384
      %vm305 = vsmask.f32 256
      %vm306 = vmand %vm304, %vm305
      %v307 = vld [vmem:[%s303] sm:$0x1]
      %v308 = vsel %vm306, 0, %v307
      %309 = vst [vmem:[%s303] sm:$0x1] %v308
      %v310 = vld [vmem:[%s303 + $0x8] sm:$0x1]
      %v311 = vsel %vm306, 0, %v310
      %312 = vst [vmem:[%s303 + $0x8] sm:$0x1] %v311
      %v313 = vld [vmem:[%s303 + $0x10] sm:$0x1]
      %v314 = vsel %vm306, 0, %v313
      %315 = vst [vmem:[%s303 + $0x10] sm:$0x1] %v314
      %v316 = vld [vmem:[%s303 + $0x18] sm:$0x1]
      %v317 = vsel %vm306, 0, %v316
      %318 = vst [vmem:[%s303 + $0x18] sm:$0x1] %v317
      %v319 = vld [vmem:[%s303 + $0x20] sm:$0x1]
      %v320 = vsel %vm306, 0, %v319
      %321 = vst [vmem:[%s303 + $0x20] sm:$0x1] %v320
      %v322 = vld [vmem:[%s303 + $0x28] sm:$0x1]
      %v323 = vsel %vm306, 0, %v322
      %324 = vst [vmem:[%s303 + $0x28] sm:$0x1] %v323
      %v325 = vld [vmem:[%s303 + $0x30] sm:$0x1]
      %v326 = vsel %vm306, 0, %v325
      %327 = vst [vmem:[%s303 + $0x30] sm:$0x1] %v326
      %v328 = vld [vmem:[%s303 + $0x38] sm:$0x1]
      %v329 = vsel %vm306, 0, %v328
      %330 = vst [vmem:[%s303 + $0x38] sm:$0x1] %v329
      %vm331 = vsmask.f32 7938
      %vm332 = vmand %vm304, %vm331
      %v333 = vld [vmem:[%s303 + $0x4] sm:$0x1]
      %v334 = vsel %vm332, 0, %v333
      %335 = vst [vmem:[%s303 + $0x4] sm:$0x1] %v334
      %v336 = vld [vmem:[%s303 + $0xc] sm:$0x1]
      %v337 = vsel %vm332, 0, %v336
      %338 = vst [vmem:[%s303 + $0xc] sm:$0x1] %v337
      %v339 = vld [vmem:[%s303 + $0x14] sm:$0x1]
      %v340 = vsel %vm332, 0, %v339
      %341 = vst [vmem:[%s303 + $0x14] sm:$0x1] %v340
      %v342 = vld [vmem:[%s303 + $0x1c] sm:$0x1]
      %v343 = vsel %vm332, 0, %v342
      %344 = vst [vmem:[%s303 + $0x1c] sm:$0x1] %v343
      %v345 = vld [vmem:[%s303 + $0x24] sm:$0x1]
      %v346 = vsel %vm332, 0, %v345
      %347 = vst [vmem:[%s303 + $0x24] sm:$0x1] %v346
      %v348 = vld [vmem:[%s303 + $0x2c] sm:$0x1]
      %v349 = vsel %vm332, 0, %v348
      %350 = vst [vmem:[%s303 + $0x2c] sm:$0x1] %v349
      %v351 = vld [vmem:[%s303 + $0x34] sm:$0x1]
      %v352 = vsel %vm332, 0, %v351
      %353 = vst [vmem:[%s303 + $0x34] sm:$0x1] %v352
      %v354 = vld [vmem:[%s303 + $0x3c] sm:$0x1]
      %v355 = vsel %vm332, 0, %v354
      %356 = vst [vmem:[%s303 + $0x3c] sm:$0x1] %v355
      %v361 = vunpack.c.l.b16 %v294
      %v362 = vunpack.c.h.b16 %v294
      %v363 = vunpack.c.l.b16 %v295
      %v364 = vunpack.c.h.b16 %v295
      %v365 = vunpack.c.l.b16 %v296
      %v366 = vunpack.c.h.b16 %v296
      %v367 = vunpack.c.l.b16 %v297
      %v368 = vunpack.c.h.b16 %v297
      %v369 = vpack.c.b16 %v361, %v361
      %v370 = vpack.c.b16 %v362, %v362
      %v371 = vpack.c.b16 %v363, %v363
      %v372 = vpack.c.b16 %v364, %v364
      %v373 = vpack.c.b16 %v365, %v365
      %v374 = vpack.c.b16 %v366, %v366
      %v375 = vpack.c.b16 %v367, %v367
      %v376 = vpack.c.b16 %v368, %v368
      %v378 = vshrl.u32 %v369, 16
      %v380 = vrot.slane %v378, 7
      %v381 = vshll.u32 %v369, 16
      %v383 = vor.u32 %v380, %v381
      %v384 = vrot.slane %v380, 4
      %v386 = vshrl.u32 %v370, 16
      %v388 = vrot.slane %v386, 7
      %v389 = vshll.u32 %v370, 16
      %v391 = vor.u32 %v388, %v389
      %v392 = vrot.slane %v388, 4
      %v394 = vshrl.u32 %v371, 16
      %v396 = vrot.slane %v394, 7
      %v397 = vshll.u32 %v371, 16
      %v399 = vor.u32 %v396, %v397
      %v400 = vrot.slane %v396, 4
      %v402 = vshrl.u32 %v372, 16
      %v404 = vrot.slane %v402, 7
      %v405 = vshll.u32 %v372, 16
      %v407 = vor.u32 %v404, %v405
      %v408 = vrot.slane %v404, 4
      %v410 = vshrl.u32 %v373, 16
      %v412 = vrot.slane %v410, 7
      %v413 = vshll.u32 %v373, 16
      %v415 = vor.u32 %v412, %v413
      %v416 = vrot.slane %v412, 4
      %v418 = vshrl.u32 %v374, 16
      %v420 = vrot.slane %v418, 7
      %v421 = vshll.u32 %v374, 16
      %v423 = vor.u32 %v420, %v421
      %v424 = vrot.slane %v420, 4
      %v426 = vshrl.u32 %v375, 16
      %v428 = vrot.slane %v426, 7
      %v429 = vshll.u32 %v375, 16
      %v431 = vor.u32 %v428, %v429
      %v432 = vrot.slane %v428, 4
      %v434 = vshrl.u32 %v376, 16
      %v436 = vrot.slane %v434, 7
      %v437 = vshll.u32 %v376, 16
      %v439 = vor.u32 %v436, %v437
      %v440 = vrot.slane %v436, 4
      %vm457 = vcmask 1043456
      %vm458 = vmand %vm457, %vm331
      %v459 = vld [vmem:[%s303] sm:$0xf]
      %v460 = vsel %vm458, %v383, %v459
      %461 = vst [vmem:[%s303] sm:$0xf] %v460
      %v462 = vld [vmem:[%s303 + $0x4] sm:$0x1]
      %v463 = vsel %vm306, %v384, %v462
      %464 = vst [vmem:[%s303 + $0x4] sm:$0x1] %v463
      %v465 = vld [vmem:[%s303 + $0x8] sm:$0xf]
      %v466 = vsel %vm458, %v391, %v465
      %467 = vst [vmem:[%s303 + $0x8] sm:$0xf] %v466
      %v468 = vld [vmem:[%s303 + $0xc] sm:$0x1]
      %v469 = vsel %vm306, %v392, %v468
      %470 = vst [vmem:[%s303 + $0xc] sm:$0x1] %v469
      %v471 = vld [vmem:[%s303 + $0x10] sm:$0xf]
      %v472 = vsel %vm458, %v399, %v471
      %473 = vst [vmem:[%s303 + $0x10] sm:$0xf] %v472
      %v474 = vld [vmem:[%s303 + $0x14] sm:$0x1]
      %v475 = vsel %vm306, %v400, %v474
      %476 = vst [vmem:[%s303 + $0x14] sm:$0x1] %v475
      %v477 = vld [vmem:[%s303 + $0x18] sm:$0xf]
      %v478 = vsel %vm458, %v407, %v477
      %479 = vst [vmem:[%s303 + $0x18] sm:$0xf] %v478
      %v480 = vld [vmem:[%s303 + $0x1c] sm:$0x1]
      %v481 = vsel %vm306, %v408, %v480
      %482 = vst [vmem:[%s303 + $0x1c] sm:$0x1] %v481
      %v483 = vld [vmem:[%s303 + $0x20] sm:$0xf]
      %v484 = vsel %vm458, %v415, %v483
      %485 = vst [vmem:[%s303 + $0x20] sm:$0xf] %v484
      %v486 = vld [vmem:[%s303 + $0x24] sm:$0x1]
      %v487 = vsel %vm306, %v416, %v486
      %488 = vst [vmem:[%s303 + $0x24] sm:$0x1] %v487
      %v489 = vld [vmem:[%s303 + $0x28] sm:$0xf]
      %v490 = vsel %vm458, %v423, %v489
      %491 = vst [vmem:[%s303 + $0x28] sm:$0xf] %v490
      %v492 = vld [vmem:[%s303 + $0x2c] sm:$0x1]
      %v493 = vsel %vm306, %v424, %v492
      %494 = vst [vmem:[%s303 + $0x2c] sm:$0x1] %v493
      %v495 = vld [vmem:[%s303 + $0x30] sm:$0xf]
      %v496 = vsel %vm458, %v431, %v495
      %497 = vst [vmem:[%s303 + $0x30] sm:$0xf] %v496
      %v498 = vld [vmem:[%s303 + $0x34] sm:$0x1]
      %v499 = vsel %vm306, %v432, %v498
      %500 = vst [vmem:[%s303 + $0x34] sm:$0x1] %v499
      %v501 = vld [vmem:[%s303 + $0x38] sm:$0xf]
      %v502 = vsel %vm458, %v439, %v501
      %503 = vst [vmem:[%s303 + $0x38] sm:$0xf] %v502
      %v504 = vld [vmem:[%s303 + $0x3c] sm:$0x1]
      %v505 = vsel %vm306, %v440, %v504
      %506 = vst [vmem:[%s303 + $0x3c] sm:$0x1] %v505
      %v507 = vld [vmem:[#allocation2] sm:$0xf]
      %v508 = vld [vmem:[#allocation2 + $0x8] sm:$0xf]
      %v509 = vld [vmem:[#allocation2 + $0x10] sm:$0xf]
      %v510 = vld [vmem:[#allocation2 + $0x18] sm:$0xf]
      %v511 = vld [vmem:[#allocation2 + $0x20] sm:$0xf]
      %v512 = vld [vmem:[#allocation2 + $0x28] sm:$0xf]
      %v513 = vld [vmem:[#allocation2 + $0x30] sm:$0xf]
      %v514 = vld [vmem:[#allocation2 + $0x38] sm:$0xf]
      %v515 = vld [vmem:[%s3] sm:$0xf]
      %v516 = vld [vmem:[%s3 + $0x4] sm:$0xf]
      %v517 = vld [vmem:[%s3 + $0x8] sm:$0xf]
      %v518 = vld [vmem:[%s3 + $0xc] sm:$0xf]
      %v519 = vld [vmem:[%s3 + $0x10] sm:$0xf]
      %v520 = vld [vmem:[%s3 + $0x14] sm:$0xf]
      %v521 = vld [vmem:[%s3 + $0x18] sm:$0xf]
      %v522 = vld [vmem:[%s3 + $0x1c] sm:$0xf]
      %v523 = vld [vmem:[%s3 + $0x20] sm:$0xf]
      %v524 = vld [vmem:[%s3 + $0x24] sm:$0xf]
      %v525 = vld [vmem:[%s3 + $0x28] sm:$0xf]
      %v526 = vld [vmem:[%s3 + $0x2c] sm:$0xf]
      %v527 = vld [vmem:[%s3 + $0x30] sm:$0xf]
      %v528 = vld [vmem:[%s3 + $0x34] sm:$0xf]
      %v529 = vld [vmem:[%s3 + $0x38] sm:$0xf]
      %v530 = vld [vmem:[%s3 + $0x3c] sm:$0xf]
      %v531 = vld [vmem:[#allocation2 + $0x4] sm:$0x1]
      %v532 = vld [vmem:[#allocation2 + $0xc] sm:$0x1]
      %v533 = vld [vmem:[#allocation2 + $0x14] sm:$0x1]
      %v534 = vld [vmem:[#allocation2 + $0x1c] sm:$0x1]
      %v535 = vld [vmem:[#allocation2 + $0x24] sm:$0x1]
      %v536 = vld [vmem:[#allocation2 + $0x2c] sm:$0x1]
      %v537 = vld [vmem:[#allocation2 + $0x34] sm:$0x1]
      %v538 = vld [vmem:[#allocation2 + $0x3c] sm:$0x1]
      %vm539 = vsmask.f32 3328
      %vm540 = vsmask.f32 7440
      %vm541 = vmor %vm539, %vm540
      %v543 = vshrl.u32 %v507, 16
      %v545 = vrot.slane %v543, 4
      %v546 = vshll.u32 %v507, 16
      %v548 = vrot.slane %v546, 5
      %v549 = vor.u32 %v545, %v548
      %v550 = vrot.slane %v549, 4
      %v552 = vshll.u32 %v531, 16
      %v554 = vrot.slane %v552, 5
      %v555 = vsel %vm541, %v550, %v554
      %v557 = vshrl.u32 %v508, 16
      %v559 = vrot.slane %v557, 4
      %v560 = vshll.u32 %v508, 16
      %v562 = vrot.slane %v560, 5
      %v563 = vor.u32 %v559, %v562
      %v564 = vrot.slane %v563, 4
      %v566 = vshll.u32 %v532, 16
      %v568 = vrot.slane %v566, 5
      %v569 = vsel %vm541, %v564, %v568
      %v571 = vshrl.u32 %v509, 16
      %v573 = vrot.slane %v571, 4
      %v574 = vshll.u32 %v509, 16
      %v576 = vrot.slane %v574, 5
      %v577 = vor.u32 %v573, %v576
      %v578 = vrot.slane %v577, 4
      %v580 = vshll.u32 %v533, 16
      %v582 = vrot.slane %v580, 5
      %v583 = vsel %vm541, %v578, %v582
      %v585 = vshrl.u32 %v510, 16
      %v587 = vrot.slane %v585, 4
      %v588 = vshll.u32 %v510, 16
      %v590 = vrot.slane %v588, 5
      %v591 = vor.u32 %v587, %v590
      %v592 = vrot.slane %v591, 4
      %v594 = vshll.u32 %v534, 16
      %v596 = vrot.slane %v594, 5
      %v597 = vsel %vm541, %v592, %v596
      %v599 = vshrl.u32 %v511, 16
      %v601 = vrot.slane %v599, 4
      %v602 = vshll.u32 %v511, 16
      %v604 = vrot.slane %v602, 5
      %v605 = vor.u32 %v601, %v604
      %v606 = vrot.slane %v605, 4
      %v608 = vshll.u32 %v535, 16
      %v610 = vrot.slane %v608, 5
      %v611 = vsel %vm541, %v606, %v610
      %v613 = vshrl.u32 %v512, 16
      %v615 = vrot.slane %v613, 4
      %v616 = vshll.u32 %v512, 16
      %v618 = vrot.slane %v616, 5
      %v619 = vor.u32 %v615, %v618
      %v620 = vrot.slane %v619, 4
      %v622 = vshll.u32 %v536, 16
      %v624 = vrot.slane %v622, 5
      %v625 = vsel %vm541, %v620, %v624
      %v627 = vshrl.u32 %v513, 16
      %v629 = vrot.slane %v627, 4
      %v630 = vshll.u32 %v513, 16
      %v632 = vrot.slane %v630, 5
      %v633 = vor.u32 %v629, %v632
      %v634 = vrot.slane %v633, 4
      %v636 = vshll.u32 %v537, 16
      %v638 = vrot.slane %v636, 5
      %v639 = vsel %vm541, %v634, %v638
      %v641 = vshrl.u32 %v514, 16
      %v643 = vrot.slane %v641, 4
      %v644 = vshll.u32 %v514, 16
      %v646 = vrot.slane %v644, 5
      %v647 = vor.u32 %v643, %v646
      %v648 = vrot.slane %v647, 4
      %v650 = vshll.u32 %v538, 16
      %v652 = vrot.slane %v650, 5
      %v653 = vsel %vm541, %v648, %v652
      %v654 = vld [vmem:[%s3 + $0x40] sm:$0xf]
      %v655 = vld [vmem:[%s3 + $0x44] sm:$0xf]
      %v656 = vld [vmem:[%s3 + $0x48] sm:$0xf]
      %v657 = vld [vmem:[%s3 + $0x4c] sm:$0xf]
      %v658 = vld [vmem:[%s3 + $0x50] sm:$0xf]
      %v659 = vld [vmem:[%s3 + $0x54] sm:$0xf]
      %v660 = vld [vmem:[%s3 + $0x58] sm:$0xf]
      %v661 = vld [vmem:[%s3 + $0x5c] sm:$0xf]
      %v662 = vld [vmem:[%s3 + $0x60] sm:$0xf]
      %v663 = vld [vmem:[%s3 + $0x64] sm:$0xf]
      %v664 = vld [vmem:[%s3 + $0x68] sm:$0xf]
      %v665 = vld [vmem:[%s3 + $0x6c] sm:$0xf]
      %v666 = vld [vmem:[%s3 + $0x70] sm:$0xf]
      %v667 = vld [vmem:[%s3 + $0x74] sm:$0xf]
      %v668 = vld [vmem:[%s3 + $0x78] sm:$0xf]
      %v669 = vld [vmem:[%s3 + $0x7c] sm:$0xf]
      %v670 = vunpack.c.l.b16 %v555
      %v671 = vunpack.c.l.b16 %v569
      %v672 = vunpack.c.l.b16 %v583
      %v673 = vunpack.c.l.b16 %v597
      %v674 = vunpack.c.l.b16 %v611
      %v675 = vunpack.c.l.b16 %v625
      %v676 = vunpack.c.l.b16 %v639
      %v677 = vunpack.c.l.b16 %v653
      %v678 = vpack.c.b16 %v671, %v670
      %v679 = vpack.c.b16 %v673, %v672
      %v680 = vpack.c.b16 %v675, %v674
      %v681 = vpack.c.b16 %v677, %v676
      %v702 = vunpack.c.l.b16 %v654
      %v703 = vunpack.c.l.b16 %v655
      %v704 = vunpack.c.l.b16 %v656
      %v705 = vunpack.c.l.b16 %v657
      %v706 = vunpack.c.l.b16 %v658
      %v707 = vunpack.c.l.b16 %v659
      %v708 = vunpack.c.l.b16 %v660
      %v709 = vunpack.c.l.b16 %v661
      %v710 = vunpack.c.l.b16 %v662
      %v711 = vunpack.c.l.b16 %v663
      %v712 = vunpack.c.l.b16 %v664
      %v713 = vunpack.c.l.b16 %v665
      %v714 = vunpack.c.l.b16 %v666
      %v715 = vunpack.c.l.b16 %v667
      %v716 = vunpack.c.l.b16 %v668
      %v717 = vunpack.c.l.b16 %v669
      %v718 = vpack.c.b16 %v703, %v702
      %v719 = vpack.c.b16 %v705, %v704
      %v720 = vpack.c.b16 %v707, %v706
      %v721 = vpack.c.b16 %v709, %v708
      %v722 = vpack.c.b16 %v711, %v710
      %v723 = vpack.c.b16 %v713, %v712
      %v724 = vpack.c.b16 %v715, %v714
      %v725 = vpack.c.b16 %v717, %v716
      %734 = vmatprep.subr.bf16.mxu0 0
      %735 = vmatpush1.bf16.msra.mxu0 %v718
      %736 = vmatprep.subr.bf16.mxu0 0
      %737 = vmatpush1.bf16.msra.mxu0 %v719
      %738 = vmatprep.subr.bf16.mxu0 0
      %739 = vmatpush1.bf16.msra.mxu0 %v720
      %740 = vmatprep.subr.bf16.mxu0 0
      %741 = vmatpush1.bf16.msra.mxu0 %v721
      %742 = vmatprep.subr.bf16.mxu0 0
      %743 = vmatpush1.bf16.msra.mxu0 %v722
      %744 = vmatprep.subr.bf16.mxu0 0
      %745 = vmatpush1.bf16.msra.mxu0 %v723
      %746 = vmatprep.subr.bf16.mxu0 0
      %747 = vmatpush1.bf16.msra.mxu0 %v724
      %748 = vmatprep.subr.bf16.mxu0 0
      %749 = vmatpush1.bf16.msra.mxu0 %v725
      %750 = vmatprep.subr.bf16.mxu0 0
      %751 = vmatpush1.bf16.msra.mxu0 0
      %752 = vmatprep.subr.bf16.mxu0 0
      %753 = vmatpush1.bf16.msra.mxu0 0
      %754 = vmatprep.subr.bf16.mxu0 0
      %755 = vmatpush1.bf16.msra.mxu0 0
      %756 = vmatprep.subr.bf16.mxu0 0
      %757 = vmatpush1.bf16.msra.mxu0 0
      %758 = vmatprep.subr.bf16.mxu0 0
      %759 = vmatpush1.bf16.msra.mxu0 0
      %760 = vmatprep.subr.bf16.mxu0 0
      %761 = vmatpush1.bf16.msra.mxu0 0
      %762 = vmatprep.subr.bf16.mxu0 0
      %763 = vmatpush1.bf16.msra.mxu0 0
      %764 = vmatprep.subr.bf16.mxu0 0
      %765 = vmatpush1.bf16.msra.mxu0 0
      %766 = vmatprep.mubr.bf16.mxu0 0
      %767 = vmatmul.mubr.bf16.gmra.mrb[0].mxu0 %v678
      %v768 = vpop.f32.mrb[0].mxu0
      %v769 = vadd.f32 0.0, %v768
      %v770 = vpop.f32.mrb[0].mxu0
      %v771 = vpop.f32.mrb[0].mxu0
      %v772 = vadd.f32 0.0, %v771
      %v773 = vpop.f32.mrb[0].mxu0
      %774 = vmatprep.mubr.bf16.mxu0 0
      %775 = vmatmul.mubr.bf16.gmra.mrb[0].mxu0 %v679
      %v776 = vpop.f32.mrb[0].mxu0
      %v777 = vadd.f32 0.0, %v776
      %v778 = vpop.f32.mrb[0].mxu0
      %v779 = vpop.f32.mrb[0].mxu0
      %v780 = vadd.f32 0.0, %v779
      %v781 = vpop.f32.mrb[0].mxu0
      %782 = vmatprep.mubr.bf16.mxu0 0
      %783 = vmatmul.mubr.bf16.gmra.mrb[0].mxu0 %v680
      %v784 = vpop.f32.mrb[0].mxu0
      %v785 = vadd.f32 0.0, %v784
      %v786 = vpop.f32.mrb[0].mxu0
      %v787 = vpop.f32.mrb[0].mxu0
      %v788 = vadd.f32 0.0, %v787
      %v789 = vpop.f32.mrb[0].mxu0
      %790 = vmatprep.mubr.bf16.mxu0 0
      %791 = vmatmul.mubr.bf16.gmra.mrb[0].mxu0 %v681
      %v792 = vpop.f32.mrb[0].mxu0
      %v793 = vadd.f32 0.0, %v792
      %v794 = vpop.f32.mrb[0].mxu0
      %v795 = vpop.f32.mrb[0].mxu0
      %v796 = vadd.f32 0.0, %v795
      %v797 = vpop.f32.mrb[0].mxu0
      %798 = vdwg.mxu0
      %v807 = vunpack.c.l.b16 %v507
      %v808 = vunpack.c.l.b16 %v508
      %v809 = vunpack.c.l.b16 %v509
      %v810 = vunpack.c.l.b16 %v510
      %v811 = vunpack.c.l.b16 %v511
      %v812 = vunpack.c.l.b16 %v512
      %v813 = vunpack.c.l.b16 %v513
      %v814 = vunpack.c.l.b16 %v514
      %v815 = vpack.c.b16 %v808, %v807
      %v816 = vpack.c.b16 %v810, %v809
      %v817 = vpack.c.b16 %v812, %v811
      %v818 = vpack.c.b16 %v814, %v813
      %v839 = vunpack.c.l.b16 %v515
      %v840 = vunpack.c.l.b16 %v516
      %v841 = vunpack.c.l.b16 %v517
      %v842 = vunpack.c.l.b16 %v518
      %v843 = vunpack.c.l.b16 %v519
      %v844 = vunpack.c.l.b16 %v520
      %v845 = vunpack.c.l.b16 %v521
      %v846 = vunpack.c.l.b16 %v522
      %v847 = vunpack.c.l.b16 %v523
      %v848 = vunpack.c.l.b16 %v524
      %v849 = vunpack.c.l.b16 %v525
      %v850 = vunpack.c.l.b16 %v526
      %v851 = vunpack.c.l.b16 %v527
      %v852 = vunpack.c.l.b16 %v528
      %v853 = vunpack.c.l.b16 %v529
      %v854 = vunpack.c.l.b16 %v530
      %v855 = vpack.c.b16 %v840, %v839
      %v856 = vpack.c.b16 %v842, %v841
      %v857 = vpack.c.b16 %v844, %v843
      %v858 = vpack.c.b16 %v846, %v845
      %v859 = vpack.c.b16 %v848, %v847
      %v860 = vpack.c.b16 %v850, %v849
      %v861 = vpack.c.b16 %v852, %v851
      %v862 = vpack.c.b16 %v854, %v853
      %871 = vmatprep.subr.bf16.mxu0 0
      %872 = vmatpush1.bf16.msra.mxu0 %v855
      %873 = vmatprep.subr.bf16.mxu0 0
      %874 = vmatpush1.bf16.msra.mxu0 %v856
      %875 = vmatprep.subr.bf16.mxu0 0
      %876 = vmatpush1.bf16.msra.mxu0 %v857
      %877 = vmatprep.subr.bf16.mxu0 0
      %878 = vmatpush1.bf16.msra.mxu0 %v858
      %879 = vmatprep.subr.bf16.mxu0 0
      %880 = vmatpush1.bf16.msra.mxu0 %v859
      %881 = vmatprep.subr.bf16.mxu0 0
      %882 = vmatpush1.bf16.msra.mxu0 %v860
      %883 = vmatprep.subr.bf16.mxu0 0
      %884 = vmatpush1.bf16.msra.mxu0 %v861
      %885 = vmatprep.subr.bf16.mxu0 0
      %886 = vmatpush1.bf16.msra.mxu0 %v862
      %887 = vmatprep.subr.bf16.mxu0 0
      %888 = vmatpush1.bf16.msra.mxu0 0
      %889 = vmatprep.subr.bf16.mxu0 0
      %890 = vmatpush1.bf16.msra.mxu0 0
      %891 = vmatprep.subr.bf16.mxu0 0
      %892 = vmatpush1.bf16.msra.mxu0 0
      %893 = vmatprep.subr.bf16.mxu0 0
      %894 = vmatpush1.bf16.msra.mxu0 0
      %895 = vmatprep.subr.bf16.mxu0 0
      %896 = vmatpush1.bf16.msra.mxu0 0
      %897 = vmatprep.subr.bf16.mxu0 0
      %898 = vmatpush1.bf16.msra.mxu0 0
      %899 = vmatprep.subr.bf16.mxu0 0
      %900 = vmatpush1.bf16.msra.mxu0 0
      %901 = vmatprep.subr.bf16.mxu0 0
      %902 = vmatpush1.bf16.msra.mxu0 0
      %903 = vmatprep.mubr.bf16.mxu0 0
      %904 = vmatmul.mubr.bf16.gmra.mrb[0].mxu0 %v815
      %v905 = vpop.f32.mrb[0].mxu0
      %v906 = vadd.f32 %v769, %v905
      %v907 = vpop.f32.mrb[0].mxu0
      %v908 = vpop.f32.mrb[0].mxu0
      %v909 = vadd.f32 %v772, %v908
      %v910 = vpop.f32.mrb[0].mxu0
      %911 = vmatprep.mubr.bf16.mxu0 0
      %912 = vmatmul.mubr.bf16.gmra.mrb[0].mxu0 %v816
      %v913 = vpop.f32.mrb[0].mxu0
      %v914 = vadd.f32 %v777, %v913
      %v915 = vpop.f32.mrb[0].mxu0
      %v916 = vpop.f32.mrb[0].mxu0
      %v917 = vadd.f32 %v780, %v916
      %v918 = vpop.f32.mrb[0].mxu0
      %919 = vmatprep.mubr.bf16.mxu0 0
      %920 = vmatmul.mubr.bf16.gmra.mrb[0].mxu0 %v817
      %v921 = vpop.f32.mrb[0].mxu0
      %v922 = vadd.f32 %v785, %v921
      %v923 = vpop.f32.mrb[0].mxu0
      %v924 = vpop.f32.mrb[0].mxu0
      %v925 = vadd.f32 %v788, %v924
      %v926 = vpop.f32.mrb[0].mxu0
      %927 = vmatprep.mubr.bf16.mxu0 0
      %928 = vmatmul.mubr.bf16.gmra.mrb[0].mxu0 %v818
      %v929 = vpop.f32.mrb[0].mxu0
      %v930 = vadd.f32 %v793, %v929
      %v931 = vpop.f32.mrb[0].mxu0
      %v932 = vpop.f32.mrb[0].mxu0
      %v933 = vadd.f32 %v796, %v932
      %v934 = vpop.f32.mrb[0].mxu0
      %935 = vdwg.mxu0
      %v936 = vld [vmem:[#allocation2] sm:$0xe]
      %v937 = vld [vmem:[#allocation2 + $0x8] sm:$0xe]
      %v938 = vld [vmem:[#allocation2 + $0x10] sm:$0xe]
      %v939 = vld [vmem:[#allocation2 + $0x18] sm:$0xe]
      %v940 = vld [vmem:[#allocation2 + $0x20] sm:$0xe]
      %v941 = vld [vmem:[#allocation2 + $0x28] sm:$0xe]
      %v942 = vld [vmem:[#allocation2 + $0x30] sm:$0xe]
      %v943 = vld [vmem:[#allocation2 + $0x38] sm:$0xe]
      %vm960 = vcmask 1042432
      %vm961 = vcmask 1046532
      %vm962 = vmor %vm960, %vm961
      %v963 = vrot.slane %v936, 5
      %v964 = vrot.slane %v963, 4
      %v965 = vrot.slane %v531, 5
      %v966 = vsel %vm962, %v964, %v965
      %v967 = vrot.slane %v937, 5
      %v968 = vrot.slane %v967, 4
      %v969 = vrot.slane %v532, 5
      %v970 = vsel %vm962, %v968, %v969
      %v971 = vrot.slane %v938, 5
      %v972 = vrot.slane %v971, 4
      %v973 = vrot.slane %v533, 5
      %v974 = vsel %vm962, %v972, %v973
      %v975 = vrot.slane %v939, 5
      %v976 = vrot.slane %v975, 4
      %v977 = vrot.slane %v534, 5
      %v978 = vsel %vm962, %v976, %v977
      %v979 = vrot.slane %v940, 5
      %v980 = vrot.slane %v979, 4
      %v981 = vrot.slane %v535, 5
      %v982 = vsel %vm962, %v980, %v981
      %v983 = vrot.slane %v941, 5
      %v984 = vrot.slane %v983, 4
      %v985 = vrot.slane %v536, 5
      %v986 = vsel %vm962, %v984, %v985
      %v987 = vrot.slane %v942, 5
      %v988 = vrot.slane %v987, 4
      %v989 = vrot.slane %v537, 5
      %v990 = vsel %vm962, %v988, %v989
      %v991 = vrot.slane %v943, 5
      %v992 = vrot.slane %v991, 4
      %v993 = vrot.slane %v538, 5
      %v994 = vsel %vm962, %v992, %v993
      %v995 = vld [vmem:[%s3 + $0x80] sm:$0xf]
      %v996 = vld [vmem:[%s3 + $0x84] sm:$0xf]
      %v997 = vld [vmem:[%s3 + $0x88] sm:$0xf]
      %v998 = vld [vmem:[%s3 + $0x8c] sm:$0xf]
      %v999 = vld [vmem:[%s3 + $0x90] sm:$0xf]
      %v1000 = vld [vmem:[%s3 + $0x94] sm:$0xf]
      %v1001 = vld [vmem:[%s3 + $0x98] sm:$0xf]
      %v1002 = vld [vmem:[%s3 + $0x9c] sm:$0xf]
      %v1003 = vld [vmem:[%s3 + $0xa0] sm:$0xf]
      %v1004 = vld [vmem:[%s3 + $0xa4] sm:$0xf]
      %v1005 = vld [vmem:[%s3 + $0xa8] sm:$0xf]
      %v1006 = vld [vmem:[%s3 + $0xac] sm:$0xf]
      %v1007 = vld [vmem:[%s3 + $0xb0] sm:$0xf]
      %v1008 = vld [vmem:[%s3 + $0xb4] sm:$0xf]
      %v1009 = vld [vmem:[%s3 + $0xb8] sm:$0xf]
      %v1010 = vld [vmem:[%s3 + $0xbc] sm:$0xf]
      %v1011 = vunpack.c.l.b16 %v966
      %v1012 = vunpack.c.l.b16 %v970
      %v1013 = vunpack.c.l.b16 %v974
      %v1014 = vunpack.c.l.b16 %v978
      %v1015 = vunpack.c.l.b16 %v982
      %v1016 = vunpack.c.l.b16 %v986
      %v1017 = vunpack.c.l.b16 %v990
      %v1018 = vunpack.c.l.b16 %v994
      %v1019 = vpack.c.b16 %v1012, %v1011
      %v1020 = vpack.c.b16 %v1014, %v1013
      %v1021 = vpack.c.b16 %v1016, %v1015
      %v1022 = vpack.c.b16 %v1018, %v1017
      %v1043 = vunpack.c.l.b16 %v995
      %v1044 = vunpack.c.l.b16 %v996
      %v1045 = vunpack.c.l.b16 %v997
      %v1046 = vunpack.c.l.b16 %v998
      %v1047 = vunpack.c.l.b16 %v999
      %v1048 = vunpack.c.l.b16 %v1000
      %v1049 = vunpack.c.l.b16 %v1001
      %v1050 = vunpack.c.l.b16 %v1002
      %v1051 = vunpack.c.l.b16 %v1003
      %v1052 = vunpack.c.l.b16 %v1004
      %v1053 = vunpack.c.l.b16 %v1005
      %v1054 = vunpack.c.l.b16 %v1006
      %v1055 = vunpack.c.l.b16 %v1007
      %v1056 = vunpack.c.l.b16 %v1008
      %v1057 = vunpack.c.l.b16 %v1009
      %v1058 = vunpack.c.l.b16 %v1010
      %v1059 = vpack.c.b16 %v1044, %v1043
      %v1060 = vpack.c.b16 %v1046, %v1045
      %v1061 = vpack.c.b16 %v1048, %v1047
      %v1062 = vpack.c.b16 %v1050, %v1049
      %v1063 = vpack.c.b16 %v1052, %v1051
      %v1064 = vpack.c.b16 %v1054, %v1053
      %v1065 = vpack.c.b16 %v1056, %v1055
      %v1066 = vpack.c.b16 %v1058, %v1057
      %1075 = vmatprep.subr.bf16.mxu0 0
      %1076 = vmatpush1.bf16.msra.mxu0 %v1059
      %1077 = vmatprep.subr.bf16.mxu0 0
      %1078 = vmatpush1.bf16.msra.mxu0 %v1060
      %1079 = vmatprep.subr.bf16.mxu0 0
      %1080 = vmatpush1.bf16.msra.mxu0 %v1061
      %1081 = vmatprep.subr.bf16.mxu0 0
      %1082 = vmatpush1.bf16.msra.mxu0 %v1062
      %1083 = vmatprep.subr.bf16.mxu0 0
      %1084 = vmatpush1.bf16.msra.mxu0 %v1063
      %1085 = vmatprep.subr.bf16.mxu0 0
      %1086 = vmatpush1.bf16.msra.mxu0 %v1064
      %1087 = vmatprep.subr.bf16.mxu0 0
      %1088 = vmatpush1.bf16.msra.mxu0 %v1065
      %1089 = vmatprep.subr.bf16.mxu0 0
      %1090 = vmatpush1.bf16.msra.mxu0 %v1066
      %1091 = vmatprep.subr.bf16.mxu0 0
      %1092 = vmatpush1.bf16.msra.mxu0 0
      %1093 = vmatprep.subr.bf16.mxu0 0
      %1094 = vmatpush1.bf16.msra.mxu0 0
      %1095 = vmatprep.subr.bf16.mxu0 0
      %1096 = vmatpush1.bf16.msra.mxu0 0
      %1097 = vmatprep.subr.bf16.mxu0 0
      %1098 = vmatpush1.bf16.msra.mxu0 0
      %1099 = vmatprep.subr.bf16.mxu0 0
      %1100 = vmatpush1.bf16.msra.mxu0 0
      %1101 = vmatprep.subr.bf16.mxu0 0
      %1102 = vmatpush1.bf16.msra.mxu0 0
      %1103 = vmatprep.subr.bf16.mxu0 0
      %1104 = vmatpush1.bf16.msra.mxu0 0
      %1105 = vmatprep.subr.bf16.mxu0 0
      %1106 = vmatpush1.bf16.msra.mxu0 0
      %1107 = vmatprep.mubr.bf16.mxu0 0
      %1108 = vmatmul.mubr.bf16.gmra.mrb[0].mxu0 %v1019
      %v1109 = vpop.f32.mrb[0].mxu0
      %v1110 = vadd.f32 0.0, %v1109
      %v1111 = vpop.f32.mrb[0].mxu0
      %v1112 = vpop.f32.mrb[0].mxu0
      %v1113 = vadd.f32 0.0, %v1112
      %v1114 = vpop.f32.mrb[0].mxu0
      %1115 = vmatprep.mubr.bf16.mxu0 0
      %1116 = vmatmul.mubr.bf16.gmra.mrb[0].mxu0 %v1020
      %v1117 = vpop.f32.mrb[0].mxu0
      %v1118 = vadd.f32 0.0, %v1117
      %v1119 = vpop.f32.mrb[0].mxu0
      %v1120 = vpop.f32.mrb[0].mxu0
      %v1121 = vadd.f32 0.0, %v1120
      %v1122 = vpop.f32.mrb[0].mxu0
      %1123 = vmatprep.mubr.bf16.mxu0 0
      %1124 = vmatmul.mubr.bf16.gmra.mrb[0].mxu0 %v1021
      %v1125 = vpop.f32.mrb[0].mxu0
      %v1126 = vadd.f32 0.0, %v1125
      %v1127 = vpop.f32.mrb[0].mxu0
      %v1128 = vpop.f32.mrb[0].mxu0
      %v1129 = vadd.f32 0.0, %v1128
      %v1130 = vpop.f32.mrb[0].mxu0
      %1131 = vmatprep.mubr.bf16.mxu0 0
      %1132 = vmatmul.mubr.bf16.gmra.mrb[0].mxu0 %v1022
      %v1133 = vpop.f32.mrb[0].mxu0
      %v1134 = vadd.f32 0.0, %v1133
      %v1135 = vpop.f32.mrb[0].mxu0
      %v1136 = vpop.f32.mrb[0].mxu0
      %v1137 = vadd.f32 0.0, %v1136
      %v1138 = vpop.f32.mrb[0].mxu0
      %1139 = vdwg.mxu0
      %v1140 = vadd.f32 %v906, %v1110
      %v1141 = vadd.f32 %v909, %v1113
      %v1142 = vadd.f32 %v914, %v1118
      %v1143 = vadd.f32 %v917, %v1121
      %v1144 = vadd.f32 %v922, %v1126
      %v1145 = vadd.f32 %v925, %v1129
      %v1146 = vadd.f32 %v930, %v1134
      %v1147 = vadd.f32 %v933, %v1137
      %v1148 = vld [vmem:[%s303] sm:$0xf]
      %v1149 = vld [vmem:[%s303 + $0x8] sm:$0xf]
      %v1150 = vld [vmem:[%s303 + $0x10] sm:$0xf]
      %v1151 = vld [vmem:[%s303 + $0x18] sm:$0xf]
      %v1152 = vld [vmem:[%s303 + $0x20] sm:$0xf]
      %v1153 = vld [vmem:[%s303 + $0x28] sm:$0xf]
      %v1154 = vld [vmem:[%s303 + $0x30] sm:$0xf]
      %v1155 = vld [vmem:[%s303 + $0x38] sm:$0xf]
      %v1156 = vld [vmem:[%s3 + $0xc0] sm:$0xf]
      %v1157 = vld [vmem:[%s3 + $0xc4] sm:$0xf]
      %v1158 = vld [vmem:[%s3 + $0xc8] sm:$0xf]
      %v1159 = vld [vmem:[%s3 + $0xcc] sm:$0xf]
      %v1160 = vld [vmem:[%s3 + $0xd0] sm:$0xf]
      %v1161 = vld [vmem:[%s3 + $0xd4] sm:$0xf]
      %v1162 = vld [vmem:[%s3 + $0xd8] sm:$0xf]
      %v1163 = vld [vmem:[%s3 + $0xdc] sm:$0xf]
      %v1164 = vld [vmem:[%s3 + $0xe0] sm:$0xf]
      %v1165 = vld [vmem:[%s3 + $0xe4] sm:$0xf]
      %v1166 = vld [vmem:[%s3 + $0xe8] sm:$0xf]
      %v1167 = vld [vmem:[%s3 + $0xec] sm:$0xf]
      %v1168 = vld [vmem:[%s3 + $0xf0] sm:$0xf]
      %v1169 = vld [vmem:[%s3 + $0xf4] sm:$0xf]
      %v1170 = vld [vmem:[%s3 + $0xf8] sm:$0xf]
      %v1171 = vld [vmem:[%s3 + $0xfc] sm:$0xf]
      %v1180 = vunpack.c.l.b16 %v1148
      %v1181 = vunpack.c.l.b16 %v1149
      %v1182 = vunpack.c.l.b16 %v1150
      %v1183 = vunpack.c.l.b16 %v1151
      %v1184 = vunpack.c.l.b16 %v1152
      %v1185 = vunpack.c.l.b16 %v1153
      %v1186 = vunpack.c.l.b16 %v1154
      %v1187 = vunpack.c.l.b16 %v1155
      %v1188 = vpack.c.b16 %v1181, %v1180
      %v1189 = vpack.c.b16 %v1183, %v1182
      %v1190 = vpack.c.b16 %v1185, %v1184
      %v1191 = vpack.c.b16 %v1187, %v1186
      %v1212 = vunpack.c.l.b16 %v1156
      %v1213 = vunpack.c.l.b16 %v1157
      %v1214 = vunpack.c.l.b16 %v1158
      %v1215 = vunpack.c.l.b16 %v1159
      %v1216 = vunpack.c.l.b16 %v1160
      %v1217 = vunpack.c.l.b16 %v1161
      %v1218 = vunpack.c.l.b16 %v1162
      %v1219 = vunpack.c.l.b16 %v1163
      %v1220 = vunpack.c.l.b16 %v1164
      %v1221 = vunpack.c.l.b16 %v1165
      %v1222 = vunpack.c.l.b16 %v1166
      %v1223 = vunpack.c.l.b16 %v1167
      %v1224 = vunpack.c.l.b16 %v1168
      %v1225 = vunpack.c.l.b16 %v1169
      %v1226 = vunpack.c.l.b16 %v1170
      %v1227 = vunpack.c.l.b16 %v1171
      %v1228 = vpack.c.b16 %v1213, %v1212
      %v1229 = vpack.c.b16 %v1215, %v1214
      %v1230 = vpack.c.b16 %v1217, %v1216
      %v1231 = vpack.c.b16 %v1219, %v1218
      %v1232 = vpack.c.b16 %v1221, %v1220
      %v1233 = vpack.c.b16 %v1223, %v1222
      %v1234 = vpack.c.b16 %v1225, %v1224
      %v1235 = vpack.c.b16 %v1227, %v1226
      %1244 = vmatprep.subr.bf16.mxu0 0
      %1245 = vmatpush1.bf16.msra.mxu0 %v1228
      %1246 = vmatprep.subr.bf16.mxu0 0
      %1247 = vmatpush1.bf16.msra.mxu0 %v1229
      %1248 = vmatprep.subr.bf16.mxu0 0
      %1249 = vmatpush1.bf16.msra.mxu0 %v1230
      %1250 = vmatprep.subr.bf16.mxu0 0
      %1251 = vmatpush1.bf16.msra.mxu0 %v1231
      %1252 = vmatprep.subr.bf16.mxu0 0
      %1253 = vmatpush1.bf16.msra.mxu0 %v1232
      %1254 = vmatprep.subr.bf16.mxu0 0
      %1255 = vmatpush1.bf16.msra.mxu0 %v1233
      %1256 = vmatprep.subr.bf16.mxu0 0
      %1257 = vmatpush1.bf16.msra.mxu0 %v1234
      %1258 = vmatprep.subr.bf16.mxu0 0
      %1259 = vmatpush1.bf16.msra.mxu0 %v1235
      %1260 = vmatprep.subr.bf16.mxu0 0
      %1261 = vmatpush1.bf16.msra.mxu0 0
      %1262 = vmatprep.subr.bf16.mxu0 0
      %1263 = vmatpush1.bf16.msra.mxu0 0
      %1264 = vmatprep.subr.bf16.mxu0 0
      %1265 = vmatpush1.bf16.msra.mxu0 0
      %1266 = vmatprep.subr.bf16.mxu0 0
      %1267 = vmatpush1.bf16.msra.mxu0 0
      %1268 = vmatprep.subr.bf16.mxu0 0
      %1269 = vmatpush1.bf16.msra.mxu0 0
      %1270 = vmatprep.subr.bf16.mxu0 0
      %1271 = vmatpush1.bf16.msra.mxu0 0
      %1272 = vmatprep.subr.bf16.mxu0 0
      %1273 = vmatpush1.bf16.msra.mxu0 0
      %1274 = vmatprep.subr.bf16.mxu0 0
      %1275 = vmatpush1.bf16.msra.mxu0 0
      %1276 = vmatprep.mubr.bf16.mxu0 0
      %1277 = vmatmul.mubr.bf16.gmra.mrb[0].mxu0 %v1188
      %v1278 = vpop.f32.mrb[0].mxu0
      %v1279 = vadd.f32 0.0, %v1278
      %v1280 = vpop.f32.mrb[0].mxu0
      %v1281 = vpop.f32.mrb[0].mxu0
      %v1282 = vadd.f32 0.0, %v1281
      %v1283 = vpop.f32.mrb[0].mxu0
      %1284 = vmatprep.mubr.bf16.mxu0 0
      %1285 = vmatmul.mubr.bf16.gmra.mrb[0].mxu0 %v1189
      %v1286 = vpop.f32.mrb[0].mxu0
      %v1287 = vadd.f32 0.0, %v1286
      %v1288 = vpop.f32.mrb[0].mxu0
      %v1289 = vpop.f32.mrb[0].mxu0
      %v1290 = vadd.f32 0.0, %v1289
      %v1291 = vpop.f32.mrb[0].mxu0
      %1292 = vmatprep.mubr.bf16.mxu0 0
      %1293 = vmatmul.mubr.bf16.gmra.mrb[0].mxu0 %v1190
      %v1294 = vpop.f32.mrb[0].mxu0
      %v1295 = vadd.f32 0.0, %v1294
      %v1296 = vpop.f32.mrb[0].mxu0
      %v1297 = vpop.f32.mrb[0].mxu0
      %v1298 = vadd.f32 0.0, %v1297
      %v1299 = vpop.f32.mrb[0].mxu0
      %1300 = vmatprep.mubr.bf16.mxu0 0
      %1301 = vmatmul.mubr.bf16.gmra.mrb[0].mxu0 %v1191
      %v1302 = vpop.f32.mrb[0].mxu0
      %v1303 = vadd.f32 0.0, %v1302
      %v1304 = vpop.f32.mrb[0].mxu0
      %v1305 = vpop.f32.mrb[0].mxu0
      %v1306 = vadd.f32 0.0, %v1305
      %v1307 = vpop.f32.mrb[0].mxu0
      %1308 = vdwg.mxu0
      %v1309 = vadd.f32 %v1140, %v1279
      %v1310 = vadd.f32 %v1141, %v1282
      %v1311 = vadd.f32 %v1142, %v1287
      %v1312 = vadd.f32 %v1143, %v1290
      %v1313 = vadd.f32 %v1144, %v1295
      %v1314 = vadd.f32 %v1145, %v1298
      %v1315 = vadd.f32 %v1146, %v1303
      %v1316 = vadd.f32 %v1147, %v1306
      %v1317 = vld [vmem:[%s303] sm:$0xf]
      %v1318 = vld [vmem:[%s303 + $0x4] sm:$0x1]
      %v1319 = vld [vmem:[%s303 + $0x8] sm:$0xf]
      %v1320 = vld [vmem:[%s303 + $0xc] sm:$0x1]
      %v1321 = vld [vmem:[%s303 + $0x10] sm:$0xf]
      %v1322 = vld [vmem:[%s303 + $0x14] sm:$0x1]
      %v1323 = vld [vmem:[%s303 + $0x18] sm:$0xf]
      %v1324 = vld [vmem:[%s303 + $0x1c] sm:$0x1]
      %v1325 = vld [vmem:[%s303 + $0x20] sm:$0xf]
      %v1326 = vld [vmem:[%s303 + $0x24] sm:$0x1]
      %v1327 = vld [vmem:[%s303 + $0x28] sm:$0xf]
      %v1328 = vld [vmem:[%s303 + $0x2c] sm:$0x1]
      %v1329 = vld [vmem:[%s303 + $0x30] sm:$0xf]
      %v1330 = vld [vmem:[%s303 + $0x34] sm:$0x1]
      %v1331 = vld [vmem:[%s303 + $0x38] sm:$0xf]
      %v1332 = vld [vmem:[%s303 + $0x3c] sm:$0x1]
      %v1334 = vshrl.u32 %v1317, 16
      %v1336 = vrot.slane %v1334, 4
      %v1337 = vshll.u32 %v1317, 16
      %v1339 = vrot.slane %v1337, 5
      %v1340 = vor.u32 %v1336, %v1339
      %v1341 = vrot.slane %v1340, 4
      %v1343 = vshll.u32 %v1318, 16
      %v1345 = vrot.slane %v1343, 5
      %v1346 = vsel %vm541, %v1341, %v1345
      %v1348 = vshrl.u32 %v1319, 16
      %v1350 = vrot.slane %v1348, 4
      %v1351 = vshll.u32 %v1319, 16
      %v1353 = vrot.slane %v1351, 5
      %v1354 = vor.u32 %v1350, %v1353
      %v1355 = vrot.slane %v1354, 4
      %v1357 = vshll.u32 %v1320, 16
      %v1359 = vrot.slane %v1357, 5
      %v1360 = vsel %vm541, %v1355, %v1359
      %v1362 = vshrl.u32 %v1321, 16
      %v1364 = vrot.slane %v1362, 4
      %v1365 = vshll.u32 %v1321, 16
      %v1367 = vrot.slane %v1365, 5
      %v1368 = vor.u32 %v1364, %v1367
      %v1369 = vrot.slane %v1368, 4
      %v1371 = vshll.u32 %v1322, 16
      %v1373 = vrot.slane %v1371, 5
      %v1374 = vsel %vm541, %v1369, %v1373
      %v1376 = vshrl.u32 %v1323, 16
      %v1378 = vrot.slane %v1376, 4
      %v1379 = vshll.u32 %v1323, 16
      %v1381 = vrot.slane %v1379, 5
      %v1382 = vor.u32 %v1378, %v1381
      %v1383 = vrot.slane %v1382, 4
      %v1385 = vshll.u32 %v1324, 16
      %v1387 = vrot.slane %v1385, 5
      %v1388 = vsel %vm541, %v1383, %v1387
      %v1390 = vshrl.u32 %v1325, 16
      %v1392 = vrot.slane %v1390, 4
      %v1393 = vshll.u32 %v1325, 16
      %v1395 = vrot.slane %v1393, 5
      %v1396 = vor.u32 %v1392, %v1395
      %v1397 = vrot.slane %v1396, 4
      %v1399 = vshll.u32 %v1326, 16
      %v1401 = vrot.slane %v1399, 5
      %v1402 = vsel %vm541, %v1397, %v1401
      %v1404 = vshrl.u32 %v1327, 16
      %v1406 = vrot.slane %v1404, 4
      %v1407 = vshll.u32 %v1327, 16
      %v1409 = vrot.slane %v1407, 5
      %v1410 = vor.u32 %v1406, %v1409
      %v1411 = vrot.slane %v1410, 4
      %v1413 = vshll.u32 %v1328, 16
      %v1415 = vrot.slane %v1413, 5
      %v1416 = vsel %vm541, %v1411, %v1415
      %v1418 = vshrl.u32 %v1329, 16
      %v1420 = vrot.slane %v1418, 4
      %v1421 = vshll.u32 %v1329, 16
      %v1423 = vrot.slane %v1421, 5
      %v1424 = vor.u32 %v1420, %v1423
      %v1425 = vrot.slane %v1424, 4
      %v1427 = vshll.u32 %v1330, 16
      %v1429 = vrot.slane %v1427, 5
      %v1430 = vsel %vm541, %v1425, %v1429
      %v1432 = vshrl.u32 %v1331, 16
      %v1434 = vrot.slane %v1432, 4
      %v1435 = vshll.u32 %v1331, 16
      %v1437 = vrot.slane %v1435, 5
      %v1438 = vor.u32 %v1434, %v1437
      %v1439 = vrot.slane %v1438, 4
      %v1441 = vshll.u32 %v1332, 16
      %v1443 = vrot.slane %v1441, 5
      %v1444 = vsel %vm541, %v1439, %v1443
      %v1445 = vld [vmem:[%s3 + $0x100] sm:$0xf]
      %v1446 = vld [vmem:[%s3 + $0x104] sm:$0xf]
      %v1447 = vld [vmem:[%s3 + $0x108] sm:$0xf]
      %v1448 = vld [vmem:[%s3 + $0x10c] sm:$0xf]
      %v1449 = vld [vmem:[%s3 + $0x110] sm:$0xf]
      %v1450 = vld [vmem:[%s3 + $0x114] sm:$0xf]
      %v1451 = vld [vmem:[%s3 + $0x118] sm:$0xf]
      %v1452 = vld [vmem:[%s3 + $0x11c] sm:$0xf]
      %v1453 = vld [vmem:[%s3 + $0x120] sm:$0xf]
      %v1454 = vld [vmem:[%s3 + $0x124] sm:$0xf]
      %v1455 = vld [vmem:[%s3 + $0x128] sm:$0xf]
      %v1456 = vld [vmem:[%s3 + $0x12c] sm:$0xf]
      %v1457 = vld [vmem:[%s3 + $0x130] sm:$0xf]
      %v1458 = vld [vmem:[%s3 + $0x134] sm:$0xf]
      %v1459 = vld [vmem:[%s3 + $0x138] sm:$0xf]
      %v1460 = vld [vmem:[%s3 + $0x13c] sm:$0xf]
      %v1461 = vunpack.c.l.b16 %v1346
      %v1462 = vunpack.c.l.b16 %v1360
      %v1463 = vunpack.c.l.b16 %v1374
      %v1464 = vunpack.c.l.b16 %v1388
      %v1465 = vunpack.c.l.b16 %v1402
      %v1466 = vunpack.c.l.b16 %v1416
      %v1467 = vunpack.c.l.b16 %v1430
      %v1468 = vunpack.c.l.b16 %v1444
      %v1469 = vpack.c.b16 %v1462, %v1461
      %v1470 = vpack.c.b16 %v1464, %v1463
      %v1471 = vpack.c.b16 %v1466, %v1465
      %v1472 = vpack.c.b16 %v1468, %v1467
      %v1493 = vunpack.c.l.b16 %v1445
      %v1494 = vunpack.c.l.b16 %v1446
      %v1495 = vunpack.c.l.b16 %v1447
      %v1496 = vunpack.c.l.b16 %v1448
      %v1497 = vunpack.c.l.b16 %v1449
      %v1498 = vunpack.c.l.b16 %v1450
      %v1499 = vunpack.c.l.b16 %v1451
      %v1500 = vunpack.c.l.b16 %v1452
      %v1501 = vunpack.c.l.b16 %v1453
      %v1502 = vunpack.c.l.b16 %v1454
      %v1503 = vunpack.c.l.b16 %v1455
      %v1504 = vunpack.c.l.b16 %v1456
      %v1505 = vunpack.c.l.b16 %v1457
      %v1506 = vunpack.c.l.b16 %v1458
      %v1507 = vunpack.c.l.b16 %v1459
      %v1508 = vunpack.c.l.b16 %v1460
      %v1509 = vpack.c.b16 %v1494, %v1493
      %v1510 = vpack.c.b16 %v1496, %v1495
      %v1511 = vpack.c.b16 %v1498, %v1497
      %v1512 = vpack.c.b16 %v1500, %v1499
      %v1513 = vpack.c.b16 %v1502, %v1501
      %v1514 = vpack.c.b16 %v1504, %v1503
      %v1515 = vpack.c.b16 %v1506, %v1505
      %v1516 = vpack.c.b16 %v1508, %v1507
      %1525 = vmatprep.subr.bf16.mxu0 0
      %1526 = vmatpush1.bf16.msra.mxu0 %v1509
      %1527 = vmatprep.subr.bf16.mxu0 0
      %1528 = vmatpush1.bf16.msra.mxu0 %v1510
      %1529 = vmatprep.subr.bf16.mxu0 0
      %1530 = vmatpush1.bf16.msra.mxu0 %v1511
      %1531 = vmatprep.subr.bf16.mxu0 0
      %1532 = vmatpush1.bf16.msra.mxu0 %v1512
      %1533 = vmatprep.subr.bf16.mxu0 0
      %1534 = vmatpush1.bf16.msra.mxu0 %v1513
      %1535 = vmatprep.subr.bf16.mxu0 0
      %1536 = vmatpush1.bf16.msra.mxu0 %v1514
      %1537 = vmatprep.subr.bf16.mxu0 0
      %1538 = vmatpush1.bf16.msra.mxu0 %v1515
      %1539 = vmatprep.subr.bf16.mxu0 0
      %1540 = vmatpush1.bf16.msra.mxu0 %v1516
      %1541 = vmatprep.subr.bf16.mxu0 0
      %1542 = vmatpush1.bf16.msra.mxu0 0
      %1543 = vmatprep.subr.bf16.mxu0 0
      %1544 = vmatpush1.bf16.msra.mxu0 0
      %1545 = vmatprep.subr.bf16.mxu0 0
      %1546 = vmatpush1.bf16.msra.mxu0 0
      %1547 = vmatprep.subr.bf16.mxu0 0
      %1548 = vmatpush1.bf16.msra.mxu0 0
      %1549 = vmatprep.subr.bf16.mxu0 0
      %1550 = vmatpush1.bf16.msra.mxu0 0
      %1551 = vmatprep.subr.bf16.mxu0 0
      %1552 = vmatpush1.bf16.msra.mxu0 0
      %1553 = vmatprep.subr.bf16.mxu0 0
      %1554 = vmatpush1.bf16.msra.mxu0 0
      %1555 = vmatprep.subr.bf16.mxu0 0
      %1556 = vmatpush1.bf16.msra.mxu0 0
      %1557 = vmatprep.mubr.bf16.mxu0 0
      %1558 = vmatmul.mubr.bf16.gmra.mrb[0].mxu0 %v1469
      %v1559 = vpop.f32.mrb[0].mxu0
      %v1560 = vadd.f32 0.0, %v1559
      %v1561 = vpop.f32.mrb[0].mxu0
      %v1562 = vpop.f32.mrb[0].mxu0
      %v1563 = vadd.f32 0.0, %v1562
      %v1564 = vpop.f32.mrb[0].mxu0
      %1565 = vmatprep.mubr.bf16.mxu0 0
      %1566 = vmatmul.mubr.bf16.gmra.mrb[0].mxu0 %v1470
      %v1567 = vpop.f32.mrb[0].mxu0
      %v1568 = vadd.f32 0.0, %v1567
      %v1569 = vpop.f32.mrb[0].mxu0
      %v1570 = vpop.f32.mrb[0].mxu0
      %v1571 = vadd.f32 0.0, %v1570
      %v1572 = vpop.f32.mrb[0].mxu0
      %1573 = vmatprep.mubr.bf16.mxu0 0
      %1574 = vmatmul.mubr.bf16.gmra.mrb[0].mxu0 %v1471
      %v1575 = vpop.f32.mrb[0].mxu0
      %v1576 = vadd.f32 0.0, %v1575
      %v1577 = vpop.f32.mrb[0].mxu0
      %v1578 = vpop.f32.mrb[0].mxu0
      %v1579 = vadd.f32 0.0, %v1578
      %v1580 = vpop.f32.mrb[0].mxu0
      %1581 = vmatprep.mubr.bf16.mxu0 0
      %1582 = vmatmul.mubr.bf16.gmra.mrb[0].mxu0 %v1472
      %v1583 = vpop.f32.mrb[0].mxu0
      %v1584 = vadd.f32 0.0, %v1583
      %v1585 = vpop.f32.mrb[0].mxu0
      %v1586 = vpop.f32.mrb[0].mxu0
      %v1587 = vadd.f32 0.0, %v1586
      %v1588 = vpop.f32.mrb[0].mxu0
      %1589 = vdwg.mxu0
      %v1590 = vadd.f32 %v1309, %v1560
      %v1591 = vadd.f32 %v1310, %v1563
      %v1592 = vadd.f32 %v1311, %v1568
      %v1593 = vadd.f32 %v1312, %v1571
      %v1594 = vadd.f32 %v1313, %v1576
      %v1595 = vadd.f32 %v1314, %v1579
      %v1596 = vadd.f32 %v1315, %v1584
      %v1597 = vadd.f32 %v1316, %v1587
      %v1598 = vld [vmem:[%s303] sm:$0xe]
      %v1599 = vld [vmem:[%s303 + $0x8] sm:$0xe]
      %v1600 = vld [vmem:[%s303 + $0x10] sm:$0xe]
      %v1601 = vld [vmem:[%s303 + $0x18] sm:$0xe]
      %v1602 = vld [vmem:[%s303 + $0x20] sm:$0xe]
      %v1603 = vld [vmem:[%s303 + $0x28] sm:$0xe]
      %v1604 = vld [vmem:[%s303 + $0x30] sm:$0xe]
      %v1605 = vld [vmem:[%s303 + $0x38] sm:$0xe]
      %v1622 = vrot.slane %v1598, 5
      %v1623 = vrot.slane %v1622, 4
      %v1624 = vrot.slane %v1318, 5
      %v1625 = vsel %vm962, %v1623, %v1624
      %v1626 = vrot.slane %v1599, 5
      %v1627 = vrot.slane %v1626, 4
      %v1628 = vrot.slane %v1320, 5
      %v1629 = vsel %vm962, %v1627, %v1628
      %v1630 = vrot.slane %v1600, 5
      %v1631 = vrot.slane %v1630, 4
      %v1632 = vrot.slane %v1322, 5
      %v1633 = vsel %vm962, %v1631, %v1632
      %v1634 = vrot.slane %v1601, 5
      %v1635 = vrot.slane %v1634, 4
      %v1636 = vrot.slane %v1324, 5
      %v1637 = vsel %vm962, %v1635, %v1636
      %v1638 = vrot.slane %v1602, 5
      %v1639 = vrot.slane %v1638, 4
      %v1640 = vrot.slane %v1326, 5
      %v1641 = vsel %vm962, %v1639, %v1640
      %v1642 = vrot.slane %v1603, 5
      %v1643 = vrot.slane %v1642, 4
      %v1644 = vrot.slane %v1328, 5
      %v1645 = vsel %vm962, %v1643, %v1644
      %v1646 = vrot.slane %v1604, 5
      %v1647 = vrot.slane %v1646, 4
      %v1648 = vrot.slane %v1330, 5
      %v1649 = vsel %vm962, %v1647, %v1648
      %v1650 = vrot.slane %v1605, 5
      %v1651 = vrot.slane %v1650, 4
      %v1652 = vrot.slane %v1332, 5
      %v1653 = vsel %vm962, %v1651, %v1652
      %v1654 = vld [vmem:[%s3 + $0x140] sm:$0xf]
      %v1655 = vld [vmem:[%s3 + $0x144] sm:$0xf]
      %v1656 = vld [vmem:[%s3 + $0x148] sm:$0xf]
      %v1657 = vld [vmem:[%s3 + $0x14c] sm:$0xf]
      %v1658 = vld [vmem:[%s3 + $0x150] sm:$0xf]
      %v1659 = vld [vmem:[%s3 + $0x154] sm:$0xf]
      %v1660 = vld [vmem:[%s3 + $0x158] sm:$0xf]
      %v1661 = vld [vmem:[%s3 + $0x15c] sm:$0xf]
      %v1662 = vld [vmem:[%s3 + $0x160] sm:$0xf]
      %v1663 = vld [vmem:[%s3 + $0x164] sm:$0xf]
      %v1664 = vld [vmem:[%s3 + $0x168] sm:$0xf]
      %v1665 = vld [vmem:[%s3 + $0x16c] sm:$0xf]
      %v1666 = vld [vmem:[%s3 + $0x170] sm:$0xf]
      %v1667 = vld [vmem:[%s3 + $0x174] sm:$0xf]
      %v1668 = vld [vmem:[%s3 + $0x178] sm:$0xf]
      %v1669 = vld [vmem:[%s3 + $0x17c] sm:$0xf]
      %v1670 = vunpack.c.l.b16 %v1625
      %v1671 = vunpack.c.l.b16 %v1629
      %v1672 = vunpack.c.l.b16 %v1633
      %v1673 = vunpack.c.l.b16 %v1637
      %v1674 = vunpack.c.l.b16 %v1641
      %v1675 = vunpack.c.l.b16 %v1645
      %v1676 = vunpack.c.l.b16 %v1649
      %v1677 = vunpack.c.l.b16 %v1653
      %v1678 = vpack.c.b16 %v1671, %v1670
      %v1679 = vpack.c.b16 %v1673, %v1672
      %v1680 = vpack.c.b16 %v1675, %v1674
      %v1681 = vpack.c.b16 %v1677, %v1676
      %v1702 = vunpack.c.l.b16 %v1654
      %v1703 = vunpack.c.l.b16 %v1655
      %v1704 = vunpack.c.l.b16 %v1656
      %v1705 = vunpack.c.l.b16 %v1657
      %v1706 = vunpack.c.l.b16 %v1658
      %v1707 = vunpack.c.l.b16 %v1659
      %v1708 = vunpack.c.l.b16 %v1660
      %v1709 = vunpack.c.l.b16 %v1661
      %v1710 = vunpack.c.l.b16 %v1662
      %v1711 = vunpack.c.l.b16 %v1663
      %v1712 = vunpack.c.l.b16 %v1664
      %v1713 = vunpack.c.l.b16 %v1665
      %v1714 = vunpack.c.l.b16 %v1666
      %v1715 = vunpack.c.l.b16 %v1667
      %v1716 = vunpack.c.l.b16 %v1668
      %v1717 = vunpack.c.l.b16 %v1669
      %v1718 = vpack.c.b16 %v1703, %v1702
      %v1719 = vpack.c.b16 %v1705, %v1704
      %v1720 = vpack.c.b16 %v1707, %v1706
      %v1721 = vpack.c.b16 %v1709, %v1708
      %v1722 = vpack.c.b16 %v1711, %v1710
      %v1723 = vpack.c.b16 %v1713, %v1712
      %v1724 = vpack.c.b16 %v1715, %v1714
      %v1725 = vpack.c.b16 %v1717, %v1716
      %1734 = vmatprep.subr.bf16.mxu0 0
      %1735 = vmatpush1.bf16.msra.mxu0 %v1718
      %1736 = vmatprep.subr.bf16.mxu0 0
      %1737 = vmatpush1.bf16.msra.mxu0 %v1719
      %1738 = vmatprep.subr.bf16.mxu0 0
      %1739 = vmatpush1.bf16.msra.mxu0 %v1720
      %1740 = vmatprep.subr.bf16.mxu0 0
      %1741 = vmatpush1.bf16.msra.mxu0 %v1721
      %1742 = vmatprep.subr.bf16.mxu0 0
      %1743 = vmatpush1.bf16.msra.mxu0 %v1722
      %1744 = vmatprep.subr.bf16.mxu0 0
      %1745 = vmatpush1.bf16.msra.mxu0 %v1723
      %1746 = vmatprep.subr.bf16.mxu0 0
      %1747 = vmatpush1.bf16.msra.mxu0 %v1724
      %1748 = vmatprep.subr.bf16.mxu0 0
      %1749 = vmatpush1.bf16.msra.mxu0 %v1725
      %1750 = vmatprep.subr.bf16.mxu0 0
      %1751 = vmatpush1.bf16.msra.mxu0 0
      %1752 = vmatprep.subr.bf16.mxu0 0
      %1753 = vmatpush1.bf16.msra.mxu0 0
      %1754 = vmatprep.subr.bf16.mxu0 0
      %1755 = vmatpush1.bf16.msra.mxu0 0
      %1756 = vmatprep.subr.bf16.mxu0 0
      %1757 = vmatpush1.bf16.msra.mxu0 0
      %1758 = vmatprep.subr.bf16.mxu0 0
      %1759 = vmatpush1.bf16.msra.mxu0 0
      %1760 = vmatprep.subr.bf16.mxu0 0
      %1761 = vmatpush1.bf16.msra.mxu0 0
      %1762 = vmatprep.subr.bf16.mxu0 0
      %1763 = vmatpush1.bf16.msra.mxu0 0
      %1764 = vmatprep.subr.bf16.mxu0 0
      %1765 = vmatpush1.bf16.msra.mxu0 0
      %1766 = vmatprep.mubr.bf16.mxu0 0
      %1767 = vmatmul.mubr.bf16.gmra.mrb[0].mxu0 %v1678
      %v1768 = vpop.f32.mrb[0].mxu0
      %v1769 = vadd.f32 0.0, %v1768
      %v1770 = vpop.f32.mrb[0].mxu0
      %v1771 = vpop.f32.mrb[0].mxu0
      %v1772 = vadd.f32 0.0, %v1771
      %v1773 = vpop.f32.mrb[0].mxu0
      %1774 = vmatprep.mubr.bf16.mxu0 0
      %1775 = vmatmul.mubr.bf16.gmra.mrb[0].mxu0 %v1679
      %v1776 = vpop.f32.mrb[0].mxu0
      %v1777 = vadd.f32 0.0, %v1776
      %v1778 = vpop.f32.mrb[0].mxu0
      %v1779 = vpop.f32.mrb[0].mxu0
      %v1780 = vadd.f32 0.0, %v1779
      %v1781 = vpop.f32.mrb[0].mxu0
      %1782 = vmatprep.mubr.bf16.mxu0 0
      %1783 = vmatmul.mubr.bf16.gmra.mrb[0].mxu0 %v1680
      %v1784 = vpop.f32.mrb[0].mxu0
      %v1785 = vadd.f32 0.0, %v1784
      %v1786 = vpop.f32.mrb[0].mxu0
      %v1787 = vpop.f32.mrb[0].mxu0
      %v1788 = vadd.f32 0.0, %v1787
      %v1789 = vpop.f32.mrb[0].mxu0
      %1790 = vmatprep.mubr.bf16.mxu0 0
      %1791 = vmatmul.mubr.bf16.gmra.mrb[0].mxu0 %v1681
      %v1792 = vpop.f32.mrb[0].mxu0
      %v1793 = vadd.f32 0.0, %v1792
      %v1794 = vpop.f32.mrb[0].mxu0
      %v1795 = vpop.f32.mrb[0].mxu0
      %v1796 = vadd.f32 0.0, %v1795
      %v1797 = vpop.f32.mrb[0].mxu0
      %1798 = vdwg.mxu0
      %v1799 = vadd.f32 %v1590, %v1769
      %v1800 = vadd.f32 %v1591, %v1772
      %v1801 = vadd.f32 %v1592, %v1777
      %v1802 = vadd.f32 %v1593, %v1780
      %v1803 = vadd.f32 %v1594, %v1785
      %v1804 = vadd.f32 %v1595, %v1788
      %v1805 = vadd.f32 %v1596, %v1793
      %v1806 = vadd.f32 %v1597, %v1796
      %s1807 = scalar_lea.vmem [#allocation2], 16
      %v1808 = vld [vmem:[%s1807] sm:$0xf]
      %v1809 = vld [vmem:[%s1807 + $0x8] sm:$0xf]
      %v1810 = vld [vmem:[%s1807 + $0x10] sm:$0xf]
      %v1811 = vld [vmem:[%s1807 + $0x18] sm:$0xf]
      %v1812 = vld [vmem:[%s1807 + $0x20] sm:$0xf]
      %v1813 = vld [vmem:[%s1807 + $0x28] sm:$0xf]
      %v1814 = vld [vmem:[%s1807 + $0x30] sm:$0xf]
      %v1815 = vld [vmem:[%s1807 + $0x38] sm:$0xf]
      %v1816 = vld [vmem:[%s3 + $0x180] sm:$0xf]
      %v1817 = vld [vmem:[%s3 + $0x184] sm:$0xf]
      %v1818 = vld [vmem:[%s3 + $0x188] sm:$0xf]
      %v1819 = vld [vmem:[%s3 + $0x18c] sm:$0xf]
      %v1820 = vld [vmem:[%s3 + $0x190] sm:$0xf]
      %v1821 = vld [vmem:[%s3 + $0x194] sm:$0xf]
      %v1822 = vld [vmem:[%s3 + $0x198] sm:$0xf]
      %v1823 = vld [vmem:[%s3 + $0x19c] sm:$0xf]
      %v1824 = vld [vmem:[%s3 + $0x1a0] sm:$0xf]
      %v1825 = vld [vmem:[%s3 + $0x1a4] sm:$0xf]
      %v1826 = vld [vmem:[%s3 + $0x1a8] sm:$0xf]
      %v1827 = vld [vmem:[%s3 + $0x1ac] sm:$0xf]
      %v1828 = vld [vmem:[%s3 + $0x1b0] sm:$0xf]
      %v1829 = vld [vmem:[%s3 + $0x1b4] sm:$0xf]
      %v1830 = vld [vmem:[%s3 + $0x1b8] sm:$0xf]
      %v1831 = vld [vmem:[%s3 + $0x1bc] sm:$0xf]
      %v1840 = vunpack.c.l.b16 %v1808
      %v1841 = vunpack.c.l.b16 %v1809
      %v1842 = vunpack.c.l.b16 %v1810
      %v1843 = vunpack.c.l.b16 %v1811
      %v1844 = vunpack.c.l.b16 %v1812
      %v1845 = vunpack.c.l.b16 %v1813
      %v1846 = vunpack.c.l.b16 %v1814
      %v1847 = vunpack.c.l.b16 %v1815
      %v1848 = vpack.c.b16 %v1841, %v1840
      %v1849 = vpack.c.b16 %v1843, %v1842
      %v1850 = vpack.c.b16 %v1845, %v1844
      %v1851 = vpack.c.b16 %v1847, %v1846
      %v1872 = vunpack.c.l.b16 %v1816
      %v1873 = vunpack.c.l.b16 %v1817
      %v1874 = vunpack.c.l.b16 %v1818
      %v1875 = vunpack.c.l.b16 %v1819
      %v1876 = vunpack.c.l.b16 %v1820
      %v1877 = vunpack.c.l.b16 %v1821
      %v1878 = vunpack.c.l.b16 %v1822
      %v1879 = vunpack.c.l.b16 %v1823
      %v1880 = vunpack.c.l.b16 %v1824
      %v1881 = vunpack.c.l.b16 %v1825
      %v1882 = vunpack.c.l.b16 %v1826
      %v1883 = vunpack.c.l.b16 %v1827
      %v1884 = vunpack.c.l.b16 %v1828
      %v1885 = vunpack.c.l.b16 %v1829
      %v1886 = vunpack.c.l.b16 %v1830
      %v1887 = vunpack.c.l.b16 %v1831
      %v1888 = vpack.c.b16 %v1873, %v1872
      %v1889 = vpack.c.b16 %v1875, %v1874
      %v1890 = vpack.c.b16 %v1877, %v1876
      %v1891 = vpack.c.b16 %v1879, %v1878
      %v1892 = vpack.c.b16 %v1881, %v1880
      %v1893 = vpack.c.b16 %v1883, %v1882
      %v1894 = vpack.c.b16 %v1885, %v1884
      %v1895 = vpack.c.b16 %v1887, %v1886
      %1904 = vmatprep.subr.bf16.mxu0 0
      %1905 = vmatpush1.bf16.msra.mxu0 %v1888
      %1906 = vmatprep.subr.bf16.mxu0 0
      %1907 = vmatpush1.bf16.msra.mxu0 %v1889
      %1908 = vmatprep.subr.bf16.mxu0 0
      %1909 = vmatpush1.bf16.msra.mxu0 %v1890
      %1910 = vmatprep.subr.bf16.mxu0 0
      %1911 = vmatpush1.bf16.msra.mxu0 %v1891
      %1912 = vmatprep.subr.bf16.mxu0 0
      %1913 = vmatpush1.bf16.msra.mxu0 %v1892
      %1914 = vmatprep.subr.bf16.mxu0 0
      %1915 = vmatpush1.bf16.msra.mxu0 %v1893
      %1916 = vmatprep.subr.bf16.mxu0 0
      %1917 = vmatpush1.bf16.msra.mxu0 %v1894
      %1918 = vmatprep.subr.bf16.mxu0 0
      %1919 = vmatpush1.bf16.msra.mxu0 %v1895
      %1920 = vmatprep.subr.bf16.mxu0 0
      %1921 = vmatpush1.bf16.msra.mxu0 0
      %1922 = vmatprep.subr.bf16.mxu0 0
      %1923 = vmatpush1.bf16.msra.mxu0 0
      %1924 = vmatprep.subr.bf16.mxu0 0
      %1925 = vmatpush1.bf16.msra.mxu0 0
      %1926 = vmatprep.subr.bf16.mxu0 0
      %1927 = vmatpush1.bf16.msra.mxu0 0
      %1928 = vmatprep.subr.bf16.mxu0 0
      %1929 = vmatpush1.bf16.msra.mxu0 0
      %1930 = vmatprep.subr.bf16.mxu0 0
      %1931 = vmatpush1.bf16.msra.mxu0 0
      %1932 = vmatprep.subr.bf16.mxu0 0
      %1933 = vmatpush1.bf16.msra.mxu0 0
      %1934 = vmatprep.subr.bf16.mxu0 0
      %1935 = vmatpush1.bf16.msra.mxu0 0
      %1936 = vmatprep.mubr.bf16.mxu0 0
      %1937 = vmatmul.mubr.bf16.gmra.mrb[0].mxu0 %v1848
      %v1938 = vpop.f32.mrb[0].mxu0
      %v1939 = vadd.f32 0.0, %v1938
      %v1940 = vpop.f32.mrb[0].mxu0
      %v1941 = vpop.f32.mrb[0].mxu0
      %v1942 = vadd.f32 0.0, %v1941
      %v1943 = vpop.f32.mrb[0].mxu0
      %1944 = vmatprep.mubr.bf16.mxu0 0
      %1945 = vmatmul.mubr.bf16.gmra.mrb[0].mxu0 %v1849
      %v1946 = vpop.f32.mrb[0].mxu0
      %v1947 = vadd.f32 0.0, %v1946
      %v1948 = vpop.f32.mrb[0].mxu0
      %v1949 = vpop.f32.mrb[0].mxu0
      %v1950 = vadd.f32 0.0, %v1949
      %v1951 = vpop.f32.mrb[0].mxu0
      %1952 = vmatprep.mubr.bf16.mxu0 0
      %1953 = vmatmul.mubr.bf16.gmra.mrb[0].mxu0 %v1850
      %v1954 = vpop.f32.mrb[0].mxu0
      %v1955 = vadd.f32 0.0, %v1954
      %v1956 = vpop.f32.mrb[0].mxu0
      %v1957 = vpop.f32.mrb[0].mxu0
      %v1958 = vadd.f32 0.0, %v1957
      %v1959 = vpop.f32.mrb[0].mxu0
      %1960 = vmatprep.mubr.bf16.mxu0 0
      %1961 = vmatmul.mubr.bf16.gmra.mrb[0].mxu0 %v1851
      %v1962 = vpop.f32.mrb[0].mxu0
      %v1963 = vadd.f32 0.0, %v1962
      %v1964 = vpop.f32.mrb[0].mxu0
      %v1965 = vpop.f32.mrb[0].mxu0
      %v1966 = vadd.f32 0.0, %v1965
      %v1967 = vpop.f32.mrb[0].mxu0
      %1968 = vdwg.mxu0
      %v1969 = vadd.f32 %v1799, %v1939
      %v1970 = vadd.f32 %v1800, %v1942
      %v1971 = vadd.f32 %v1801, %v1947
      %v1972 = vadd.f32 %v1802, %v1950
      %v1973 = vadd.f32 %v1803, %v1955
      %v1974 = vadd.f32 %v1804, %v1958
      %v1975 = vadd.f32 %v1805, %v1963
      %v1976 = vadd.f32 %v1806, %v1966
      %v1977 = vld [vmem:[%s1807] sm:$0xf]
      %v1978 = vld [vmem:[%s1807 + $0x4] sm:$0x1]
      %v1979 = vld [vmem:[%s1807 + $0x8] sm:$0xf]
      %v1980 = vld [vmem:[%s1807 + $0xc] sm:$0x1]
      %v1981 = vld [vmem:[%s1807 + $0x10] sm:$0xf]
      %v1982 = vld [vmem:[%s1807 + $0x14] sm:$0x1]
      %v1983 = vld [vmem:[%s1807 + $0x18] sm:$0xf]
      %v1984 = vld [vmem:[%s1807 + $0x1c] sm:$0x1]
      %v1985 = vld [vmem:[%s1807 + $0x20] sm:$0xf]
      %v1986 = vld [vmem:[%s1807 + $0x24] sm:$0x1]
      %v1987 = vld [vmem:[%s1807 + $0x28] sm:$0xf]
      %v1988 = vld [vmem:[%s1807 + $0x2c] sm:$0x1]
      %v1989 = vld [vmem:[%s1807 + $0x30] sm:$0xf]
      %v1990 = vld [vmem:[%s1807 + $0x34] sm:$0x1]
      %v1991 = vld [vmem:[%s1807 + $0x38] sm:$0xf]
      %v1992 = vld [vmem:[%s1807 + $0x3c] sm:$0x1]
      %v1994 = vshrl.u32 %v1977, 16
      %v1996 = vrot.slane %v1994, 4
      %v1997 = vshll.u32 %v1977, 16
      %v1999 = vrot.slane %v1997, 5
      %v2000 = vor.u32 %v1996, %v1999
      %v2001 = vrot.slane %v2000, 4
      %v2003 = vshll.u32 %v1978, 16
      %v2005 = vrot.slane %v2003, 5
      %v2006 = vsel %vm541, %v2001, %v2005
      %v2008 = vshrl.u32 %v1979, 16
      %v2010 = vrot.slane %v2008, 4
      %v2011 = vshll.u32 %v1979, 16
      %v2013 = vrot.slane %v2011, 5
      %v2014 = vor.u32 %v2010, %v2013
      %v2015 = vrot.slane %v2014, 4
      %v2017 = vshll.u32 %v1980, 16
      %v2019 = vrot.slane %v2017, 5
      %v2020 = vsel %vm541, %v2015, %v2019
      %v2022 = vshrl.u32 %v1981, 16
      %v2024 = vrot.slane %v2022, 4
      %v2025 = vshll.u32 %v1981, 16
      %v2027 = vrot.slane %v2025, 5
      %v2028 = vor.u32 %v2024, %v2027
      %v2029 = vrot.slane %v2028, 4
      %v2031 = vshll.u32 %v1982, 16
      %v2033 = vrot.slane %v2031, 5
      %v2034 = vsel %vm541, %v2029, %v2033
      %v2036 = vshrl.u32 %v1983, 16
      %v2038 = vrot.slane %v2036, 4
      %v2039 = vshll.u32 %v1983, 16
      %v2041 = vrot.slane %v2039, 5
      %v2042 = vor.u32 %v2038, %v2041
      %v2043 = vrot.slane %v2042, 4
      %v2045 = vshll.u32 %v1984, 16
      %v2047 = vrot.slane %v2045, 5
      %v2048 = vsel %vm541, %v2043, %v2047
      %v2050 = vshrl.u32 %v1985, 16
      %v2052 = vrot.slane %v2050, 4
      %v2053 = vshll.u32 %v1985, 16
      %v2055 = vrot.slane %v2053, 5
      %v2056 = vor.u32 %v2052, %v2055
      %v2057 = vrot.slane %v2056, 4
      %v2059 = vshll.u32 %v1986, 16
      %v2061 = vrot.slane %v2059, 5
      %v2062 = vsel %vm541, %v2057, %v2061
      %v2064 = vshrl.u32 %v1987, 16
      %v2066 = vrot.slane %v2064, 4
      %v2067 = vshll.u32 %v1987, 16
      %v2069 = vrot.slane %v2067, 5
      %v2070 = vor.u32 %v2066, %v2069
      %v2071 = vrot.slane %v2070, 4
      %v2073 = vshll.u32 %v1988, 16
      %v2075 = vrot.slane %v2073, 5
      %v2076 = vsel %vm541, %v2071, %v2075
      %v2078 = vshrl.u32 %v1989, 16
      %v2080 = vrot.slane %v2078, 4
      %v2081 = vshll.u32 %v1989, 16
      %v2083 = vrot.slane %v2081, 5
      %v2084 = vor.u32 %v2080, %v2083
      %v2085 = vrot.slane %v2084, 4
      %v2087 = vshll.u32 %v1990, 16
      %v2089 = vrot.slane %v2087, 5
      %v2090 = vsel %vm541, %v2085, %v2089
      %v2092 = vshrl.u32 %v1991, 16
      %v2094 = vrot.slane %v2092, 4
      %v2095 = vshll.u32 %v1991, 16
      %v2097 = vrot.slane %v2095, 5
      %v2098 = vor.u32 %v2094, %v2097
      %v2099 = vrot.slane %v2098, 4
      %v2101 = vshll.u32 %v1992, 16
      %v2103 = vrot.slane %v2101, 5
      %v2104 = vsel %vm541, %v2099, %v2103
      %v2105 = vld [vmem:[%s3 + $0x1c0] sm:$0xf]
      %v2106 = vld [vmem:[%s3 + $0x1c4] sm:$0xf]
      %v2107 = vld [vmem:[%s3 + $0x1c8] sm:$0xf]
      %v2108 = vld [vmem:[%s3 + $0x1cc] sm:$0xf]
      %v2109 = vld [vmem:[%s3 + $0x1d0] sm:$0xf]
      %v2110 = vld [vmem:[%s3 + $0x1d4] sm:$0xf]
      %v2111 = vld [vmem:[%s3 + $0x1d8] sm:$0xf]
      %v2112 = vld [vmem:[%s3 + $0x1dc] sm:$0xf]
      %v2113 = vld [vmem:[%s3 + $0x1e0] sm:$0xf]
      %v2114 = vld [vmem:[%s3 + $0x1e4] sm:$0xf]
      %v2115 = vld [vmem:[%s3 + $0x1e8] sm:$0xf]
      %v2116 = vld [vmem:[%s3 + $0x1ec] sm:$0xf]
      %v2117 = vld [vmem:[%s3 + $0x1f0] sm:$0xf]
      %v2118 = vld [vmem:[%s3 + $0x1f4] sm:$0xf]
      %v2119 = vld [vmem:[%s3 + $0x1f8] sm:$0xf]
      %v2120 = vld [vmem:[%s3 + $0x1fc] sm:$0xf]
      %v2121 = vunpack.c.l.b16 %v2006
      %v2122 = vunpack.c.l.b16 %v2020
      %v2123 = vunpack.c.l.b16 %v2034
      %v2124 = vunpack.c.l.b16 %v2048
      %v2125 = vunpack.c.l.b16 %v2062
      %v2126 = vunpack.c.l.b16 %v2076
      %v2127 = vunpack.c.l.b16 %v2090
      %v2128 = vunpack.c.l.b16 %v2104
      %v2129 = vpack.c.b16 %v2122, %v2121
      %v2130 = vpack.c.b16 %v2124, %v2123
      %v2131 = vpack.c.b16 %v2126, %v2125
      %v2132 = vpack.c.b16 %v2128, %v2127
      %v2153 = vunpack.c.l.b16 %v2105
      %v2154 = vunpack.c.l.b16 %v2106
      %v2155 = vunpack.c.l.b16 %v2107
      %v2156 = vunpack.c.l.b16 %v2108
      %v2157 = vunpack.c.l.b16 %v2109
      %v2158 = vunpack.c.l.b16 %v2110
      %v2159 = vunpack.c.l.b16 %v2111
      %v2160 = vunpack.c.l.b16 %v2112
      %v2161 = vunpack.c.l.b16 %v2113
      %v2162 = vunpack.c.l.b16 %v2114
      %v2163 = vunpack.c.l.b16 %v2115
      %v2164 = vunpack.c.l.b16 %v2116
      %v2165 = vunpack.c.l.b16 %v2117
      %v2166 = vunpack.c.l.b16 %v2118
      %v2167 = vunpack.c.l.b16 %v2119
      %v2168 = vunpack.c.l.b16 %v2120
      %v2169 = vpack.c.b16 %v2154, %v2153
      %v2170 = vpack.c.b16 %v2156, %v2155
      %v2171 = vpack.c.b16 %v2158, %v2157
      %v2172 = vpack.c.b16 %v2160, %v2159
      %v2173 = vpack.c.b16 %v2162, %v2161
      %v2174 = vpack.c.b16 %v2164, %v2163
      %v2175 = vpack.c.b16 %v2166, %v2165
      %v2176 = vpack.c.b16 %v2168, %v2167
      %2185 = vmatprep.subr.bf16.mxu0 0
      %2186 = vmatpush1.bf16.msra.mxu0 %v2169
      %2187 = vmatprep.subr.bf16.mxu0 0
      %2188 = vmatpush1.bf16.msra.mxu0 %v2170
      %2189 = vmatprep.subr.bf16.mxu0 0
      %2190 = vmatpush1.bf16.msra.mxu0 %v2171
      %2191 = vmatprep.subr.bf16.mxu0 0
      %2192 = vmatpush1.bf16.msra.mxu0 %v2172
      %2193 = vmatprep.subr.bf16.mxu0 0
      %2194 = vmatpush1.bf16.msra.mxu0 %v2173
      %2195 = vmatprep.subr.bf16.mxu0 0
      %2196 = vmatpush1.bf16.msra.mxu0 %v2174
      %2197 = vmatprep.subr.bf16.mxu0 0
      %2198 = vmatpush1.bf16.msra.mxu0 %v2175
      %2199 = vmatprep.subr.bf16.mxu0 0
      %2200 = vmatpush1.bf16.msra.mxu0 %v2176
      %2201 = vmatprep.subr.bf16.mxu0 0
      %2202 = vmatpush1.bf16.msra.mxu0 0
      %2203 = vmatprep.subr.bf16.mxu0 0
      %2204 = vmatpush1.bf16.msra.mxu0 0
      %2205 = vmatprep.subr.bf16.mxu0 0
      %2206 = vmatpush1.bf16.msra.mxu0 0
      %2207 = vmatprep.subr.bf16.mxu0 0
      %2208 = vmatpush1.bf16.msra.mxu0 0
      %2209 = vmatprep.subr.bf16.mxu0 0
      %2210 = vmatpush1.bf16.msra.mxu0 0
      %2211 = vmatprep.subr.bf16.mxu0 0
      %2212 = vmatpush1.bf16.msra.mxu0 0
      %2213 = vmatprep.subr.bf16.mxu0 0
      %2214 = vmatpush1.bf16.msra.mxu0 0
      %2215 = vmatprep.subr.bf16.mxu0 0
      %2216 = vmatpush1.bf16.msra.mxu0 0
      %2217 = vmatprep.mubr.bf16.mxu0 0
      %2218 = vmatmul.mubr.bf16.gmra.mrb[0].mxu0 %v2129
      %v2219 = vpop.f32.mrb[0].mxu0
      %v2220 = vadd.f32 0.0, %v2219
      %v2221 = vpop.f32.mrb[0].mxu0
      %v2222 = vpop.f32.mrb[0].mxu0
      %v2223 = vadd.f32 0.0, %v2222
      %v2224 = vpop.f32.mrb[0].mxu0
      %2225 = vmatprep.mubr.bf16.mxu0 0
      %2226 = vmatmul.mubr.bf16.gmra.mrb[0].mxu0 %v2130
      %v2227 = vpop.f32.mrb[0].mxu0
      %v2228 = vadd.f32 0.0, %v2227
      %v2229 = vpop.f32.mrb[0].mxu0
      %v2230 = vpop.f32.mrb[0].mxu0
      %v2231 = vadd.f32 0.0, %v2230
      %v2232 = vpop.f32.mrb[0].mxu0
      %2233 = vmatprep.mubr.bf16.mxu0 0
      %2234 = vmatmul.mubr.bf16.gmra.mrb[0].mxu0 %v2131
      %v2235 = vpop.f32.mrb[0].mxu0
      %v2236 = vadd.f32 0.0, %v2235
      %v2237 = vpop.f32.mrb[0].mxu0
      %v2238 = vpop.f32.mrb[0].mxu0
      %v2239 = vadd.f32 0.0, %v2238
      %v2240 = vpop.f32.mrb[0].mxu0
      %2241 = vmatprep.mubr.bf16.mxu0 0
      %2242 = vmatmul.mubr.bf16.gmra.mrb[0].mxu0 %v2132
      %v2243 = vpop.f32.mrb[0].mxu0
      %v2244 = vadd.f32 0.0, %v2243
      %v2245 = vpop.f32.mrb[0].mxu0
      %v2246 = vpop.f32.mrb[0].mxu0
      %v2247 = vadd.f32 0.0, %v2246
      %v2248 = vpop.f32.mrb[0].mxu0
      %2249 = vdwg.mxu0
      %v2250 = vadd.f32 %v1969, %v2220
      %v2251 = vadd.f32 %v1970, %v2223
      %v2252 = vadd.f32 %v1971, %v2228
      %v2253 = vadd.f32 %v1972, %v2231
      %v2254 = vadd.f32 %v1973, %v2236
      %v2255 = vadd.f32 %v1974, %v2239
      %v2256 = vadd.f32 %v1975, %v2244
      %v2257 = vadd.f32 %v1976, %v2247
      %v2258 = vld [vmem:[%s1807] sm:$0xe]
      %v2259 = vld [vmem:[%s1807 + $0x8] sm:$0xe]
      %v2260 = vld [vmem:[%s1807 + $0x10] sm:$0xe]
      %v2261 = vld [vmem:[%s1807 + $0x18] sm:$0xe]
      %v2262 = vld [vmem:[%s1807 + $0x20] sm:$0xe]
      %v2263 = vld [vmem:[%s1807 + $0x28] sm:$0xe]
      %v2264 = vld [vmem:[%s1807 + $0x30] sm:$0xe]
      %v2265 = vld [vmem:[%s1807 + $0x38] sm:$0xe]
      %v2282 = vrot.slane %v2258, 5
      %v2283 = vrot.slane %v2282, 4
      %v2284 = vrot.slane %v1978, 5
      %v2285 = vsel %vm962, %v2283, %v2284
      %v2286 = vrot.slane %v2259, 5
      %v2287 = vrot.slane %v2286, 4
      %v2288 = vrot.slane %v1980, 5
      %v2289 = vsel %vm962, %v2287, %v2288
      %v2290 = vrot.slane %v2260, 5
      %v2291 = vrot.slane %v2290, 4
      %v2292 = vrot.slane %v1982, 5
      %v2293 = vsel %vm962, %v2291, %v2292
      %v2294 = vrot.slane %v2261, 5
      %v2295 = vrot.slane %v2294, 4
      %v2296 = vrot.slane %v1984, 5
      %v2297 = vsel %vm962, %v2295, %v2296
      %v2298 = vrot.slane %v2262, 5
      %v2299 = vrot.slane %v2298, 4
      %v2300 = vrot.slane %v1986, 5
      %v2301 = vsel %vm962, %v2299, %v2300
      %v2302 = vrot.slane %v2263, 5
      %v2303 = vrot.slane %v2302, 4
      %v2304 = vrot.slane %v1988, 5
      %v2305 = vsel %vm962, %v2303, %v2304
      %v2306 = vrot.slane %v2264, 5
      %v2307 = vrot.slane %v2306, 4
      %v2308 = vrot.slane %v1990, 5
      %v2309 = vsel %vm962, %v2307, %v2308
      %v2310 = vrot.slane %v2265, 5
      %v2311 = vrot.slane %v2310, 4
      %v2312 = vrot.slane %v1992, 5
      %v2313 = vsel %vm962, %v2311, %v2312
      %v2314 = vld [vmem:[%s3 + $0x200] sm:$0xf]
      %v2315 = vld [vmem:[%s3 + $0x204] sm:$0xf]
      %v2316 = vld [vmem:[%s3 + $0x208] sm:$0xf]
      %v2317 = vld [vmem:[%s3 + $0x20c] sm:$0xf]
      %v2318 = vld [vmem:[%s3 + $0x210] sm:$0xf]
      %v2319 = vld [vmem:[%s3 + $0x214] sm:$0xf]
      %v2320 = vld [vmem:[%s3 + $0x218] sm:$0xf]
      %v2321 = vld [vmem:[%s3 + $0x21c] sm:$0xf]
      %v2322 = vld [vmem:[%s3 + $0x220] sm:$0xf]
      %v2323 = vld [vmem:[%s3 + $0x224] sm:$0xf]
      %v2324 = vld [vmem:[%s3 + $0x228] sm:$0xf]
      %v2325 = vld [vmem:[%s3 + $0x22c] sm:$0xf]
      %v2326 = vld [vmem:[%s3 + $0x230] sm:$0xf]
      %v2327 = vld [vmem:[%s3 + $0x234] sm:$0xf]
      %v2328 = vld [vmem:[%s3 + $0x238] sm:$0xf]
      %v2329 = vld [vmem:[%s3 + $0x23c] sm:$0xf]
      %v2330 = vunpack.c.l.b16 %v2285
      %v2331 = vunpack.c.l.b16 %v2289
      %v2332 = vunpack.c.l.b16 %v2293
      %v2333 = vunpack.c.l.b16 %v2297
      %v2334 = vunpack.c.l.b16 %v2301
      %v2335 = vunpack.c.l.b16 %v2305
      %v2336 = vunpack.c.l.b16 %v2309
      %v2337 = vunpack.c.l.b16 %v2313
      %v2338 = vpack.c.b16 %v2331, %v2330
      %v2339 = vpack.c.b16 %v2333, %v2332
      %v2340 = vpack.c.b16 %v2335, %v2334
      %v2341 = vpack.c.b16 %v2337, %v2336
      %v2362 = vunpack.c.l.b16 %v2314
      %v2363 = vunpack.c.l.b16 %v2315
      %v2364 = vunpack.c.l.b16 %v2316
      %v2365 = vunpack.c.l.b16 %v2317
      %v2366 = vunpack.c.l.b16 %v2318
      %v2367 = vunpack.c.l.b16 %v2319
      %v2368 = vunpack.c.l.b16 %v2320
      %v2369 = vunpack.c.l.b16 %v2321
      %v2370 = vunpack.c.l.b16 %v2322
      %v2371 = vunpack.c.l.b16 %v2323
      %v2372 = vunpack.c.l.b16 %v2324
      %v2373 = vunpack.c.l.b16 %v2325
      %v2374 = vunpack.c.l.b16 %v2326
      %v2375 = vunpack.c.l.b16 %v2327
      %v2376 = vunpack.c.l.b16 %v2328
      %v2377 = vunpack.c.l.b16 %v2329
      %v2378 = vpack.c.b16 %v2363, %v2362
      %v2379 = vpack.c.b16 %v2365, %v2364
      %v2380 = vpack.c.b16 %v2367, %v2366
      %v2381 = vpack.c.b16 %v2369, %v2368
      %v2382 = vpack.c.b16 %v2371, %v2370
      %v2383 = vpack.c.b16 %v2373, %v2372
      %v2384 = vpack.c.b16 %v2375, %v2374
      %v2385 = vpack.c.b16 %v2377, %v2376
      %2394 = vmatprep.subr.bf16.mxu0 0
      %2395 = vmatpush1.bf16.msra.mxu0 %v2378
      %2396 = vmatprep.subr.bf16.mxu0 0
      %2397 = vmatpush1.bf16.msra.mxu0 %v2379
      %2398 = vmatprep.subr.bf16.mxu0 0
      %2399 = vmatpush1.bf16.msra.mxu0 %v2380
      %2400 = vmatprep.subr.bf16.mxu0 0
      %2401 = vmatpush1.bf16.msra.mxu0 %v2381
      %2402 = vmatprep.subr.bf16.mxu0 0
      %2403 = vmatpush1.bf16.msra.mxu0 %v2382
      %2404 = vmatprep.subr.bf16.mxu0 0
      %2405 = vmatpush1.bf16.msra.mxu0 %v2383
      %2406 = vmatprep.subr.bf16.mxu0 0
      %2407 = vmatpush1.bf16.msra.mxu0 %v2384
      %2408 = vmatprep.subr.bf16.mxu0 0
      %2409 = vmatpush1.bf16.msra.mxu0 %v2385
      %2410 = vmatprep.subr.bf16.mxu0 0
      %2411 = vmatpush1.bf16.msra.mxu0 0
      %2412 = vmatprep.subr.bf16.mxu0 0
      %2413 = vmatpush1.bf16.msra.mxu0 0
      %2414 = vmatprep.subr.bf16.mxu0 0
      %2415 = vmatpush1.bf16.msra.mxu0 0
      %2416 = vmatprep.subr.bf16.mxu0 0
      %2417 = vmatpush1.bf16.msra.mxu0 0
      %2418 = vmatprep.subr.bf16.mxu0 0
      %2419 = vmatpush1.bf16.msra.mxu0 0
      %2420 = vmatprep.subr.bf16.mxu0 0
      %2421 = vmatpush1.bf16.msra.mxu0 0
      %2422 = vmatprep.subr.bf16.mxu0 0
      %2423 = vmatpush1.bf16.msra.mxu0 0
      %2424 = vmatprep.subr.bf16.mxu0 0
      %2425 = vmatpush1.bf16.msra.mxu0 0
      %2426 = vmatprep.mubr.bf16.mxu0 0
      %2427 = vmatmul.mubr.bf16.gmra.mrb[0].mxu0 %v2338
      %v2428 = vpop.f32.mrb[0].mxu0
      %v2429 = vadd.f32 0.0, %v2428
      %v2430 = vpop.f32.mrb[0].mxu0
      %v2431 = vpop.f32.mrb[0].mxu0
      %v2432 = vadd.f32 0.0, %v2431
      %v2433 = vpop.f32.mrb[0].mxu0
      %2434 = vmatprep.mubr.bf16.mxu0 0
      %2435 = vmatmul.mubr.bf16.gmra.mrb[0].mxu0 %v2339
      %v2436 = vpop.f32.mrb[0].mxu0
      %v2437 = vadd.f32 0.0, %v2436
      %v2438 = vpop.f32.mrb[0].mxu0
      %v2439 = vpop.f32.mrb[0].mxu0
      %v2440 = vadd.f32 0.0, %v2439
      %v2441 = vpop.f32.mrb[0].mxu0
      %2442 = vmatprep.mubr.bf16.mxu0 0
      %2443 = vmatmul.mubr.bf16.gmra.mrb[0].mxu0 %v2340
      %v2444 = vpop.f32.mrb[0].mxu0
      %v2445 = vadd.f32 0.0, %v2444
      %v2446 = vpop.f32.mrb[0].mxu0
      %v2447 = vpop.f32.mrb[0].mxu0
      %v2448 = vadd.f32 0.0, %v2447
      %v2449 = vpop.f32.mrb[0].mxu0
      %2450 = vmatprep.mubr.bf16.mxu0 0
      %2451 = vmatmul.mubr.bf16.gmra.mrb[0].mxu0 %v2341
      %v2452 = vpop.f32.mrb[0].mxu0
      %v2453 = vadd.f32 0.0, %v2452
      %v2454 = vpop.f32.mrb[0].mxu0
      %v2455 = vpop.f32.mrb[0].mxu0
      %v2456 = vadd.f32 0.0, %v2455
      %v2457 = vpop.f32.mrb[0].mxu0
      %2458 = vdwg.mxu0
      %v2459 = vadd.f32 %v2250, %v2429
      %v2460 = vadd.f32 %v2251, %v2432
      %v2461 = vadd.f32 %v2252, %v2437
      %v2462 = vadd.f32 %v2253, %v2440
      %v2463 = vadd.f32 %v2254, %v2445
      %v2464 = vadd.f32 %v2255, %v2448
      %v2465 = vadd.f32 %v2256, %v2453
      %v2466 = vadd.f32 %v2257, %v2456
      %v2467 = vpack.c.bf16 %v2460, %v2459
      %v2468 = vpack.c.bf16 %v2462, %v2461
      %v2469 = vpack.c.bf16 %v2464, %v2463
      %v2470 = vpack.c.bf16 %v2466, %v2465
      %v2475 = vunpack.c.l.b16 %v2467
      %v2476 = vunpack.c.h.b16 %v2467
      %v2477 = vunpack.c.l.b16 %v2468
      %v2478 = vunpack.c.h.b16 %v2468
      %v2479 = vunpack.c.l.b16 %v2469
      %v2480 = vunpack.c.h.b16 %v2469
      %v2481 = vunpack.c.l.b16 %v2470
      %v2482 = vunpack.c.h.b16 %v2470
      %v2483 = vpack.c.b16 %v2475, %v2475
      %v2484 = vpack.c.b16 %v2476, %v2476
      %v2485 = vpack.c.b16 %v2477, %v2477
      %v2486 = vpack.c.b16 %v2478, %v2478
      %v2487 = vpack.c.b16 %v2479, %v2479
      %v2488 = vpack.c.b16 %v2480, %v2480
      %v2489 = vpack.c.b16 %v2481, %v2481
      %v2490 = vpack.c.b16 %v2482, %v2482
      %2499 = vst [vmem:[%s233] sm:$0xf] %v2483
      %2500 = vst [vmem:[%s233 + $0x4] sm:$0xf] %v2484
      %2501 = vst [vmem:[%s233 + $0x8] sm:$0xf] %v2485
      %2502 = vst [vmem:[%s233 + $0xc] sm:$0xf] %v2486
      %2503 = vst [vmem:[%s233 + $0x10] sm:$0xf] %v2487
      %2504 = vst [vmem:[%s233 + $0x14] sm:$0xf] %v2488
      %2505 = vst [vmem:[%s233 + $0x18] sm:$0xf] %v2489
      %2506 = vst [vmem:[%s233 + $0x1c] sm:$0xf] %v2490
      %v2507 = vadd.f32 %v2459, %v2460
      %v2508 = vadd.f32 %v2507, %v2461
      %v2509 = vadd.f32 %v2508, %v2462
      %v2510 = vadd.f32 %v2509, %v2463
      %v2511 = vadd.f32 %v2510, %v2464
      %v2512 = vadd.f32 %v2511, %v2465
      %v2513 = vadd.f32 %v2512, %v2466
      %v2514 = vrot.slane %v2513, 4
      %v2515 = vadd.f32 %v2513, %v2514
      %v2516 = vrot.slane %v2515, 2
      %v2517 = vadd.f32 %v2515, %v2516
      %v2518 = vrot.slane %v2517, 1
      %v2519 = vadd.f32 %v2517, %v2518
      %v2520 = vmul.f32 %v2459, %v2459
      %v2521 = vmul.f32 %v2460, %v2460
      %v2522 = vmul.f32 %v2461, %v2461
      %v2523 = vmul.f32 %v2462, %v2462
      %v2524 = vmul.f32 %v2463, %v2463
      %v2525 = vmul.f32 %v2464, %v2464
      %v2526 = vmul.f32 %v2465, %v2465
      %v2527 = vmul.f32 %v2466, %v2466
      %v2528 = vadd.f32 %v2520, %v2521
      %v2529 = vadd.f32 %v2528, %v2522
      %v2530 = vadd.f32 %v2529, %v2523
      %v2531 = vadd.f32 %v2530, %v2524
      %v2532 = vadd.f32 %v2531, %v2525
      %v2533 = vadd.f32 %v2532, %v2526
      %v2534 = vadd.f32 %v2533, %v2527
      %v2535 = vrot.slane %v2534, 4
      %v2536 = vadd.f32 %v2534, %v2535
      %v2537 = vrot.slane %v2536, 2
      %v2538 = vadd.f32 %v2536, %v2537
      %v2539 = vrot.slane %v2538, 1
      %v2540 = vadd.f32 %v2538, %v2539
      %vm2541 = vcmask 1040384
      %v2542 = vsel %vm2541, %v2519, %v2540
      %2543 = vst [vmem:[%s238] sm:$0x3] %v2542
      %s2544 = smul.u32 8, %s17
      %p2545 = scmp.lt.s32.totalorder %s2544, 63
      %s2546 = scalar_select %p2545, %s2544, 63
      %s2547 = smul.addr %s2546, 4
      %s2548 = scalar_lea.vmem %s4, %s2547
      %p2549 = scmp.lt.s32.totalorder %s17, 7
      %s2550 = scalar_select %p2549, %s17, 7
      %s2551 = smul.addr %s2550, 2
      %s2552 = scalar_lea.vmem %s5, %s2551
      // Predicated region
      $region37: #{bottleneck_forward.6} parent=35 // pred_check
        %p2553 = pneg %p124
      $region38: #{bottleneck_forward.6} parent=35 // pred_check_branch
        %2555 = sbr.rel (%p2553) target = $region40
      $region39: #{bottleneck_forward.6} parent=35 // pred_region
        %s2556 = smul.u32 8, %s17
      $region40: #{bottleneck_forward.6} parent=35 // pred_fallthru
        _
      // Predicated region
      $region41: #{bottleneck_forward.6} parent=35 // pred_check
        %p2557 = pneg %p150
      $region42: #{bottleneck_forward.6} parent=35 // pred_check_branch
        %2559 = sbr.rel (%p2557) target = $region44
      $region43: #{bottleneck_forward.6} parent=35 // pred_region
        _
      $region44: #{bottleneck_forward.6} parent=35 // pred_fallthru
        _
    $region36: #{bottleneck_forward.6} parent=5 // pred_fallthru
      _
    %p2560 = scmp.le.s32.totalorder 2, %s12
    // Predicated region
    $region45: #{bottleneck_forward.6} parent=5 // pred_check
      %p2561 = pneg %p2560
    $region46: #{bottleneck_forward.6} parent=5 // pred_check_branch
      %2563 = sbr.rel (%p2561) target = $region48
    $region47: #{bottleneck_forward.6} parent=5 // pred_region
      %s2564 = ssub.s32 %s12, 2
      // Predicated region
      $region49: #{bottleneck_forward.6} parent=47 // pred_check
        %p2565 = pneg %p130
      $region50: #{bottleneck_forward.6} parent=47 // pred_check_branch
        %2567 = sbr.rel (%p2565) target = $region52
      $region51: #{bottleneck_forward.6} parent=47 // pred_region
        %s2568 = smul.u32 8, %s18
        %p2569 = scmp.lt.s32.totalorder %s2568, 63
        %s2570 = scalar_select %p2569, %s2568, 63
        %s2571 = smul.addr %s2570, 4
        %s2572 = scalar_lea.vmem %s4, %s2571
      $region52: #{bottleneck_forward.6} parent=47 // pred_fallthru
        _
      // Predicated region
      $region53: #{bottleneck_forward.6} parent=47 // pred_check
        %p2573 = pneg %p156
      $region54: #{bottleneck_forward.6} parent=47 // pred_check_branch
        %2575 = sbr.rel (%p2573) target = $region56
      $region55: #{bottleneck_forward.6} parent=47 // pred_region
        %p2576 = scmp.lt.s32.totalorder %s18, 7
        %s2577 = scalar_select %p2576, %s18, 7
        %s2578 = smul.addr %s2577, 2
        %s2579 = scalar_lea.vmem %s5, %s2578
      $region56: #{bottleneck_forward.6} parent=47 // pred_fallthru
        _
    $region48: #{bottleneck_forward.6} parent=5 // pred_fallthru
      _
  $region6: #{bottleneck_forward.6} parent=0 // loop_footer
    %s16 = sadd.s32 1, %s12
  $region7: #{bottleneck_forward.6} parent=0 // loop_footer_branch
    %11 = sbr.rel target = $region3
  $region8: #{bottleneck_forward.6} parent=0 // loop_exit
    _

// kernel: bottleneck_forward.9
$region0: #{bottleneck_forward.9}
  #allocation0 [shape = 'u32[]', space=smem, size = 0x4, offset = 0x4, fixed_abs, tag = 'smem constant byte address 0x4 - core index']
  #allocation1 [shape = 'u32[144,128]{1,0:T(1,128)}', space=vmem, size = 0x12000, scoped, tag = 'internal scratch']
  %s0 = inlined_call_operand.vmem [shape: bf16[512,128], index: 0, kind: input, shape index: {}]
  %s1 = inlined_call_operand.vmem [shape: bf16[512,128], index: 1, kind: input, shape index: {}]
  %s2 = inlined_call_operand.vmem [shape: f32[1,128], index: 2, kind: input, shape index: {}]
  %s3 = inlined_call_operand.vmem [shape: f32[1,128], index: 3, kind: input, shape index: {}]
  %s4 = inlined_call_operand.hbm [shape: f32[512,128], index: 4, kind: output, shape index: {}]
  %s5 = sld [smem:[#allocation0]]
  $region26: #{bottleneck_forward.9} parent=0
    _
  %s7 = ssub.s32 1, %s5
  %s8 = scalar_select 0, %s7, %s5
  $region1: #{bottleneck_forward.9} parent=0
    #allocation2 [shape = 'u8[262144]{0}', space=vmem, size = 0x40000, scoped, tag = 'output window, operand 0, single buffered']
    #allocation3 [shape = 's32[1]{0}', space=sflag, size = 0x4, scoped, tag = 'scoped memory for bottleneck_forward.9']
    %9 = vsyncpa [#allocation3], 0
    // Predicated region
    $region2: #{bottleneck_forward.9} parent=1 // pred_check
      _
    $region3: #{bottleneck_forward.9} parent=1 // pred_check_branch
      %11 = sbr.rel (0) target = $region5
    $region4: #{bottleneck_forward.9} parent=1 // pred_region
      _
    $region5: #{bottleneck_forward.9} parent=1 // pred_fallthru
      _
    // Predicated region
    $region6: #{bottleneck_forward.9} parent=1 // pred_check
      _
    $region7: #{bottleneck_forward.9} parent=1 // pred_check_branch
      %13 = sbr.rel (0) target = $region9
    $region8: #{bottleneck_forward.9} parent=1 // pred_region
      _
    $region9: #{bottleneck_forward.9} parent=1 // pred_fallthru
      _
    // Predicated region
    $region10: #{bottleneck_forward.9} parent=1 // pred_check
      _
    $region11: #{bottleneck_forward.9} parent=1 // pred_check_branch
      %15 = sbr.rel (0) target = $region13
    $region12: #{bottleneck_forward.9} parent=1 // pred_region
      _
    $region13: #{bottleneck_forward.9} parent=1 // pred_fallthru
      _
    // Predicated region
    $region14: #{bottleneck_forward.9} parent=1 // pred_check
      _
    $region15: #{bottleneck_forward.9} parent=1 // pred_check_branch
      %17 = sbr.rel (0) target = $region17
    $region16: #{bottleneck_forward.9} parent=1 // pred_region
      _
    $region17: #{bottleneck_forward.9} parent=1 // pred_fallthru
      _
    %v18 = vld [vmem:[%s0] sm:$0xf]
    %v19 = vld [vmem:[%s0 + $0x4] sm:$0xf]
    %v20 = vld [vmem:[%s0 + $0x8] sm:$0xf]
    %v21 = vld [vmem:[%s0 + $0xc] sm:$0xf]
    %v22 = vld [vmem:[%s0 + $0x10] sm:$0xf]
    %v23 = vld [vmem:[%s0 + $0x14] sm:$0xf]
    %v24 = vld [vmem:[%s0 + $0x18] sm:$0xf]
    %v25 = vld [vmem:[%s0 + $0x1c] sm:$0xf]
    %v26 = vld [vmem:[%s0 + $0x20] sm:$0xf]
    %v27 = vld [vmem:[%s0 + $0x24] sm:$0xf]
    %v28 = vld [vmem:[%s0 + $0x28] sm:$0xf]
    %v29 = vld [vmem:[%s0 + $0x2c] sm:$0xf]
    %v30 = vld [vmem:[%s0 + $0x30] sm:$0xf]
    %v31 = vld [vmem:[%s0 + $0x34] sm:$0xf]
    %v32 = vld [vmem:[%s0 + $0x38] sm:$0xf]
    %v33 = vld [vmem:[%s0 + $0x3c] sm:$0xf]
    %v34 = vld [vmem:[%s0 + $0x40] sm:$0xf]
    %v35 = vld [vmem:[%s0 + $0x44] sm:$0xf]
    %v36 = vld [vmem:[%s0 + $0x48] sm:$0xf]
    %v37 = vld [vmem:[%s0 + $0x4c] sm:$0xf]
    %v38 = vld [vmem:[%s0 + $0x50] sm:$0xf]
    %v39 = vld [vmem:[%s0 + $0x54] sm:$0xf]
    %v40 = vld [vmem:[%s0 + $0x58] sm:$0xf]
    %v41 = vld [vmem:[%s0 + $0x5c] sm:$0xf]
    %v42 = vld [vmem:[%s0 + $0x60] sm:$0xf]
    %v43 = vld [vmem:[%s0 + $0x64] sm:$0xf]
    %v44 = vld [vmem:[%s0 + $0x68] sm:$0xf]
    %v45 = vld [vmem:[%s0 + $0x6c] sm:$0xf]
    %v46 = vld [vmem:[%s0 + $0x70] sm:$0xf]
    %v47 = vld [vmem:[%s0 + $0x74] sm:$0xf]
    %v48 = vld [vmem:[%s0 + $0x78] sm:$0xf]
    %v49 = vld [vmem:[%s0 + $0x7c] sm:$0xf]
    %v50 = vld [vmem:[%s0 + $0x80] sm:$0xf]
    %v51 = vld [vmem:[%s0 + $0x84] sm:$0xf]
    %v52 = vld [vmem:[%s0 + $0x88] sm:$0xf]
    %v53 = vld [vmem:[%s0 + $0x8c] sm:$0xf]
    %v54 = vld [vmem:[%s0 + $0x90] sm:$0xf]
    %v55 = vld [vmem:[%s0 + $0x94] sm:$0xf]
    %v56 = vld [vmem:[%s0 + $0x98] sm:$0xf]
    %v57 = vld [vmem:[%s0 + $0x9c] sm:$0xf]
    %v58 = vld [vmem:[%s0 + $0xa0] sm:$0xf]
    %v59 = vld [vmem:[%s0 + $0xa4] sm:$0xf]
    %v60 = vld [vmem:[%s0 + $0xa8] sm:$0xf]
    %v61 = vld [vmem:[%s0 + $0xac] sm:$0xf]
    %v62 = vld [vmem:[%s0 + $0xb0] sm:$0xf]
    %v63 = vld [vmem:[%s0 + $0xb4] sm:$0xf]
    %v64 = vld [vmem:[%s0 + $0xb8] sm:$0xf]
    %v65 = vld [vmem:[%s0 + $0xbc] sm:$0xf]
    %v66 = vld [vmem:[%s0 + $0xc0] sm:$0xf]
    %v67 = vld [vmem:[%s0 + $0xc4] sm:$0xf]
    %v68 = vld [vmem:[%s0 + $0xc8] sm:$0xf]
    %v69 = vld [vmem:[%s0 + $0xcc] sm:$0xf]
    %v70 = vld [vmem:[%s0 + $0xd0] sm:$0xf]
    %v71 = vld [vmem:[%s0 + $0xd4] sm:$0xf]
    %v72 = vld [vmem:[%s0 + $0xd8] sm:$0xf]
    %v73 = vld [vmem:[%s0 + $0xdc] sm:$0xf]
    %v74 = vld [vmem:[%s0 + $0xe0] sm:$0xf]
    %v75 = vld [vmem:[%s0 + $0xe4] sm:$0xf]
    %v76 = vld [vmem:[%s0 + $0xe8] sm:$0xf]
    %v77 = vld [vmem:[%s0 + $0xec] sm:$0xf]
    %v78 = vld [vmem:[%s0 + $0xf0] sm:$0xf]
    %v79 = vld [vmem:[%s0 + $0xf4] sm:$0xf]
    %v80 = vld [vmem:[%s0 + $0xf8] sm:$0xf]
    %v81 = vld [vmem:[%s0 + $0xfc] sm:$0xf]
    %v82 = vunpack.c.l.bf16 %v18
    %v83 = vunpack.c.l.bf16 %v19
    %v84 = vunpack.c.l.bf16 %v20
    %v85 = vunpack.c.l.bf16 %v21
    %v86 = vunpack.c.l.bf16 %v22
    %v87 = vunpack.c.l.bf16 %v23
    %v88 = vunpack.c.l.bf16 %v24
    %v89 = vunpack.c.l.bf16 %v25
    %v90 = vunpack.c.l.bf16 %v26
    %v91 = vunpack.c.l.bf16 %v27
    %v92 = vunpack.c.l.bf16 %v28
    %v93 = vunpack.c.l.bf16 %v29
    %v94 = vunpack.c.l.bf16 %v30
    %v95 = vunpack.c.l.bf16 %v31
    %v96 = vunpack.c.l.bf16 %v32
    %v97 = vunpack.c.l.bf16 %v33
    %v98 = vunpack.c.l.bf16 %v34
    %v99 = vunpack.c.l.bf16 %v35
    %v100 = vunpack.c.l.bf16 %v36
    %v101 = vunpack.c.l.bf16 %v37
    %v102 = vunpack.c.l.bf16 %v38
    %v103 = vunpack.c.l.bf16 %v39
    %v104 = vunpack.c.l.bf16 %v40
    %v105 = vunpack.c.l.bf16 %v41
    %v106 = vunpack.c.l.bf16 %v42
    %v107 = vunpack.c.l.bf16 %v43
    %v108 = vunpack.c.l.bf16 %v44
    %v109 = vunpack.c.l.bf16 %v45
    %v110 = vunpack.c.l.bf16 %v46
    %v111 = vunpack.c.l.bf16 %v47
    %v112 = vunpack.c.l.bf16 %v48
    %v113 = vunpack.c.l.bf16 %v49
    %v114 = vunpack.c.l.bf16 %v50
    %v115 = vunpack.c.l.bf16 %v51
    %v116 = vunpack.c.l.bf16 %v52
    %v117 = vunpack.c.l.bf16 %v53
    %v118 = vunpack.c.l.bf16 %v54
    %v119 = vunpack.c.l.bf16 %v55
    %v120 = vunpack.c.l.bf16 %v56
    %v121 = vunpack.c.l.bf16 %v57
    %v122 = vunpack.c.l.bf16 %v58
    %v123 = vunpack.c.l.bf16 %v59
    %v124 = vunpack.c.l.bf16 %v60
    %v125 = vunpack.c.l.bf16 %v61
    %v126 = vunpack.c.l.bf16 %v62
    %v127 = vunpack.c.l.bf16 %v63
    %v128 = vunpack.c.l.bf16 %v64
    %v129 = vunpack.c.l.bf16 %v65
    %v130 = vunpack.c.l.bf16 %v66
    %v131 = vunpack.c.l.bf16 %v67
    %v132 = vunpack.c.l.bf16 %v68
    %v133 = vunpack.c.l.bf16 %v69
    %v134 = vunpack.c.l.bf16 %v70
    %v135 = vunpack.c.l.bf16 %v71
    %v136 = vunpack.c.l.bf16 %v72
    %v137 = vunpack.c.l.bf16 %v73
    %v138 = vunpack.c.l.bf16 %v74
    %v139 = vunpack.c.l.bf16 %v75
    %v140 = vunpack.c.l.bf16 %v76
    %v141 = vunpack.c.l.bf16 %v77
    %v142 = vunpack.c.l.bf16 %v78
    %v143 = vunpack.c.l.bf16 %v79
    %v144 = vunpack.c.l.bf16 %v80
    %v145 = vunpack.c.l.bf16 %v81
    %v146 = vld [vmem:[%s2] sm:$0x1]
    %v148 = vlaneseq
    %v149 = vshrl.u32 %v148, 7
    %v150 = vsub.s32 0, %v149
    %v151 = vrot.slane %v146, %v150
    %v153 = vmul.f32 %v82, %v151
    %v154 = vmul.f32 %v83, %v151
    %v155 = vmul.f32 %v84, %v151
    %v156 = vmul.f32 %v85, %v151
    %v157 = vmul.f32 %v86, %v151
    %v158 = vmul.f32 %v87, %v151
    %v159 = vmul.f32 %v88, %v151
    %v160 = vmul.f32 %v89, %v151
    %v161 = vmul.f32 %v90, %v151
    %v162 = vmul.f32 %v91, %v151
    %v163 = vmul.f32 %v92, %v151
    %v164 = vmul.f32 %v93, %v151
    %v165 = vmul.f32 %v94, %v151
    %v166 = vmul.f32 %v95, %v151
    %v167 = vmul.f32 %v96, %v151
    %v168 = vmul.f32 %v97, %v151
    %v169 = vmul.f32 %v98, %v151
    %v170 = vmul.f32 %v99, %v151
    %v171 = vmul.f32 %v100, %v151
    %v172 = vmul.f32 %v101, %v151
    %v173 = vmul.f32 %v102, %v151
    %v174 = vmul.f32 %v103, %v151
    %v175 = vmul.f32 %v104, %v151
    %v176 = vmul.f32 %v105, %v151
    %v177 = vmul.f32 %v106, %v151
    %v178 = vmul.f32 %v107, %v151
    %v179 = vmul.f32 %v108, %v151
    %v180 = vmul.f32 %v109, %v151
    %v181 = vmul.f32 %v110, %v151
    %v182 = vmul.f32 %v111, %v151
    %v183 = vmul.f32 %v112, %v151
    %v184 = vmul.f32 %v113, %v151
    %v185 = vmul.f32 %v114, %v151
    %v186 = vmul.f32 %v115, %v151
    %v187 = vmul.f32 %v116, %v151
    %v188 = vmul.f32 %v117, %v151
    %v189 = vmul.f32 %v118, %v151
    %v190 = vmul.f32 %v119, %v151
    %v191 = vmul.f32 %v120, %v151
    %v192 = vmul.f32 %v121, %v151
    %v193 = vmul.f32 %v122, %v151
    %v194 = vmul.f32 %v123, %v151
    %v195 = vmul.f32 %v124, %v151
    %v196 = vmul.f32 %v125, %v151
    %v197 = vmul.f32 %v126, %v151
    %v198 = vmul.f32 %v127, %v151
    %v199 = vmul.f32 %v128, %v151
    %v200 = vmul.f32 %v129, %v151
    %v201 = vmul.f32 %v130, %v151
    %v202 = vmul.f32 %v131, %v151
    %v203 = vmul.f32 %v132, %v151
    %v204 = vmul.f32 %v133, %v151
    %v205 = vmul.f32 %v134, %v151
    %v206 = vmul.f32 %v135, %v151
    %v207 = vmul.f32 %v136, %v151
    %v208 = vmul.f32 %v137, %v151
    %v209 = vmul.f32 %v138, %v151
    %v210 = vmul.f32 %v139, %v151
    %v211 = vmul.f32 %v140, %v151
    %v212 = vmul.f32 %v141, %v151
    %v213 = vmul.f32 %v142, %v151
    %v214 = vmul.f32 %v143, %v151
    %v215 = vmul.f32 %v144, %v151
    %v216 = vmul.f32 %v145, %v151
    %v217 = vld [vmem:[%s3] sm:$0x1]
    %v219 = vlaneseq
    %v220 = vshrl.u32 %v219, 7
    %v221 = vsub.s32 0, %v220
    %v222 = vrot.slane %v217, %v221
    %v224 = vadd.f32 %v153, %v222
    %v225 = vadd.f32 %v154, %v222
    %v226 = vadd.f32 %v155, %v222
    %v227 = vadd.f32 %v156, %v222
    %v228 = vadd.f32 %v157, %v222
    %v229 = vadd.f32 %v158, %v222
    %v230 = vadd.f32 %v159, %v222
    %v231 = vadd.f32 %v160, %v222
    %v232 = vadd.f32 %v161, %v222
    %v233 = vadd.f32 %v162, %v222
    %v234 = vadd.f32 %v163, %v222
    %v235 = vadd.f32 %v164, %v222
    %v236 = vadd.f32 %v165, %v222
    %v237 = vadd.f32 %v166, %v222
    %v238 = vadd.f32 %v167, %v222
    %v239 = vadd.f32 %v168, %v222
    %v240 = vadd.f32 %v169, %v222
    %v241 = vadd.f32 %v170, %v222
    %v242 = vadd.f32 %v171, %v222
    %v243 = vadd.f32 %v172, %v222
    %v244 = vadd.f32 %v173, %v222
    %v245 = vadd.f32 %v174, %v222
    %v246 = vadd.f32 %v175, %v222
    %v247 = vadd.f32 %v176, %v222
    %v248 = vadd.f32 %v177, %v222
    %v249 = vadd.f32 %v178, %v222
    %v250 = vadd.f32 %v179, %v222
    %v251 = vadd.f32 %v180, %v222
    %v252 = vadd.f32 %v181, %v222
    %v253 = vadd.f32 %v182, %v222
    %v254 = vadd.f32 %v183, %v222
    %v255 = vadd.f32 %v184, %v222
    %v256 = vadd.f32 %v185, %v222
    %v257 = vadd.f32 %v186, %v222
    %v258 = vadd.f32 %v187, %v222
    %v259 = vadd.f32 %v188, %v222
    %v260 = vadd.f32 %v189, %v222
    %v261 = vadd.f32 %v190, %v222
    %v262 = vadd.f32 %v191, %v222
    %v263 = vadd.f32 %v192, %v222
    %v264 = vadd.f32 %v193, %v222
    %v265 = vadd.f32 %v194, %v222
    %v266 = vadd.f32 %v195, %v222
    %v267 = vadd.f32 %v196, %v222
    %v268 = vadd.f32 %v197, %v222
    %v269 = vadd.f32 %v198, %v222
    %v270 = vadd.f32 %v199, %v222
    %v271 = vadd.f32 %v200, %v222
    %v272 = vadd.f32 %v201, %v222
    %v273 = vadd.f32 %v202, %v222
    %v274 = vadd.f32 %v203, %v222
    %v275 = vadd.f32 %v204, %v222
    %v276 = vadd.f32 %v205, %v222
    %v277 = vadd.f32 %v206, %v222
    %v278 = vadd.f32 %v207, %v222
    %v279 = vadd.f32 %v208, %v222
    %v280 = vadd.f32 %v209, %v222
    %v281 = vadd.f32 %v210, %v222
    %v282 = vadd.f32 %v211, %v222
    %v283 = vadd.f32 %v212, %v222
    %v284 = vadd.f32 %v213, %v222
    %v285 = vadd.f32 %v214, %v222
    %v286 = vadd.f32 %v215, %v222
    %v287 = vadd.f32 %v216, %v222
    %v288 = vld [vmem:[%s1] sm:$0xf]
    %v289 = vld [vmem:[%s1 + $0x4] sm:$0xf]
    %v290 = vld [vmem:[%s1 + $0x8] sm:$0xf]
    %v291 = vld [vmem:[%s1 + $0xc] sm:$0xf]
    %v292 = vld [vmem:[%s1 + $0x10] sm:$0xf]
    %v293 = vld [vmem:[%s1 + $0x14] sm:$0xf]
    %v294 = vld [vmem:[%s1 + $0x18] sm:$0xf]
    %v295 = vld [vmem:[%s1 + $0x1c] sm:$0xf]
    %v296 = vld [vmem:[%s1 + $0x20] sm:$0xf]
    %v297 = vld [vmem:[%s1 + $0x24] sm:$0xf]
    %v298 = vld [vmem:[%s1 + $0x28] sm:$0xf]
    %v299 = vld [vmem:[%s1 + $0x2c] sm:$0xf]
    %v300 = vld [vmem:[%s1 + $0x30] sm:$0xf]
    %v301 = vld [vmem:[%s1 + $0x34] sm:$0xf]
    %v302 = vld [vmem:[%s1 + $0x38] sm:$0xf]
    %v303 = vld [vmem:[%s1 + $0x3c] sm:$0xf]
    %v304 = vld [vmem:[%s1 + $0x40] sm:$0xf]
    %v305 = vld [vmem:[%s1 + $0x44] sm:$0xf]
    %v306 = vld [vmem:[%s1 + $0x48] sm:$0xf]
    %v307 = vld [vmem:[%s1 + $0x4c] sm:$0xf]
    %v308 = vld [vmem:[%s1 + $0x50] sm:$0xf]
    %v309 = vld [vmem:[%s1 + $0x54] sm:$0xf]
    %v310 = vld [vmem:[%s1 + $0x58] sm:$0xf]
    %v311 = vld [vmem:[%s1 + $0x5c] sm:$0xf]
    %v312 = vld [vmem:[%s1 + $0x60] sm:$0xf]
    %v313 = vld [vmem:[%s1 + $0x64] sm:$0xf]
    %v314 = vld [vmem:[%s1 + $0x68] sm:$0xf]
    %v315 = vld [vmem:[%s1 + $0x6c] sm:$0xf]
    %v316 = vld [vmem:[%s1 + $0x70] sm:$0xf]
    %v317 = vld [vmem:[%s1 + $0x74] sm:$0xf]
    %v318 = vld [vmem:[%s1 + $0x78] sm:$0xf]
    %v319 = vld [vmem:[%s1 + $0x7c] sm:$0xf]
    %v320 = vld [vmem:[%s1 + $0x80] sm:$0xf]
    %v321 = vld [vmem:[%s1 + $0x84] sm:$0xf]
    %v322 = vld [vmem:[%s1 + $0x88] sm:$0xf]
    %v323 = vld [vmem:[%s1 + $0x8c] sm:$0xf]
    %v324 = vld [vmem:[%s1 + $0x90] sm:$0xf]
    %v325 = vld [vmem:[%s1 + $0x94] sm:$0xf]
    %v326 = vld [vmem:[%s1 + $0x98] sm:$0xf]
    %v327 = vld [vmem:[%s1 + $0x9c] sm:$0xf]
    %v328 = vld [vmem:[%s1 + $0xa0] sm:$0xf]
    %v329 = vld [vmem:[%s1 + $0xa4] sm:$0xf]
    %v330 = vld [vmem:[%s1 + $0xa8] sm:$0xf]
    %v331 = vld [vmem:[%s1 + $0xac] sm:$0xf]
    %v332 = vld [vmem:[%s1 + $0xb0] sm:$0xf]
    %v333 = vld [vmem:[%s1 + $0xb4] sm:$0xf]
    %v334 = vld [vmem:[%s1 + $0xb8] sm:$0xf]
    %v335 = vld [vmem:[%s1 + $0xbc] sm:$0xf]
    %v336 = vld [vmem:[%s1 + $0xc0] sm:$0xf]
    %v337 = vld [vmem:[%s1 + $0xc4] sm:$0xf]
    %v338 = vld [vmem:[%s1 + $0xc8] sm:$0xf]
    %v339 = vld [vmem:[%s1 + $0xcc] sm:$0xf]
    %v340 = vld [vmem:[%s1 + $0xd0] sm:$0xf]
    %v341 = vld [vmem:[%s1 + $0xd4] sm:$0xf]
    %v342 = vld [vmem:[%s1 + $0xd8] sm:$0xf]
    %v343 = vld [vmem:[%s1 + $0xdc] sm:$0xf]
    %v344 = vld [vmem:[%s1 + $0xe0] sm:$0xf]
    %v345 = vld [vmem:[%s1 + $0xe4] sm:$0xf]
    %v346 = vld [vmem:[%s1 + $0xe8] sm:$0xf]
    %v347 = vld [vmem:[%s1 + $0xec] sm:$0xf]
    %v348 = vld [vmem:[%s1 + $0xf0] sm:$0xf]
    %v349 = vld [vmem:[%s1 + $0xf4] sm:$0xf]
    %v350 = vld [vmem:[%s1 + $0xf8] sm:$0xf]
    %v351 = vld [vmem:[%s1 + $0xfc] sm:$0xf]
    %v352 = vunpack.c.l.bf16 %v288
    %v353 = vunpack.c.l.bf16 %v289
    %v354 = vunpack.c.l.bf16 %v290
    %v355 = vunpack.c.l.bf16 %v291
    %v356 = vunpack.c.l.bf16 %v292
    %v357 = vunpack.c.l.bf16 %v293
    %v358 = vunpack.c.l.bf16 %v294
    %v359 = vunpack.c.l.bf16 %v295
    %v360 = vunpack.c.l.bf16 %v296
    %v361 = vunpack.c.l.bf16 %v297
    %v362 = vunpack.c.l.bf16 %v298
    %v363 = vunpack.c.l.bf16 %v299
    %v364 = vunpack.c.l.bf16 %v300
    %v365 = vunpack.c.l.bf16 %v301
    %v366 = vunpack.c.l.bf16 %v302
    %v367 = vunpack.c.l.bf16 %v303
    %v368 = vunpack.c.l.bf16 %v304
    %v369 = vunpack.c.l.bf16 %v305
    %v370 = vunpack.c.l.bf16 %v306
    %v371 = vunpack.c.l.bf16 %v307
    %v372 = vunpack.c.l.bf16 %v308
    %v373 = vunpack.c.l.bf16 %v309
    %v374 = vunpack.c.l.bf16 %v310
    %v375 = vunpack.c.l.bf16 %v311
    %v376 = vunpack.c.l.bf16 %v312
    %v377 = vunpack.c.l.bf16 %v313
    %v378 = vunpack.c.l.bf16 %v314
    %v379 = vunpack.c.l.bf16 %v315
    %v380 = vunpack.c.l.bf16 %v316
    %v381 = vunpack.c.l.bf16 %v317
    %v382 = vunpack.c.l.bf16 %v318
    %v383 = vunpack.c.l.bf16 %v319
    %v384 = vunpack.c.l.bf16 %v320
    %v385 = vunpack.c.l.bf16 %v321
    %v386 = vunpack.c.l.bf16 %v322
    %v387 = vunpack.c.l.bf16 %v323
    %v388 = vunpack.c.l.bf16 %v324
    %v389 = vunpack.c.l.bf16 %v325
    %v390 = vunpack.c.l.bf16 %v326
    %v391 = vunpack.c.l.bf16 %v327
    %v392 = vunpack.c.l.bf16 %v328
    %v393 = vunpack.c.l.bf16 %v329
    %v394 = vunpack.c.l.bf16 %v330
    %v395 = vunpack.c.l.bf16 %v331
    %v396 = vunpack.c.l.bf16 %v332
    %v397 = vunpack.c.l.bf16 %v333
    %v398 = vunpack.c.l.bf16 %v334
    %v399 = vunpack.c.l.bf16 %v335
    %v400 = vunpack.c.l.bf16 %v336
    %v401 = vunpack.c.l.bf16 %v337
    %v402 = vunpack.c.l.bf16 %v338
    %v403 = vunpack.c.l.bf16 %v339
    %v404 = vunpack.c.l.bf16 %v340
    %v405 = vunpack.c.l.bf16 %v341
    %v406 = vunpack.c.l.bf16 %v342
    %v407 = vunpack.c.l.bf16 %v343
    %v408 = vunpack.c.l.bf16 %v344
    %v409 = vunpack.c.l.bf16 %v345
    %v410 = vunpack.c.l.bf16 %v346
    %v411 = vunpack.c.l.bf16 %v347
    %v412 = vunpack.c.l.bf16 %v348
    %v413 = vunpack.c.l.bf16 %v349
    %v414 = vunpack.c.l.bf16 %v350
    %v415 = vunpack.c.l.bf16 %v351
    %v416 = vadd.f32 %v224, %v352
    %v417 = vadd.f32 %v225, %v353
    %v418 = vadd.f32 %v226, %v354
    %v419 = vadd.f32 %v227, %v355
    %v420 = vadd.f32 %v228, %v356
    %v421 = vadd.f32 %v229, %v357
    %v422 = vadd.f32 %v230, %v358
    %v423 = vadd.f32 %v231, %v359
    %v424 = vadd.f32 %v232, %v360
    %v425 = vadd.f32 %v233, %v361
    %v426 = vadd.f32 %v234, %v362
    %v427 = vadd.f32 %v235, %v363
    %v428 = vadd.f32 %v236, %v364
    %v429 = vadd.f32 %v237, %v365
    %v430 = vadd.f32 %v238, %v366
    %v431 = vadd.f32 %v239, %v367
    %v432 = vadd.f32 %v240, %v368
    %v433 = vadd.f32 %v241, %v369
    %v434 = vadd.f32 %v242, %v370
    %v435 = vadd.f32 %v243, %v371
    %v436 = vadd.f32 %v244, %v372
    %v437 = vadd.f32 %v245, %v373
    %v438 = vadd.f32 %v246, %v374
    %v439 = vadd.f32 %v247, %v375
    %v440 = vadd.f32 %v248, %v376
    %v441 = vadd.f32 %v249, %v377
    %v442 = vadd.f32 %v250, %v378
    %v443 = vadd.f32 %v251, %v379
    %v444 = vadd.f32 %v252, %v380
    %v445 = vadd.f32 %v253, %v381
    %v446 = vadd.f32 %v254, %v382
    %v447 = vadd.f32 %v255, %v383
    %v448 = vadd.f32 %v256, %v384
    %v449 = vadd.f32 %v257, %v385
    %v450 = vadd.f32 %v258, %v386
    %v451 = vadd.f32 %v259, %v387
    %v452 = vadd.f32 %v260, %v388
    %v453 = vadd.f32 %v261, %v389
    %v454 = vadd.f32 %v262, %v390
    %v455 = vadd.f32 %v263, %v391
    %v456 = vadd.f32 %v264, %v392
    %v457 = vadd.f32 %v265, %v393
    %v458 = vadd.f32 %v266, %v394
    %v459 = vadd.f32 %v267, %v395
    %v460 = vadd.f32 %v268, %v396
    %v461 = vadd.f32 %v269, %v397
    %v462 = vadd.f32 %v270, %v398
    %v463 = vadd.f32 %v271, %v399
    %v464 = vadd.f32 %v272, %v400
    %v465 = vadd.f32 %v273, %v401
    %v466 = vadd.f32 %v274, %v402
    %v467 = vadd.f32 %v275, %v403
    %v468 = vadd.f32 %v276, %v404
    %v469 = vadd.f32 %v277, %v405
    %v470 = vadd.f32 %v278, %v406
    %v471 = vadd.f32 %v279, %v407
    %v472 = vadd.f32 %v280, %v408
    %v473 = vadd.f32 %v281, %v409
    %v474 = vadd.f32 %v282, %v410
    %v475 = vadd.f32 %v283, %v411
    %v476 = vadd.f32 %v284, %v412
    %v477 = vadd.f32 %v285, %v413
    %v478 = vadd.f32 %v286, %v414
    %v479 = vadd.f32 %v287, %v415
    %v480 = vmax.f32 %v416, 0.0
    %v481 = vmax.f32 %v417, 0.0
    %v482 = vmax.f32 %v418, 0.0
    %v483 = vmax.f32 %v419, 0.0
    %v484 = vmax.f32 %v420, 0.0
    %v485 = vmax.f32 %v421, 0.0
    %v486 = vmax.f32 %v422, 0.0
    %v487 = vmax.f32 %v423, 0.0
    %v488 = vmax.f32 %v424, 0.0
    %v489 = vmax.f32 %v425, 0.0
    %v490 = vmax.f32 %v426, 0.0
    %v491 = vmax.f32 %v427, 0.0
    %v492 = vmax.f32 %v428, 0.0
    %v493 = vmax.f32 %v429, 0.0
    %v494 = vmax.f32 %v430, 0.0
    %v495 = vmax.f32 %v431, 0.0
    %v496 = vmax.f32 %v432, 0.0
    %v497 = vmax.f32 %v433, 0.0
    %v498 = vmax.f32 %v434, 0.0
    %v499 = vmax.f32 %v435, 0.0
    %v500 = vmax.f32 %v436, 0.0
    %v501 = vmax.f32 %v437, 0.0
    %v502 = vmax.f32 %v438, 0.0
    %v503 = vmax.f32 %v439, 0.0
    %v504 = vmax.f32 %v440, 0.0
    %v505 = vmax.f32 %v441, 0.0
    %v506 = vmax.f32 %v442, 0.0
    %v507 = vmax.f32 %v443, 0.0
    %v508 = vmax.f32 %v444, 0.0
    %v509 = vmax.f32 %v445, 0.0
    %v510 = vmax.f32 %v446, 0.0
    %v511 = vmax.f32 %v447, 0.0
    %v512 = vmax.f32 %v448, 0.0
    %v513 = vmax.f32 %v449, 0.0
    %v514 = vmax.f32 %v450, 0.0
    %v515 = vmax.f32 %v451, 0.0
    %v516 = vmax.f32 %v452, 0.0
    %v517 = vmax.f32 %v453, 0.0
    %v518 = vmax.f32 %v454, 0.0
    %v519 = vmax.f32 %v455, 0.0
    %v520 = vmax.f32 %v456, 0.0
    %v521 = vmax.f32 %v457, 0.0
    %v522 = vmax.f32 %v458, 0.0
    %v523 = vmax.f32 %v459, 0.0
    %v524 = vmax.f32 %v460, 0.0
    %v525 = vmax.f32 %v461, 0.0
    %v526 = vmax.f32 %v462, 0.0
    %v527 = vmax.f32 %v463, 0.0
    %v528 = vmax.f32 %v464, 0.0
    %v529 = vmax.f32 %v465, 0.0
    %v530 = vmax.f32 %v466, 0.0
    %v531 = vmax.f32 %v467, 0.0
    %v532 = vmax.f32 %v468, 0.0
    %v533 = vmax.f32 %v469, 0.0
    %v534 = vmax.f32 %v470, 0.0
    %v535 = vmax.f32 %v471, 0.0
    %v536 = vmax.f32 %v472, 0.0
    %v537 = vmax.f32 %v473, 0.0
    %v538 = vmax.f32 %v474, 0.0
    %v539 = vmax.f32 %v475, 0.0
    %v540 = vmax.f32 %v476, 0.0
    %v541 = vmax.f32 %v477, 0.0
    %v542 = vmax.f32 %v478, 0.0
    %v543 = vmax.f32 %v479, 0.0
    %544 = vst [vmem:[#allocation2] sm:$0xff] %v480
    %545 = vst [vmem:[#allocation2 + $0x8] sm:$0xff] %v481
    %546 = vst [vmem:[#allocation2 + $0x10] sm:$0xff] %v482
    %547 = vst [vmem:[#allocation2 + $0x18] sm:$0xff] %v483
    %548 = vst [vmem:[#allocation2 + $0x20] sm:$0xff] %v484
    %549 = vst [vmem:[#allocation2 + $0x28] sm:$0xff] %v485
    %550 = vst [vmem:[#allocation2 + $0x30] sm:$0xff] %v486
    %551 = vst [vmem:[#allocation2 + $0x38] sm:$0xff] %v487
    %552 = vst [vmem:[#allocation2 + $0x40] sm:$0xff] %v488
    %553 = vst [vmem:[#allocation2 + $0x48] sm:$0xff] %v489
    %554 = vst [vmem:[#allocation2 + $0x50] sm:$0xff] %v490
    %555 = vst [vmem:[#allocation2 + $0x58] sm:$0xff] %v491
    %556 = vst [vmem:[#allocation2 + $0x60] sm:$0xff] %v492
    %557 = vst [vmem:[#allocation2 + $0x68] sm:$0xff] %v493
    %558 = vst [vmem:[#allocation2 + $0x70] sm:$0xff] %v494
    %559 = vst [vmem:[#allocation2 + $0x78] sm:$0xff] %v495
    %560 = vst [vmem:[#allocation2 + $0x80] sm:$0xff] %v496
    %561 = vst [vmem:[#allocation2 + $0x88] sm:$0xff] %v497
    %562 = vst [vmem:[#allocation2 + $0x90] sm:$0xff] %v498
    %563 = vst [vmem:[#allocation2 + $0x98] sm:$0xff] %v499
    %564 = vst [vmem:[#allocation2 + $0xa0] sm:$0xff] %v500
    %565 = vst [vmem:[#allocation2 + $0xa8] sm:$0xff] %v501
    %566 = vst [vmem:[#allocation2 + $0xb0] sm:$0xff] %v502
    %567 = vst [vmem:[#allocation2 + $0xb8] sm:$0xff] %v503
    %568 = vst [vmem:[#allocation2 + $0xc0] sm:$0xff] %v504
    %569 = vst [vmem:[#allocation2 + $0xc8] sm:$0xff] %v505
    %570 = vst [vmem:[#allocation2 + $0xd0] sm:$0xff] %v506
    %571 = vst [vmem:[#allocation2 + $0xd8] sm:$0xff] %v507
    %572 = vst [vmem:[#allocation2 + $0xe0] sm:$0xff] %v508
    %573 = vst [vmem:[#allocation2 + $0xe8] sm:$0xff] %v509
    %574 = vst [vmem:[#allocation2 + $0xf0] sm:$0xff] %v510
    %575 = vst [vmem:[#allocation2 + $0xf8] sm:$0xff] %v511
    %576 = vst [vmem:[#allocation2 + $0x100] sm:$0xff] %v512
    %577 = vst [vmem:[#allocation2 + $0x108] sm:$0xff] %v513
    %578 = vst [vmem:[#allocation2 + $0x110] sm:$0xff] %v514
    %579 = vst [vmem:[#allocation2 + $0x118] sm:$0xff] %v515
    %580 = vst [vmem:[#allocation2 + $0x120] sm:$0xff] %v516
    %581 = vst [vmem:[#allocation2 + $0x128] sm:$0xff] %v517
    %582 = vst [vmem:[#allocation2 + $0x130] sm:$0xff] %v518
    %583 = vst [vmem:[#allocation2 + $0x138] sm:$0xff] %v519
    %584 = vst [vmem:[#allocation2 + $0x140] sm:$0xff] %v520
    %585 = vst [vmem:[#allocation2 + $0x148] sm:$0xff] %v521
    %586 = vst [vmem:[#allocation2 + $0x150] sm:$0xff] %v522
    %587 = vst [vmem:[#allocation2 + $0x158] sm:$0xff] %v523
    %588 = vst [vmem:[#allocation2 + $0x160] sm:$0xff] %v524
    %589 = vst [vmem:[#allocation2 + $0x168] sm:$0xff] %v525
    %590 = vst [vmem:[#allocation2 + $0x170] sm:$0xff] %v526
    %591 = vst [vmem:[#allocation2 + $0x178] sm:$0xff] %v527
    %592 = vst [vmem:[#allocation2 + $0x180] sm:$0xff] %v528
    %593 = vst [vmem:[#allocation2 + $0x188] sm:$0xff] %v529
    %594 = vst [vmem:[#allocation2 + $0x190] sm:$0xff] %v530
    %595 = vst [vmem:[#allocation2 + $0x198] sm:$0xff] %v531
    %596 = vst [vmem:[#allocation2 + $0x1a0] sm:$0xff] %v532
    %597 = vst [vmem:[#allocation2 + $0x1a8] sm:$0xff] %v533
    %598 = vst [vmem:[#allocation2 + $0x1b0] sm:$0xff] %v534
    %599 = vst [vmem:[#allocation2 + $0x1b8] sm:$0xff] %v535
    %600 = vst [vmem:[#allocation2 + $0x1c0] sm:$0xff] %v536
    %601 = vst [vmem:[#allocation2 + $0x1c8] sm:$0xff] %v537
    %602 = vst [vmem:[#allocation2 + $0x1d0] sm:$0xff] %v538
    %603 = vst [vmem:[#allocation2 + $0x1d8] sm:$0xff] %v539
    %604 = vst [vmem:[#allocation2 + $0x1e0] sm:$0xff] %v540
    %605 = vst [vmem:[#allocation2 + $0x1e8] sm:$0xff] %v541
    %606 = vst [vmem:[#allocation2 + $0x1f0] sm:$0xff] %v542
    %607 = vst [vmem:[#allocation2 + $0x1f8] sm:$0xff] %v543
    // Predicated region
    $region18: #{bottleneck_forward.9} parent=1 // pred_check
      _
    $region19: #{bottleneck_forward.9} parent=1 // pred_check_branch
      %609 = sbr.rel (0) target = $region21
    $region20: #{bottleneck_forward.9} parent=1 // pred_region
      %s611 = ssub.s32 8192, 8192
      %612 = vsyncadd [#allocation3], %s611
      %s613 = sshll.u32 [#allocation2], 4
      %s614 = int_to_ptr.vmem [resolvable:$true] %s613
      %619 = dma.vmem_to_hbm [thread:$0]  %s614, 8192, %s4, [#allocation3], 128, 128, 8
    $region21: #{bottleneck_forward.9} parent=1 // pred_fallthru
      _
    // Predicated region
    $region22: #{bottleneck_forward.9} parent=1 // pred_check
      _
    $region23: #{bottleneck_forward.9} parent=1 // pred_check_branch
      %621 = sbr.rel (0) target = $region25
    $region24: #{bottleneck_forward.9} parent=1 // pred_region
      %622 = dma.done [#allocation3], 8192
    $region25: #{bottleneck_forward.9} parent=1 // pred_fallthru
      _
    %623 = vsyncpa [#allocation3], 1

</llo_original>
